<compile_context>
chip_gen: v7x
topology: tpu7x:2x2x1
jax: 0.10.0
libtpu: 0.0.40
codegen_flags: <defaults>
</compile_context>

<pallas_src>
import jax
import jax.numpy as jnp
from jax.experimental import pallas as pl
from jax.experimental.pallas import tpu as pltpu

# ----------------------------- configuration --------------------------------
DIMS = [16, 32, 32]          # config_model.dims
FACTORS = [2, 2]             # config_model.factors
BLOCK_NUMS = [1, 1]          # config_cond.block_nums  (1 unit per GBlock assumed below)
TIME_EMB_DIM = 32            # config_cond.time_emb_dim
CLASS_EMB_DIM = 16           # config_cond.class_emb_dim
EVENT_DIM = 8                # config_cond.event_dims[event_type]
NUM_CLASSES = 7
COND_DIM = TIME_EMB_DIM + CLASS_EMB_DIM + EVENT_DIM
RFF_N = 16                   # random Fourier frequencies -> 2*RFF_N features
BATCH = 2
SEQ_LEN = 64

# static per-unit plan: down0, down1, up0, up1 (up blocks see concatenated channels)
UNIT_CIN = (DIMS[0], DIMS[1], 2 * DIMS[2], 2 * DIMS[1])   # (16, 32, 64, 64)
UNIT_COUT = (DIMS[1], DIMS[2], DIMS[1], DIMS[0])          # (32, 32, 32, 16)
HAS_SKIP = tuple(ci != co for ci, co in zip(UNIT_CIN, UNIT_COUT))
FILM_TOTAL = sum(2 * c for c in UNIT_COUT)                # 224

PAD_MAX = 2                  # stem conv K=5 -> pad 2
C_MAX = 2 * max(DIMS)        # widest conv input (skip concat) = 64
KC_MAX = 3 * C_MAX           # widest im2col matrix (K=3, Cin=64) = 192


# ----------------------------- in-kernel helpers ------------------------------
def _avgpool_mat(n_in, factor):
    """(n_in//factor, n_in) matrix averaging consecutive groups of `factor` rows."""
    n_out = n_in // factor
    r = jax.lax.broadcasted_iota(jnp.int32, (n_out, n_in), 0)
    c = jax.lax.broadcasted_iota(jnp.int32, (n_out, n_in), 1)
    d = c - factor * r
    mask = (d >= 0) & (d < factor)
    return mask.astype(jnp.float32) * (1.0 / factor)


def _repeat_mat(n_in, factor):
    """(n_in*factor, n_in) nearest-neighbour repeat matrix."""
    n_out = n_in * factor
    r = jax.lax.broadcasted_iota(jnp.int32, (n_out, n_in), 0)
    c = jax.lax.broadcasted_iota(jnp.int32, (n_out, n_in), 1)
    d = r - factor * c
    mask = (d >= 0) & (d < factor)
    return mask.astype(jnp.float32)


# ----------------------------- the fused kernel -------------------------------
def _unet_kernel(audio_ref, rff_ref, cls_ref, ev_ref, *rest):
    """One grid step = one batch element; all activations stay in vregs / VMEM scratch."""
    out_ref, pad_ref, im_ref = rest[-3], rest[-2], rest[-1]
    wrefs = rest[:-3]

    it = iter(wrefs)
    conv1_w, conv1_b = next(it), next(it)
    emb_w1, emb_b1, emb_w2, emb_b2 = next(it), next(it), next(it), next(it)
    cls_w1, cls_b1, cls_w2, cls_b2 = next(it), next(it), next(it), next(it)
    fw_sig, fw_cls, fw_evt, film_b = next(it), next(it), next(it), next(it)
    units = []
    for hs in HAS_SKIP:
        u = {'w1': next(it), 'b1': next(it), 'w2': next(it), 'b2': next(it)}
        if hs:
            u['skw'], u['skb'] = next(it), next(it)
        else:
            u['skw'], u['skb'] = None, None
        units.append(u)
    last_w, last_b = next(it), next(it)

    f32 = jnp.float32

    def silu(v):
        return v * jax.nn.sigmoid(v)

    def conv_same(pieces, L, K, w_ref, b_ref):
        """'same' 1-D conv. pieces: [(value (L, c), c), ...] channel-concatenated input.
        Zero halo is written into pad_ref, then im2col -> a single MXU matmul."""
        cin = sum(c for _, c in pieces)
        pad = (K - 1) // 2
        cout = w_ref.shape[1]
        # Zero only the halo rows this conv actually reads (cheaper than full clears);
        # the data rows [pad:pad+L, 0:cin] are fully overwritten right below.
        zero_halo = jnp.zeros((pad, cin), f32)
        pad_ref[0:pad, 0:cin] = zero_halo
        pad_ref[pad + L:pad + L + pad, 0:cin] = zero_halo
        off = 0
        for p, c in pieces:
            pad_ref[pad:pad + L, off:off + c] = p.astype(f32)
            off += c
        if cin == 1:                                    # stem conv: outer product on VPU
            acc = jnp.zeros((L, cout), f32) + b_ref[...]
            for k in range(K):
                acc = acc + pad_ref[k:k + L, 0:1] * w_ref[k:k + 1, :]
            return acc
        # im2col: one matmul with contraction K*cin instead of K shifted dots
        for k in range(K):
            im_ref[0:L, k * cin:(k + 1) * cin] = pad_ref[k:k + L, 0:cin]
        cols = im_ref[0:L, 0:K * cin]
        return jnp.dot(cols, w_ref[...], preferred_element_type=f32) + b_ref[...]

    def gblock_unit(pieces, L, u, film_all, film_off, cout):
        """FiLM residual unit: (1x1 skip | identity), conv3, FiLM+SiLU, conv3, add."""
        if u['skw'] is None:
            res = pieces[0][0]
        else:
            res = jnp.zeros((L, cout), f32) + u['skb'][...]
            off = 0
            for p, c in pieces:
                res = res + jnp.dot(p, u['skw'][off:off + c, :],
                                    preferred_element_type=f32)
                off += c
        h = conv_same(pieces, L, 3, u['w1'], u['b1'])
        fi = film_all[:, film_off:film_off + 2 * cout]
        h = h * (1.0 + fi[:, 0:cout]) + fi[:, cout:2 * cout]     # FiLM
        h = silu(h)
        h = conv_same([(h, cout)], L, 3, u['w2'], u['b2'])
        return h + res

    # ---- conditioning: sigma MLP + class MLP + all FiLM projections in one shot ----
    sig = silu(jnp.dot(rff_ref[...], emb_w1[...], preferred_element_type=f32) + emb_b1[...])
    sig = jnp.dot(sig, emb_w2[...], preferred_element_type=f32) + emb_b2[...]
    cv = silu(jnp.dot(cls_ref[...], cls_w1[...], preferred_element_type=f32) + cls_b1[...])
    cv = jnp.dot(cv, cls_w2[...], preferred_element_type=f32) + cls_b2[...]
    film_all = (jnp.dot(sig, fw_sig[...], preferred_element_type=f32)
                + jnp.dot(cv, fw_cls[...], preferred_element_type=f32)
                + jnp.dot(ev_ref[...], fw_evt[...], preferred_element_type=f32)
                + film_b[...])                                   # (1, FILM_TOTAL)

    # ---- stem conv (K=5, Cin=1) ----
    x = conv_same([(audio_ref[...], 1)], SEQ_LEN, 5, conv1_w, conv1_b)     # (L, 16)

    # ---- encoder: avg-pool (matmul) then FiLM residual unit ----
    L = SEQ_LEN
    ch = DIMS[0]
    film_off = 0
    skips = []
    for si in range(len(FACTORS)):
        f = FACTORS[si]
        cout = UNIT_COUT[si]
        x = jnp.dot(_avgpool_mat(L, f), x, preferred_element_type=f32)
        L = L // f
        x = gblock_unit([(x, ch)], L, units[si], film_all, film_off, cout)
        film_off += 2 * cout
        ch = cout
        skips.append((x, ch))

    # ---- decoder: skip concat (as pieces) -> nearest-repeat upsample -> unit ----
    rev_factors = FACTORS[::-1]
    for di in range(len(FACTORS)):
        f = rev_factors[di]
        cout = UNIT_COUT[len(FACTORS) + di]
        skip_x, skip_c = skips[len(skips) - 1 - di]
        U = _repeat_mat(L, f)
        pieces = [(jnp.dot(U, x, preferred_element_type=f32), ch),
                  (jnp.dot(U, skip_x, preferred_element_type=f32), skip_c)]
        L = L * f
        x = gblock_unit(pieces, L, units[len(FACTORS) + di], film_all, film_off, cout)
        film_off += 2 * cout
        ch = cout

    # ---- head conv (16 -> 1, K=3) ----
    y = conv_same([(x, ch)], L, 3, last_w, last_b)                 # (L, 1)
    out_ref[...] = y.astype(out_ref.dtype)


# ----------------------------- host-side glue ---------------------------------
def rff_features(sigma, freqs):
    # sigma: (B, 1), freqs: (RFF_N,) -> (B, 2*RFF_N)
    arg = 2.0 * jnp.pi * sigma * freqs[None, :]
    return jnp.concatenate([jnp.sin(arg), jnp.cos(arg)], axis=-1)


def _all_units(params):
    return [params['down'][0][0], params['down'][1][0],
            params['up'][0][0], params['up'][1][0]]


def _build_weight_list(params):
    """Flatten / reshape all weights into the exact order the kernel unpacks them."""
    def b2(v):
        return v.reshape(1, -1)

    units = _all_units(params)
    film_w = jnp.concatenate([u['film_w'] for u in units], axis=1)    # (COND_DIM, 224)
    film_b = jnp.concatenate([u['film_b'] for u in units], axis=0)    # (224,)

    ws = [
        params['conv1_w'].reshape(5 * 1, DIMS[0]), b2(params['conv1_b']),
        params['emb_w1'], b2(params['emb_b1']),
        params['emb_w2'], b2(params['emb_b2']),
        params['cls_w1'], b2(params['cls_b1']),
        params['cls_w2'], b2(params['cls_b2']),
        film_w[0:TIME_EMB_DIM, :],
        film_w[TIME_EMB_DIM:TIME_EMB_DIM + CLASS_EMB_DIM, :],
        film_w[TIME_EMB_DIM + CLASS_EMB_DIM:, :],
        b2(film_b),
    ]
    for u, hs in zip(units, HAS_SKIP):
        k1, ci, co = u['w1'].shape
        ws += [u['w1'].reshape(k1 * ci, co), b2(u['b1']),
               u['w2'].reshape(3 * co, co), b2(u['b2'])]
        if hs:
            ws += [u['skip_w'].reshape(ci, co), b2(u['skip_b'])]
    ws += [params['last_w'].reshape(3 * DIMS[0], 1), b2(params['last_b'])]
    return ws


def unet_forward(params, audio, sigma, classes, events):
    """audio: (B, L), sigma: (B, 1), classes: (B,) int32, events: (B, EVENT_DIM)."""
    B, L0 = audio.shape
    assert L0 == SEQ_LEN, (L0, SEQ_LEN)

    rff = rff_features(sigma.astype(jnp.float32), params['rff_freqs'])   # (B, 32)
    classes_emb = params['classes_emb'][classes]                         # (B, CLASS_EMB_DIM)
    ws = _build_weight_list(params)

    audio3 = audio[:, :, None].astype(jnp.float32)                       # (B, L, 1)
    rff3 = rff[:, None, :].astype(jnp.float32)
    cls3 = classes_emb[:, None, :].astype(jnp.float32)
    ev3 = events[:, None, :].astype(jnp.float32)

    in_specs = [
        pl.BlockSpec((None, SEQ_LEN, 1), lambda b: (b, 0, 0)),        # audio (per batch)
        pl.BlockSpec((None, 1, 2 * RFF_N), lambda b: (b, 0, 0)),      # rff   (per batch)
        pl.BlockSpec((None, 1, CLASS_EMB_DIM), lambda b: (b, 0, 0)),  # class emb
        pl.BlockSpec((None, 1, EVENT_DIM), lambda b: (b, 0, 0)),      # events
    ] + [pl.BlockSpec(w.shape, lambda b: (0, 0)) for w in ws]         # weights, full blocks
    # (weights keep block index (0,0) across the grid -> DMA'd into VMEM once, reused)

    out = pl.pallas_call(
        _unet_kernel,
        out_shape=jax.ShapeDtypeStruct((B, SEQ_LEN, 1), jnp.float32),
        grid=(B,),
        in_specs=in_specs,
        out_specs=pl.BlockSpec((None, SEQ_LEN, 1), lambda b: (b, 0, 0)),
        scratch_shapes=[
            pltpu.VMEM((SEQ_LEN + 2 * PAD_MAX, C_MAX), jnp.float32),  # zero-halo conv input
            pltpu.VMEM((SEQ_LEN, KC_MAX), jnp.float32),               # im2col matrix
        ],
        compiler_params=pltpu.CompilerParams(
            dimension_semantics=("parallel",)),                       # v7x: 1 batch per TC
    )(audio3, rff3, cls3, ev3, *ws)
    return out[:, :, 0]


# ----------------------------- parameter init --------------------------------
def init_params(key):
    keys = iter(jax.random.split(key, 128))

    def nrm(shape, scale=0.1):
        return scale * jax.random.normal(next(keys), shape, dtype=jnp.float32)

    def zeros(n):
        return jnp.zeros((n,), jnp.float32)

    def init_gblock(cin, cout, block_num):
        units = []
        ch = cin
        for _ in range(block_num):
            units.append({
                'w1': nrm((3, ch, cout)), 'b1': zeros(cout),
                'film_w': nrm((COND_DIM, 2 * cout)), 'film_b': zeros(2 * cout),
                'w2': nrm((3, cout, cout)), 'b2': zeros(cout),
                'skip_w': nrm((1, ch, cout)) if ch != cout else None,
                'skip_b': zeros(cout) if ch != cout else None,
            })
            ch = cout
        return units

    params = {
        'conv1_w': nrm((5, 1, DIMS[0])), 'conv1_b': zeros(DIMS[0]),
        'rff_freqs': jax.random.normal(next(keys), (RFF_N,), dtype=jnp.float32),
        'emb_w1': nrm((2 * RFF_N, TIME_EMB_DIM)), 'emb_b1': zeros(TIME_EMB_DIM),
        'emb_w2': nrm((TIME_EMB_DIM, TIME_EMB_DIM)), 'emb_b2': zeros(TIME_EMB_DIM),
        'classes_emb': nrm((NUM_CLASSES, CLASS_EMB_DIM), scale=1.0),
        'null_classes_emb': jax.random.normal(next(keys), (CLASS_EMB_DIM,), dtype=jnp.float32),
        'null_event_emb': jax.random.normal(next(keys), (EVENT_DIM,), dtype=jnp.float32),
        'cls_w1': nrm((CLASS_EMB_DIM, 4 * CLASS_EMB_DIM)), 'cls_b1': zeros(4 * CLASS_EMB_DIM),
        'cls_w2': nrm((4 * CLASS_EMB_DIM, CLASS_EMB_DIM)), 'cls_b2': zeros(CLASS_EMB_DIM),
        # downsample GBlocks: (16->32, f=2), (32->32, f=2)
        'down': [init_gblock(DIMS[0], DIMS[1], BLOCK_NUMS[0]),
                 init_gblock(DIMS[1], DIMS[2], BLOCK_NUMS[1])],
        # upsample GBlocks receive 2*in_dim channels because of the skip concat
        'up': [init_gblock(2 * DIMS[2], DIMS[1], BLOCK_NUMS[1]),
               init_gblock(2 * DIMS[1], DIMS[0], BLOCK_NUMS[0])],
        'last_w': nrm((3, DIMS[0], 1)), 'last_b': zeros(1),
    }
    return params


# ----------------------------- main -------------------------------------------
if __name__ == "__main__":
    key = jax.random.PRNGKey(0)
    kp, ka, ks, kc, ke = jax.random.split(key, 5)

    params = init_params(kp)

    audio = jax.random.normal(ka, (BATCH, SEQ_LEN), dtype=jnp.float32)
    sigma = jax.random.uniform(ks, (BATCH, 1), dtype=jnp.float32, minval=0.1, maxval=1.0)
    classes = jax.random.randint(kc, (BATCH,), 0, NUM_CLASSES)
    events = jax.random.normal(ke, (BATCH, EVENT_DIM), dtype=jnp.float32)

    fwd = jax.jit(unet_forward)
    out = fwd(params, audio, sigma, classes, events)
    out = jax.block_until_ready(out)

    assert out.shape == (BATCH, SEQ_LEN), out.shape
    assert jnp.all(jnp.isfinite(out))
    print("KERNEL_OK")
</pallas_src>

<mosaic_0001>
module attributes {stable_mosaic.version = 11 : i64} {
  func.func @_unet_kernel(%arg0: i32, %arg1: memref<1x64x1xf32, #tpu.memory_space<vmem>>, %arg2: memref<1x1x32xf32, #tpu.memory_space<vmem>>, %arg3: memref<1x1x16xf32, #tpu.memory_space<vmem>>, %arg4: memref<1x1x8xf32, #tpu.memory_space<vmem>>, %arg5: memref<5x16xf32, #tpu.memory_space<vmem>>, %arg6: memref<1x16xf32, #tpu.memory_space<vmem>>, %arg7: memref<32x32xf32, #tpu.memory_space<vmem>>, %arg8: memref<1x32xf32, #tpu.memory_space<vmem>>, %arg9: memref<32x32xf32, #tpu.memory_space<vmem>>, %arg10: memref<1x32xf32, #tpu.memory_space<vmem>>, %arg11: memref<16x64xf32, #tpu.memory_space<vmem>>, %arg12: memref<1x64xf32, #tpu.memory_space<vmem>>, %arg13: memref<64x16xf32, #tpu.memory_space<vmem>>, %arg14: memref<1x16xf32, #tpu.memory_space<vmem>>, %arg15: memref<32x224xf32, #tpu.memory_space<vmem>>, %arg16: memref<16x224xf32, #tpu.memory_space<vmem>>, %arg17: memref<8x224xf32, #tpu.memory_space<vmem>>, %arg18: memref<1x224xf32, #tpu.memory_space<vmem>>, %arg19: memref<48x32xf32, #tpu.memory_space<vmem>>, %arg20: memref<1x32xf32, #tpu.memory_space<vmem>>, %arg21: memref<96x32xf32, #tpu.memory_space<vmem>>, %arg22: memref<1x32xf32, #tpu.memory_space<vmem>>, %arg23: memref<16x32xf32, #tpu.memory_space<vmem>>, %arg24: memref<1x32xf32, #tpu.memory_space<vmem>>, %arg25: memref<96x32xf32, #tpu.memory_space<vmem>>, %arg26: memref<1x32xf32, #tpu.memory_space<vmem>>, %arg27: memref<96x32xf32, #tpu.memory_space<vmem>>, %arg28: memref<1x32xf32, #tpu.memory_space<vmem>>, %arg29: memref<192x32xf32, #tpu.memory_space<vmem>>, %arg30: memref<1x32xf32, #tpu.memory_space<vmem>>, %arg31: memref<96x32xf32, #tpu.memory_space<vmem>>, %arg32: memref<1x32xf32, #tpu.memory_space<vmem>>, %arg33: memref<64x32xf32, #tpu.memory_space<vmem>>, %arg34: memref<1x32xf32, #tpu.memory_space<vmem>>, %arg35: memref<192x16xf32, #tpu.memory_space<vmem>>, %arg36: memref<1x16xf32, #tpu.memory_space<vmem>>, %arg37: memref<48x16xf32, #tpu.memory_space<vmem>>, %arg38: memref<1x16xf32, #tpu.memory_space<vmem>>, %arg39: memref<64x16xf32, #tpu.memory_space<vmem>>, %arg40: memref<1x16xf32, #tpu.memory_space<vmem>>, %arg41: memref<48x1xf32, #tpu.memory_space<vmem>>, %arg42: memref<1x1xf32, #tpu.memory_space<vmem>>, %arg43: memref<1x64x1xf32, #tpu.memory_space<vmem>>, %arg44: memref<68x64xf32, #tpu.memory_space<vmem>>, %arg45: memref<64x192xf32, #tpu.memory_space<vmem>>) attributes {dimension_semantics = [#tpu.dimension_semantics<parallel>], iteration_bounds = array<i64: 2>, scalar_prefetch = 0 : i64, scratch_operands = 2 : i64, tpu.core_type = #tpu.core_type<tc>, window_params = [{transform_indices = @transform_0, window_bounds = array<i64: 1, 64, 1>}, {transform_indices = @transform_1, window_bounds = array<i64: 1, 1, 32>}, {transform_indices = @transform_2, window_bounds = array<i64: 1, 1, 16>}, {transform_indices = @transform_3, window_bounds = array<i64: 1, 1, 8>}, {pipeline_mode = #tpu.pipeline_mode<synchronous>, transform_indices = @transform_4, window_bounds = array<i64: 5, 16>}, {pipeline_mode = #tpu.pipeline_mode<synchronous>, transform_indices = @transform_5, window_bounds = array<i64: 1, 16>}, {pipeline_mode = #tpu.pipeline_mode<synchronous>, transform_indices = @transform_6, window_bounds = array<i64: 32, 32>}, {pipeline_mode = #tpu.pipeline_mode<synchronous>, transform_indices = @transform_7, window_bounds = array<i64: 1, 32>}, {pipeline_mode = #tpu.pipeline_mode<synchronous>, transform_indices = @transform_8, window_bounds = array<i64: 32, 32>}, {pipeline_mode = #tpu.pipeline_mode<synchronous>, transform_indices = @transform_9, window_bounds = array<i64: 1, 32>}, {pipeline_mode = #tpu.pipeline_mode<synchronous>, transform_indices = @transform_10, window_bounds = array<i64: 16, 64>}, {pipeline_mode = #tpu.pipeline_mode<synchronous>, transform_indices = @transform_11, window_bounds = array<i64: 1, 64>}, {pipeline_mode = #tpu.pipeline_mode<synchronous>, transform_indices = @transform_12, window_bounds = array<i64: 64, 16>}, {pipeline_mode = #tpu.pipeline_mode<synchronous>, transform_indices = @transform_13, window_bounds = array<i64: 1, 16>}, {pipeline_mode = #tpu.pipeline_mode<synchronous>, transform_indices = @transform_14, window_bounds = array<i64: 32, 224>}, {pipeline_mode = #tpu.pipeline_mode<synchronous>, transform_indices = @transform_15, window_bounds = array<i64: 16, 224>}, {pipeline_mode = #tpu.pipeline_mode<synchronous>, transform_indices = @transform_16, window_bounds = array<i64: 8, 224>}, {pipeline_mode = #tpu.pipeline_mode<synchronous>, transform_indices = @transform_17, window_bounds = array<i64: 1, 224>}, {pipeline_mode = #tpu.pipeline_mode<synchronous>, transform_indices = @transform_18, window_bounds = array<i64: 48, 32>}, {pipeline_mode = #tpu.pipeline_mode<synchronous>, transform_indices = @transform_19, window_bounds = array<i64: 1, 32>}, {pipeline_mode = #tpu.pipeline_mode<synchronous>, transform_indices = @transform_20, window_bounds = array<i64: 96, 32>}, {pipeline_mode = #tpu.pipeline_mode<synchronous>, transform_indices = @transform_21, window_bounds = array<i64: 1, 32>}, {pipeline_mode = #tpu.pipeline_mode<synchronous>, transform_indices = @transform_22, window_bounds = array<i64: 16, 32>}, {pipeline_mode = #tpu.pipeline_mode<synchronous>, transform_indices = @transform_23, window_bounds = array<i64: 1, 32>}, {pipeline_mode = #tpu.pipeline_mode<synchronous>, transform_indices = @transform_24, window_bounds = array<i64: 96, 32>}, {pipeline_mode = #tpu.pipeline_mode<synchronous>, transform_indices = @transform_25, window_bounds = array<i64: 1, 32>}, {pipeline_mode = #tpu.pipeline_mode<synchronous>, transform_indices = @transform_26, window_bounds = array<i64: 96, 32>}, {pipeline_mode = #tpu.pipeline_mode<synchronous>, transform_indices = @transform_27, window_bounds = array<i64: 1, 32>}, {pipeline_mode = #tpu.pipeline_mode<synchronous>, transform_indices = @transform_28, window_bounds = array<i64: 192, 32>}, {pipeline_mode = #tpu.pipeline_mode<synchronous>, transform_indices = @transform_29, window_bounds = array<i64: 1, 32>}, {pipeline_mode = #tpu.pipeline_mode<synchronous>, transform_indices = @transform_30, window_bounds = array<i64: 96, 32>}, {pipeline_mode = #tpu.pipeline_mode<synchronous>, transform_indices = @transform_31, window_bounds = array<i64: 1, 32>}, {pipeline_mode = #tpu.pipeline_mode<synchronous>, transform_indices = @transform_32, window_bounds = array<i64: 64, 32>}, {pipeline_mode = #tpu.pipeline_mode<synchronous>, transform_indices = @transform_33, window_bounds = array<i64: 1, 32>}, {pipeline_mode = #tpu.pipeline_mode<synchronous>, transform_indices = @transform_34, window_bounds = array<i64: 192, 16>}, {pipeline_mode = #tpu.pipeline_mode<synchronous>, transform_indices = @transform_35, window_bounds = array<i64: 1, 16>}, {pipeline_mode = #tpu.pipeline_mode<synchronous>, transform_indices = @transform_36, window_bounds = array<i64: 48, 16>}, {pipeline_mode = #tpu.pipeline_mode<synchronous>, transform_indices = @transform_37, window_bounds = array<i64: 1, 16>}, {pipeline_mode = #tpu.pipeline_mode<synchronous>, transform_indices = @transform_38, window_bounds = array<i64: 64, 16>}, {pipeline_mode = #tpu.pipeline_mode<synchronous>, transform_indices = @transform_39, window_bounds = array<i64: 1, 16>}, {pipeline_mode = #tpu.pipeline_mode<synchronous>, transform_indices = @transform_40, window_bounds = array<i64: 48, 1>}, {pipeline_mode = #tpu.pipeline_mode<synchronous>, transform_indices = @transform_41, window_bounds = array<i64: 1, 1>}, {transform_indices = @transform_42, window_bounds = array<i64: 1, 64, 1>}]} {
    %c0 = arith.constant 0 : index
    %c0_0 = arith.constant 0 : index
    %c0_1 = arith.constant 0 : index
    %0 = vector.load %arg2[%c0, %c0_0, %c0_1] : memref<1x1x32xf32, #tpu.memory_space<vmem>>, vector<1x1x32xf32>
    %1 = vector.shape_cast %0 : vector<1x1x32xf32> to vector<1x32xf32>
    %c0_2 = arith.constant 0 : index
    %c0_3 = arith.constant 0 : index
    %2 = vector.load %arg7[%c0_2, %c0_3] : memref<32x32xf32, #tpu.memory_space<vmem>>, vector<32x32xf32>
    %cst = arith.constant dense<0.000000e+00> : vector<1x32xf32>
    %3 = tpu.matmul %1, %2, %cst {dimension_numbers = #tpu.dot_dimension_numbers<[1], [0], [0], [1], [0, 0, 1, 1], [], []>} : vector<1x32xf32>, vector<32x32xf32>, vector<1x32xf32> -> vector<1x32xf32>
    %c0_4 = arith.constant 0 : index
    %c0_5 = arith.constant 0 : index
    %4 = vector.load %arg8[%c0_4, %c0_5] : memref<1x32xf32, #tpu.memory_space<vmem>>, vector<1x32xf32>
    %5 = arith.addf %3, %4 : vector<1x32xf32>
    %6 = arith.negf %5 : vector<1x32xf32>
    %7 = math.exp %6 : vector<1x32xf32>
    %cst_6 = arith.constant 1.000000e+00 : f32
    %8 = vector.broadcast %cst_6 : f32 to vector<1x32xf32>
    %9 = arith.addf %8, %7 : vector<1x32xf32>
    %10 = arith.divf %8, %9 : vector<1x32xf32>
    %11 = arith.mulf %5, %10 : vector<1x32xf32>
    %c0_7 = arith.constant 0 : index
    %c0_8 = arith.constant 0 : index
    %12 = vector.load %arg9[%c0_7, %c0_8] : memref<32x32xf32, #tpu.memory_space<vmem>>, vector<32x32xf32>
    %cst_9 = arith.constant dense<0.000000e+00> : vector<1x32xf32>
    %13 = tpu.matmul %11, %12, %cst_9 {dimension_numbers = #tpu.dot_dimension_numbers<[1], [0], [0], [1], [0, 0, 1, 1], [], []>} : vector<1x32xf32>, vector<32x32xf32>, vector<1x32xf32> -> vector<1x32xf32>
    %c0_10 = arith.constant 0 : index
    %c0_11 = arith.constant 0 : index
    %14 = vector.load %arg10[%c0_10, %c0_11] : memref<1x32xf32, #tpu.memory_space<vmem>>, vector<1x32xf32>
    %15 = arith.addf %13, %14 : vector<1x32xf32>
    %c0_12 = arith.constant 0 : index
    %c0_13 = arith.constant 0 : index
    %c0_14 = arith.constant 0 : index
    %16 = vector.load %arg3[%c0_12, %c0_13, %c0_14] : memref<1x1x16xf32, #tpu.memory_space<vmem>>, vector<1x1x16xf32>
    %17 = vector.shape_cast %16 : vector<1x1x16xf32> to vector<1x16xf32>
    %c0_15 = arith.constant 0 : index
    %c0_16 = arith.constant 0 : index
    %18 = vector.load %arg11[%c0_15, %c0_16] : memref<16x64xf32, #tpu.memory_space<vmem>>, vector<16x64xf32>
    %cst_17 = arith.constant dense<0.000000e+00> : vector<1x64xf32>
    %19 = tpu.matmul %17, %18, %cst_17 {dimension_numbers = #tpu.dot_dimension_numbers<[1], [0], [0], [1], [0, 0, 1, 1], [], []>} : vector<1x16xf32>, vector<16x64xf32>, vector<1x64xf32> -> vector<1x64xf32>
    %c0_18 = arith.constant 0 : index
    %c0_19 = arith.constant 0 : index
    %20 = vector.load %arg12[%c0_18, %c0_19] : memref<1x64xf32, #tpu.memory_space<vmem>>, vector<1x64xf32>
    %21 = arith.addf %19, %20 : vector<1x64xf32>
    %22 = arith.negf %21 : vector<1x64xf32>
    %23 = math.exp %22 : vector<1x64xf32>
    %cst_20 = arith.constant 1.000000e+00 : f32
    %24 = vector.broadcast %cst_20 : f32 to vector<1x64xf32>
    %25 = arith.addf %24, %23 : vector<1x64xf32>
    %26 = arith.divf %24, %25 : vector<1x64xf32>
    %27 = arith.mulf %21, %26 : vector<1x64xf32>
    %c0_21 = arith.constant 0 : index
    %c0_22 = arith.constant 0 : index
    %28 = vector.load %arg13[%c0_21, %c0_22] : memref<64x16xf32, #tpu.memory_space<vmem>>, vector<64x16xf32>
    %cst_23 = arith.constant dense<0.000000e+00> : vector<1x16xf32>
    %29 = tpu.matmul %27, %28, %cst_23 {dimension_numbers = #tpu.dot_dimension_numbers<[1], [0], [0], [1], [0, 0, 1, 1], [], []>} : vector<1x64xf32>, vector<64x16xf32>, vector<1x16xf32> -> vector<1x16xf32>
    %c0_24 = arith.constant 0 : index
    %c0_25 = arith.constant 0 : index
    %30 = vector.load %arg14[%c0_24, %c0_25] : memref<1x16xf32, #tpu.memory_space<vmem>>, vector<1x16xf32>
    %31 = arith.addf %29, %30 : vector<1x16xf32>
    %c0_26 = arith.constant 0 : index
    %c0_27 = arith.constant 0 : index
    %32 = vector.load %arg15[%c0_26, %c0_27] : memref<32x224xf32, #tpu.memory_space<vmem>>, vector<32x224xf32>
    %cst_28 = arith.constant dense<0.000000e+00> : vector<1x224xf32>
    %33 = tpu.matmul %15, %32, %cst_28 {dimension_numbers = #tpu.dot_dimension_numbers<[1], [0], [0], [1], [0, 0, 1, 1], [], []>} : vector<1x32xf32>, vector<32x224xf32>, vector<1x224xf32> -> vector<1x224xf32>
    %c0_29 = arith.constant 0 : index
    %c0_30 = arith.constant 0 : index
    %34 = vector.load %arg16[%c0_29, %c0_30] : memref<16x224xf32, #tpu.memory_space<vmem>>, vector<16x224xf32>
    %cst_31 = arith.constant dense<0.000000e+00> : vector<1x224xf32>
    %35 = tpu.matmul %31, %34, %cst_31 {dimension_numbers = #tpu.dot_dimension_numbers<[1], [0], [0], [1], [0, 0, 1, 1], [], []>} : vector<1x16xf32>, vector<16x224xf32>, vector<1x224xf32> -> vector<1x224xf32>
    %36 = arith.addf %33, %35 : vector<1x224xf32>
    %c0_32 = arith.constant 0 : index
    %c0_33 = arith.constant 0 : index
    %c0_34 = arith.constant 0 : index
    %37 = vector.load %arg4[%c0_32, %c0_33, %c0_34] : memref<1x1x8xf32, #tpu.memory_space<vmem>>, vector<1x1x8xf32>
    %38 = vector.shape_cast %37 : vector<1x1x8xf32> to vector<1x8xf32>
    %c0_35 = arith.constant 0 : index
    %c0_36 = arith.constant 0 : index
    %39 = vector.load %arg17[%c0_35, %c0_36] : memref<8x224xf32, #tpu.memory_space<vmem>>, vector<8x224xf32>
    %cst_37 = arith.constant dense<0.000000e+00> : vector<1x224xf32>
    %40 = tpu.matmul %38, %39, %cst_37 {dimension_numbers = #tpu.dot_dimension_numbers<[1], [0], [0], [1], [0, 0, 1, 1], [], []>} : vector<1x8xf32>, vector<8x224xf32>, vector<1x224xf32> -> vector<1x224xf32>
    %41 = arith.addf %36, %40 : vector<1x224xf32>
    %c0_38 = arith.constant 0 : index
    %c0_39 = arith.constant 0 : index
    %42 = vector.load %arg18[%c0_38, %c0_39] : memref<1x224xf32, #tpu.memory_space<vmem>>, vector<1x224xf32>
    %43 = arith.addf %41, %42 : vector<1x224xf32>
    %c0_40 = arith.constant 0 : index
    %c0_41 = arith.constant 0 : index
    %c0_42 = arith.constant 0 : index
    %44 = vector.load %arg1[%c0_40, %c0_41, %c0_42] : memref<1x64x1xf32, #tpu.memory_space<vmem>>, vector<1x64x1xf32>
    %45 = vector.shape_cast %44 : vector<1x64x1xf32> to vector<64x1xf32>
    %cst_43 = arith.constant 0.000000e+00 : f32
    %46 = vector.broadcast %cst_43 : f32 to vector<2x1xf32>
    %c0_44 = arith.constant 0 : index
    %c0_45 = arith.constant 0 : index
    %47 = vector.load %arg44[%c0_44, %c0_45] : memref<68x64xf32, #tpu.memory_space<vmem>>, vector<2x1xf32>
    tpu.vector_store %arg44[%c0_44, %c0_45], %46 {strides = array<i32>} : memref<68x64xf32, #tpu.memory_space<vmem>>, vector<2x1xf32>,
    %c66 = arith.constant 66 : index
    %c0_46 = arith.constant 0 : index
    %48 = vector.load %arg44[%c66, %c0_46] : memref<68x64xf32, #tpu.memory_space<vmem>>, vector<2x1xf32>
    tpu.vector_store %arg44[%c66, %c0_46], %46 {strides = array<i32>} : memref<68x64xf32, #tpu.memory_space<vmem>>, vector<2x1xf32>,
    %c2 = arith.constant 2 : index
    %c0_47 = arith.constant 0 : index
    %49 = vector.load %arg44[%c2, %c0_47] : memref<68x64xf32, #tpu.memory_space<vmem>>, vector<64x1xf32>
    tpu.vector_store %arg44[%c2, %c0_47], %45 {strides = array<i32>} : memref<68x64xf32, #tpu.memory_space<vmem>>, vector<64x1xf32>,
    %cst_48 = arith.constant 0.000000e+00 : f32
    %50 = vector.broadcast %cst_48 : f32 to vector<64x16xf32>
    %c0_49 = arith.constant 0 : index
    %c0_50 = arith.constant 0 : index
    %51 = vector.load %arg6[%c0_49, %c0_50] : memref<1x16xf32, #tpu.memory_space<vmem>>, vector<1x16xf32>
    %52 = vector.broadcast %51 : vector<1x16xf32> to vector<64x16xf32>
    %53 = arith.addf %50, %52 : vector<64x16xf32>
    %c0_51 = arith.constant 0 : index
    %c0_52 = arith.constant 0 : index
    %54 = vector.load %arg44[%c0_51, %c0_52] : memref<68x64xf32, #tpu.memory_space<vmem>>, vector<64x1xf32>
    %c0_53 = arith.constant 0 : index
    %c0_54 = arith.constant 0 : index
    %55 = vector.load %arg5[%c0_53, %c0_54] : memref<5x16xf32, #tpu.memory_space<vmem>>, vector<1x16xf32>
    %56 = vector.broadcast %54 : vector<64x1xf32> to vector<64x16xf32>
    %57 = vector.broadcast %55 : vector<1x16xf32> to vector<64x16xf32>
    %58 = arith.mulf %56, %57 : vector<64x16xf32>
    %59 = arith.addf %53, %58 : vector<64x16xf32>
    %c1 = arith.constant 1 : index
    %c0_55 = arith.constant 0 : index
    %60 = vector.load %arg44[%c1, %c0_55] : memref<68x64xf32, #tpu.memory_space<vmem>>, vector<64x1xf32>
    %c1_56 = arith.constant 1 : index
    %c0_57 = arith.constant 0 : index
    %61 = vector.load %arg5[%c1_56, %c0_57] : memref<5x16xf32, #tpu.memory_space<vmem>>, vector<1x16xf32>
    %62 = vector.broadcast %60 : vector<64x1xf32> to vector<64x16xf32>
    %63 = vector.broadcast %61 : vector<1x16xf32> to vector<64x16xf32>
    %64 = arith.mulf %62, %63 : vector<64x16xf32>
    %65 = arith.addf %59, %64 : vector<64x16xf32>
    %c2_58 = arith.constant 2 : index
    %c0_59 = arith.constant 0 : index
    %66 = vector.load %arg44[%c2_58, %c0_59] : memref<68x64xf32, #tpu.memory_space<vmem>>, vector<64x1xf32>
    %c2_60 = arith.constant 2 : index
    %c0_61 = arith.constant 0 : index
    %67 = vector.load %arg5[%c2_60, %c0_61] : memref<5x16xf32, #tpu.memory_space<vmem>>, vector<1x16xf32>
    %68 = vector.broadcast %66 : vector<64x1xf32> to vector<64x16xf32>
    %69 = vector.broadcast %67 : vector<1x16xf32> to vector<64x16xf32>
    %70 = arith.mulf %68, %69 : vector<64x16xf32>
    %71 = arith.addf %65, %70 : vector<64x16xf32>
    %c3 = arith.constant 3 : index
    %c0_62 = arith.constant 0 : index
    %72 = vector.load %arg44[%c3, %c0_62] : memref<68x64xf32, #tpu.memory_space<vmem>>, vector<64x1xf32>
    %c3_63 = arith.constant 3 : index
    %c0_64 = arith.constant 0 : index
    %73 = vector.load %arg5[%c3_63, %c0_64] : memref<5x16xf32, #tpu.memory_space<vmem>>, vector<1x16xf32>
    %74 = vector.broadcast %72 : vector<64x1xf32> to vector<64x16xf32>
    %75 = vector.broadcast %73 : vector<1x16xf32> to vector<64x16xf32>
    %76 = arith.mulf %74, %75 : vector<64x16xf32>
    %77 = arith.addf %71, %76 : vector<64x16xf32>
    %c4 = arith.constant 4 : index
    %c0_65 = arith.constant 0 : index
    %78 = vector.load %arg44[%c4, %c0_65] : memref<68x64xf32, #tpu.memory_space<vmem>>, vector<64x1xf32>
    %c4_66 = arith.constant 4 : index
    %c0_67 = arith.constant 0 : index
    %79 = vector.load %arg5[%c4_66, %c0_67] : memref<5x16xf32, #tpu.memory_space<vmem>>, vector<1x16xf32>
    %80 = vector.broadcast %78 : vector<64x1xf32> to vector<64x16xf32>
    %81 = vector.broadcast %79 : vector<1x16xf32> to vector<64x16xf32>
    %82 = arith.mulf %80, %81 : vector<64x16xf32>
    %83 = arith.addf %77, %82 : vector<64x16xf32>
    %84 = tpu.iota {dimensions = array<i32: 0>} : vector<32x64xi32>
    %85 = tpu.iota {dimensions = array<i32: 1>} : vector<32x64xi32>
    %c2_i32 = arith.constant 2 : i32
    %86 = vector.broadcast %c2_i32 : i32 to vector<32x64xi32>
    %87 = arith.muli %86, %84 : vector<32x64xi32>
    %88 = arith.subi %85, %87 : vector<32x64xi32>
    %c0_i32 = arith.constant 0 : i32
    %89 = vector.broadcast %c0_i32 : i32 to vector<32x64xi32>
    %90 = arith.cmpi sge, %88, %89 : vector<32x64xi32>
    %c2_i32_68 = arith.constant 2 : i32
    %91 = vector.broadcast %c2_i32_68 : i32 to vector<32x64xi32>
    %92 = arith.cmpi slt, %88, %91 : vector<32x64xi32>
    %93 = arith.andi %90, %92 : vector<32x64xi1>
    %94 = arith.extui %93 : vector<32x64xi1> to vector<32x64xi32>
    %95 = arith.sitofp %94 : vector<32x64xi32> to vector<32x64xf32>
    %cst_69 = arith.constant 5.000000e-01 : f32
    %96 = vector.broadcast %cst_69 : f32 to vector<32x64xf32>
    %97 = arith.mulf %95, %96 : vector<32x64xf32>
    %cst_70 = arith.constant dense<0.000000e+00> : vector<32x16xf32>
    %98 = tpu.matmul %97, %83, %cst_70 {dimension_numbers = #tpu.dot_dimension_numbers<[1], [0], [0], [1], [0, 0, 1, 1], [], []>} : vector<32x64xf32>, vector<64x16xf32>, vector<32x16xf32> -> vector<32x16xf32>
    %cst_71 = arith.constant 0.000000e+00 : f32
    %99 = vector.broadcast %cst_71 : f32 to vector<32x32xf32>
    %c0_72 = arith.constant 0 : index
    %c0_73 = arith.constant 0 : index
    %100 = vector.load %arg24[%c0_72, %c0_73] : memref<1x32xf32, #tpu.memory_space<vmem>>, vector<1x32xf32>
    %101 = vector.broadcast %100 : vector<1x32xf32> to vector<32x32xf32>
    %102 = arith.addf %99, %101 : vector<32x32xf32>
    %c0_74 = arith.constant 0 : index
    %c0_75 = arith.constant 0 : index
    %103 = vector.load %arg23[%c0_74, %c0_75] : memref<16x32xf32, #tpu.memory_space<vmem>>, vector<16x32xf32>
    %cst_76 = arith.constant dense<0.000000e+00> : vector<32x32xf32>
    %104 = tpu.matmul %98, %103, %cst_76 {dimension_numbers = #tpu.dot_dimension_numbers<[1], [0], [0], [1], [0, 0, 1, 1], [], []>} : vector<32x16xf32>, vector<16x32xf32>, vector<32x32xf32> -> vector<32x32xf32>
    %105 = arith.addf %102, %104 : vector<32x32xf32>
    %cst_77 = arith.constant 0.000000e+00 : f32
    %106 = vector.broadcast %cst_77 : f32 to vector<1x16xf32>
    %c0_78 = arith.constant 0 : index
    %c0_79 = arith.constant 0 : index
    %107 = vector.load %arg44[%c0_78, %c0_79] : memref<68x64xf32, #tpu.memory_space<vmem>>, vector<1x16xf32>
    tpu.vector_store %arg44[%c0_78, %c0_79], %106 {strides = array<i32>} : memref<68x64xf32, #tpu.memory_space<vmem>>, vector<1x16xf32>,
    %c33 = arith.constant 33 : index
    %c0_80 = arith.constant 0 : index
    %108 = vector.load %arg44[%c33, %c0_80] : memref<68x64xf32, #tpu.memory_space<vmem>>, vector<1x16xf32>
    tpu.vector_store %arg44[%c33, %c0_80], %106 {strides = array<i32>} : memref<68x64xf32, #tpu.memory_space<vmem>>, vector<1x16xf32>,
    %c1_81 = arith.constant 1 : index
    %c0_82 = arith.constant 0 : index
    %109 = vector.load %arg44[%c1_81, %c0_82] : memref<68x64xf32, #tpu.memory_space<vmem>>, vector<32x16xf32>
    tpu.vector_store %arg44[%c1_81, %c0_82], %98 {strides = array<i32>} : memref<68x64xf32, #tpu.memory_space<vmem>>, vector<32x16xf32>,
    %c0_83 = arith.constant 0 : index
    %c0_84 = arith.constant 0 : index
    %110 = vector.load %arg44[%c0_83, %c0_84] : memref<68x64xf32, #tpu.memory_space<vmem>>, vector<32x16xf32>
    %c0_85 = arith.constant 0 : index
    %c0_86 = arith.constant 0 : index
    %111 = vector.load %arg45[%c0_85, %c0_86] : memref<64x192xf32, #tpu.memory_space<vmem>>, vector<32x16xf32>
    tpu.vector_store %arg45[%c0_85, %c0_86], %110 {strides = array<i32>} : memref<64x192xf32, #tpu.memory_space<vmem>>, vector<32x16xf32>,
    %c1_87 = arith.constant 1 : index
    %c0_88 = arith.constant 0 : index
    %112 = vector.load %arg44[%c1_87, %c0_88] : memref<68x64xf32, #tpu.memory_space<vmem>>, vector<32x16xf32>
    %c0_89 = arith.constant 0 : index
    %c16 = arith.constant 16 : index
    %113 = vector.load %arg45[%c0_89, %c16] : memref<64x192xf32, #tpu.memory_space<vmem>>, vector<32x16xf32>
    tpu.vector_store %arg45[%c0_89, %c16], %112 {strides = array<i32>} : memref<64x192xf32, #tpu.memory_space<vmem>>, vector<32x16xf32>,
    %c2_90 = arith.constant 2 : index
    %c0_91 = arith.constant 0 : index
    %114 = vector.load %arg44[%c2_90, %c0_91] : memref<68x64xf32, #tpu.memory_space<vmem>>, vector<32x16xf32>
    %c0_92 = arith.constant 0 : index
    %c32 = arith.constant 32 : index
    %115 = vector.load %arg45[%c0_92, %c32] : memref<64x192xf32, #tpu.memory_space<vmem>>, vector<32x16xf32>
    tpu.vector_store %arg45[%c0_92, %c32], %114 {strides = array<i32>} : memref<64x192xf32, #tpu.memory_space<vmem>>, vector<32x16xf32>,
    %c0_93 = arith.constant 0 : index
    %c0_94 = arith.constant 0 : index
    %116 = vector.load %arg45[%c0_93, %c0_94] : memref<64x192xf32, #tpu.memory_space<vmem>>, vector<32x48xf32>
    %c0_95 = arith.constant 0 : index
    %c0_96 = arith.constant 0 : index
    %117 = vector.load %arg19[%c0_95, %c0_96] : memref<48x32xf32, #tpu.memory_space<vmem>>, vector<48x32xf32>
    %cst_97 = arith.constant dense<0.000000e+00> : vector<32x32xf32>
    %118 = tpu.matmul %116, %117, %cst_97 {dimension_numbers = #tpu.dot_dimension_numbers<[1], [0], [0], [1], [0, 0, 1, 1], [], []>} : vector<32x48xf32>, vector<48x32xf32>, vector<32x32xf32> -> vector<32x32xf32>
    %c0_98 = arith.constant 0 : index
    %c0_99 = arith.constant 0 : index
    %119 = vector.load %arg20[%c0_98, %c0_99] : memref<1x32xf32, #tpu.memory_space<vmem>>, vector<1x32xf32>
    %120 = vector.broadcast %119 : vector<1x32xf32> to vector<32x32xf32>
    %121 = arith.addf %118, %120 : vector<32x32xf32>
    %122 = vector.extract_strided_slice %43 {offsets = [0, 0], sizes = [1, 64], strides = [1, 1]} : vector<1x224xf32> to vector<1x64xf32>
    %123 = vector.extract_strided_slice %122 {offsets = [0, 0], sizes = [1, 32], strides = [1, 1]} : vector<1x64xf32> to vector<1x32xf32>
    %cst_100 = arith.constant 1.000000e+00 : f32
    %124 = vector.broadcast %cst_100 : f32 to vector<1x32xf32>
    %125 = arith.addf %124, %123 : vector<1x32xf32>
    %126 = vector.broadcast %125 : vector<1x32xf32> to vector<32x32xf32>
    %127 = arith.mulf %121, %126 : vector<32x32xf32>
    %128 = vector.extract_strided_slice %122 {offsets = [0, 32], sizes = [1, 32], strides = [1, 1]} : vector<1x64xf32> to vector<1x32xf32>
    %129 = vector.broadcast %128 : vector<1x32xf32> to vector<32x32xf32>
    %130 = arith.addf %127, %129 : vector<32x32xf32>
    %131 = arith.negf %130 : vector<32x32xf32>
    %132 = math.exp %131 : vector<32x32xf32>
    %cst_101 = arith.constant 1.000000e+00 : f32
    %133 = vector.broadcast %cst_101 : f32 to vector<32x32xf32>
    %134 = arith.addf %133, %132 : vector<32x32xf32>
    %135 = arith.divf %133, %134 : vector<32x32xf32>
    %136 = arith.mulf %130, %135 : vector<32x32xf32>
    %cst_102 = arith.constant 0.000000e+00 : f32
    %137 = vector.broadcast %cst_102 : f32 to vector<1x32xf32>
    %c0_103 = arith.constant 0 : index
    %c0_104 = arith.constant 0 : index
    %138 = vector.load %arg44[%c0_103, %c0_104] : memref<68x64xf32, #tpu.memory_space<vmem>>, vector<1x32xf32>
    tpu.vector_store %arg44[%c0_103, %c0_104], %137 {strides = array<i32>} : memref<68x64xf32, #tpu.memory_space<vmem>>, vector<1x32xf32>,
    %c33_105 = arith.constant 33 : index
    %c0_106 = arith.constant 0 : index
    %139 = vector.load %arg44[%c33_105, %c0_106] : memref<68x64xf32, #tpu.memory_space<vmem>>, vector<1x32xf32>
    tpu.vector_store %arg44[%c33_105, %c0_106], %137 {strides = array<i32>} : memref<68x64xf32, #tpu.memory_space<vmem>>, vector<1x32xf32>,
    %c1_107 = arith.constant 1 : index
    %c0_108 = arith.constant 0 : index
    %140 = vector.load %arg44[%c1_107, %c0_108] : memref<68x64xf32, #tpu.memory_space<vmem>>, vector<32x32xf32>
    tpu.vector_store %arg44[%c1_107, %c0_108], %136 {strides = array<i32>} : memref<68x64xf32, #tpu.memory_space<vmem>>, vector<32x32xf32>,
    %c0_109 = arith.constant 0 : index
    %c0_110 = arith.constant 0 : index
    %141 = vector.load %arg44[%c0_109, %c0_110] : memref<68x64xf32, #tpu.memory_space<vmem>>, vector<32x32xf32>
    %c0_111 = arith.constant 0 : index
    %c0_112 = arith.constant 0 : index
    %142 = vector.load %arg45[%c0_111, %c0_112] : memref<64x192xf32, #tpu.memory_space<vmem>>, vector<32x32xf32>
    tpu.vector_store %arg45[%c0_111, %c0_112], %141 {strides = array<i32>} : memref<64x192xf32, #tpu.memory_space<vmem>>, vector<32x32xf32>,
    %c1_113 = arith.constant 1 : index
    %c0_114 = arith.constant 0 : index
    %143 = vector.load %arg44[%c1_113, %c0_114] : memref<68x64xf32, #tpu.memory_space<vmem>>, vector<32x32xf32>
    %c0_115 = arith.constant 0 : index
    %c32_116 = arith.constant 32 : index
    %144 = vector.load %arg45[%c0_115, %c32_116] : memref<64x192xf32, #tpu.memory_space<vmem>>, vector<32x32xf32>
    tpu.vector_store %arg45[%c0_115, %c32_116], %143 {strides = array<i32>} : memref<64x192xf32, #tpu.memory_space<vmem>>, vector<32x32xf32>,
    %c2_117 = arith.constant 2 : index
    %c0_118 = arith.constant 0 : index
    %145 = vector.load %arg44[%c2_117, %c0_118] : memref<68x64xf32, #tpu.memory_space<vmem>>, vector<32x32xf32>
    %c0_119 = arith.constant 0 : index
    %c64 = arith.constant 64 : index
    %146 = vector.load %arg45[%c0_119, %c64] : memref<64x192xf32, #tpu.memory_space<vmem>>, vector<32x32xf32>
    tpu.vector_store %arg45[%c0_119, %c64], %145 {strides = array<i32>} : memref<64x192xf32, #tpu.memory_space<vmem>>, vector<32x32xf32>,
    %c0_120 = arith.constant 0 : index
    %c0_121 = arith.constant 0 : index
    %147 = vector.load %arg45[%c0_120, %c0_121] : memref<64x192xf32, #tpu.memory_space<vmem>>, vector<32x96xf32>
    %c0_122 = arith.constant 0 : index
    %c0_123 = arith.constant 0 : index
    %148 = vector.load %arg21[%c0_122, %c0_123] : memref<96x32xf32, #tpu.memory_space<vmem>>, vector<96x32xf32>
    %cst_124 = arith.constant dense<0.000000e+00> : vector<32x32xf32>
    %149 = tpu.matmul %147, %148, %cst_124 {dimension_numbers = #tpu.dot_dimension_numbers<[1], [0], [0], [1], [0, 0, 1, 1], [], []>} : vector<32x96xf32>, vector<96x32xf32>, vector<32x32xf32> -> vector<32x32xf32>
    %c0_125 = arith.constant 0 : index
    %c0_126 = arith.constant 0 : index
    %150 = vector.load %arg22[%c0_125, %c0_126] : memref<1x32xf32, #tpu.memory_space<vmem>>, vector<1x32xf32>
    %151 = vector.broadcast %150 : vector<1x32xf32> to vector<32x32xf32>
    %152 = arith.addf %149, %151 : vector<32x32xf32>
    %153 = arith.addf %152, %105 : vector<32x32xf32>
    %154 = tpu.iota {dimensions = array<i32: 0>} : vector<16x32xi32>
    %155 = tpu.iota {dimensions = array<i32: 1>} : vector<16x32xi32>
    %c2_i32_127 = arith.constant 2 : i32
    %156 = vector.broadcast %c2_i32_127 : i32 to vector<16x32xi32>
    %157 = arith.muli %156, %154 : vector<16x32xi32>
    %158 = arith.subi %155, %157 : vector<16x32xi32>
    %c0_i32_128 = arith.constant 0 : i32
    %159 = vector.broadcast %c0_i32_128 : i32 to vector<16x32xi32>
    %160 = arith.cmpi sge, %158, %159 : vector<16x32xi32>
    %c2_i32_129 = arith.constant 2 : i32
    %161 = vector.broadcast %c2_i32_129 : i32 to vector<16x32xi32>
    %162 = arith.cmpi slt, %158, %161 : vector<16x32xi32>
    %163 = arith.andi %160, %162 : vector<16x32xi1>
    %164 = arith.extui %163 : vector<16x32xi1> to vector<16x32xi32>
    %165 = arith.sitofp %164 : vector<16x32xi32> to vector<16x32xf32>
    %cst_130 = arith.constant 5.000000e-01 : f32
    %166 = vector.broadcast %cst_130 : f32 to vector<16x32xf32>
    %167 = arith.mulf %165, %166 : vector<16x32xf32>
    %cst_131 = arith.constant dense<0.000000e+00> : vector<16x32xf32>
    %168 = tpu.matmul %167, %153, %cst_131 {dimension_numbers = #tpu.dot_dimension_numbers<[1], [0], [0], [1], [0, 0, 1, 1], [], []>} : vector<16x32xf32>, vector<32x32xf32>, vector<16x32xf32> -> vector<16x32xf32>
    %cst_132 = arith.constant 0.000000e+00 : f32
    %169 = vector.broadcast %cst_132 : f32 to vector<1x32xf32>
    %c0_133 = arith.constant 0 : index
    %c0_134 = arith.constant 0 : index
    %170 = vector.load %arg44[%c0_133, %c0_134] : memref<68x64xf32, #tpu.memory_space<vmem>>, vector<1x32xf32>
    tpu.vector_store %arg44[%c0_133, %c0_134], %169 {strides = array<i32>} : memref<68x64xf32, #tpu.memory_space<vmem>>, vector<1x32xf32>,
    %c17 = arith.constant 17 : index
    %c0_135 = arith.constant 0 : index
    %171 = vector.load %arg44[%c17, %c0_135] : memref<68x64xf32, #tpu.memory_space<vmem>>, vector<1x32xf32>
    tpu.vector_store %arg44[%c17, %c0_135], %169 {strides = array<i32>} : memref<68x64xf32, #tpu.memory_space<vmem>>, vector<1x32xf32>,
    %c1_136 = arith.constant 1 : index
    %c0_137 = arith.constant 0 : index
    %172 = vector.load %arg44[%c1_136, %c0_137] : memref<68x64xf32, #tpu.memory_space<vmem>>, vector<16x32xf32>
    tpu.vector_store %arg44[%c1_136, %c0_137], %168 {strides = array<i32>} : memref<68x64xf32, #tpu.memory_space<vmem>>, vector<16x32xf32>,
    %c0_138 = arith.constant 0 : index
    %c0_139 = arith.constant 0 : index
    %173 = vector.load %arg44[%c0_138, %c0_139] : memref<68x64xf32, #tpu.memory_space<vmem>>, vector<16x32xf32>
    %c0_140 = arith.constant 0 : index
    %c0_141 = arith.constant 0 : index
    %174 = vector.load %arg45[%c0_140, %c0_141] : memref<64x192xf32, #tpu.memory_space<vmem>>, vector<16x32xf32>
    tpu.vector_store %arg45[%c0_140, %c0_141], %173 {strides = array<i32>} : memref<64x192xf32, #tpu.memory_space<vmem>>, vector<16x32xf32>,
    %c1_142 = arith.constant 1 : index
    %c0_143 = arith.constant 0 : index
    %175 = vector.load %arg44[%c1_142, %c0_143] : memref<68x64xf32, #tpu.memory_space<vmem>>, vector<16x32xf32>
    %c0_144 = arith.constant 0 : index
    %c32_145 = arith.constant 32 : index
    %176 = vector.load %arg45[%c0_144, %c32_145] : memref<64x192xf32, #tpu.memory_space<vmem>>, vector<16x32xf32>
    tpu.vector_store %arg45[%c0_144, %c32_145], %175 {strides = array<i32>} : memref<64x192xf32, #tpu.memory_space<vmem>>, vector<16x32xf32>,
    %c2_146 = arith.constant 2 : index
    %c0_147 = arith.constant 0 : index
    %177 = vector.load %arg44[%c2_146, %c0_147] : memref<68x64xf32, #tpu.memory_space<vmem>>, vector<16x32xf32>
    %c0_148 = arith.constant 0 : index
    %c64_149 = arith.constant 64 : index
    %178 = vector.load %arg45[%c0_148, %c64_149] : memref<64x192xf32, #tpu.memory_space<vmem>>, vector<16x32xf32>
    tpu.vector_store %arg45[%c0_148, %c64_149], %177 {strides = array<i32>} : memref<64x192xf32, #tpu.memory_space<vmem>>, vector<16x32xf32>,
    %c0_150 = arith.constant 0 : index
    %c0_151 = arith.constant 0 : index
    %179 = vector.load %arg45[%c0_150, %c0_151] : memref<64x192xf32, #tpu.memory_space<vmem>>, vector<16x96xf32>
    %c0_152 = arith.constant 0 : index
    %c0_153 = arith.constant 0 : index
    %180 = vector.load %arg25[%c0_152, %c0_153] : memref<96x32xf32, #tpu.memory_space<vmem>>, vector<96x32xf32>
    %cst_154 = arith.constant dense<0.000000e+00> : vector<16x32xf32>
    %181 = tpu.matmul %179, %180, %cst_154 {dimension_numbers = #tpu.dot_dimension_numbers<[1], [0], [0], [1], [0, 0, 1, 1], [], []>} : vector<16x96xf32>, vector<96x32xf32>, vector<16x32xf32> -> vector<16x32xf32>
    %c0_155 = arith.constant 0 : index
    %c0_156 = arith.constant 0 : index
    %182 = vector.load %arg26[%c0_155, %c0_156] : memref<1x32xf32, #tpu.memory_space<vmem>>, vector<1x32xf32>
    %183 = vector.broadcast %182 : vector<1x32xf32> to vector<16x32xf32>
    %184 = arith.addf %181, %183 : vector<16x32xf32>
    %185 = vector.extract_strided_slice %43 {offsets = [0, 64], sizes = [1, 64], strides = [1, 1]} : vector<1x224xf32> to vector<1x64xf32>
    %186 = vector.extract_strided_slice %185 {offsets = [0, 0], sizes = [1, 32], strides = [1, 1]} : vector<1x64xf32> to vector<1x32xf32>
    %cst_157 = arith.constant 1.000000e+00 : f32
    %187 = vector.broadcast %cst_157 : f32 to vector<1x32xf32>
    %188 = arith.addf %187, %186 : vector<1x32xf32>
    %189 = vector.broadcast %188 : vector<1x32xf32> to vector<16x32xf32>
    %190 = arith.mulf %184, %189 : vector<16x32xf32>
    %191 = vector.extract_strided_slice %185 {offsets = [0, 32], sizes = [1, 32], strides = [1, 1]} : vector<1x64xf32> to vector<1x32xf32>
    %192 = vector.broadcast %191 : vector<1x32xf32> to vector<16x32xf32>
    %193 = arith.addf %190, %192 : vector<16x32xf32>
    %194 = arith.negf %193 : vector<16x32xf32>
    %195 = math.exp %194 : vector<16x32xf32>
    %cst_158 = arith.constant 1.000000e+00 : f32
    %196 = vector.broadcast %cst_158 : f32 to vector<16x32xf32>
    %197 = arith.addf %196, %195 : vector<16x32xf32>
    %198 = arith.divf %196, %197 : vector<16x32xf32>
    %199 = arith.mulf %193, %198 : vector<16x32xf32>
    %cst_159 = arith.constant 0.000000e+00 : f32
    %200 = vector.broadcast %cst_159 : f32 to vector<1x32xf32>
    %c0_160 = arith.constant 0 : index
    %c0_161 = arith.constant 0 : index
    %201 = vector.load %arg44[%c0_160, %c0_161] : memref<68x64xf32, #tpu.memory_space<vmem>>, vector<1x32xf32>
    tpu.vector_store %arg44[%c0_160, %c0_161], %200 {strides = array<i32>} : memref<68x64xf32, #tpu.memory_space<vmem>>, vector<1x32xf32>,
    %c17_162 = arith.constant 17 : index
    %c0_163 = arith.constant 0 : index
    %202 = vector.load %arg44[%c17_162, %c0_163] : memref<68x64xf32, #tpu.memory_space<vmem>>, vector<1x32xf32>
    tpu.vector_store %arg44[%c17_162, %c0_163], %200 {strides = array<i32>} : memref<68x64xf32, #tpu.memory_space<vmem>>, vector<1x32xf32>,
    %c1_164 = arith.constant 1 : index
    %c0_165 = arith.constant 0 : index
    %203 = vector.load %arg44[%c1_164, %c0_165] : memref<68x64xf32, #tpu.memory_space<vmem>>, vector<16x32xf32>
    tpu.vector_store %arg44[%c1_164, %c0_165], %199 {strides = array<i32>} : memref<68x64xf32, #tpu.memory_space<vmem>>, vector<16x32xf32>,
    %c0_166 = arith.constant 0 : index
    %c0_167 = arith.constant 0 : index
    %204 = vector.load %arg44[%c0_166, %c0_167] : memref<68x64xf32, #tpu.memory_space<vmem>>, vector<16x32xf32>
    %c0_168 = arith.constant 0 : index
    %c0_169 = arith.constant 0 : index
    %205 = vector.load %arg45[%c0_168, %c0_169] : memref<64x192xf32, #tpu.memory_space<vmem>>, vector<16x32xf32>
    tpu.vector_store %arg45[%c0_168, %c0_169], %204 {strides = array<i32>} : memref<64x192xf32, #tpu.memory_space<vmem>>, vector<16x32xf32>,
    %c1_170 = arith.constant 1 : index
    %c0_171 = arith.constant 0 : index
    %206 = vector.load %arg44[%c1_170, %c0_171] : memref<68x64xf32, #tpu.memory_space<vmem>>, vector<16x32xf32>
    %c0_172 = arith.constant 0 : index
    %c32_173 = arith.constant 32 : index
    %207 = vector.load %arg45[%c0_172, %c32_173] : memref<64x192xf32, #tpu.memory_space<vmem>>, vector<16x32xf32>
    tpu.vector_store %arg45[%c0_172, %c32_173], %206 {strides = array<i32>} : memref<64x192xf32, #tpu.memory_space<vmem>>, vector<16x32xf32>,
    %c2_174 = arith.constant 2 : index
    %c0_175 = arith.constant 0 : index
    %208 = vector.load %arg44[%c2_174, %c0_175] : memref<68x64xf32, #tpu.memory_space<vmem>>, vector<16x32xf32>
    %c0_176 = arith.constant 0 : index
    %c64_177 = arith.constant 64 : index
    %209 = vector.load %arg45[%c0_176, %c64_177] : memref<64x192xf32, #tpu.memory_space<vmem>>, vector<16x32xf32>
    tpu.vector_store %arg45[%c0_176, %c64_177], %208 {strides = array<i32>} : memref<64x192xf32, #tpu.memory_space<vmem>>, vector<16x32xf32>,
    %c0_178 = arith.constant 0 : index
    %c0_179 = arith.constant 0 : index
    %210 = vector.load %arg45[%c0_178, %c0_179] : memref<64x192xf32, #tpu.memory_space<vmem>>, vector<16x96xf32>
    %c0_180 = arith.constant 0 : index
    %c0_181 = arith.constant 0 : index
    %211 = vector.load %arg27[%c0_180, %c0_181] : memref<96x32xf32, #tpu.memory_space<vmem>>, vector<96x32xf32>
    %cst_182 = arith.constant dense<0.000000e+00> : vector<16x32xf32>
    %212 = tpu.matmul %210, %211, %cst_182 {dimension_numbers = #tpu.dot_dimension_numbers<[1], [0], [0], [1], [0, 0, 1, 1], [], []>} : vector<16x96xf32>, vector<96x32xf32>, vector<16x32xf32> -> vector<16x32xf32>
    %c0_183 = arith.constant 0 : index
    %c0_184 = arith.constant 0 : index
    %213 = vector.load %arg28[%c0_183, %c0_184] : memref<1x32xf32, #tpu.memory_space<vmem>>, vector<1x32xf32>
    %214 = vector.broadcast %213 : vector<1x32xf32> to vector<16x32xf32>
    %215 = arith.addf %212, %214 : vector<16x32xf32>
    %216 = arith.addf %215, %168 : vector<16x32xf32>
    %217 = tpu.iota {dimensions = array<i32: 0>} : vector<32x16xi32>
    %218 = tpu.iota {dimensions = array<i32: 1>} : vector<32x16xi32>
    %c2_i32_185 = arith.constant 2 : i32
    %219 = vector.broadcast %c2_i32_185 : i32 to vector<32x16xi32>
    %220 = arith.muli %219, %218 : vector<32x16xi32>
    %221 = arith.subi %217, %220 : vector<32x16xi32>
    %c0_i32_186 = arith.constant 0 : i32
    %222 = vector.broadcast %c0_i32_186 : i32 to vector<32x16xi32>
    %223 = arith.cmpi sge, %221, %222 : vector<32x16xi32>
    %c2_i32_187 = arith.constant 2 : i32
    %224 = vector.broadcast %c2_i32_187 : i32 to vector<32x16xi32>
    %225 = arith.cmpi slt, %221, %224 : vector<32x16xi32>
    %226 = arith.andi %223, %225 : vector<32x16xi1>
    %227 = arith.extui %226 : vector<32x16xi1> to vector<32x16xi32>
    %228 = arith.sitofp %227 : vector<32x16xi32> to vector<32x16xf32>
    %cst_188 = arith.constant dense<0.000000e+00> : vector<32x32xf32>
    %229 = tpu.matmul %228, %216, %cst_188 {dimension_numbers = #tpu.dot_dimension_numbers<[1], [0], [0], [1], [0, 0, 1, 1], [], []>} : vector<32x16xf32>, vector<16x32xf32>, vector<32x32xf32> -> vector<32x32xf32>
    %cst_189 = arith.constant dense<0.000000e+00> : vector<32x32xf32>
    %230 = tpu.matmul %228, %216, %cst_189 {dimension_numbers = #tpu.dot_dimension_numbers<[1], [0], [0], [1], [0, 0, 1, 1], [], []>} : vector<32x16xf32>, vector<16x32xf32>, vector<32x32xf32> -> vector<32x32xf32>
    %cst_190 = arith.constant 0.000000e+00 : f32
    %231 = vector.broadcast %cst_190 : f32 to vector<32x32xf32>
    %c0_191 = arith.constant 0 : index
    %c0_192 = arith.constant 0 : index
    %232 = vector.load %arg34[%c0_191, %c0_192] : memref<1x32xf32, #tpu.memory_space<vmem>>, vector<1x32xf32>
    %233 = vector.broadcast %232 : vector<1x32xf32> to vector<32x32xf32>
    %234 = arith.addf %231, %233 : vector<32x32xf32>
    %c0_193 = arith.constant 0 : index
    %c0_194 = arith.constant 0 : index
    %235 = vector.load %arg33[%c0_193, %c0_194] : memref<64x32xf32, #tpu.memory_space<vmem>>, vector<32x32xf32>
    %cst_195 = arith.constant dense<0.000000e+00> : vector<32x32xf32>
    %236 = tpu.matmul %229, %235, %cst_195 {dimension_numbers = #tpu.dot_dimension_numbers<[1], [0], [0], [1], [0, 0, 1, 1], [], []>} : vector<32x32xf32>, vector<32x32xf32>, vector<32x32xf32> -> vector<32x32xf32>
    %237 = arith.addf %234, %236 : vector<32x32xf32>
    %c32_196 = arith.constant 32 : index
    %c0_197 = arith.constant 0 : index
    %238 = vector.load %arg33[%c32_196, %c0_197] : memref<64x32xf32, #tpu.memory_space<vmem>>, vector<32x32xf32>
    %cst_198 = arith.constant dense<0.000000e+00> : vector<32x32xf32>
    %239 = tpu.matmul %230, %238, %cst_198 {dimension_numbers = #tpu.dot_dimension_numbers<[1], [0], [0], [1], [0, 0, 1, 1], [], []>} : vector<32x32xf32>, vector<32x32xf32>, vector<32x32xf32> -> vector<32x32xf32>
    %240 = arith.addf %237, %239 : vector<32x32xf32>
    %cst_199 = arith.constant 0.000000e+00 : f32
    %241 = vector.broadcast %cst_199 : f32 to vector<1x64xf32>
    %c0_200 = arith.constant 0 : index
    %c0_201 = arith.constant 0 : index
    %242 = vector.load %arg44[%c0_200, %c0_201] : memref<68x64xf32, #tpu.memory_space<vmem>>, vector<1x64xf32>
    tpu.vector_store %arg44[%c0_200, %c0_201], %241 {strides = array<i32>} : memref<68x64xf32, #tpu.memory_space<vmem>>, vector<1x64xf32>,
    %c33_202 = arith.constant 33 : index
    %c0_203 = arith.constant 0 : index
    %243 = vector.load %arg44[%c33_202, %c0_203] : memref<68x64xf32, #tpu.memory_space<vmem>>, vector<1x64xf32>
    tpu.vector_store %arg44[%c33_202, %c0_203], %241 {strides = array<i32>} : memref<68x64xf32, #tpu.memory_space<vmem>>, vector<1x64xf32>,
    %c1_204 = arith.constant 1 : index
    %c0_205 = arith.constant 0 : index
    %244 = vector.load %arg44[%c1_204, %c0_205] : memref<68x64xf32, #tpu.memory_space<vmem>>, vector<32x32xf32>
    tpu.vector_store %arg44[%c1_204, %c0_205], %229 {strides = array<i32>} : memref<68x64xf32, #tpu.memory_space<vmem>>, vector<32x32xf32>,
    %c1_206 = arith.constant 1 : index
    %c32_207 = arith.constant 32 : index
    %245 = vector.load %arg44[%c1_206, %c32_207] : memref<68x64xf32, #tpu.memory_space<vmem>>, vector<32x32xf32>
    tpu.vector_store %arg44[%c1_206, %c32_207], %230 {strides = array<i32>} : memref<68x64xf32, #tpu.memory_space<vmem>>, vector<32x32xf32>,
    %c0_208 = arith.constant 0 : index
    %c0_209 = arith.constant 0 : index
    %246 = vector.load %arg44[%c0_208, %c0_209] : memref<68x64xf32, #tpu.memory_space<vmem>>, vector<32x64xf32>
    %c0_210 = arith.constant 0 : index
    %c0_211 = arith.constant 0 : index
    %247 = vector.load %arg45[%c0_210, %c0_211] : memref<64x192xf32, #tpu.memory_space<vmem>>, vector<32x64xf32>
    tpu.vector_store %arg45[%c0_210, %c0_211], %246 {strides = array<i32>} : memref<64x192xf32, #tpu.memory_space<vmem>>, vector<32x64xf32>,
    %c1_212 = arith.constant 1 : index
    %c0_213 = arith.constant 0 : index
    %248 = vector.load %arg44[%c1_212, %c0_213] : memref<68x64xf32, #tpu.memory_space<vmem>>, vector<32x64xf32>
    %c0_214 = arith.constant 0 : index
    %c64_215 = arith.constant 64 : index
    %249 = vector.load %arg45[%c0_214, %c64_215] : memref<64x192xf32, #tpu.memory_space<vmem>>, vector<32x64xf32>
    tpu.vector_store %arg45[%c0_214, %c64_215], %248 {strides = array<i32>} : memref<64x192xf32, #tpu.memory_space<vmem>>, vector<32x64xf32>,
    %c2_216 = arith.constant 2 : index
    %c0_217 = arith.constant 0 : index
    %250 = vector.load %arg44[%c2_216, %c0_217] : memref<68x64xf32, #tpu.memory_space<vmem>>, vector<32x64xf32>
    %c0_218 = arith.constant 0 : index
    %c128 = arith.constant 128 : index
    %251 = vector.load %arg45[%c0_218, %c128] : memref<64x192xf32, #tpu.memory_space<vmem>>, vector<32x64xf32>
    tpu.vector_store %arg45[%c0_218, %c128], %250 {strides = array<i32>} : memref<64x192xf32, #tpu.memory_space<vmem>>, vector<32x64xf32>,
    %c0_219 = arith.constant 0 : index
    %c0_220 = arith.constant 0 : index
    %252 = vector.load %arg45[%c0_219, %c0_220] : memref<64x192xf32, #tpu.memory_space<vmem>>, vector<32x192xf32>
    %c0_221 = arith.constant 0 : index
    %c0_222 = arith.constant 0 : index
    %253 = vector.load %arg29[%c0_221, %c0_222] : memref<192x32xf32, #tpu.memory_space<vmem>>, vector<192x32xf32>
    %cst_223 = arith.constant dense<0.000000e+00> : vector<32x32xf32>
    %254 = tpu.matmul %252, %253, %cst_223 {dimension_numbers = #tpu.dot_dimension_numbers<[1], [0], [0], [1], [0, 0, 1, 1], [], []>} : vector<32x192xf32>, vector<192x32xf32>, vector<32x32xf32> -> vector<32x32xf32>
    %c0_224 = arith.constant 0 : index
    %c0_225 = arith.constant 0 : index
    %255 = vector.load %arg30[%c0_224, %c0_225] : memref<1x32xf32, #tpu.memory_space<vmem>>, vector<1x32xf32>
    %256 = vector.broadcast %255 : vector<1x32xf32> to vector<32x32xf32>
    %257 = arith.addf %254, %256 : vector<32x32xf32>
    %258 = vector.extract_strided_slice %43 {offsets = [0, 128], sizes = [1, 64], strides = [1, 1]} : vector<1x224xf32> to vector<1x64xf32>
    %259 = vector.extract_strided_slice %258 {offsets = [0, 0], sizes = [1, 32], strides = [1, 1]} : vector<1x64xf32> to vector<1x32xf32>
    %cst_226 = arith.constant 1.000000e+00 : f32
    %260 = vector.broadcast %cst_226 : f32 to vector<1x32xf32>
    %261 = arith.addf %260, %259 : vector<1x32xf32>
    %262 = vector.broadcast %261 : vector<1x32xf32> to vector<32x32xf32>
    %263 = arith.mulf %257, %262 : vector<32x32xf32>
    %264 = vector.extract_strided_slice %258 {offsets = [0, 32], sizes = [1, 32], strides = [1, 1]} : vector<1x64xf32> to vector<1x32xf32>
    %265 = vector.broadcast %264 : vector<1x32xf32> to vector<32x32xf32>
    %266 = arith.addf %263, %265 : vector<32x32xf32>
    %267 = arith.negf %266 : vector<32x32xf32>
    %268 = math.exp %267 : vector<32x32xf32>
    %cst_227 = arith.constant 1.000000e+00 : f32
    %269 = vector.broadcast %cst_227 : f32 to vector<32x32xf32>
    %270 = arith.addf %269, %268 : vector<32x32xf32>
    %271 = arith.divf %269, %270 : vector<32x32xf32>
    %272 = arith.mulf %266, %271 : vector<32x32xf32>
    %cst_228 = arith.constant 0.000000e+00 : f32
    %273 = vector.broadcast %cst_228 : f32 to vector<1x32xf32>
    %c0_229 = arith.constant 0 : index
    %c0_230 = arith.constant 0 : index
    %274 = vector.load %arg44[%c0_229, %c0_230] : memref<68x64xf32, #tpu.memory_space<vmem>>, vector<1x32xf32>
    tpu.vector_store %arg44[%c0_229, %c0_230], %273 {strides = array<i32>} : memref<68x64xf32, #tpu.memory_space<vmem>>, vector<1x32xf32>,
    %c33_231 = arith.constant 33 : index
    %c0_232 = arith.constant 0 : index
    %275 = vector.load %arg44[%c33_231, %c0_232] : memref<68x64xf32, #tpu.memory_space<vmem>>, vector<1x32xf32>
    tpu.vector_store %arg44[%c33_231, %c0_232], %273 {strides = array<i32>} : memref<68x64xf32, #tpu.memory_space<vmem>>, vector<1x32xf32>,
    %c1_233 = arith.constant 1 : index
    %c0_234 = arith.constant 0 : index
    %276 = vector.load %arg44[%c1_233, %c0_234] : memref<68x64xf32, #tpu.memory_space<vmem>>, vector<32x32xf32>
    tpu.vector_store %arg44[%c1_233, %c0_234], %272 {strides = array<i32>} : memref<68x64xf32, #tpu.memory_space<vmem>>, vector<32x32xf32>,
    %c0_235 = arith.constant 0 : index
    %c0_236 = arith.constant 0 : index
    %277 = vector.load %arg44[%c0_235, %c0_236] : memref<68x64xf32, #tpu.memory_space<vmem>>, vector<32x32xf32>
    %c0_237 = arith.constant 0 : index
    %c0_238 = arith.constant 0 : index
    %278 = vector.load %arg45[%c0_237, %c0_238] : memref<64x192xf32, #tpu.memory_space<vmem>>, vector<32x32xf32>
    tpu.vector_store %arg45[%c0_237, %c0_238], %277 {strides = array<i32>} : memref<64x192xf32, #tpu.memory_space<vmem>>, vector<32x32xf32>,
    %c1_239 = arith.constant 1 : index
    %c0_240 = arith.constant 0 : index
    %279 = vector.load %arg44[%c1_239, %c0_240] : memref<68x64xf32, #tpu.memory_space<vmem>>, vector<32x32xf32>
    %c0_241 = arith.constant 0 : index
    %c32_242 = arith.constant 32 : index
    %280 = vector.load %arg45[%c0_241, %c32_242] : memref<64x192xf32, #tpu.memory_space<vmem>>, vector<32x32xf32>
    tpu.vector_store %arg45[%c0_241, %c32_242], %279 {strides = array<i32>} : memref<64x192xf32, #tpu.memory_space<vmem>>, vector<32x32xf32>,
    %c2_243 = arith.constant 2 : index
    %c0_244 = arith.constant 0 : index
    %281 = vector.load %arg44[%c2_243, %c0_244] : memref<68x64xf32, #tpu.memory_space<vmem>>, vector<32x32xf32>
    %c0_245 = arith.constant 0 : index
    %c64_246 = arith.constant 64 : index
    %282 = vector.load %arg45[%c0_245, %c64_246] : memref<64x192xf32, #tpu.memory_space<vmem>>, vector<32x32xf32>
    tpu.vector_store %arg45[%c0_245, %c64_246], %281 {strides = array<i32>} : memref<64x192xf32, #tpu.memory_space<vmem>>, vector<32x32xf32>,
    %c0_247 = arith.constant 0 : index
    %c0_248 = arith.constant 0 : index
    %283 = vector.load %arg45[%c0_247, %c0_248] : memref<64x192xf32, #tpu.memory_space<vmem>>, vector<32x96xf32>
    %c0_249 = arith.constant 0 : index
    %c0_250 = arith.constant 0 : index
    %284 = vector.load %arg31[%c0_249, %c0_250] : memref<96x32xf32, #tpu.memory_space<vmem>>, vector<96x32xf32>
    %cst_251 = arith.constant dense<0.000000e+00> : vector<32x32xf32>
    %285 = tpu.matmul %283, %284, %cst_251 {dimension_numbers = #tpu.dot_dimension_numbers<[1], [0], [0], [1], [0, 0, 1, 1], [], []>} : vector<32x96xf32>, vector<96x32xf32>, vector<32x32xf32> -> vector<32x32xf32>
    %c0_252 = arith.constant 0 : index
    %c0_253 = arith.constant 0 : index
    %286 = vector.load %arg32[%c0_252, %c0_253] : memref<1x32xf32, #tpu.memory_space<vmem>>, vector<1x32xf32>
    %287 = vector.broadcast %286 : vector<1x32xf32> to vector<32x32xf32>
    %288 = arith.addf %285, %287 : vector<32x32xf32>
    %289 = arith.addf %288, %240 : vector<32x32xf32>
    %290 = tpu.iota {dimensions = array<i32: 0>} : vector<64x32xi32>
    %291 = tpu.iota {dimensions = array<i32: 1>} : vector<64x32xi32>
    %c2_i32_254 = arith.constant 2 : i32
    %292 = vector.broadcast %c2_i32_254 : i32 to vector<64x32xi32>
    %293 = arith.muli %292, %291 : vector<64x32xi32>
    %294 = arith.subi %290, %293 : vector<64x32xi32>
    %c0_i32_255 = arith.constant 0 : i32
    %295 = vector.broadcast %c0_i32_255 : i32 to vector<64x32xi32>
    %296 = arith.cmpi sge, %294, %295 : vector<64x32xi32>
    %c2_i32_256 = arith.constant 2 : i32
    %297 = vector.broadcast %c2_i32_256 : i32 to vector<64x32xi32>
    %298 = arith.cmpi slt, %294, %297 : vector<64x32xi32>
    %299 = arith.andi %296, %298 : vector<64x32xi1>
    %300 = arith.extui %299 : vector<64x32xi1> to vector<64x32xi32>
    %301 = arith.sitofp %300 : vector<64x32xi32> to vector<64x32xf32>
    %cst_257 = arith.constant dense<0.000000e+00> : vector<64x32xf32>
    %302 = tpu.matmul %301, %289, %cst_257 {dimension_numbers = #tpu.dot_dimension_numbers<[1], [0], [0], [1], [0, 0, 1, 1], [], []>} : vector<64x32xf32>, vector<32x32xf32>, vector<64x32xf32> -> vector<64x32xf32>
    %cst_258 = arith.constant dense<0.000000e+00> : vector<64x32xf32>
    %303 = tpu.matmul %301, %153, %cst_258 {dimension_numbers = #tpu.dot_dimension_numbers<[1], [0], [0], [1], [0, 0, 1, 1], [], []>} : vector<64x32xf32>, vector<32x32xf32>, vector<64x32xf32> -> vector<64x32xf32>
    %cst_259 = arith.constant 0.000000e+00 : f32
    %304 = vector.broadcast %cst_259 : f32 to vector<64x16xf32>
    %c0_260 = arith.constant 0 : index
    %c0_261 = arith.constant 0 : index
    %305 = vector.load %arg40[%c0_260, %c0_261] : memref<1x16xf32, #tpu.memory_space<vmem>>, vector<1x16xf32>
    %306 = vector.broadcast %305 : vector<1x16xf32> to vector<64x16xf32>
    %307 = arith.addf %304, %306 : vector<64x16xf32>
    %c0_262 = arith.constant 0 : index
    %c0_263 = arith.constant 0 : index
    %308 = vector.load %arg39[%c0_262, %c0_263] : memref<64x16xf32, #tpu.memory_space<vmem>>, vector<32x16xf32>
    %cst_264 = arith.constant dense<0.000000e+00> : vector<64x16xf32>
    %309 = tpu.matmul %302, %308, %cst_264 {dimension_numbers = #tpu.dot_dimension_numbers<[1], [0], [0], [1], [0, 0, 1, 1], [], []>} : vector<64x32xf32>, vector<32x16xf32>, vector<64x16xf32> -> vector<64x16xf32>
    %310 = arith.addf %307, %309 : vector<64x16xf32>
    %c32_265 = arith.constant 32 : index
    %c0_266 = arith.constant 0 : index
    %311 = vector.load %arg39[%c32_265, %c0_266] : memref<64x16xf32, #tpu.memory_space<vmem>>, vector<32x16xf32>
    %cst_267 = arith.constant dense<0.000000e+00> : vector<64x16xf32>
    %312 = tpu.matmul %303, %311, %cst_267 {dimension_numbers = #tpu.dot_dimension_numbers<[1], [0], [0], [1], [0, 0, 1, 1], [], []>} : vector<64x32xf32>, vector<32x16xf32>, vector<64x16xf32> -> vector<64x16xf32>
    %313 = arith.addf %310, %312 : vector<64x16xf32>
    %cst_268 = arith.constant 0.000000e+00 : f32
    %314 = vector.broadcast %cst_268 : f32 to vector<1x64xf32>
    %c0_269 = arith.constant 0 : index
    %c0_270 = arith.constant 0 : index
    %315 = vector.load %arg44[%c0_269, %c0_270] : memref<68x64xf32, #tpu.memory_space<vmem>>, vector<1x64xf32>
    tpu.vector_store %arg44[%c0_269, %c0_270], %314 {strides = array<i32>} : memref<68x64xf32, #tpu.memory_space<vmem>>, vector<1x64xf32>,
    %c65 = arith.constant 65 : index
    %c0_271 = arith.constant 0 : index
    %316 = vector.load %arg44[%c65, %c0_271] : memref<68x64xf32, #tpu.memory_space<vmem>>, vector<1x64xf32>
    tpu.vector_store %arg44[%c65, %c0_271], %314 {strides = array<i32>} : memref<68x64xf32, #tpu.memory_space<vmem>>, vector<1x64xf32>,
    %c1_272 = arith.constant 1 : index
    %c0_273 = arith.constant 0 : index
    %317 = vector.load %arg44[%c1_272, %c0_273] : memref<68x64xf32, #tpu.memory_space<vmem>>, vector<64x32xf32>
    tpu.vector_store %arg44[%c1_272, %c0_273], %302 {strides = array<i32>} : memref<68x64xf32, #tpu.memory_space<vmem>>, vector<64x32xf32>,
    %c1_274 = arith.constant 1 : index
    %c32_275 = arith.constant 32 : index
    %318 = vector.load %arg44[%c1_274, %c32_275] : memref<68x64xf32, #tpu.memory_space<vmem>>, vector<64x32xf32>
    tpu.vector_store %arg44[%c1_274, %c32_275], %303 {strides = array<i32>} : memref<68x64xf32, #tpu.memory_space<vmem>>, vector<64x32xf32>,
    %c0_276 = arith.constant 0 : index
    %c0_277 = arith.constant 0 : index
    %319 = vector.load %arg44[%c0_276, %c0_277] : memref<68x64xf32, #tpu.memory_space<vmem>>, vector<64x64xf32>
    %c0_278 = arith.constant 0 : index
    %c0_279 = arith.constant 0 : index
    %320 = vector.load %arg45[%c0_278, %c0_279] : memref<64x192xf32, #tpu.memory_space<vmem>>, vector<64x64xf32>
    tpu.vector_store %arg45[%c0_278, %c0_279], %319 {strides = array<i32>} : memref<64x192xf32, #tpu.memory_space<vmem>>, vector<64x64xf32>,
    %c1_280 = arith.constant 1 : index
    %c0_281 = arith.constant 0 : index
    %321 = vector.load %arg44[%c1_280, %c0_281] : memref<68x64xf32, #tpu.memory_space<vmem>>, vector<64x64xf32>
    %c0_282 = arith.constant 0 : index
    %c64_283 = arith.constant 64 : index
    %322 = vector.load %arg45[%c0_282, %c64_283] : memref<64x192xf32, #tpu.memory_space<vmem>>, vector<64x64xf32>
    tpu.vector_store %arg45[%c0_282, %c64_283], %321 {strides = array<i32>} : memref<64x192xf32, #tpu.memory_space<vmem>>, vector<64x64xf32>,
    %c2_284 = arith.constant 2 : index
    %c0_285 = arith.constant 0 : index
    %323 = vector.load %arg44[%c2_284, %c0_285] : memref<68x64xf32, #tpu.memory_space<vmem>>, vector<64x64xf32>
    %c0_286 = arith.constant 0 : index
    %c128_287 = arith.constant 128 : index
    %324 = vector.load %arg45[%c0_286, %c128_287] : memref<64x192xf32, #tpu.memory_space<vmem>>, vector<64x64xf32>
    tpu.vector_store %arg45[%c0_286, %c128_287], %323 {strides = array<i32>} : memref<64x192xf32, #tpu.memory_space<vmem>>, vector<64x64xf32>,
    %c0_288 = arith.constant 0 : index
    %c0_289 = arith.constant 0 : index
    %325 = vector.load %arg45[%c0_288, %c0_289] : memref<64x192xf32, #tpu.memory_space<vmem>>, vector<64x192xf32>
    %c0_290 = arith.constant 0 : index
    %c0_291 = arith.constant 0 : index
    %326 = vector.load %arg35[%c0_290, %c0_291] : memref<192x16xf32, #tpu.memory_space<vmem>>, vector<192x16xf32>
    %cst_292 = arith.constant dense<0.000000e+00> : vector<64x16xf32>
    %327 = tpu.matmul %325, %326, %cst_292 {dimension_numbers = #tpu.dot_dimension_numbers<[1], [0], [0], [1], [0, 0, 1, 1], [], []>} : vector<64x192xf32>, vector<192x16xf32>, vector<64x16xf32> -> vector<64x16xf32>
    %c0_293 = arith.constant 0 : index
    %c0_294 = arith.constant 0 : index
    %328 = vector.load %arg36[%c0_293, %c0_294] : memref<1x16xf32, #tpu.memory_space<vmem>>, vector<1x16xf32>
    %329 = vector.broadcast %328 : vector<1x16xf32> to vector<64x16xf32>
    %330 = arith.addf %327, %329 : vector<64x16xf32>
    %331 = vector.extract_strided_slice %43 {offsets = [0, 192], sizes = [1, 32], strides = [1, 1]} : vector<1x224xf32> to vector<1x32xf32>
    %332 = vector.extract_strided_slice %331 {offsets = [0, 0], sizes = [1, 16], strides = [1, 1]} : vector<1x32xf32> to vector<1x16xf32>
    %cst_295 = arith.constant 1.000000e+00 : f32
    %333 = vector.broadcast %cst_295 : f32 to vector<1x16xf32>
    %334 = arith.addf %333, %332 : vector<1x16xf32>
    %335 = vector.broadcast %334 : vector<1x16xf32> to vector<64x16xf32>
    %336 = arith.mulf %330, %335 : vector<64x16xf32>
    %337 = vector.extract_strided_slice %331 {offsets = [0, 16], sizes = [1, 16], strides = [1, 1]} : vector<1x32xf32> to vector<1x16xf32>
    %338 = vector.broadcast %337 : vector<1x16xf32> to vector<64x16xf32>
    %339 = arith.addf %336, %338 : vector<64x16xf32>
    %340 = arith.negf %339 : vector<64x16xf32>
    %341 = math.exp %340 : vector<64x16xf32>
    %cst_296 = arith.constant 1.000000e+00 : f32
    %342 = vector.broadcast %cst_296 : f32 to vector<64x16xf32>
    %343 = arith.addf %342, %341 : vector<64x16xf32>
    %344 = arith.divf %342, %343 : vector<64x16xf32>
    %345 = arith.mulf %339, %344 : vector<64x16xf32>
    %cst_297 = arith.constant 0.000000e+00 : f32
    %346 = vector.broadcast %cst_297 : f32 to vector<1x16xf32>
    %c0_298 = arith.constant 0 : index
    %c0_299 = arith.constant 0 : index
    %347 = vector.load %arg44[%c0_298, %c0_299] : memref<68x64xf32, #tpu.memory_space<vmem>>, vector<1x16xf32>
    tpu.vector_store %arg44[%c0_298, %c0_299], %346 {strides = array<i32>} : memref<68x64xf32, #tpu.memory_space<vmem>>, vector<1x16xf32>,
    %c65_300 = arith.constant 65 : index
    %c0_301 = arith.constant 0 : index
    %348 = vector.load %arg44[%c65_300, %c0_301] : memref<68x64xf32, #tpu.memory_space<vmem>>, vector<1x16xf32>
    tpu.vector_store %arg44[%c65_300, %c0_301], %346 {strides = array<i32>} : memref<68x64xf32, #tpu.memory_space<vmem>>, vector<1x16xf32>,
    %c1_302 = arith.constant 1 : index
    %c0_303 = arith.constant 0 : index
    %349 = vector.load %arg44[%c1_302, %c0_303] : memref<68x64xf32, #tpu.memory_space<vmem>>, vector<64x16xf32>
    tpu.vector_store %arg44[%c1_302, %c0_303], %345 {strides = array<i32>} : memref<68x64xf32, #tpu.memory_space<vmem>>, vector<64x16xf32>,
    %c0_304 = arith.constant 0 : index
    %c0_305 = arith.constant 0 : index
    %350 = vector.load %arg44[%c0_304, %c0_305] : memref<68x64xf32, #tpu.memory_space<vmem>>, vector<64x16xf32>
    %c0_306 = arith.constant 0 : index
    %c0_307 = arith.constant 0 : index
    %351 = vector.load %arg45[%c0_306, %c0_307] : memref<64x192xf32, #tpu.memory_space<vmem>>, vector<64x16xf32>
    tpu.vector_store %arg45[%c0_306, %c0_307], %350 {strides = array<i32>} : memref<64x192xf32, #tpu.memory_space<vmem>>, vector<64x16xf32>,
    %c1_308 = arith.constant 1 : index
    %c0_309 = arith.constant 0 : index
    %352 = vector.load %arg44[%c1_308, %c0_309] : memref<68x64xf32, #tpu.memory_space<vmem>>, vector<64x16xf32>
    %c0_310 = arith.constant 0 : index
    %c16_311 = arith.constant 16 : index
    %353 = vector.load %arg45[%c0_310, %c16_311] : memref<64x192xf32, #tpu.memory_space<vmem>>, vector<64x16xf32>
    tpu.vector_store %arg45[%c0_310, %c16_311], %352 {strides = array<i32>} : memref<64x192xf32, #tpu.memory_space<vmem>>, vector<64x16xf32>,
    %c2_312 = arith.constant 2 : index
    %c0_313 = arith.constant 0 : index
    %354 = vector.load %arg44[%c2_312, %c0_313] : memref<68x64xf32, #tpu.memory_space<vmem>>, vector<64x16xf32>
    %c0_314 = arith.constant 0 : index
    %c32_315 = arith.constant 32 : index
    %355 = vector.load %arg45[%c0_314, %c32_315] : memref<64x192xf32, #tpu.memory_space<vmem>>, vector<64x16xf32>
    tpu.vector_store %arg45[%c0_314, %c32_315], %354 {strides = array<i32>} : memref<64x192xf32, #tpu.memory_space<vmem>>, vector<64x16xf32>,
    %c0_316 = arith.constant 0 : index
    %c0_317 = arith.constant 0 : index
    %356 = vector.load %arg45[%c0_316, %c0_317] : memref<64x192xf32, #tpu.memory_space<vmem>>, vector<64x48xf32>
    %c0_318 = arith.constant 0 : index
    %c0_319 = arith.constant 0 : index
    %357 = vector.load %arg37[%c0_318, %c0_319] : memref<48x16xf32, #tpu.memory_space<vmem>>, vector<48x16xf32>
    %cst_320 = arith.constant dense<0.000000e+00> : vector<64x16xf32>
    %358 = tpu.matmul %356, %357, %cst_320 {dimension_numbers = #tpu.dot_dimension_numbers<[1], [0], [0], [1], [0, 0, 1, 1], [], []>} : vector<64x48xf32>, vector<48x16xf32>, vector<64x16xf32> -> vector<64x16xf32>
    %c0_321 = arith.constant 0 : index
    %c0_322 = arith.constant 0 : index
    %359 = vector.load %arg38[%c0_321, %c0_322] : memref<1x16xf32, #tpu.memory_space<vmem>>, vector<1x16xf32>
    %360 = vector.broadcast %359 : vector<1x16xf32> to vector<64x16xf32>
    %361 = arith.addf %358, %360 : vector<64x16xf32>
    %362 = arith.addf %361, %313 : vector<64x16xf32>
    %cst_323 = arith.constant 0.000000e+00 : f32
    %363 = vector.broadcast %cst_323 : f32 to vector<1x16xf32>
    %c0_324 = arith.constant 0 : index
    %c0_325 = arith.constant 0 : index
    %364 = vector.load %arg44[%c0_324, %c0_325] : memref<68x64xf32, #tpu.memory_space<vmem>>, vector<1x16xf32>
    tpu.vector_store %arg44[%c0_324, %c0_325], %363 {strides = array<i32>} : memref<68x64xf32, #tpu.memory_space<vmem>>, vector<1x16xf32>,
    %c65_326 = arith.constant 65 : index
    %c0_327 = arith.constant 0 : index
    %365 = vector.load %arg44[%c65_326, %c0_327] : memref<68x64xf32, #tpu.memory_space<vmem>>, vector<1x16xf32>
    tpu.vector_store %arg44[%c65_326, %c0_327], %363 {strides = array<i32>} : memref<68x64xf32, #tpu.memory_space<vmem>>, vector<1x16xf32>,
    %c1_328 = arith.constant 1 : index
    %c0_329 = arith.constant 0 : index
    %366 = vector.load %arg44[%c1_328, %c0_329] : memref<68x64xf32, #tpu.memory_space<vmem>>, vector<64x16xf32>
    tpu.vector_store %arg44[%c1_328, %c0_329], %362 {strides = array<i32>} : memref<68x64xf32, #tpu.memory_space<vmem>>, vector<64x16xf32>,
    %c0_330 = arith.constant 0 : index
    %c0_331 = arith.constant 0 : index
    %367 = vector.load %arg44[%c0_330, %c0_331] : memref<68x64xf32, #tpu.memory_space<vmem>>, vector<64x16xf32>
    %c0_332 = arith.constant 0 : index
    %c0_333 = arith.constant 0 : index
    %368 = vector.load %arg45[%c0_332, %c0_333] : memref<64x192xf32, #tpu.memory_space<vmem>>, vector<64x16xf32>
    tpu.vector_store %arg45[%c0_332, %c0_333], %367 {strides = array<i32>} : memref<64x192xf32, #tpu.memory_space<vmem>>, vector<64x16xf32>,
    %c1_334 = arith.constant 1 : index
    %c0_335 = arith.constant 0 : index
    %369 = vector.load %arg44[%c1_334, %c0_335] : memref<68x64xf32, #tpu.memory_space<vmem>>, vector<64x16xf32>
    %c0_336 = arith.constant 0 : index
    %c16_337 = arith.constant 16 : index
    %370 = vector.load %arg45[%c0_336, %c16_337] : memref<64x192xf32, #tpu.memory_space<vmem>>, vector<64x16xf32>
    tpu.vector_store %arg45[%c0_336, %c16_337], %369 {strides = array<i32>} : memref<64x192xf32, #tpu.memory_space<vmem>>, vector<64x16xf32>,
    %c2_338 = arith.constant 2 : index
    %c0_339 = arith.constant 0 : index
    %371 = vector.load %arg44[%c2_338, %c0_339] : memref<68x64xf32, #tpu.memory_space<vmem>>, vector<64x16xf32>
    %c0_340 = arith.constant 0 : index
    %c32_341 = arith.constant 32 : index
    %372 = vector.load %arg45[%c0_340, %c32_341] : memref<64x192xf32, #tpu.memory_space<vmem>>, vector<64x16xf32>
    tpu.vector_store %arg45[%c0_340, %c32_341], %371 {strides = array<i32>} : memref<64x192xf32, #tpu.memory_space<vmem>>, vector<64x16xf32>,
    %c0_342 = arith.constant 0 : index
    %c0_343 = arith.constant 0 : index
    %373 = vector.load %arg45[%c0_342, %c0_343] : memref<64x192xf32, #tpu.memory_space<vmem>>, vector<64x48xf32>
    %c0_344 = arith.constant 0 : index
    %c0_345 = arith.constant 0 : index
    %374 = vector.load %arg41[%c0_344, %c0_345] : memref<48x1xf32, #tpu.memory_space<vmem>>, vector<48x1xf32>
    %cst_346 = arith.constant dense<0.000000e+00> : vector<64x1xf32>
    %375 = tpu.matmul %373, %374, %cst_346 {dimension_numbers = #tpu.dot_dimension_numbers<[1], [0], [0], [1], [0, 0, 1, 1], [], []>} : vector<64x48xf32>, vector<48x1xf32>, vector<64x1xf32> -> vector<64x1xf32>
    %c0_347 = arith.constant 0 : index
    %c0_348 = arith.constant 0 : index
    %376 = vector.load %arg42[%c0_347, %c0_348] : memref<1x1xf32, #tpu.memory_space<vmem>>, vector<1x1xf32>
    %377 = vector.broadcast %376 : vector<1x1xf32> to vector<64x1xf32>
    %378 = arith.addf %375, %377 : vector<64x1xf32>
    %c0_349 = arith.constant 0 : index
    %c0_350 = arith.constant 0 : index
    %c0_351 = arith.constant 0 : index
    %379 = vector.load %arg43[%c0_349, %c0_350, %c0_351] : memref<1x64x1xf32, #tpu.memory_space<vmem>>, vector<1x64x1xf32>
    %380 = vector.shape_cast %379 : vector<1x64x1xf32> to vector<64x1xf32>
    %381 = vector.shape_cast %378 : vector<64x1xf32> to vector<1x64x1xf32>
    tpu.vector_store %arg43[%c0_349, %c0_350, %c0_351], %381 {strides = array<i32>} : memref<1x64x1xf32, #tpu.memory_space<vmem>>, vector<1x64x1xf32>,
    return
  }
  func.func @transform_0(%arg0: i32) -> (i32, i32, i32) {
    %c0_i32 = arith.constant 0 : i32
    %c0_i32_0 = arith.constant 0 : i32
    %c0_i32_1 = arith.constant 0 : i32
    return %arg0, %c0_i32, %c0_i32_0 : i32, i32, i32
  }
  func.func @transform_1(%arg0: i32) -> (i32, i32, i32) {
    %c0_i32 = arith.constant 0 : i32
    %c0_i32_0 = arith.constant 0 : i32
    %c0_i32_1 = arith.constant 0 : i32
    return %arg0, %c0_i32, %c0_i32_0 : i32, i32, i32
  }
  func.func @transform_2(%arg0: i32) -> (i32, i32, i32) {
    %c0_i32 = arith.constant 0 : i32
    %c0_i32_0 = arith.constant 0 : i32
    %c0_i32_1 = arith.constant 0 : i32
    return %arg0, %c0_i32, %c0_i32_0 : i32, i32, i32
  }
  func.func @transform_3(%arg0: i32) -> (i32, i32, i32) {
    %c0_i32 = arith.constant 0 : i32
    %c0_i32_0 = arith.constant 0 : i32
    %c0_i32_1 = arith.constant 0 : i32
    return %arg0, %c0_i32, %c0_i32_0 : i32, i32, i32
  }
  func.func @transform_4(%arg0: i32) -> (i32, i32) {
    %c0_i32 = arith.constant 0 : i32
    %c0_i32_0 = arith.constant 0 : i32
    %c0_i32_1 = arith.constant 0 : i32
    return %c0_i32, %c0_i32_0 : i32, i32
  }
  func.func @transform_5(%arg0: i32) -> (i32, i32) {
    %c0_i32 = arith.constant 0 : i32
    %c0_i32_0 = arith.constant 0 : i32
    %c0_i32_1 = arith.constant 0 : i32
    return %c0_i32, %c0_i32_0 : i32, i32
  }
  func.func @transform_6(%arg0: i32) -> (i32, i32) {
    %c0_i32 = arith.constant 0 : i32
    %c0_i32_0 = arith.constant 0 : i32
    %c0_i32_1 = arith.constant 0 : i32
    return %c0_i32, %c0_i32_0 : i32, i32
  }
  func.func @transform_7(%arg0: i32) -> (i32, i32) {
    %c0_i32 = arith.constant 0 : i32
    %c0_i32_0 = arith.constant 0 : i32
    %c0_i32_1 = arith.constant 0 : i32
    return %c0_i32, %c0_i32_0 : i32, i32
  }
  func.func @transform_8(%arg0: i32) -> (i32, i32) {
    %c0_i32 = arith.constant 0 : i32
    %c0_i32_0 = arith.constant 0 : i32
    %c0_i32_1 = arith.constant 0 : i32
    return %c0_i32, %c0_i32_0 : i32, i32
  }
  func.func @transform_9(%arg0: i32) -> (i32, i32) {
    %c0_i32 = arith.constant 0 : i32
    %c0_i32_0 = arith.constant 0 : i32
    %c0_i32_1 = arith.constant 0 : i32
    return %c0_i32, %c0_i32_0 : i32, i32
  }
  func.func @transform_10(%arg0: i32) -> (i32, i32) {
    %c0_i32 = arith.constant 0 : i32
    %c0_i32_0 = arith.constant 0 : i32
    %c0_i32_1 = arith.constant 0 : i32
    return %c0_i32, %c0_i32_0 : i32, i32
  }
  func.func @transform_11(%arg0: i32) -> (i32, i32) {
    %c0_i32 = arith.constant 0 : i32
    %c0_i32_0 = arith.constant 0 : i32
    %c0_i32_1 = arith.constant 0 : i32
    return %c0_i32, %c0_i32_0 : i32, i32
  }
  func.func @transform_12(%arg0: i32) -> (i32, i32) {
    %c0_i32 = arith.constant 0 : i32
    %c0_i32_0 = arith.constant 0 : i32
    %c0_i32_1 = arith.constant 0 : i32
    return %c0_i32, %c0_i32_0 : i32, i32
  }
  func.func @transform_13(%arg0: i32) -> (i32, i32) {
    %c0_i32 = arith.constant 0 : i32
    %c0_i32_0 = arith.constant 0 : i32
    %c0_i32_1 = arith.constant 0 : i32
    return %c0_i32, %c0_i32_0 : i32, i32
  }
  func.func @transform_14(%arg0: i32) -> (i32, i32) {
    %c0_i32 = arith.constant 0 : i32
    %c0_i32_0 = arith.constant 0 : i32
    %c0_i32_1 = arith.constant 0 : i32
    return %c0_i32, %c0_i32_0 : i32, i32
  }
  func.func @transform_15(%arg0: i32) -> (i32, i32) {
    %c0_i32 = arith.constant 0 : i32
    %c0_i32_0 = arith.constant 0 : i32
    %c0_i32_1 = arith.constant 0 : i32
    return %c0_i32, %c0_i32_0 : i32, i32
  }
  func.func @transform_16(%arg0: i32) -> (i32, i32) {
    %c0_i32 = arith.constant 0 : i32
    %c0_i32_0 = arith.constant 0 : i32
    %c0_i32_1 = arith.constant 0 : i32
    return %c0_i32, %c0_i32_0 : i32, i32
  }
  func.func @transform_17(%arg0: i32) -> (i32, i32) {
    %c0_i32 = arith.constant 0 : i32
    %c0_i32_0 = arith.constant 0 : i32
    %c0_i32_1 = arith.constant 0 : i32
    return %c0_i32, %c0_i32_0 : i32, i32
  }
  func.func @transform_18(%arg0: i32) -> (i32, i32) {
    %c0_i32 = arith.constant 0 : i32
    %c0_i32_0 = arith.constant 0 : i32
    %c0_i32_1 = arith.constant 0 : i32
    return %c0_i32, %c0_i32_0 : i32, i32
  }
  func.func @transform_19(%arg0: i32) -> (i32, i32) {
    %c0_i32 = arith.constant 0 : i32
    %c0_i32_0 = arith.constant 0 : i32
    %c0_i32_1 = arith.constant 0 : i32
    return %c0_i32, %c0_i32_0 : i32, i32
  }
  func.func @transform_20(%arg0: i32) -> (i32, i32) {
    %c0_i32 = arith.constant 0 : i32
    %c0_i32_0 = arith.constant 0 : i32
    %c0_i32_1 = arith.constant 0 : i32
    return %c0_i32, %c0_i32_0 : i32, i32
  }
  func.func @transform_21(%arg0: i32) -> (i32, i32) {
    %c0_i32 = arith.constant 0 : i32
    %c0_i32_0 = arith.constant 0 : i32
    %c0_i32_1 = arith.constant 0 : i32
    return %c0_i32, %c0_i32_0 : i32, i32
  }
  func.func @transform_22(%arg0: i32) -> (i32, i32) {
    %c0_i32 = arith.constant 0 : i32
    %c0_i32_0 = arith.constant 0 : i32
    %c0_i32_1 = arith.constant 0 : i32
    return %c0_i32, %c0_i32_0 : i32, i32
  }
  func.func @transform_23(%arg0: i32) -> (i32, i32) {
    %c0_i32 = arith.constant 0 : i32
    %c0_i32_0 = arith.constant 0 : i32
    %c0_i32_1 = arith.constant 0 : i32
    return %c0_i32, %c0_i32_0 : i32, i32
  }
  func.func @transform_24(%arg0: i32) -> (i32, i32) {
    %c0_i32 = arith.constant 0 : i32
    %c0_i32_0 = arith.constant 0 : i32
    %c0_i32_1 = arith.constant 0 : i32
    return %c0_i32, %c0_i32_0 : i32, i32
  }
  func.func @transform_25(%arg0: i32) -> (i32, i32) {
    %c0_i32 = arith.constant 0 : i32
    %c0_i32_0 = arith.constant 0 : i32
    %c0_i32_1 = arith.constant 0 : i32
    return %c0_i32, %c0_i32_0 : i32, i32
  }
  func.func @transform_26(%arg0: i32) -> (i32, i32) {
    %c0_i32 = arith.constant 0 : i32
    %c0_i32_0 = arith.constant 0 : i32
    %c0_i32_1 = arith.constant 0 : i32
    return %c0_i32, %c0_i32_0 : i32, i32
  }
  func.func @transform_27(%arg0: i32) -> (i32, i32) {
    %c0_i32 = arith.constant 0 : i32
    %c0_i32_0 = arith.constant 0 : i32
    %c0_i32_1 = arith.constant 0 : i32
    return %c0_i32, %c0_i32_0 : i32, i32
  }
  func.func @transform_28(%arg0: i32) -> (i32, i32) {
    %c0_i32 = arith.constant 0 : i32
    %c0_i32_0 = arith.constant 0 : i32
    %c0_i32_1 = arith.constant 0 : i32
    return %c0_i32, %c0_i32_0 : i32, i32
  }
  func.func @transform_29(%arg0: i32) -> (i32, i32) {
    %c0_i32 = arith.constant 0 : i32
    %c0_i32_0 = arith.constant 0 : i32
    %c0_i32_1 = arith.constant 0 : i32
    return %c0_i32, %c0_i32_0 : i32, i32
  }
  func.func @transform_30(%arg0: i32) -> (i32, i32) {
    %c0_i32 = arith.constant 0 : i32
    %c0_i32_0 = arith.constant 0 : i32
    %c0_i32_1 = arith.constant 0 : i32
    return %c0_i32, %c0_i32_0 : i32, i32
  }
  func.func @transform_31(%arg0: i32) -> (i32, i32) {
    %c0_i32 = arith.constant 0 : i32
    %c0_i32_0 = arith.constant 0 : i32
    %c0_i32_1 = arith.constant 0 : i32
    return %c0_i32, %c0_i32_0 : i32, i32
  }
  func.func @transform_32(%arg0: i32) -> (i32, i32) {
    %c0_i32 = arith.constant 0 : i32
    %c0_i32_0 = arith.constant 0 : i32
    %c0_i32_1 = arith.constant 0 : i32
    return %c0_i32, %c0_i32_0 : i32, i32
  }
  func.func @transform_33(%arg0: i32) -> (i32, i32) {
    %c0_i32 = arith.constant 0 : i32
    %c0_i32_0 = arith.constant 0 : i32
    %c0_i32_1 = arith.constant 0 : i32
    return %c0_i32, %c0_i32_0 : i32, i32
  }
  func.func @transform_34(%arg0: i32) -> (i32, i32) {
    %c0_i32 = arith.constant 0 : i32
    %c0_i32_0 = arith.constant 0 : i32
    %c0_i32_1 = arith.constant 0 : i32
    return %c0_i32, %c0_i32_0 : i32, i32
  }
  func.func @transform_35(%arg0: i32) -> (i32, i32) {
    %c0_i32 = arith.constant 0 : i32
    %c0_i32_0 = arith.constant 0 : i32
    %c0_i32_1 = arith.constant 0 : i32
    return %c0_i32, %c0_i32_0 : i32, i32
  }
  func.func @transform_36(%arg0: i32) -> (i32, i32) {
    %c0_i32 = arith.constant 0 : i32
    %c0_i32_0 = arith.constant 0 : i32
    %c0_i32_1 = arith.constant 0 : i32
    return %c0_i32, %c0_i32_0 : i32, i32
  }
  func.func @transform_37(%arg0: i32) -> (i32, i32) {
    %c0_i32 = arith.constant 0 : i32
    %c0_i32_0 = arith.constant 0 : i32
    %c0_i32_1 = arith.constant 0 : i32
    return %c0_i32, %c0_i32_0 : i32, i32
  }
  func.func @transform_38(%arg0: i32) -> (i32, i32) {
    %c0_i32 = arith.constant 0 : i32
    %c0_i32_0 = arith.constant 0 : i32
    %c0_i32_1 = arith.constant 0 : i32
    return %c0_i32, %c0_i32_0 : i32, i32
  }
  func.func @transform_39(%arg0: i32) -> (i32, i32) {
    %c0_i32 = arith.constant 0 : i32
    %c0_i32_0 = arith.constant 0 : i32
    %c0_i32_1 = arith.constant 0 : i32
    return %c0_i32, %c0_i32_0 : i32, i32
  }
  func.func @transform_40(%arg0: i32) -> (i32, i32) {
    %c0_i32 = arith.constant 0 : i32
    %c0_i32_0 = arith.constant 0 : i32
    %c0_i32_1 = arith.constant 0 : i32
    return %c0_i32, %c0_i32_0 : i32, i32
  }
  func.func @transform_41(%arg0: i32) -> (i32, i32) {
    %c0_i32 = arith.constant 0 : i32
    %c0_i32_0 = arith.constant 0 : i32
    %c0_i32_1 = arith.constant 0 : i32
    return %c0_i32, %c0_i32_0 : i32, i32
  }
  func.func @transform_42(%arg0: i32) -> (i32, i32, i32) {
    %c0_i32 = arith.constant 0 : i32
    %c0_i32_0 = arith.constant 0 : i32
    %c0_i32_1 = arith.constant 0 : i32
    return %arg0, %c0_i32, %c0_i32_0 : i32, i32, i32
  }
}

</mosaic_0001>

<llo_original>
// kernel: unet_forward.1
$region0: #{unet_forward.1}
  #allocation0 [shape = 'u32[]', space=smem, size = 0x4, offset = 0x4, fixed_abs, tag = 'smem constant byte address 0x4 - core index']
  #allocation1 [shape = 'u32[144,128]{1,0:T(1,128)}', space=vmem, size = 0x12000, scoped, tag = 'internal scratch']
  #allocation2 [shape = 'f32[68,64]{1,0:T(8,128)}', space=vmem, size = 0x9000, scoped, tag = 'scratch operand']
  #allocation3 [shape = 'f32[64,192]{1,0:T(8,128)}', space=vmem, size = 0x10000, scoped, tag = 'scratch operand']
  #allocation4 [shape = 'f32[1,1]{1,0:T(1,128)S(1)}', space=vmem, size = 0x200, scoped, tag = 'scoped memory for unet_forward.1']
  %s0 = inlined_call_operand.smem [shape: u32[43], index: -1, kind: input, shape index: {}]
  %s1 = sld [smem:[%s0]]
  %s2 = scalar_lea.smem %s0, 1
  %s3 = sld [smem:[%s2]]
  %s4 = scalar_lea.smem %s0, 2
  %s5 = sld [smem:[%s4]]
  %s6 = scalar_lea.smem %s0, 3
  %s7 = sld [smem:[%s6]]
  %s8 = scalar_lea.smem %s0, 4
  %s9 = sld [smem:[%s8]]
  %s10 = scalar_lea.smem %s0, 5
  %s11 = sld [smem:[%s10]]
  %s12 = scalar_lea.smem %s0, 6
  %s13 = sld [smem:[%s12]]
  %s14 = scalar_lea.smem %s0, 7
  %s15 = sld [smem:[%s14]]
  %s16 = scalar_lea.smem %s0, 8
  %s17 = sld [smem:[%s16]]
  %s18 = scalar_lea.smem %s0, 9
  %s19 = sld [smem:[%s18]]
  %s20 = scalar_lea.smem %s0, 10
  %s21 = sld [smem:[%s20]]
  %s22 = scalar_lea.smem %s0, 11
  %s23 = sld [smem:[%s22]]
  %s24 = scalar_lea.smem %s0, 12
  %s25 = sld [smem:[%s24]]
  %s26 = scalar_lea.smem %s0, 13
  %s27 = sld [smem:[%s26]]
  %s28 = scalar_lea.smem %s0, 14
  %s29 = sld [smem:[%s28]]
  %s30 = scalar_lea.smem %s0, 15
  %s31 = sld [smem:[%s30]]
  %s32 = scalar_lea.smem %s0, 16
  %s33 = sld [smem:[%s32]]
  %s34 = scalar_lea.smem %s0, 17
  %s35 = sld [smem:[%s34]]
  %s36 = scalar_lea.smem %s0, 18
  %s37 = sld [smem:[%s36]]
  %s38 = scalar_lea.smem %s0, 19
  %s39 = sld [smem:[%s38]]
  %s40 = scalar_lea.smem %s0, 20
  %s41 = sld [smem:[%s40]]
  %s42 = scalar_lea.smem %s0, 21
  %s43 = sld [smem:[%s42]]
  %s44 = scalar_lea.smem %s0, 22
  %s45 = sld [smem:[%s44]]
  %s46 = scalar_lea.smem %s0, 23
  %s47 = sld [smem:[%s46]]
  %s48 = scalar_lea.smem %s0, 24
  %s49 = sld [smem:[%s48]]
  %s50 = scalar_lea.smem %s0, 25
  %s51 = sld [smem:[%s50]]
  %s52 = scalar_lea.smem %s0, 26
  %s53 = sld [smem:[%s52]]
  %s54 = scalar_lea.smem %s0, 27
  %s55 = sld [smem:[%s54]]
  %s56 = scalar_lea.smem %s0, 28
  %s57 = sld [smem:[%s56]]
  %s58 = scalar_lea.smem %s0, 29
  %s59 = sld [smem:[%s58]]
  %s60 = scalar_lea.smem %s0, 30
  %s61 = sld [smem:[%s60]]
  %s62 = scalar_lea.smem %s0, 31
  %s63 = sld [smem:[%s62]]
  %s64 = scalar_lea.smem %s0, 32
  %s65 = sld [smem:[%s64]]
  %s66 = scalar_lea.smem %s0, 33
  %s67 = sld [smem:[%s66]]
  %s68 = scalar_lea.smem %s0, 34
  %s69 = sld [smem:[%s68]]
  %s70 = scalar_lea.smem %s0, 35
  %s71 = sld [smem:[%s70]]
  %s72 = scalar_lea.smem %s0, 36
  %s73 = sld [smem:[%s72]]
  %s74 = scalar_lea.smem %s0, 37
  %s75 = sld [smem:[%s74]]
  %s76 = scalar_lea.smem %s0, 38
  %s77 = sld [smem:[%s76]]
  %s78 = scalar_lea.smem %s0, 39
  %s79 = sld [smem:[%s78]]
  %s80 = scalar_lea.smem %s0, 40
  %s81 = sld [smem:[%s80]]
  %s82 = scalar_lea.smem %s0, 41
  %s83 = sld [smem:[%s82]]
  %s84 = scalar_lea.smem %s0, 42
  %s85 = sld [smem:[%s84]]
  %s86 = sld [smem:[#allocation0]]
  $region201: #{unet_forward.1} parent=0
    _
  %s88 = ssub.s32 1, %s86
  %s89 = scalar_select 0, %s88, %s86
  %v90 = vstv %s83
  %91 = vst [vmem:[#allocation4] sm:$0x1] %v90
  loop: start=0, step=1, limit=4
  $region2: #{unet_forward.1} parent=0 // loop_pre_header
    _
  $region3: #{unet_forward.1} parent=0 // loop_header
    %s93 = sphi 0, %s97
    %p94 = scmp.ge.s32.totalorder %s93, 4
    %s103 = sphi 0, %s105
    %s106 = sphi 0, %s103
    %s107 = sphi 0, %s106
    %s123 = sphi 0, %s107
    %s129 = sphi 0, %s131
    %s132 = sphi 0, %s129
    %s133 = sphi 0, %s132
    %s149 = sphi 0, %s133
    %s155 = sphi 0, %s157
    %s158 = sphi 0, %s155
    %s159 = sphi 0, %s158
    %s175 = sphi 0, %s159
    %s181 = sphi 0, %s183
    %s184 = sphi 0, %s181
    %s185 = sphi 0, %s184
    %s201 = sphi 0, %s185
    %s205 = sphi 0, %s205
    %s207 = sphi 0, %s205
    %s208 = sphi 0, %s207
    %s222 = sphi 0, %s208
    %s226 = sphi 0, %s226
    %s228 = sphi 0, %s226
    %s229 = sphi 0, %s228
    %s243 = sphi 0, %s229
    %s247 = sphi 0, %s247
    %s249 = sphi 0, %s247
    %s250 = sphi 0, %s249
    %s264 = sphi 0, %s250
    %s268 = sphi 0, %s268
    %s270 = sphi 0, %s268
    %s271 = sphi 0, %s270
    %s285 = sphi 0, %s271
    %s289 = sphi 0, %s289
    %s291 = sphi 0, %s289
    %s292 = sphi 0, %s291
    %s306 = sphi 0, %s292
    %s310 = sphi 0, %s310
    %s312 = sphi 0, %s310
    %s313 = sphi 0, %s312
    %s327 = sphi 0, %s313
    %s331 = sphi 0, %s331
    %s333 = sphi 0, %s331
    %s334 = sphi 0, %s333
    %s348 = sphi 0, %s334
    %s352 = sphi 0, %s352
    %s354 = sphi 0, %s352
    %s355 = sphi 0, %s354
    %s369 = sphi 0, %s355
    %s373 = sphi 0, %s373
    %s375 = sphi 0, %s373
    %s376 = sphi 0, %s375
    %s390 = sphi 0, %s376
    %s394 = sphi 0, %s394
    %s396 = sphi 0, %s394
    %s397 = sphi 0, %s396
    %s411 = sphi 0, %s397
    %s415 = sphi 0, %s415
    %s417 = sphi 0, %s415
    %s418 = sphi 0, %s417
    %s432 = sphi 0, %s418
    %s436 = sphi 0, %s436
    %s438 = sphi 0, %s436
    %s439 = sphi 0, %s438
    %s453 = sphi 0, %s439
    %s457 = sphi 0, %s457
    %s459 = sphi 0, %s457
    %s460 = sphi 0, %s459
    %s474 = sphi 0, %s460
    %s478 = sphi 0, %s478
    %s480 = sphi 0, %s478
    %s481 = sphi 0, %s480
    %s495 = sphi 0, %s481
    %s499 = sphi 0, %s499
    %s501 = sphi 0, %s499
    %s502 = sphi 0, %s501
    %s516 = sphi 0, %s502
    %s520 = sphi 0, %s520
    %s522 = sphi 0, %s520
    %s523 = sphi 0, %s522
    %s537 = sphi 0, %s523
    %s541 = sphi 0, %s541
    %s543 = sphi 0, %s541
    %s544 = sphi 0, %s543
    %s558 = sphi 0, %s544
    %s562 = sphi 0, %s562
    %s564 = sphi 0, %s562
    %s565 = sphi 0, %s564
    %s579 = sphi 0, %s565
    %s583 = sphi 0, %s583
    %s585 = sphi 0, %s583
    %s586 = sphi 0, %s585
    %s600 = sphi 0, %s586
    %s604 = sphi 0, %s604
    %s606 = sphi 0, %s604
    %s607 = sphi 0, %s606
    %s621 = sphi 0, %s607
    %s625 = sphi 0, %s625
    %s627 = sphi 0, %s625
    %s628 = sphi 0, %s627
    %s642 = sphi 0, %s628
    %s646 = sphi 0, %s646
    %s648 = sphi 0, %s646
    %s649 = sphi 0, %s648
    %s663 = sphi 0, %s649
    %s667 = sphi 0, %s667
    %s669 = sphi 0, %s667
    %s670 = sphi 0, %s669
    %s684 = sphi 0, %s670
    %s688 = sphi 0, %s688
    %s690 = sphi 0, %s688
    %s691 = sphi 0, %s690
    %s705 = sphi 0, %s691
    %s709 = sphi 0, %s709
    %s711 = sphi 0, %s709
    %s712 = sphi 0, %s711
    %s726 = sphi 0, %s712
    %s730 = sphi 0, %s730
    %s732 = sphi 0, %s730
    %s733 = sphi 0, %s732
    %s747 = sphi 0, %s733
    %s751 = sphi 0, %s751
    %s753 = sphi 0, %s751
    %s754 = sphi 0, %s753
    %s768 = sphi 0, %s754
    %s772 = sphi 0, %s772
    %s774 = sphi 0, %s772
    %s775 = sphi 0, %s774
    %s789 = sphi 0, %s775
    %s793 = sphi 0, %s793
    %s795 = sphi 0, %s793
    %s796 = sphi 0, %s795
    %s810 = sphi 0, %s796
    %s814 = sphi 0, %s814
    %s816 = sphi 0, %s814
    %s817 = sphi 0, %s816
    %s831 = sphi 0, %s817
    %s835 = sphi 0, %s835
    %s837 = sphi 0, %s835
    %s838 = sphi 0, %s837
    %s852 = sphi 0, %s838
    %s856 = sphi 0, %s856
    %s858 = sphi 0, %s856
    %s859 = sphi 0, %s858
    %s873 = sphi 0, %s859
    %s877 = sphi 0, %s877
    %s879 = sphi 0, %s877
    %s880 = sphi 0, %s879
    %s894 = sphi 0, %s880
    %s898 = sphi 0, %s898
    %s900 = sphi 0, %s898
    %s901 = sphi 0, %s900
    %s915 = sphi 0, %s901
    %s919 = sphi 0, %s919
    %s921 = sphi 0, %s919
    %s922 = sphi 0, %s921
    %s936 = sphi 0, %s922
    %s940 = sphi 0, %s940
    %s942 = sphi 0, %s940
    %s943 = sphi 0, %s942
    %s957 = sphi 0, %s943
    %s961 = sphi 0, %s961
    %s963 = sphi 0, %s961
    %s964 = sphi 0, %s963
    %s978 = sphi 0, %s964
    %s982 = sphi 0, %s982
    %s984 = sphi 0, %s982
    %s985 = sphi 0, %s984
    %s999 = sphi 0, %s985
    %s1005 = sphi 0, %s1007
    %s1008 = sphi 0, %s1005
    %s1009 = sphi 0, %s1008
    %s1025 = sphi 0, %s1009
  $region4: #{unet_forward.1} parent=0 // loop_header_branch
    %96 = sbr.rel (%p94) target = $region8
  $region5: #{unet_forward.1} parent=0 // loop_body
    %s98 = ssub.s32 %s93, 1
    %s99 = ssub.s32 %s93, 2
    %s100 = sadd.s32 %s93, 1
    %s101 = ssub.s32 %s93, %s100
    %p102 = scmp.eq.s32.totalorder %s101, 0
    %s104 = sadd.s32 %s103, 1
    %s105 = scalar_select %p102, %s103, %s104
    %p108 = pneg %p102
    %p109 = scmp.eq.s32.totalorder %s93, 1
    %p110 = por %p108, %p109
    %p111 = scmp.ne.s32.totalorder %s103, %s106
    %p112 = scmp.eq.s32.totalorder %s93, 0
    %p113 = por %p111, %p112
    %p114 = scmp.ne.s32.totalorder %s103, %s106
    %p115 = scmp.eq.s32.totalorder %s98, 1
    %p116 = por %p114, %p115
    %p117 = scmp.ne.s32.totalorder %s106, %s107
    %p118 = scmp.eq.s32.totalorder %s98, 0
    %p119 = por %p117, %p118
    %p120 = scmp.ne.s32.totalorder %s106, %s107
    %p121 = scmp.eq.s32.totalorder %s99, 1
    %p122 = por %p120, %p121
    %p124 = scmp.ne.s32.totalorder %s107, %s123
    %p125 = scmp.eq.s32.totalorder %s99, 0
    %p126 = por %p124, %p125
    %s127 = ssub.s32 %s93, %s100
    %p128 = scmp.eq.s32.totalorder %s127, 0
    %s130 = sadd.s32 %s129, 1
    %s131 = scalar_select %p128, %s129, %s130
    %p134 = pneg %p128
    %p135 = scmp.eq.s32.totalorder %s93, 1
    %p136 = por %p134, %p135
    %p137 = scmp.ne.s32.totalorder %s129, %s132
    %p138 = scmp.eq.s32.totalorder %s93, 0
    %p139 = por %p137, %p138
    %p140 = scmp.ne.s32.totalorder %s129, %s132
    %p141 = scmp.eq.s32.totalorder %s98, 1
    %p142 = por %p140, %p141
    %p143 = scmp.ne.s32.totalorder %s132, %s133
    %p144 = scmp.eq.s32.totalorder %s98, 0
    %p145 = por %p143, %p144
    %p146 = scmp.ne.s32.totalorder %s132, %s133
    %p147 = scmp.eq.s32.totalorder %s99, 1
    %p148 = por %p146, %p147
    %p150 = scmp.ne.s32.totalorder %s133, %s149
    %p151 = scmp.eq.s32.totalorder %s99, 0
    %p152 = por %p150, %p151
    %s153 = ssub.s32 %s93, %s100
    %p154 = scmp.eq.s32.totalorder %s153, 0
    %s156 = sadd.s32 %s155, 1
    %s157 = scalar_select %p154, %s155, %s156
    %p160 = pneg %p154
    %p161 = scmp.eq.s32.totalorder %s93, 1
    %p162 = por %p160, %p161
    %p163 = scmp.ne.s32.totalorder %s155, %s158
    %p164 = scmp.eq.s32.totalorder %s93, 0
    %p165 = por %p163, %p164
    %p166 = scmp.ne.s32.totalorder %s155, %s158
    %p167 = scmp.eq.s32.totalorder %s98, 1
    %p168 = por %p166, %p167
    %p169 = scmp.ne.s32.totalorder %s158, %s159
    %p170 = scmp.eq.s32.totalorder %s98, 0
    %p171 = por %p169, %p170
    %p172 = scmp.ne.s32.totalorder %s158, %s159
    %p173 = scmp.eq.s32.totalorder %s99, 1
    %p174 = por %p172, %p173
    %p176 = scmp.ne.s32.totalorder %s159, %s175
    %p177 = scmp.eq.s32.totalorder %s99, 0
    %p178 = por %p176, %p177
    %s179 = ssub.s32 %s93, %s100
    %p180 = scmp.eq.s32.totalorder %s179, 0
    %s182 = sadd.s32 %s181, 1
    %s183 = scalar_select %p180, %s181, %s182
    %p186 = pneg %p180
    %p187 = scmp.eq.s32.totalorder %s93, 1
    %p188 = por %p186, %p187
    %p189 = scmp.ne.s32.totalorder %s181, %s184
    %p190 = scmp.eq.s32.totalorder %s93, 0
    %p191 = por %p189, %p190
    %p192 = scmp.ne.s32.totalorder %s181, %s184
    %p193 = scmp.eq.s32.totalorder %s98, 1
    %p194 = por %p192, %p193
    %p195 = scmp.ne.s32.totalorder %s184, %s185
    %p196 = scmp.eq.s32.totalorder %s98, 0
    %p197 = por %p195, %p196
    %p198 = scmp.ne.s32.totalorder %s184, %s185
    %p199 = scmp.eq.s32.totalorder %s99, 1
    %p200 = por %p198, %p199
    %p202 = scmp.ne.s32.totalorder %s185, %s201
    %p203 = scmp.eq.s32.totalorder %s99, 0
    %p204 = por %p202, %p203
    %s206 = sadd.s32 %s205, 1
    %p209 = scmp.eq.s32.totalorder %s93, 1
    %p210 = scmp.ne.s32.totalorder %s205, %s207
    %p211 = scmp.eq.s32.totalorder %s93, 0
    %p212 = por %p210, %p211
    %p213 = scmp.ne.s32.totalorder %s205, %s207
    %p214 = scmp.eq.s32.totalorder %s98, 1
    %p215 = por %p213, %p214
    %p216 = scmp.ne.s32.totalorder %s207, %s208
    %p217 = scmp.eq.s32.totalorder %s98, 0
    %p218 = por %p216, %p217
    %p219 = scmp.ne.s32.totalorder %s207, %s208
    %p220 = scmp.eq.s32.totalorder %s99, 1
    %p221 = por %p219, %p220
    %p223 = scmp.ne.s32.totalorder %s208, %s222
    %p224 = scmp.eq.s32.totalorder %s99, 0
    %p225 = por %p223, %p224
    %s227 = sadd.s32 %s226, 1
    %p230 = scmp.eq.s32.totalorder %s93, 1
    %p231 = scmp.ne.s32.totalorder %s226, %s228
    %p232 = scmp.eq.s32.totalorder %s93, 0
    %p233 = por %p231, %p232
    %p234 = scmp.ne.s32.totalorder %s226, %s228
    %p235 = scmp.eq.s32.totalorder %s98, 1
    %p236 = por %p234, %p235
    %p237 = scmp.ne.s32.totalorder %s228, %s229
    %p238 = scmp.eq.s32.totalorder %s98, 0
    %p239 = por %p237, %p238
    %p240 = scmp.ne.s32.totalorder %s228, %s229
    %p241 = scmp.eq.s32.totalorder %s99, 1
    %p242 = por %p240, %p241
    %p244 = scmp.ne.s32.totalorder %s229, %s243
    %p245 = scmp.eq.s32.totalorder %s99, 0
    %p246 = por %p244, %p245
    %s248 = sadd.s32 %s247, 1
    %p251 = scmp.eq.s32.totalorder %s93, 1
    %p252 = scmp.ne.s32.totalorder %s247, %s249
    %p253 = scmp.eq.s32.totalorder %s93, 0
    %p254 = por %p252, %p253
    %p255 = scmp.ne.s32.totalorder %s247, %s249
    %p256 = scmp.eq.s32.totalorder %s98, 1
    %p257 = por %p255, %p256
    %p258 = scmp.ne.s32.totalorder %s249, %s250
    %p259 = scmp.eq.s32.totalorder %s98, 0
    %p260 = por %p258, %p259
    %p261 = scmp.ne.s32.totalorder %s249, %s250
    %p262 = scmp.eq.s32.totalorder %s99, 1
    %p263 = por %p261, %p262
    %p265 = scmp.ne.s32.totalorder %s250, %s264
    %p266 = scmp.eq.s32.totalorder %s99, 0
    %p267 = por %p265, %p266
    %s269 = sadd.s32 %s268, 1
    %p272 = scmp.eq.s32.totalorder %s93, 1
    %p273 = scmp.ne.s32.totalorder %s268, %s270
    %p274 = scmp.eq.s32.totalorder %s93, 0
    %p275 = por %p273, %p274
    %p276 = scmp.ne.s32.totalorder %s268, %s270
    %p277 = scmp.eq.s32.totalorder %s98, 1
    %p278 = por %p276, %p277
    %p279 = scmp.ne.s32.totalorder %s270, %s271
    %p280 = scmp.eq.s32.totalorder %s98, 0
    %p281 = por %p279, %p280
    %p282 = scmp.ne.s32.totalorder %s270, %s271
    %p283 = scmp.eq.s32.totalorder %s99, 1
    %p284 = por %p282, %p283
    %p286 = scmp.ne.s32.totalorder %s271, %s285
    %p287 = scmp.eq.s32.totalorder %s99, 0
    %p288 = por %p286, %p287
    %s290 = sadd.s32 %s289, 1
    %p293 = scmp.eq.s32.totalorder %s93, 1
    %p294 = scmp.ne.s32.totalorder %s289, %s291
    %p295 = scmp.eq.s32.totalorder %s93, 0
    %p296 = por %p294, %p295
    %p297 = scmp.ne.s32.totalorder %s289, %s291
    %p298 = scmp.eq.s32.totalorder %s98, 1
    %p299 = por %p297, %p298
    %p300 = scmp.ne.s32.totalorder %s291, %s292
    %p301 = scmp.eq.s32.totalorder %s98, 0
    %p302 = por %p300, %p301
    %p303 = scmp.ne.s32.totalorder %s291, %s292
    %p304 = scmp.eq.s32.totalorder %s99, 1
    %p305 = por %p303, %p304
    %p307 = scmp.ne.s32.totalorder %s292, %s306
    %p308 = scmp.eq.s32.totalorder %s99, 0
    %p309 = por %p307, %p308
    %s311 = sadd.s32 %s310, 1
    %p314 = scmp.eq.s32.totalorder %s93, 1
    %p315 = scmp.ne.s32.totalorder %s310, %s312
    %p316 = scmp.eq.s32.totalorder %s93, 0
    %p317 = por %p315, %p316
    %p318 = scmp.ne.s32.totalorder %s310, %s312
    %p319 = scmp.eq.s32.totalorder %s98, 1
    %p320 = por %p318, %p319
    %p321 = scmp.ne.s32.totalorder %s312, %s313
    %p322 = scmp.eq.s32.totalorder %s98, 0
    %p323 = por %p321, %p322
    %p324 = scmp.ne.s32.totalorder %s312, %s313
    %p325 = scmp.eq.s32.totalorder %s99, 1
    %p326 = por %p324, %p325
    %p328 = scmp.ne.s32.totalorder %s313, %s327
    %p329 = scmp.eq.s32.totalorder %s99, 0
    %p330 = por %p328, %p329
    %s332 = sadd.s32 %s331, 1
    %p335 = scmp.eq.s32.totalorder %s93, 1
    %p336 = scmp.ne.s32.totalorder %s331, %s333
    %p337 = scmp.eq.s32.totalorder %s93, 0
    %p338 = por %p336, %p337
    %p339 = scmp.ne.s32.totalorder %s331, %s333
    %p340 = scmp.eq.s32.totalorder %s98, 1
    %p341 = por %p339, %p340
    %p342 = scmp.ne.s32.totalorder %s333, %s334
    %p343 = scmp.eq.s32.totalorder %s98, 0
    %p344 = por %p342, %p343
    %p345 = scmp.ne.s32.totalorder %s333, %s334
    %p346 = scmp.eq.s32.totalorder %s99, 1
    %p347 = por %p345, %p346
    %p349 = scmp.ne.s32.totalorder %s334, %s348
    %p350 = scmp.eq.s32.totalorder %s99, 0
    %p351 = por %p349, %p350
    %s353 = sadd.s32 %s352, 1
    %p356 = scmp.eq.s32.totalorder %s93, 1
    %p357 = scmp.ne.s32.totalorder %s352, %s354
    %p358 = scmp.eq.s32.totalorder %s93, 0
    %p359 = por %p357, %p358
    %p360 = scmp.ne.s32.totalorder %s352, %s354
    %p361 = scmp.eq.s32.totalorder %s98, 1
    %p362 = por %p360, %p361
    %p363 = scmp.ne.s32.totalorder %s354, %s355
    %p364 = scmp.eq.s32.totalorder %s98, 0
    %p365 = por %p363, %p364
    %p366 = scmp.ne.s32.totalorder %s354, %s355
    %p367 = scmp.eq.s32.totalorder %s99, 1
    %p368 = por %p366, %p367
    %p370 = scmp.ne.s32.totalorder %s355, %s369
    %p371 = scmp.eq.s32.totalorder %s99, 0
    %p372 = por %p370, %p371
    %s374 = sadd.s32 %s373, 1
    %p377 = scmp.eq.s32.totalorder %s93, 1
    %p378 = scmp.ne.s32.totalorder %s373, %s375
    %p379 = scmp.eq.s32.totalorder %s93, 0
    %p380 = por %p378, %p379
    %p381 = scmp.ne.s32.totalorder %s373, %s375
    %p382 = scmp.eq.s32.totalorder %s98, 1
    %p383 = por %p381, %p382
    %p384 = scmp.ne.s32.totalorder %s375, %s376
    %p385 = scmp.eq.s32.totalorder %s98, 0
    %p386 = por %p384, %p385
    %p387 = scmp.ne.s32.totalorder %s375, %s376
    %p388 = scmp.eq.s32.totalorder %s99, 1
    %p389 = por %p387, %p388
    %p391 = scmp.ne.s32.totalorder %s376, %s390
    %p392 = scmp.eq.s32.totalorder %s99, 0
    %p393 = por %p391, %p392
    %s395 = sadd.s32 %s394, 1
    %p398 = scmp.eq.s32.totalorder %s93, 1
    %p399 = scmp.ne.s32.totalorder %s394, %s396
    %p400 = scmp.eq.s32.totalorder %s93, 0
    %p401 = por %p399, %p400
    %p402 = scmp.ne.s32.totalorder %s394, %s396
    %p403 = scmp.eq.s32.totalorder %s98, 1
    %p404 = por %p402, %p403
    %p405 = scmp.ne.s32.totalorder %s396, %s397
    %p406 = scmp.eq.s32.totalorder %s98, 0
    %p407 = por %p405, %p406
    %p408 = scmp.ne.s32.totalorder %s396, %s397
    %p409 = scmp.eq.s32.totalorder %s99, 1
    %p410 = por %p408, %p409
    %p412 = scmp.ne.s32.totalorder %s397, %s411
    %p413 = scmp.eq.s32.totalorder %s99, 0
    %p414 = por %p412, %p413
    %s416 = sadd.s32 %s415, 1
    %p419 = scmp.eq.s32.totalorder %s93, 1
    %p420 = scmp.ne.s32.totalorder %s415, %s417
    %p421 = scmp.eq.s32.totalorder %s93, 0
    %p422 = por %p420, %p421
    %p423 = scmp.ne.s32.totalorder %s415, %s417
    %p424 = scmp.eq.s32.totalorder %s98, 1
    %p425 = por %p423, %p424
    %p426 = scmp.ne.s32.totalorder %s417, %s418
    %p427 = scmp.eq.s32.totalorder %s98, 0
    %p428 = por %p426, %p427
    %p429 = scmp.ne.s32.totalorder %s417, %s418
    %p430 = scmp.eq.s32.totalorder %s99, 1
    %p431 = por %p429, %p430
    %p433 = scmp.ne.s32.totalorder %s418, %s432
    %p434 = scmp.eq.s32.totalorder %s99, 0
    %p435 = por %p433, %p434
    %s437 = sadd.s32 %s436, 1
    %p440 = scmp.eq.s32.totalorder %s93, 1
    %p441 = scmp.ne.s32.totalorder %s436, %s438
    %p442 = scmp.eq.s32.totalorder %s93, 0
    %p443 = por %p441, %p442
    %p444 = scmp.ne.s32.totalorder %s436, %s438
    %p445 = scmp.eq.s32.totalorder %s98, 1
    %p446 = por %p444, %p445
    %p447 = scmp.ne.s32.totalorder %s438, %s439
    %p448 = scmp.eq.s32.totalorder %s98, 0
    %p449 = por %p447, %p448
    %p450 = scmp.ne.s32.totalorder %s438, %s439
    %p451 = scmp.eq.s32.totalorder %s99, 1
    %p452 = por %p450, %p451
    %p454 = scmp.ne.s32.totalorder %s439, %s453
    %p455 = scmp.eq.s32.totalorder %s99, 0
    %p456 = por %p454, %p455
    %s458 = sadd.s32 %s457, 1
    %p461 = scmp.eq.s32.totalorder %s93, 1
    %p462 = scmp.ne.s32.totalorder %s457, %s459
    %p463 = scmp.eq.s32.totalorder %s93, 0
    %p464 = por %p462, %p463
    %p465 = scmp.ne.s32.totalorder %s457, %s459
    %p466 = scmp.eq.s32.totalorder %s98, 1
    %p467 = por %p465, %p466
    %p468 = scmp.ne.s32.totalorder %s459, %s460
    %p469 = scmp.eq.s32.totalorder %s98, 0
    %p470 = por %p468, %p469
    %p471 = scmp.ne.s32.totalorder %s459, %s460
    %p472 = scmp.eq.s32.totalorder %s99, 1
    %p473 = por %p471, %p472
    %p475 = scmp.ne.s32.totalorder %s460, %s474
    %p476 = scmp.eq.s32.totalorder %s99, 0
    %p477 = por %p475, %p476
    %s479 = sadd.s32 %s478, 1
    %p482 = scmp.eq.s32.totalorder %s93, 1
    %p483 = scmp.ne.s32.totalorder %s478, %s480
    %p484 = scmp.eq.s32.totalorder %s93, 0
    %p485 = por %p483, %p484
    %p486 = scmp.ne.s32.totalorder %s478, %s480
    %p487 = scmp.eq.s32.totalorder %s98, 1
    %p488 = por %p486, %p487
    %p489 = scmp.ne.s32.totalorder %s480, %s481
    %p490 = scmp.eq.s32.totalorder %s98, 0
    %p491 = por %p489, %p490
    %p492 = scmp.ne.s32.totalorder %s480, %s481
    %p493 = scmp.eq.s32.totalorder %s99, 1
    %p494 = por %p492, %p493
    %p496 = scmp.ne.s32.totalorder %s481, %s495
    %p497 = scmp.eq.s32.totalorder %s99, 0
    %p498 = por %p496, %p497
    %s500 = sadd.s32 %s499, 1
    %p503 = scmp.eq.s32.totalorder %s93, 1
    %p504 = scmp.ne.s32.totalorder %s499, %s501
    %p505 = scmp.eq.s32.totalorder %s93, 0
    %p506 = por %p504, %p505
    %p507 = scmp.ne.s32.totalorder %s499, %s501
    %p508 = scmp.eq.s32.totalorder %s98, 1
    %p509 = por %p507, %p508
    %p510 = scmp.ne.s32.totalorder %s501, %s502
    %p511 = scmp.eq.s32.totalorder %s98, 0
    %p512 = por %p510, %p511
    %p513 = scmp.ne.s32.totalorder %s501, %s502
    %p514 = scmp.eq.s32.totalorder %s99, 1
    %p515 = por %p513, %p514
    %p517 = scmp.ne.s32.totalorder %s502, %s516
    %p518 = scmp.eq.s32.totalorder %s99, 0
    %p519 = por %p517, %p518
    %s521 = sadd.s32 %s520, 1
    %p524 = scmp.eq.s32.totalorder %s93, 1
    %p525 = scmp.ne.s32.totalorder %s520, %s522
    %p526 = scmp.eq.s32.totalorder %s93, 0
    %p527 = por %p525, %p526
    %p528 = scmp.ne.s32.totalorder %s520, %s522
    %p529 = scmp.eq.s32.totalorder %s98, 1
    %p530 = por %p528, %p529
    %p531 = scmp.ne.s32.totalorder %s522, %s523
    %p532 = scmp.eq.s32.totalorder %s98, 0
    %p533 = por %p531, %p532
    %p534 = scmp.ne.s32.totalorder %s522, %s523
    %p535 = scmp.eq.s32.totalorder %s99, 1
    %p536 = por %p534, %p535
    %p538 = scmp.ne.s32.totalorder %s523, %s537
    %p539 = scmp.eq.s32.totalorder %s99, 0
    %p540 = por %p538, %p539
    %s542 = sadd.s32 %s541, 1
    %p545 = scmp.eq.s32.totalorder %s93, 1
    %p546 = scmp.ne.s32.totalorder %s541, %s543
    %p547 = scmp.eq.s32.totalorder %s93, 0
    %p548 = por %p546, %p547
    %p549 = scmp.ne.s32.totalorder %s541, %s543
    %p550 = scmp.eq.s32.totalorder %s98, 1
    %p551 = por %p549, %p550
    %p552 = scmp.ne.s32.totalorder %s543, %s544
    %p553 = scmp.eq.s32.totalorder %s98, 0
    %p554 = por %p552, %p553
    %p555 = scmp.ne.s32.totalorder %s543, %s544
    %p556 = scmp.eq.s32.totalorder %s99, 1
    %p557 = por %p555, %p556
    %p559 = scmp.ne.s32.totalorder %s544, %s558
    %p560 = scmp.eq.s32.totalorder %s99, 0
    %p561 = por %p559, %p560
    %s563 = sadd.s32 %s562, 1
    %p566 = scmp.eq.s32.totalorder %s93, 1
    %p567 = scmp.ne.s32.totalorder %s562, %s564
    %p568 = scmp.eq.s32.totalorder %s93, 0
    %p569 = por %p567, %p568
    %p570 = scmp.ne.s32.totalorder %s562, %s564
    %p571 = scmp.eq.s32.totalorder %s98, 1
    %p572 = por %p570, %p571
    %p573 = scmp.ne.s32.totalorder %s564, %s565
    %p574 = scmp.eq.s32.totalorder %s98, 0
    %p575 = por %p573, %p574
    %p576 = scmp.ne.s32.totalorder %s564, %s565
    %p577 = scmp.eq.s32.totalorder %s99, 1
    %p578 = por %p576, %p577
    %p580 = scmp.ne.s32.totalorder %s565, %s579
    %p581 = scmp.eq.s32.totalorder %s99, 0
    %p582 = por %p580, %p581
    %s584 = sadd.s32 %s583, 1
    %p587 = scmp.eq.s32.totalorder %s93, 1
    %p588 = scmp.ne.s32.totalorder %s583, %s585
    %p589 = scmp.eq.s32.totalorder %s93, 0
    %p590 = por %p588, %p589
    %p591 = scmp.ne.s32.totalorder %s583, %s585
    %p592 = scmp.eq.s32.totalorder %s98, 1
    %p593 = por %p591, %p592
    %p594 = scmp.ne.s32.totalorder %s585, %s586
    %p595 = scmp.eq.s32.totalorder %s98, 0
    %p596 = por %p594, %p595
    %p597 = scmp.ne.s32.totalorder %s585, %s586
    %p598 = scmp.eq.s32.totalorder %s99, 1
    %p599 = por %p597, %p598
    %p601 = scmp.ne.s32.totalorder %s586, %s600
    %p602 = scmp.eq.s32.totalorder %s99, 0
    %p603 = por %p601, %p602
    %s605 = sadd.s32 %s604, 1
    %p608 = scmp.eq.s32.totalorder %s93, 1
    %p609 = scmp.ne.s32.totalorder %s604, %s606
    %p610 = scmp.eq.s32.totalorder %s93, 0
    %p611 = por %p609, %p610
    %p612 = scmp.ne.s32.totalorder %s604, %s606
    %p613 = scmp.eq.s32.totalorder %s98, 1
    %p614 = por %p612, %p613
    %p615 = scmp.ne.s32.totalorder %s606, %s607
    %p616 = scmp.eq.s32.totalorder %s98, 0
    %p617 = por %p615, %p616
    %p618 = scmp.ne.s32.totalorder %s606, %s607
    %p619 = scmp.eq.s32.totalorder %s99, 1
    %p620 = por %p618, %p619
    %p622 = scmp.ne.s32.totalorder %s607, %s621
    %p623 = scmp.eq.s32.totalorder %s99, 0
    %p624 = por %p622, %p623
    %s626 = sadd.s32 %s625, 1
    %p629 = scmp.eq.s32.totalorder %s93, 1
    %p630 = scmp.ne.s32.totalorder %s625, %s627
    %p631 = scmp.eq.s32.totalorder %s93, 0
    %p632 = por %p630, %p631
    %p633 = scmp.ne.s32.totalorder %s625, %s627
    %p634 = scmp.eq.s32.totalorder %s98, 1
    %p635 = por %p633, %p634
    %p636 = scmp.ne.s32.totalorder %s627, %s628
    %p637 = scmp.eq.s32.totalorder %s98, 0
    %p638 = por %p636, %p637
    %p639 = scmp.ne.s32.totalorder %s627, %s628
    %p640 = scmp.eq.s32.totalorder %s99, 1
    %p641 = por %p639, %p640
    %p643 = scmp.ne.s32.totalorder %s628, %s642
    %p644 = scmp.eq.s32.totalorder %s99, 0
    %p645 = por %p643, %p644
    %s647 = sadd.s32 %s646, 1
    %p650 = scmp.eq.s32.totalorder %s93, 1
    %p651 = scmp.ne.s32.totalorder %s646, %s648
    %p652 = scmp.eq.s32.totalorder %s93, 0
    %p653 = por %p651, %p652
    %p654 = scmp.ne.s32.totalorder %s646, %s648
    %p655 = scmp.eq.s32.totalorder %s98, 1
    %p656 = por %p654, %p655
    %p657 = scmp.ne.s32.totalorder %s648, %s649
    %p658 = scmp.eq.s32.totalorder %s98, 0
    %p659 = por %p657, %p658
    %p660 = scmp.ne.s32.totalorder %s648, %s649
    %p661 = scmp.eq.s32.totalorder %s99, 1
    %p662 = por %p660, %p661
    %p664 = scmp.ne.s32.totalorder %s649, %s663
    %p665 = scmp.eq.s32.totalorder %s99, 0
    %p666 = por %p664, %p665
    %s668 = sadd.s32 %s667, 1
    %p671 = scmp.eq.s32.totalorder %s93, 1
    %p672 = scmp.ne.s32.totalorder %s667, %s669
    %p673 = scmp.eq.s32.totalorder %s93, 0
    %p674 = por %p672, %p673
    %p675 = scmp.ne.s32.totalorder %s667, %s669
    %p676 = scmp.eq.s32.totalorder %s98, 1
    %p677 = por %p675, %p676
    %p678 = scmp.ne.s32.totalorder %s669, %s670
    %p679 = scmp.eq.s32.totalorder %s98, 0
    %p680 = por %p678, %p679
    %p681 = scmp.ne.s32.totalorder %s669, %s670
    %p682 = scmp.eq.s32.totalorder %s99, 1
    %p683 = por %p681, %p682
    %p685 = scmp.ne.s32.totalorder %s670, %s684
    %p686 = scmp.eq.s32.totalorder %s99, 0
    %p687 = por %p685, %p686
    %s689 = sadd.s32 %s688, 1
    %p692 = scmp.eq.s32.totalorder %s93, 1
    %p693 = scmp.ne.s32.totalorder %s688, %s690
    %p694 = scmp.eq.s32.totalorder %s93, 0
    %p695 = por %p693, %p694
    %p696 = scmp.ne.s32.totalorder %s688, %s690
    %p697 = scmp.eq.s32.totalorder %s98, 1
    %p698 = por %p696, %p697
    %p699 = scmp.ne.s32.totalorder %s690, %s691
    %p700 = scmp.eq.s32.totalorder %s98, 0
    %p701 = por %p699, %p700
    %p702 = scmp.ne.s32.totalorder %s690, %s691
    %p703 = scmp.eq.s32.totalorder %s99, 1
    %p704 = por %p702, %p703
    %p706 = scmp.ne.s32.totalorder %s691, %s705
    %p707 = scmp.eq.s32.totalorder %s99, 0
    %p708 = por %p706, %p707
    %s710 = sadd.s32 %s709, 1
    %p713 = scmp.eq.s32.totalorder %s93, 1
    %p714 = scmp.ne.s32.totalorder %s709, %s711
    %p715 = scmp.eq.s32.totalorder %s93, 0
    %p716 = por %p714, %p715
    %p717 = scmp.ne.s32.totalorder %s709, %s711
    %p718 = scmp.eq.s32.totalorder %s98, 1
    %p719 = por %p717, %p718
    %p720 = scmp.ne.s32.totalorder %s711, %s712
    %p721 = scmp.eq.s32.totalorder %s98, 0
    %p722 = por %p720, %p721
    %p723 = scmp.ne.s32.totalorder %s711, %s712
    %p724 = scmp.eq.s32.totalorder %s99, 1
    %p725 = por %p723, %p724
    %p727 = scmp.ne.s32.totalorder %s712, %s726
    %p728 = scmp.eq.s32.totalorder %s99, 0
    %p729 = por %p727, %p728
    %s731 = sadd.s32 %s730, 1
    %p734 = scmp.eq.s32.totalorder %s93, 1
    %p735 = scmp.ne.s32.totalorder %s730, %s732
    %p736 = scmp.eq.s32.totalorder %s93, 0
    %p737 = por %p735, %p736
    %p738 = scmp.ne.s32.totalorder %s730, %s732
    %p739 = scmp.eq.s32.totalorder %s98, 1
    %p740 = por %p738, %p739
    %p741 = scmp.ne.s32.totalorder %s732, %s733
    %p742 = scmp.eq.s32.totalorder %s98, 0
    %p743 = por %p741, %p742
    %p744 = scmp.ne.s32.totalorder %s732, %s733
    %p745 = scmp.eq.s32.totalorder %s99, 1
    %p746 = por %p744, %p745
    %p748 = scmp.ne.s32.totalorder %s733, %s747
    %p749 = scmp.eq.s32.totalorder %s99, 0
    %p750 = por %p748, %p749
    %s752 = sadd.s32 %s751, 1
    %p755 = scmp.eq.s32.totalorder %s93, 1
    %p756 = scmp.ne.s32.totalorder %s751, %s753
    %p757 = scmp.eq.s32.totalorder %s93, 0
    %p758 = por %p756, %p757
    %p759 = scmp.ne.s32.totalorder %s751, %s753
    %p760 = scmp.eq.s32.totalorder %s98, 1
    %p761 = por %p759, %p760
    %p762 = scmp.ne.s32.totalorder %s753, %s754
    %p763 = scmp.eq.s32.totalorder %s98, 0
    %p764 = por %p762, %p763
    %p765 = scmp.ne.s32.totalorder %s753, %s754
    %p766 = scmp.eq.s32.totalorder %s99, 1
    %p767 = por %p765, %p766
    %p769 = scmp.ne.s32.totalorder %s754, %s768
    %p770 = scmp.eq.s32.totalorder %s99, 0
    %p771 = por %p769, %p770
    %s773 = sadd.s32 %s772, 1
    %p776 = scmp.eq.s32.totalorder %s93, 1
    %p777 = scmp.ne.s32.totalorder %s772, %s774
    %p778 = scmp.eq.s32.totalorder %s93, 0
    %p779 = por %p777, %p778
    %p780 = scmp.ne.s32.totalorder %s772, %s774
    %p781 = scmp.eq.s32.totalorder %s98, 1
    %p782 = por %p780, %p781
    %p783 = scmp.ne.s32.totalorder %s774, %s775
    %p784 = scmp.eq.s32.totalorder %s98, 0
    %p785 = por %p783, %p784
    %p786 = scmp.ne.s32.totalorder %s774, %s775
    %p787 = scmp.eq.s32.totalorder %s99, 1
    %p788 = por %p786, %p787
    %p790 = scmp.ne.s32.totalorder %s775, %s789
    %p791 = scmp.eq.s32.totalorder %s99, 0
    %p792 = por %p790, %p791
    %s794 = sadd.s32 %s793, 1
    %p797 = scmp.eq.s32.totalorder %s93, 1
    %p798 = scmp.ne.s32.totalorder %s793, %s795
    %p799 = scmp.eq.s32.totalorder %s93, 0
    %p800 = por %p798, %p799
    %p801 = scmp.ne.s32.totalorder %s793, %s795
    %p802 = scmp.eq.s32.totalorder %s98, 1
    %p803 = por %p801, %p802
    %p804 = scmp.ne.s32.totalorder %s795, %s796
    %p805 = scmp.eq.s32.totalorder %s98, 0
    %p806 = por %p804, %p805
    %p807 = scmp.ne.s32.totalorder %s795, %s796
    %p808 = scmp.eq.s32.totalorder %s99, 1
    %p809 = por %p807, %p808
    %p811 = scmp.ne.s32.totalorder %s796, %s810
    %p812 = scmp.eq.s32.totalorder %s99, 0
    %p813 = por %p811, %p812
    %s815 = sadd.s32 %s814, 1
    %p818 = scmp.eq.s32.totalorder %s93, 1
    %p819 = scmp.ne.s32.totalorder %s814, %s816
    %p820 = scmp.eq.s32.totalorder %s93, 0
    %p821 = por %p819, %p820
    %p822 = scmp.ne.s32.totalorder %s814, %s816
    %p823 = scmp.eq.s32.totalorder %s98, 1
    %p824 = por %p822, %p823
    %p825 = scmp.ne.s32.totalorder %s816, %s817
    %p826 = scmp.eq.s32.totalorder %s98, 0
    %p827 = por %p825, %p826
    %p828 = scmp.ne.s32.totalorder %s816, %s817
    %p829 = scmp.eq.s32.totalorder %s99, 1
    %p830 = por %p828, %p829
    %p832 = scmp.ne.s32.totalorder %s817, %s831
    %p833 = scmp.eq.s32.totalorder %s99, 0
    %p834 = por %p832, %p833
    %s836 = sadd.s32 %s835, 1
    %p839 = scmp.eq.s32.totalorder %s93, 1
    %p840 = scmp.ne.s32.totalorder %s835, %s837
    %p841 = scmp.eq.s32.totalorder %s93, 0
    %p842 = por %p840, %p841
    %p843 = scmp.ne.s32.totalorder %s835, %s837
    %p844 = scmp.eq.s32.totalorder %s98, 1
    %p845 = por %p843, %p844
    %p846 = scmp.ne.s32.totalorder %s837, %s838
    %p847 = scmp.eq.s32.totalorder %s98, 0
    %p848 = por %p846, %p847
    %p849 = scmp.ne.s32.totalorder %s837, %s838
    %p850 = scmp.eq.s32.totalorder %s99, 1
    %p851 = por %p849, %p850
    %p853 = scmp.ne.s32.totalorder %s838, %s852
    %p854 = scmp.eq.s32.totalorder %s99, 0
    %p855 = por %p853, %p854
    %s857 = sadd.s32 %s856, 1
    %p860 = scmp.eq.s32.totalorder %s93, 1
    %p861 = scmp.ne.s32.totalorder %s856, %s858
    %p862 = scmp.eq.s32.totalorder %s93, 0
    %p863 = por %p861, %p862
    %p864 = scmp.ne.s32.totalorder %s856, %s858
    %p865 = scmp.eq.s32.totalorder %s98, 1
    %p866 = por %p864, %p865
    %p867 = scmp.ne.s32.totalorder %s858, %s859
    %p868 = scmp.eq.s32.totalorder %s98, 0
    %p869 = por %p867, %p868
    %p870 = scmp.ne.s32.totalorder %s858, %s859
    %p871 = scmp.eq.s32.totalorder %s99, 1
    %p872 = por %p870, %p871
    %p874 = scmp.ne.s32.totalorder %s859, %s873
    %p875 = scmp.eq.s32.totalorder %s99, 0
    %p876 = por %p874, %p875
    %s878 = sadd.s32 %s877, 1
    %p881 = scmp.eq.s32.totalorder %s93, 1
    %p882 = scmp.ne.s32.totalorder %s877, %s879
    %p883 = scmp.eq.s32.totalorder %s93, 0
    %p884 = por %p882, %p883
    %p885 = scmp.ne.s32.totalorder %s877, %s879
    %p886 = scmp.eq.s32.totalorder %s98, 1
    %p887 = por %p885, %p886
    %p888 = scmp.ne.s32.totalorder %s879, %s880
    %p889 = scmp.eq.s32.totalorder %s98, 0
    %p890 = por %p888, %p889
    %p891 = scmp.ne.s32.totalorder %s879, %s880
    %p892 = scmp.eq.s32.totalorder %s99, 1
    %p893 = por %p891, %p892
    %p895 = scmp.ne.s32.totalorder %s880, %s894
    %p896 = scmp.eq.s32.totalorder %s99, 0
    %p897 = por %p895, %p896
    %s899 = sadd.s32 %s898, 1
    %p902 = scmp.eq.s32.totalorder %s93, 1
    %p903 = scmp.ne.s32.totalorder %s898, %s900
    %p904 = scmp.eq.s32.totalorder %s93, 0
    %p905 = por %p903, %p904
    %p906 = scmp.ne.s32.totalorder %s898, %s900
    %p907 = scmp.eq.s32.totalorder %s98, 1
    %p908 = por %p906, %p907
    %p909 = scmp.ne.s32.totalorder %s900, %s901
    %p910 = scmp.eq.s32.totalorder %s98, 0
    %p911 = por %p909, %p910
    %p912 = scmp.ne.s32.totalorder %s900, %s901
    %p913 = scmp.eq.s32.totalorder %s99, 1
    %p914 = por %p912, %p913
    %p916 = scmp.ne.s32.totalorder %s901, %s915
    %p917 = scmp.eq.s32.totalorder %s99, 0
    %p918 = por %p916, %p917
    %s920 = sadd.s32 %s919, 1
    %p923 = scmp.eq.s32.totalorder %s93, 1
    %p924 = scmp.ne.s32.totalorder %s919, %s921
    %p925 = scmp.eq.s32.totalorder %s93, 0
    %p926 = por %p924, %p925
    %p927 = scmp.ne.s32.totalorder %s919, %s921
    %p928 = scmp.eq.s32.totalorder %s98, 1
    %p929 = por %p927, %p928
    %p930 = scmp.ne.s32.totalorder %s921, %s922
    %p931 = scmp.eq.s32.totalorder %s98, 0
    %p932 = por %p930, %p931
    %p933 = scmp.ne.s32.totalorder %s921, %s922
    %p934 = scmp.eq.s32.totalorder %s99, 1
    %p935 = por %p933, %p934
    %p937 = scmp.ne.s32.totalorder %s922, %s936
    %p938 = scmp.eq.s32.totalorder %s99, 0
    %p939 = por %p937, %p938
    %s941 = sadd.s32 %s940, 1
    %p944 = scmp.eq.s32.totalorder %s93, 1
    %p945 = scmp.ne.s32.totalorder %s940, %s942
    %p946 = scmp.eq.s32.totalorder %s93, 0
    %p947 = por %p945, %p946
    %p948 = scmp.ne.s32.totalorder %s940, %s942
    %p949 = scmp.eq.s32.totalorder %s98, 1
    %p950 = por %p948, %p949
    %p951 = scmp.ne.s32.totalorder %s942, %s943
    %p952 = scmp.eq.s32.totalorder %s98, 0
    %p953 = por %p951, %p952
    %p954 = scmp.ne.s32.totalorder %s942, %s943
    %p955 = scmp.eq.s32.totalorder %s99, 1
    %p956 = por %p954, %p955
    %p958 = scmp.ne.s32.totalorder %s943, %s957
    %p959 = scmp.eq.s32.totalorder %s99, 0
    %p960 = por %p958, %p959
    %s962 = sadd.s32 %s961, 1
    %p965 = scmp.eq.s32.totalorder %s93, 1
    %p966 = scmp.ne.s32.totalorder %s961, %s963
    %p967 = scmp.eq.s32.totalorder %s93, 0
    %p968 = por %p966, %p967
    %p969 = scmp.ne.s32.totalorder %s961, %s963
    %p970 = scmp.eq.s32.totalorder %s98, 1
    %p971 = por %p969, %p970
    %p972 = scmp.ne.s32.totalorder %s963, %s964
    %p973 = scmp.eq.s32.totalorder %s98, 0
    %p974 = por %p972, %p973
    %p975 = scmp.ne.s32.totalorder %s963, %s964
    %p976 = scmp.eq.s32.totalorder %s99, 1
    %p977 = por %p975, %p976
    %p979 = scmp.ne.s32.totalorder %s964, %s978
    %p980 = scmp.eq.s32.totalorder %s99, 0
    %p981 = por %p979, %p980
    %s983 = sadd.s32 %s982, 1
    %p986 = scmp.eq.s32.totalorder %s93, 1
    %p987 = scmp.ne.s32.totalorder %s982, %s984
    %p988 = scmp.eq.s32.totalorder %s93, 0
    %p989 = por %p987, %p988
    %p990 = scmp.ne.s32.totalorder %s982, %s984
    %p991 = scmp.eq.s32.totalorder %s98, 1
    %p992 = por %p990, %p991
    %p993 = scmp.ne.s32.totalorder %s984, %s985
    %p994 = scmp.eq.s32.totalorder %s98, 0
    %p995 = por %p993, %p994
    %p996 = scmp.ne.s32.totalorder %s984, %s985
    %p997 = scmp.eq.s32.totalorder %s99, 1
    %p998 = por %p996, %p997
    %p1000 = scmp.ne.s32.totalorder %s985, %s999
    %p1001 = scmp.eq.s32.totalorder %s99, 0
    %p1002 = por %p1000, %p1001
    %s1003 = ssub.s32 %s93, %s100
    %p1004 = scmp.eq.s32.totalorder %s1003, 0
    %s1006 = sadd.s32 %s1005, 1
    %s1007 = scalar_select %p1004, %s1005, %s1006
    %p1010 = pneg %p1004
    %p1011 = scmp.eq.s32.totalorder %s93, 1
    %p1012 = por %p1010, %p1011
    %p1013 = scmp.ne.s32.totalorder %s1005, %s1008
    %p1014 = scmp.eq.s32.totalorder %s93, 0
    %p1015 = por %p1013, %p1014
    %p1016 = scmp.ne.s32.totalorder %s1005, %s1008
    %p1017 = scmp.eq.s32.totalorder %s98, 1
    %p1018 = por %p1016, %p1017
    %p1019 = scmp.ne.s32.totalorder %s1008, %s1009
    %p1020 = scmp.eq.s32.totalorder %s98, 0
    %p1021 = por %p1019, %p1020
    %p1022 = scmp.ne.s32.totalorder %s1008, %s1009
    %p1023 = scmp.eq.s32.totalorder %s99, 1
    %p1024 = por %p1022, %p1023
    %p1026 = scmp.ne.s32.totalorder %s1009, %s1025
    %p1027 = scmp.eq.s32.totalorder %s99, 0
    %p1028 = por %p1026, %p1027
    %p1029 = scmp.le.s32.totalorder 1, %s93
    %p1030 = scmp.lt.s32.totalorder %s93, 3
    %p1031 = pnand %p1029, %p1030
    %p1032 = pneg %p1031
    // Predicated region
    $region9: #{unet_forward.1} parent=5 // pred_check
      _
    $region10: #{unet_forward.1} parent=5 // pred_check_branch
      %1034 = sbr.rel (%p1031) target = $region12
    $region11: #{unet_forward.1} parent=5 // pred_region
      %s1035 = ssub.s32 %s93, 1
      // Predicated region
      $region13: #{unet_forward.1} parent=11 // pred_check
        %p1036 = pneg %p218
      $region14: #{unet_forward.1} parent=11 // pred_check_branch
        %1038 = sbr.rel (%p1036) target = $region16
      $region15: #{unet_forward.1} parent=11 // pred_region
        _
      $region16: #{unet_forward.1} parent=11 // pred_fallthru
        _
      // Predicated region
      $region17: #{unet_forward.1} parent=11 // pred_check
        %p1039 = pneg %p239
      $region18: #{unet_forward.1} parent=11 // pred_check_branch
        %1041 = sbr.rel (%p1039) target = $region20
      $region19: #{unet_forward.1} parent=11 // pred_region
        _
      $region20: #{unet_forward.1} parent=11 // pred_fallthru
        _
      // Predicated region
      $region21: #{unet_forward.1} parent=11 // pred_check
        %p1042 = pneg %p260
      $region22: #{unet_forward.1} parent=11 // pred_check_branch
        %1044 = sbr.rel (%p1042) target = $region24
      $region23: #{unet_forward.1} parent=11 // pred_region
        _
      $region24: #{unet_forward.1} parent=11 // pred_fallthru
        _
      // Predicated region
      $region25: #{unet_forward.1} parent=11 // pred_check
        %p1045 = pneg %p281
      $region26: #{unet_forward.1} parent=11 // pred_check_branch
        %1047 = sbr.rel (%p1045) target = $region28
      $region27: #{unet_forward.1} parent=11 // pred_region
        _
      $region28: #{unet_forward.1} parent=11 // pred_fallthru
        _
      // Predicated region
      $region29: #{unet_forward.1} parent=11 // pred_check
        %p1048 = pneg %p302
      $region30: #{unet_forward.1} parent=11 // pred_check_branch
        %1050 = sbr.rel (%p1048) target = $region32
      $region31: #{unet_forward.1} parent=11 // pred_region
        _
      $region32: #{unet_forward.1} parent=11 // pred_fallthru
        _
      // Predicated region
      $region33: #{unet_forward.1} parent=11 // pred_check
        %p1051 = pneg %p323
      $region34: #{unet_forward.1} parent=11 // pred_check_branch
        %1053 = sbr.rel (%p1051) target = $region36
      $region35: #{unet_forward.1} parent=11 // pred_region
        _
      $region36: #{unet_forward.1} parent=11 // pred_fallthru
        _
      // Predicated region
      $region37: #{unet_forward.1} parent=11 // pred_check
        %p1054 = pneg %p344
      $region38: #{unet_forward.1} parent=11 // pred_check_branch
        %1056 = sbr.rel (%p1054) target = $region40
      $region39: #{unet_forward.1} parent=11 // pred_region
        _
      $region40: #{unet_forward.1} parent=11 // pred_fallthru
        _
      // Predicated region
      $region41: #{unet_forward.1} parent=11 // pred_check
        %p1057 = pneg %p365
      $region42: #{unet_forward.1} parent=11 // pred_check_branch
        %1059 = sbr.rel (%p1057) target = $region44
      $region43: #{unet_forward.1} parent=11 // pred_region
        _
      $region44: #{unet_forward.1} parent=11 // pred_fallthru
        _
      // Predicated region
      $region45: #{unet_forward.1} parent=11 // pred_check
        %p1060 = pneg %p386
      $region46: #{unet_forward.1} parent=11 // pred_check_branch
        %1062 = sbr.rel (%p1060) target = $region48
      $region47: #{unet_forward.1} parent=11 // pred_region
        _
      $region48: #{unet_forward.1} parent=11 // pred_fallthru
        _
      // Predicated region
      $region49: #{unet_forward.1} parent=11 // pred_check
        %p1063 = pneg %p407
      $region50: #{unet_forward.1} parent=11 // pred_check_branch
        %1065 = sbr.rel (%p1063) target = $region52
      $region51: #{unet_forward.1} parent=11 // pred_region
        _
      $region52: #{unet_forward.1} parent=11 // pred_fallthru
        _
      // Predicated region
      $region53: #{unet_forward.1} parent=11 // pred_check
        %p1066 = pneg %p428
      $region54: #{unet_forward.1} parent=11 // pred_check_branch
        %1068 = sbr.rel (%p1066) target = $region56
      $region55: #{unet_forward.1} parent=11 // pred_region
        _
      $region56: #{unet_forward.1} parent=11 // pred_fallthru
        _
      // Predicated region
      $region57: #{unet_forward.1} parent=11 // pred_check
        %p1069 = pneg %p449
      $region58: #{unet_forward.1} parent=11 // pred_check_branch
        %1071 = sbr.rel (%p1069) target = $region60
      $region59: #{unet_forward.1} parent=11 // pred_region
        _
      $region60: #{unet_forward.1} parent=11 // pred_fallthru
        _
      // Predicated region
      $region61: #{unet_forward.1} parent=11 // pred_check
        %p1072 = pneg %p470
      $region62: #{unet_forward.1} parent=11 // pred_check_branch
        %1074 = sbr.rel (%p1072) target = $region64
      $region63: #{unet_forward.1} parent=11 // pred_region
        _
      $region64: #{unet_forward.1} parent=11 // pred_fallthru
        _
      // Predicated region
      $region65: #{unet_forward.1} parent=11 // pred_check
        %p1075 = pneg %p491
      $region66: #{unet_forward.1} parent=11 // pred_check_branch
        %1077 = sbr.rel (%p1075) target = $region68
      $region67: #{unet_forward.1} parent=11 // pred_region
        _
      $region68: #{unet_forward.1} parent=11 // pred_fallthru
        _
      // Predicated region
      $region69: #{unet_forward.1} parent=11 // pred_check
        %p1078 = pneg %p512
      $region70: #{unet_forward.1} parent=11 // pred_check_branch
        %1080 = sbr.rel (%p1078) target = $region72
      $region71: #{unet_forward.1} parent=11 // pred_region
        _
      $region72: #{unet_forward.1} parent=11 // pred_fallthru
        _
      // Predicated region
      $region73: #{unet_forward.1} parent=11 // pred_check
        %p1081 = pneg %p533
      $region74: #{unet_forward.1} parent=11 // pred_check_branch
        %1083 = sbr.rel (%p1081) target = $region76
      $region75: #{unet_forward.1} parent=11 // pred_region
        _
      $region76: #{unet_forward.1} parent=11 // pred_fallthru
        _
      // Predicated region
      $region77: #{unet_forward.1} parent=11 // pred_check
        %p1084 = pneg %p554
      $region78: #{unet_forward.1} parent=11 // pred_check_branch
        %1086 = sbr.rel (%p1084) target = $region80
      $region79: #{unet_forward.1} parent=11 // pred_region
        _
      $region80: #{unet_forward.1} parent=11 // pred_fallthru
        _
      // Predicated region
      $region81: #{unet_forward.1} parent=11 // pred_check
        %p1087 = pneg %p575
      $region82: #{unet_forward.1} parent=11 // pred_check_branch
        %1089 = sbr.rel (%p1087) target = $region84
      $region83: #{unet_forward.1} parent=11 // pred_region
        _
      $region84: #{unet_forward.1} parent=11 // pred_fallthru
        _
      // Predicated region
      $region85: #{unet_forward.1} parent=11 // pred_check
        %p1090 = pneg %p596
      $region86: #{unet_forward.1} parent=11 // pred_check_branch
        %1092 = sbr.rel (%p1090) target = $region88
      $region87: #{unet_forward.1} parent=11 // pred_region
        _
      $region88: #{unet_forward.1} parent=11 // pred_fallthru
        _
      // Predicated region
      $region89: #{unet_forward.1} parent=11 // pred_check
        %p1093 = pneg %p617
      $region90: #{unet_forward.1} parent=11 // pred_check_branch
        %1095 = sbr.rel (%p1093) target = $region92
      $region91: #{unet_forward.1} parent=11 // pred_region
        _
      $region92: #{unet_forward.1} parent=11 // pred_fallthru
        _
      // Predicated region
      $region93: #{unet_forward.1} parent=11 // pred_check
        %p1096 = pneg %p638
      $region94: #{unet_forward.1} parent=11 // pred_check_branch
        %1098 = sbr.rel (%p1096) target = $region96
      $region95: #{unet_forward.1} parent=11 // pred_region
        _
      $region96: #{unet_forward.1} parent=11 // pred_fallthru
        _
      // Predicated region
      $region97: #{unet_forward.1} parent=11 // pred_check
        %p1099 = pneg %p659
      $region98: #{unet_forward.1} parent=11 // pred_check_branch
        %1101 = sbr.rel (%p1099) target = $region100
      $region99: #{unet_forward.1} parent=11 // pred_region
        _
      $region100: #{unet_forward.1} parent=11 // pred_fallthru
        _
      // Predicated region
      $region101: #{unet_forward.1} parent=11 // pred_check
        %p1102 = pneg %p680
      $region102: #{unet_forward.1} parent=11 // pred_check_branch
        %1104 = sbr.rel (%p1102) target = $region104
      $region103: #{unet_forward.1} parent=11 // pred_region
        _
      $region104: #{unet_forward.1} parent=11 // pred_fallthru
        _
      // Predicated region
      $region105: #{unet_forward.1} parent=11 // pred_check
        %p1105 = pneg %p701
      $region106: #{unet_forward.1} parent=11 // pred_check_branch
        %1107 = sbr.rel (%p1105) target = $region108
      $region107: #{unet_forward.1} parent=11 // pred_region
        _
      $region108: #{unet_forward.1} parent=11 // pred_fallthru
        _
      // Predicated region
      $region109: #{unet_forward.1} parent=11 // pred_check
        %p1108 = pneg %p722
      $region110: #{unet_forward.1} parent=11 // pred_check_branch
        %1110 = sbr.rel (%p1108) target = $region112
      $region111: #{unet_forward.1} parent=11 // pred_region
        _
      $region112: #{unet_forward.1} parent=11 // pred_fallthru
        _
      // Predicated region
      $region113: #{unet_forward.1} parent=11 // pred_check
        %p1111 = pneg %p743
      $region114: #{unet_forward.1} parent=11 // pred_check_branch
        %1113 = sbr.rel (%p1111) target = $region116
      $region115: #{unet_forward.1} parent=11 // pred_region
        _
      $region116: #{unet_forward.1} parent=11 // pred_fallthru
        _
      // Predicated region
      $region117: #{unet_forward.1} parent=11 // pred_check
        %p1114 = pneg %p764
      $region118: #{unet_forward.1} parent=11 // pred_check_branch
        %1116 = sbr.rel (%p1114) target = $region120
      $region119: #{unet_forward.1} parent=11 // pred_region
        _
      $region120: #{unet_forward.1} parent=11 // pred_fallthru
        _
      // Predicated region
      $region121: #{unet_forward.1} parent=11 // pred_check
        %p1117 = pneg %p785
      $region122: #{unet_forward.1} parent=11 // pred_check_branch
        %1119 = sbr.rel (%p1117) target = $region124
      $region123: #{unet_forward.1} parent=11 // pred_region
        _
      $region124: #{unet_forward.1} parent=11 // pred_fallthru
        _
      // Predicated region
      $region125: #{unet_forward.1} parent=11 // pred_check
        %p1120 = pneg %p806
      $region126: #{unet_forward.1} parent=11 // pred_check_branch
        %1122 = sbr.rel (%p1120) target = $region128
      $region127: #{unet_forward.1} parent=11 // pred_region
        _
      $region128: #{unet_forward.1} parent=11 // pred_fallthru
        _
      // Predicated region
      $region129: #{unet_forward.1} parent=11 // pred_check
        %p1123 = pneg %p827
      $region130: #{unet_forward.1} parent=11 // pred_check_branch
        %1125 = sbr.rel (%p1123) target = $region132
      $region131: #{unet_forward.1} parent=11 // pred_region
        _
      $region132: #{unet_forward.1} parent=11 // pred_fallthru
        _
      // Predicated region
      $region133: #{unet_forward.1} parent=11 // pred_check
        %p1126 = pneg %p848
      $region134: #{unet_forward.1} parent=11 // pred_check_branch
        %1128 = sbr.rel (%p1126) target = $region136
      $region135: #{unet_forward.1} parent=11 // pred_region
        _
      $region136: #{unet_forward.1} parent=11 // pred_fallthru
        _
      // Predicated region
      $region137: #{unet_forward.1} parent=11 // pred_check
        %p1129 = pneg %p869
      $region138: #{unet_forward.1} parent=11 // pred_check_branch
        %1131 = sbr.rel (%p1129) target = $region140
      $region139: #{unet_forward.1} parent=11 // pred_region
        _
      $region140: #{unet_forward.1} parent=11 // pred_fallthru
        _
      // Predicated region
      $region141: #{unet_forward.1} parent=11 // pred_check
        %p1132 = pneg %p890
      $region142: #{unet_forward.1} parent=11 // pred_check_branch
        %1134 = sbr.rel (%p1132) target = $region144
      $region143: #{unet_forward.1} parent=11 // pred_region
        _
      $region144: #{unet_forward.1} parent=11 // pred_fallthru
        _
      // Predicated region
      $region145: #{unet_forward.1} parent=11 // pred_check
        %p1135 = pneg %p911
      $region146: #{unet_forward.1} parent=11 // pred_check_branch
        %1137 = sbr.rel (%p1135) target = $region148
      $region147: #{unet_forward.1} parent=11 // pred_region
        _
      $region148: #{unet_forward.1} parent=11 // pred_fallthru
        _
      // Predicated region
      $region149: #{unet_forward.1} parent=11 // pred_check
        %p1138 = pneg %p932
      $region150: #{unet_forward.1} parent=11 // pred_check_branch
        %1140 = sbr.rel (%p1138) target = $region152
      $region151: #{unet_forward.1} parent=11 // pred_region
        _
      $region152: #{unet_forward.1} parent=11 // pred_fallthru
        _
      // Predicated region
      $region153: #{unet_forward.1} parent=11 // pred_check
        %p1141 = pneg %p953
      $region154: #{unet_forward.1} parent=11 // pred_check_branch
        %1143 = sbr.rel (%p1141) target = $region156
      $region155: #{unet_forward.1} parent=11 // pred_region
        _
      $region156: #{unet_forward.1} parent=11 // pred_fallthru
        _
      // Predicated region
      $region157: #{unet_forward.1} parent=11 // pred_check
        %p1144 = pneg %p974
      $region158: #{unet_forward.1} parent=11 // pred_check_branch
        %1146 = sbr.rel (%p1144) target = $region160
      $region159: #{unet_forward.1} parent=11 // pred_region
        _
      $region160: #{unet_forward.1} parent=11 // pred_fallthru
        _
      // Predicated region
      $region161: #{unet_forward.1} parent=11 // pred_check
        %p1147 = pneg %p995
      $region162: #{unet_forward.1} parent=11 // pred_check_branch
        %1149 = sbr.rel (%p1147) target = $region164
      $region163: #{unet_forward.1} parent=11 // pred_region
        _
      $region164: #{unet_forward.1} parent=11 // pred_fallthru
        _
    $region12: #{unet_forward.1} parent=5 // pred_fallthru
      _
    %p1150 = scmp.lt.s32.totalorder %s93, 2
    // Predicated region
    $region165: #{unet_forward.1} parent=5 // pred_check
      %p1151 = pneg %p1150
    $region166: #{unet_forward.1} parent=5 // pred_check_branch
      %1153 = sbr.rel (%p1151) target = $region168
    $region167: #{unet_forward.1} parent=5 // pred_region
      // Predicated region
      $region169: #{unet_forward.1} parent=167 // pred_check
        %p1154 = pneg %p113
      $region170: #{unet_forward.1} parent=167 // pred_check_branch
        %1156 = sbr.rel (%p1154) target = $region172
      $region171: #{unet_forward.1} parent=167 // pred_region
        %p1157 = scmp.lt.s32.totalorder %s93, 1
        %s1158 = scalar_select %p1157, %s93, 1
        %s1159 = smul.addr %s1158, 8
        %s1160 = smul.addr %s1159, 8
        %s1161 = scalar_lea.vmem %s1, %s1160
      $region172: #{unet_forward.1} parent=167 // pred_fallthru
        _
      // Predicated region
      $region173: #{unet_forward.1} parent=167 // pred_check
        %p1162 = pneg %p139
      $region174: #{unet_forward.1} parent=167 // pred_check_branch
        %1164 = sbr.rel (%p1162) target = $region176
      $region175: #{unet_forward.1} parent=167 // pred_region
        %p1165 = scmp.lt.s32.totalorder %s93, 1
        %s1166 = scalar_select %p1165, %s93, 1
        %s1167 = scalar_lea.vmem %s3, %s1166
      $region176: #{unet_forward.1} parent=167 // pred_fallthru
        _
      // Predicated region
      $region177: #{unet_forward.1} parent=167 // pred_check
        %p1168 = pneg %p165
      $region178: #{unet_forward.1} parent=167 // pred_check_branch
        %1170 = sbr.rel (%p1168) target = $region180
      $region179: #{unet_forward.1} parent=167 // pred_region
        %p1171 = scmp.lt.s32.totalorder %s93, 1
        %s1172 = scalar_select %p1171, %s93, 1
        %s1173 = scalar_lea.vmem %s5, %s1172
      $region180: #{unet_forward.1} parent=167 // pred_fallthru
        _
      // Predicated region
      $region181: #{unet_forward.1} parent=167 // pred_check
        %p1174 = pneg %p191
      $region182: #{unet_forward.1} parent=167 // pred_check_branch
        %1176 = sbr.rel (%p1174) target = $region184
      $region183: #{unet_forward.1} parent=167 // pred_region
        %p1177 = scmp.lt.s32.totalorder %s93, 1
        %s1178 = scalar_select %p1177, %s93, 1
        %s1179 = scalar_lea.vmem %s7, %s1178
      $region184: #{unet_forward.1} parent=167 // pred_fallthru
        _
    $region168: #{unet_forward.1} parent=5 // pred_fallthru
      _
    %p1180 = scmp.le.s32.totalorder 1, %s93
    %p1181 = scmp.lt.s32.totalorder %s93, 3
    %p1182 = pnand %p1180, %p1181
    %p1183 = pneg %p1182
    // Predicated region
    $region185: #{unet_forward.1} parent=5 // pred_check
      _
    $region186: #{unet_forward.1} parent=5 // pred_check_branch
      %1185 = sbr.rel (%p1182) target = $region188
    $region187: #{unet_forward.1} parent=5 // pred_region
      %s1186 = ssub.s32 %s93, 1
      %p1187 = scmp.lt.s32.totalorder %s98, 1
      %s1188 = scalar_select %p1187, %s98, 1
      %s1189 = smul.addr %s1188, 8
      %s1190 = smul.addr %s1189, 8
      %s1191 = scalar_lea.vmem %s1, %s1190
      %p1192 = pneg %p119
      %p1193 = pneg %p116
      %p1194 = scmp.lt.s32.totalorder %s98, 1
      %s1195 = scalar_select %p1194, %s98, 1
      %s1196 = scalar_lea.vmem %s3, %s1195
      %p1197 = pneg %p145
      %p1198 = pneg %p142
      %p1199 = scmp.lt.s32.totalorder %s98, 1
      %s1200 = scalar_select %p1199, %s98, 1
      %s1201 = scalar_lea.vmem %s5, %s1200
      %p1202 = pneg %p171
      %p1203 = pneg %p168
      %p1204 = scmp.lt.s32.totalorder %s98, 1
      %s1205 = scalar_select %p1204, %s98, 1
      %s1206 = scalar_lea.vmem %s7, %s1205
      %p1207 = pneg %p197
      %p1208 = pneg %p194
      %p1209 = pneg %p218
      %p1210 = pneg %p215
      %p1211 = pneg %p239
      %p1212 = pneg %p236
      %p1213 = pneg %p260
      %p1214 = pneg %p257
      %p1215 = pneg %p281
      %p1216 = pneg %p278
      %p1217 = pneg %p302
      %p1218 = pneg %p299
      %p1219 = pneg %p323
      %p1220 = pneg %p320
      %p1221 = pneg %p344
      %p1222 = pneg %p341
      %p1223 = pneg %p365
      %p1224 = pneg %p362
      %p1225 = pneg %p386
      %p1226 = pneg %p383
      %p1227 = pneg %p407
      %p1228 = pneg %p404
      %p1229 = pneg %p428
      %p1230 = pneg %p425
      %p1231 = pneg %p449
      %p1232 = pneg %p446
      %p1233 = pneg %p470
      %p1234 = pneg %p467
      %p1235 = pneg %p491
      %p1236 = pneg %p488
      %p1237 = pneg %p512
      %p1238 = pneg %p509
      %p1239 = pneg %p533
      %p1240 = pneg %p530
      %p1241 = pneg %p554
      %p1242 = pneg %p551
      %p1243 = pneg %p575
      %p1244 = pneg %p572
      %p1245 = pneg %p596
      %p1246 = pneg %p593
      %p1247 = pneg %p617
      %p1248 = pneg %p614
      %p1249 = pneg %p638
      %p1250 = pneg %p635
      %p1251 = pneg %p659
      %p1252 = pneg %p656
      %p1253 = pneg %p680
      %p1254 = pneg %p677
      %p1255 = pneg %p701
      %p1256 = pneg %p698
      %p1257 = pneg %p722
      %p1258 = pneg %p719
      %p1259 = pneg %p743
      %p1260 = pneg %p740
      %p1261 = pneg %p764
      %p1262 = pneg %p761
      %p1263 = pneg %p785
      %p1264 = pneg %p782
      %p1265 = pneg %p806
      %p1266 = pneg %p803
      %p1267 = pneg %p827
      %p1268 = pneg %p824
      %p1269 = pneg %p848
      %p1270 = pneg %p845
      %p1271 = pneg %p869
      %p1272 = pneg %p866
      %p1273 = pneg %p890
      %p1274 = pneg %p887
      %p1275 = pneg %p911
      %p1276 = pneg %p908
      %p1277 = pneg %p932
      %p1278 = pneg %p929
      %p1279 = pneg %p953
      %p1280 = pneg %p950
      %p1281 = pneg %p974
      %p1282 = pneg %p971
      %p1283 = pneg %p995
      %p1284 = pneg %p992
      %p1285 = pneg %p1021
      %p1286 = pneg %p1018
      %p1287 = scmp.lt.s32.totalorder %s98, 1
      %s1288 = scalar_select %p1287, %s98, 1
      %s1289 = smul.addr %s1288, 8
      %s1290 = smul.addr %s1289, 8
      %s1291 = scalar_lea.vmem %s85, %s1290
      %p1292 = scmp.lt.s32.totalorder %s98, 1
      %s1293 = scalar_select %p1292, %s98, 1
      %s1294 = smul.addr %s1293, 8
      %s1295 = smul.addr %s1294, 8
      %s1296 = scalar_lea.vmem %s1, %s1295
      %p1297 = scmp.lt.s32.totalorder %s98, 1
      %s1298 = scalar_select %p1297, %s98, 1
      %s1299 = scalar_lea.vmem %s3, %s1298
      %p1300 = scmp.lt.s32.totalorder %s98, 1
      %s1301 = scalar_select %p1300, %s98, 1
      %s1302 = scalar_lea.vmem %s5, %s1301
      %p1303 = scmp.lt.s32.totalorder %s98, 1
      %s1304 = scalar_select %p1303, %s98, 1
      %s1305 = scalar_lea.vmem %s7, %s1304
      %p1306 = scmp.lt.s32.totalorder %s98, 1
      %s1307 = scalar_select %p1306, %s98, 1
      %s1308 = smul.addr %s1307, 8
      %s1309 = smul.addr %s1308, 8
      %s1310 = scalar_lea.vmem %s85, %s1309
      %v1311 = vld [vmem:[%s1299] sm:$0x1]
      %v1312 = vld [vmem:[%s13] sm:$0xff]
      %v1313 = vld [vmem:[%s13 + $0x8] sm:$0xff]
      %v1314 = vld [vmem:[%s13 + $0x10] sm:$0xff]
      %v1315 = vld [vmem:[%s13 + $0x18] sm:$0xff]
      %v1316 = vld [vmem:[%s15] sm:$0x1]
      %vm1317 = vcmask 261120
      %v1319 = vsel %vm1317, %v1311, 0
      %1321 = vmatprep.subr.mxu0 0.0
      %1322 = vmatpush1.msra.mxu0 %v1312
      %1323 = vmatprep.subr.mxu0 0.0
      %1324 = vmatpush1.msra.mxu0 %v1313
      %1325 = vmatprep.subr.mxu0 0.0
      %1326 = vmatpush1.msra.mxu0 %v1314
      %1327 = vmatprep.subr.mxu0 0.0
      %1328 = vmatpush1.msra.mxu0 %v1315
      %1329 = vmatprep.subr.mxu0 0.0
      %1330 = vmatpush1.msra.mxu0 0.0
      %1331 = vmatprep.subr.mxu0 0.0
      %1332 = vmatpush1.msra.mxu0 0.0
      %1333 = vmatprep.subr.mxu0 0.0
      %1334 = vmatpush1.msra.mxu0 0.0
      %1335 = vmatprep.subr.mxu0 0.0
      %1336 = vmatpush1.msra.mxu0 0.0
      %1337 = vmatprep.subr.mxu0 0.0
      %1338 = vmatpush1.msra.mxu0 0.0
      %1339 = vmatprep.subr.mxu0 0.0
      %1340 = vmatpush1.msra.mxu0 0.0
      %1341 = vmatprep.subr.mxu0 0.0
      %1342 = vmatpush1.msra.mxu0 0.0
      %1343 = vmatprep.subr.mxu0 0.0
      %1344 = vmatpush1.msra.mxu0 0.0
      %1345 = vmatprep.subr.mxu0 0.0
      %1346 = vmatpush1.msra.mxu0 0.0
      %1347 = vmatprep.subr.mxu0 0.0
      %1348 = vmatpush1.msra.mxu0 0.0
      %1349 = vmatprep.subr.mxu0 0.0
      %1350 = vmatpush1.msra.mxu0 0.0
      %1351 = vmatprep.subr.mxu0 0.0
      %1352 = vmatpush1.msra.mxu0 0.0
      %1353 = vmatprep.subr.mxu0 0.0
      %1354 = vmatpush1.msra.mxu0 0.0
      %1355 = vmatprep.subr.mxu0 0.0
      %1356 = vmatpush1.msra.mxu0 0.0
      %1357 = vmatprep.subr.mxu0 0.0
      %1358 = vmatpush1.msra.mxu0 0.0
      %1359 = vmatprep.subr.mxu0 0.0
      %1360 = vmatpush1.msra.mxu0 0.0
      %1361 = vmatprep.subr.mxu0 0.0
      %1362 = vmatpush1.msra.mxu0 0.0
      %1363 = vmatprep.subr.mxu0 0.0
      %1364 = vmatpush1.msra.mxu0 0.0
      %1365 = vmatprep.subr.mxu0 0.0
      %1366 = vmatpush1.msra.mxu0 0.0
      %1367 = vmatprep.subr.mxu0 0.0
      %1368 = vmatpush1.msra.mxu0 0.0
      %1369 = vmatprep.subr.mxu0 0.0
      %1370 = vmatpush1.msra.mxu0 0.0
      %1371 = vmatprep.subr.mxu0 0.0
      %1372 = vmatpush1.msra.mxu0 0.0
      %1373 = vmatprep.subr.mxu0 0.0
      %1374 = vmatpush1.msra.mxu0 0.0
      %1375 = vmatprep.subr.mxu0 0.0
      %1376 = vmatpush1.msra.mxu0 0.0
      %1377 = vmatprep.subr.mxu0 0.0
      %1378 = vmatpush1.msra.mxu0 0.0
      %1379 = vmatprep.subr.mxu0 0.0
      %1380 = vmatpush1.msra.mxu0 0.0
      %1381 = vmatprep.subr.mxu0 0.0
      %1382 = vmatpush1.msra.mxu0 0.0
      %1383 = vmatprep.subr.mxu0 0.0
      %1384 = vmatpush1.msra.mxu0 0.0
      %1385 = vmatprep.mubr.f32.mxu0 0.0
      %1386 = vmatmul.mubr.f32.gmra.mrb[0].mxu0 %v1319
      %v1387 = vpop.f32.mrb[0].mxu0
      %v1388 = vadd.f32 %v1316, %v1387
      %v1389 = vpop.f32.mrb[0].mxu0
      %1390 = vdwg.mxu0
      %v1391 = vxor.u32 %v1388, 2147483648
      %v1392 = vmul.f32 %v1391, 1.442695
      %v1393 = vpow.pop %v1392
      %v1394 = vadd.f32 %v1393, 1.0
      %v1395 = vrcp.pop %v1394
      %v1396 = vmul.f32 1.0, %v1395
      %v1397 = vmul.f32 %v1388, %v1396
      %v1398 = vld [vmem:[%s17] sm:$0xff]
      %v1399 = vld [vmem:[%s17 + $0x8] sm:$0xff]
      %v1400 = vld [vmem:[%s17 + $0x10] sm:$0xff]
      %v1401 = vld [vmem:[%s17 + $0x18] sm:$0xff]
      %v1402 = vld [vmem:[%s19] sm:$0x1]
      %v1404 = vsel %vm1317, %v1397, 0
      %1406 = vmatprep.subr.mxu0 0.0
      %1407 = vmatpush1.msra.mxu0 %v1398
      %1408 = vmatprep.subr.mxu0 0.0
      %1409 = vmatpush1.msra.mxu0 %v1399
      %1410 = vmatprep.subr.mxu0 0.0
      %1411 = vmatpush1.msra.mxu0 %v1400
      %1412 = vmatprep.subr.mxu0 0.0
      %1413 = vmatpush1.msra.mxu0 %v1401
      %1414 = vmatprep.subr.mxu0 0.0
      %1415 = vmatpush1.msra.mxu0 0.0
      %1416 = vmatprep.subr.mxu0 0.0
      %1417 = vmatpush1.msra.mxu0 0.0
      %1418 = vmatprep.subr.mxu0 0.0
      %1419 = vmatpush1.msra.mxu0 0.0
      %1420 = vmatprep.subr.mxu0 0.0
      %1421 = vmatpush1.msra.mxu0 0.0
      %1422 = vmatprep.subr.mxu0 0.0
      %1423 = vmatpush1.msra.mxu0 0.0
      %1424 = vmatprep.subr.mxu0 0.0
      %1425 = vmatpush1.msra.mxu0 0.0
      %1426 = vmatprep.subr.mxu0 0.0
      %1427 = vmatpush1.msra.mxu0 0.0
      %1428 = vmatprep.subr.mxu0 0.0
      %1429 = vmatpush1.msra.mxu0 0.0
      %1430 = vmatprep.subr.mxu0 0.0
      %1431 = vmatpush1.msra.mxu0 0.0
      %1432 = vmatprep.subr.mxu0 0.0
      %1433 = vmatpush1.msra.mxu0 0.0
      %1434 = vmatprep.subr.mxu0 0.0
      %1435 = vmatpush1.msra.mxu0 0.0
      %1436 = vmatprep.subr.mxu0 0.0
      %1437 = vmatpush1.msra.mxu0 0.0
      %1438 = vmatprep.subr.mxu0 0.0
      %1439 = vmatpush1.msra.mxu0 0.0
      %1440 = vmatprep.subr.mxu0 0.0
      %1441 = vmatpush1.msra.mxu0 0.0
      %1442 = vmatprep.subr.mxu0 0.0
      %1443 = vmatpush1.msra.mxu0 0.0
      %1444 = vmatprep.subr.mxu0 0.0
      %1445 = vmatpush1.msra.mxu0 0.0
      %1446 = vmatprep.subr.mxu0 0.0
      %1447 = vmatpush1.msra.mxu0 0.0
      %1448 = vmatprep.subr.mxu0 0.0
      %1449 = vmatpush1.msra.mxu0 0.0
      %1450 = vmatprep.subr.mxu0 0.0
      %1451 = vmatpush1.msra.mxu0 0.0
      %1452 = vmatprep.subr.mxu0 0.0
      %1453 = vmatpush1.msra.mxu0 0.0
      %1454 = vmatprep.subr.mxu0 0.0
      %1455 = vmatpush1.msra.mxu0 0.0
      %1456 = vmatprep.subr.mxu0 0.0
      %1457 = vmatpush1.msra.mxu0 0.0
      %1458 = vmatprep.subr.mxu0 0.0
      %1459 = vmatpush1.msra.mxu0 0.0
      %1460 = vmatprep.subr.mxu0 0.0
      %1461 = vmatpush1.msra.mxu0 0.0
      %1462 = vmatprep.subr.mxu0 0.0
      %1463 = vmatpush1.msra.mxu0 0.0
      %1464 = vmatprep.subr.mxu0 0.0
      %1465 = vmatpush1.msra.mxu0 0.0
      %1466 = vmatprep.subr.mxu0 0.0
      %1467 = vmatpush1.msra.mxu0 0.0
      %1468 = vmatprep.subr.mxu0 0.0
      %1469 = vmatpush1.msra.mxu0 0.0
      %1470 = vmatprep.mubr.f32.mxu0 0.0
      %1471 = vmatmul.mubr.f32.gmra.mrb[0].mxu0 %v1404
      %v1472 = vpop.f32.mrb[0].mxu0
      %v1473 = vadd.f32 %v1402, %v1472
      %v1474 = vpop.f32.mrb[0].mxu0
      %1475 = vdwg.mxu0
      %v1476 = vld [vmem:[%s1302] sm:$0x1]
      %v1477 = vld [vmem:[%s21] sm:$0xff]
      %v1478 = vld [vmem:[%s21 + $0x8] sm:$0xff]
      %v1479 = vld [vmem:[%s23] sm:$0x1]
      %vm1480 = vcmask 130048
      %v1482 = vsel %vm1480, %v1476, 0
      %1484 = vmatprep.subr.mxu0 0.0
      %1485 = vmatpush1.msra.mxu0 %v1477
      %1486 = vmatprep.subr.mxu0 0.0
      %1487 = vmatpush1.msra.mxu0 %v1478
      %1488 = vmatprep.subr.mxu0 0.0
      %1489 = vmatpush1.msra.mxu0 0.0
      %1490 = vmatprep.subr.mxu0 0.0
      %1491 = vmatpush1.msra.mxu0 0.0
      %1492 = vmatprep.subr.mxu0 0.0
      %1493 = vmatpush1.msra.mxu0 0.0
      %1494 = vmatprep.subr.mxu0 0.0
      %1495 = vmatpush1.msra.mxu0 0.0
      %1496 = vmatprep.subr.mxu0 0.0
      %1497 = vmatpush1.msra.mxu0 0.0
      %1498 = vmatprep.subr.mxu0 0.0
      %1499 = vmatpush1.msra.mxu0 0.0
      %1500 = vmatprep.subr.mxu0 0.0
      %1501 = vmatpush1.msra.mxu0 0.0
      %1502 = vmatprep.subr.mxu0 0.0
      %1503 = vmatpush1.msra.mxu0 0.0
      %1504 = vmatprep.subr.mxu0 0.0
      %1505 = vmatpush1.msra.mxu0 0.0
      %1506 = vmatprep.subr.mxu0 0.0
      %1507 = vmatpush1.msra.mxu0 0.0
      %1508 = vmatprep.subr.mxu0 0.0
      %1509 = vmatpush1.msra.mxu0 0.0
      %1510 = vmatprep.subr.mxu0 0.0
      %1511 = vmatpush1.msra.mxu0 0.0
      %1512 = vmatprep.subr.mxu0 0.0
      %1513 = vmatpush1.msra.mxu0 0.0
      %1514 = vmatprep.subr.mxu0 0.0
      %1515 = vmatpush1.msra.mxu0 0.0
      %1516 = vmatprep.subr.mxu0 0.0
      %1517 = vmatpush1.msra.mxu0 0.0
      %1518 = vmatprep.subr.mxu0 0.0
      %1519 = vmatpush1.msra.mxu0 0.0
      %1520 = vmatprep.subr.mxu0 0.0
      %1521 = vmatpush1.msra.mxu0 0.0
      %1522 = vmatprep.subr.mxu0 0.0
      %1523 = vmatpush1.msra.mxu0 0.0
      %1524 = vmatprep.subr.mxu0 0.0
      %1525 = vmatpush1.msra.mxu0 0.0
      %1526 = vmatprep.subr.mxu0 0.0
      %1527 = vmatpush1.msra.mxu0 0.0
      %1528 = vmatprep.subr.mxu0 0.0
      %1529 = vmatpush1.msra.mxu0 0.0
      %1530 = vmatprep.subr.mxu0 0.0
      %1531 = vmatpush1.msra.mxu0 0.0
      %1532 = vmatprep.subr.mxu0 0.0
      %1533 = vmatpush1.msra.mxu0 0.0
      %1534 = vmatprep.subr.mxu0 0.0
      %1535 = vmatpush1.msra.mxu0 0.0
      %1536 = vmatprep.subr.mxu0 0.0
      %1537 = vmatpush1.msra.mxu0 0.0
      %1538 = vmatprep.subr.mxu0 0.0
      %1539 = vmatpush1.msra.mxu0 0.0
      %1540 = vmatprep.subr.mxu0 0.0
      %1541 = vmatpush1.msra.mxu0 0.0
      %1542 = vmatprep.subr.mxu0 0.0
      %1543 = vmatpush1.msra.mxu0 0.0
      %1544 = vmatprep.subr.mxu0 0.0
      %1545 = vmatpush1.msra.mxu0 0.0
      %1546 = vmatprep.subr.mxu0 0.0
      %1547 = vmatpush1.msra.mxu0 0.0
      %1548 = vmatprep.mubr.f32.mxu0 0.0
      %1549 = vmatmul.mubr.f32.gmra.mrb[0].mxu0 %v1482
      %v1550 = vpop.f32.mrb[0].mxu0
      %v1551 = vadd.f32 %v1479, %v1550
      %v1552 = vpop.f32.mrb[0].mxu0
      %1553 = vdwg.mxu0
      %v1554 = vxor.u32 %v1551, 2147483648
      %v1555 = vmul.f32 %v1554, 1.442695
      %v1556 = vpow.pop %v1555
      %v1557 = vadd.f32 %v1556, 1.0
      %v1558 = vrcp.pop %v1557
      %v1559 = vmul.f32 1.0, %v1558
      %v1560 = vmul.f32 %v1551, %v1559
      %v1561 = vld [vmem:[%s25] sm:$0xff]
      %v1562 = vld [vmem:[%s25 + $0x8] sm:$0xff]
      %v1563 = vld [vmem:[%s25 + $0x10] sm:$0xff]
      %v1564 = vld [vmem:[%s25 + $0x18] sm:$0xff]
      %v1565 = vld [vmem:[%s25 + $0x20] sm:$0xff]
      %v1566 = vld [vmem:[%s25 + $0x28] sm:$0xff]
      %v1567 = vld [vmem:[%s25 + $0x30] sm:$0xff]
      %v1568 = vld [vmem:[%s25 + $0x38] sm:$0xff]
      %v1569 = vld [vmem:[%s27] sm:$0x1]
      %vm1570 = vcmask 523264
      %v1572 = vsel %vm1570, %v1560, 0
      %1574 = vmatprep.subr.mxu0 0.0
      %1575 = vmatpush1.msra.mxu0 %v1561
      %1576 = vmatprep.subr.mxu0 0.0
      %1577 = vmatpush1.msra.mxu0 %v1562
      %1578 = vmatprep.subr.mxu0 0.0
      %1579 = vmatpush1.msra.mxu0 %v1563
      %1580 = vmatprep.subr.mxu0 0.0
      %1581 = vmatpush1.msra.mxu0 %v1564
      %1582 = vmatprep.subr.mxu0 0.0
      %1583 = vmatpush1.msra.mxu0 %v1565
      %1584 = vmatprep.subr.mxu0 0.0
      %1585 = vmatpush1.msra.mxu0 %v1566
      %1586 = vmatprep.subr.mxu0 0.0
      %1587 = vmatpush1.msra.mxu0 %v1567
      %1588 = vmatprep.subr.mxu0 0.0
      %1589 = vmatpush1.msra.mxu0 %v1568
      %1590 = vmatprep.subr.mxu0 0.0
      %1591 = vmatpush1.msra.mxu0 0.0
      %1592 = vmatprep.subr.mxu0 0.0
      %1593 = vmatpush1.msra.mxu0 0.0
      %1594 = vmatprep.subr.mxu0 0.0
      %1595 = vmatpush1.msra.mxu0 0.0
      %1596 = vmatprep.subr.mxu0 0.0
      %1597 = vmatpush1.msra.mxu0 0.0
      %1598 = vmatprep.subr.mxu0 0.0
      %1599 = vmatpush1.msra.mxu0 0.0
      %1600 = vmatprep.subr.mxu0 0.0
      %1601 = vmatpush1.msra.mxu0 0.0
      %1602 = vmatprep.subr.mxu0 0.0
      %1603 = vmatpush1.msra.mxu0 0.0
      %1604 = vmatprep.subr.mxu0 0.0
      %1605 = vmatpush1.msra.mxu0 0.0
      %1606 = vmatprep.subr.mxu0 0.0
      %1607 = vmatpush1.msra.mxu0 0.0
      %1608 = vmatprep.subr.mxu0 0.0
      %1609 = vmatpush1.msra.mxu0 0.0
      %1610 = vmatprep.subr.mxu0 0.0
      %1611 = vmatpush1.msra.mxu0 0.0
      %1612 = vmatprep.subr.mxu0 0.0
      %1613 = vmatpush1.msra.mxu0 0.0
      %1614 = vmatprep.subr.mxu0 0.0
      %1615 = vmatpush1.msra.mxu0 0.0
      %1616 = vmatprep.subr.mxu0 0.0
      %1617 = vmatpush1.msra.mxu0 0.0
      %1618 = vmatprep.subr.mxu0 0.0
      %1619 = vmatpush1.msra.mxu0 0.0
      %1620 = vmatprep.subr.mxu0 0.0
      %1621 = vmatpush1.msra.mxu0 0.0
      %1622 = vmatprep.subr.mxu0 0.0
      %1623 = vmatpush1.msra.mxu0 0.0
      %1624 = vmatprep.subr.mxu0 0.0
      %1625 = vmatpush1.msra.mxu0 0.0
      %1626 = vmatprep.subr.mxu0 0.0
      %1627 = vmatpush1.msra.mxu0 0.0
      %1628 = vmatprep.subr.mxu0 0.0
      %1629 = vmatpush1.msra.mxu0 0.0
      %1630 = vmatprep.subr.mxu0 0.0
      %1631 = vmatpush1.msra.mxu0 0.0
      %1632 = vmatprep.subr.mxu0 0.0
      %1633 = vmatpush1.msra.mxu0 0.0
      %1634 = vmatprep.subr.mxu0 0.0
      %1635 = vmatpush1.msra.mxu0 0.0
      %1636 = vmatprep.subr.mxu0 0.0
      %1637 = vmatpush1.msra.mxu0 0.0
      %1638 = vmatprep.mubr.f32.mxu0 0.0
      %1639 = vmatmul.mubr.f32.gmra.mrb[0].mxu0 %v1572
      %v1640 = vpop.f32.mrb[0].mxu0
      %v1641 = vadd.f32 %v1569, %v1640
      %v1642 = vpop.f32.mrb[0].mxu0
      %1643 = vdwg.mxu0
      %v1644 = vld [vmem:[%s29] sm:$0xff]
      %v1645 = vld [vmem:[%s29 + $0x8] sm:$0xff]
      %v1646 = vld [vmem:[%s29 + $0x10] sm:$0xff]
      %v1647 = vld [vmem:[%s29 + $0x18] sm:$0xff]
      %v1648 = vld [vmem:[%s29 + $0x20] sm:$0xff]
      %v1649 = vld [vmem:[%s29 + $0x28] sm:$0xff]
      %v1650 = vld [vmem:[%s29 + $0x30] sm:$0xff]
      %v1651 = vld [vmem:[%s29 + $0x38] sm:$0xff]
      %v1652 = vld [vmem:[%s31] sm:$0xff]
      %v1653 = vld [vmem:[%s31 + $0x8] sm:$0xff]
      %v1654 = vld [vmem:[%s31 + $0x10] sm:$0xff]
      %v1655 = vld [vmem:[%s31 + $0x18] sm:$0xff]
      %v1657 = vsel %vm1480, %v1641, 0
      %1659 = vmatprep.subr.mxu0 %v1653
      %1660 = vmatpush1.msra.mxu0 %v1652
      %1661 = vmatprep.subr.mxu0 %v1655
      %1662 = vmatpush1.msra.mxu0 %v1654
      %1663 = vmatprep.subr.mxu0 0.0
      %1664 = vmatpush1.msra.mxu0 0.0
      %1665 = vmatprep.subr.mxu0 0.0
      %1666 = vmatpush1.msra.mxu0 0.0
      %1667 = vmatprep.subr.mxu0 0.0
      %1668 = vmatpush1.msra.mxu0 0.0
      %1669 = vmatprep.subr.mxu0 0.0
      %1670 = vmatpush1.msra.mxu0 0.0
      %1671 = vmatprep.subr.mxu0 0.0
      %1672 = vmatpush1.msra.mxu0 0.0
      %1673 = vmatprep.subr.mxu0 0.0
      %1674 = vmatpush1.msra.mxu0 0.0
      %1675 = vmatprep.subr.mxu0 0.0
      %1676 = vmatpush1.msra.mxu0 0.0
      %1677 = vmatprep.subr.mxu0 0.0
      %1678 = vmatpush1.msra.mxu0 0.0
      %1679 = vmatprep.subr.mxu0 0.0
      %1680 = vmatpush1.msra.mxu0 0.0
      %1681 = vmatprep.subr.mxu0 0.0
      %1682 = vmatpush1.msra.mxu0 0.0
      %1683 = vmatprep.subr.mxu0 0.0
      %1684 = vmatpush1.msra.mxu0 0.0
      %1685 = vmatprep.subr.mxu0 0.0
      %1686 = vmatpush1.msra.mxu0 0.0
      %1687 = vmatprep.subr.mxu0 0.0
      %1688 = vmatpush1.msra.mxu0 0.0
      %1689 = vmatprep.subr.mxu0 0.0
      %1690 = vmatpush1.msra.mxu0 0.0
      %1691 = vmatprep.subr.mxu0 0.0
      %1692 = vmatpush1.msra.mxu0 0.0
      %1693 = vmatprep.subr.mxu0 0.0
      %1694 = vmatpush1.msra.mxu0 0.0
      %1695 = vmatprep.subr.mxu0 0.0
      %1696 = vmatpush1.msra.mxu0 0.0
      %1697 = vmatprep.subr.mxu0 0.0
      %1698 = vmatpush1.msra.mxu0 0.0
      %1699 = vmatprep.subr.mxu0 0.0
      %1700 = vmatpush1.msra.mxu0 0.0
      %1701 = vmatprep.subr.mxu0 0.0
      %1702 = vmatpush1.msra.mxu0 0.0
      %1703 = vmatprep.subr.mxu0 0.0
      %1704 = vmatpush1.msra.mxu0 0.0
      %1705 = vmatprep.subr.mxu0 0.0
      %1706 = vmatpush1.msra.mxu0 0.0
      %1707 = vmatprep.subr.mxu0 0.0
      %1708 = vmatpush1.msra.mxu0 0.0
      %1709 = vmatprep.subr.mxu0 0.0
      %1710 = vmatpush1.msra.mxu0 0.0
      %1711 = vmatprep.subr.mxu0 0.0
      %1712 = vmatpush1.msra.mxu0 0.0
      %1713 = vmatprep.subr.mxu0 0.0
      %1714 = vmatpush1.msra.mxu0 0.0
      %1715 = vmatprep.subr.mxu0 0.0
      %1716 = vmatpush1.msra.mxu0 0.0
      %1717 = vmatprep.subr.mxu0 0.0
      %1718 = vmatpush1.msra.mxu0 0.0
      %1719 = vmatprep.subr.mxu0 0.0
      %1720 = vmatpush1.msra.mxu0 0.0
      %1721 = vmatprep.subr.mxu0 0.0
      %1722 = vmatpush1.msra.mxu0 0.0
      %1723 = vmatprep.mubr.f32.mxu0 0.0
      %1724 = vmatmul.mubr.f32.gmra.mrb[0].mxu0 %v1657
      %v1725 = vpop.f32.mrb[0].mxu0
      %v1726 = vadd.f32 0.0, %v1725
      %v1727 = vpop.f32.mrb[0].mxu0
      %v1728 = vadd.f32 0.0, %v1727
      %1729 = vdwg.mxu0
      %v1731 = vsel %vm1317, %v1473, 0
      %1733 = vmatprep.subr.mxu0 %v1645
      %1734 = vmatpush1.msra.mxu0 %v1644
      %1735 = vmatprep.subr.mxu0 %v1647
      %1736 = vmatpush1.msra.mxu0 %v1646
      %1737 = vmatprep.subr.mxu0 %v1649
      %1738 = vmatpush1.msra.mxu0 %v1648
      %1739 = vmatprep.subr.mxu0 %v1651
      %1740 = vmatpush1.msra.mxu0 %v1650
      %1741 = vmatprep.subr.mxu0 0.0
      %1742 = vmatpush1.msra.mxu0 0.0
      %1743 = vmatprep.subr.mxu0 0.0
      %1744 = vmatpush1.msra.mxu0 0.0
      %1745 = vmatprep.subr.mxu0 0.0
      %1746 = vmatpush1.msra.mxu0 0.0
      %1747 = vmatprep.subr.mxu0 0.0
      %1748 = vmatpush1.msra.mxu0 0.0
      %1749 = vmatprep.subr.mxu0 0.0
      %1750 = vmatpush1.msra.mxu0 0.0
      %1751 = vmatprep.subr.mxu0 0.0
      %1752 = vmatpush1.msra.mxu0 0.0
      %1753 = vmatprep.subr.mxu0 0.0
      %1754 = vmatpush1.msra.mxu0 0.0
      %1755 = vmatprep.subr.mxu0 0.0
      %1756 = vmatpush1.msra.mxu0 0.0
      %1757 = vmatprep.subr.mxu0 0.0
      %1758 = vmatpush1.msra.mxu0 0.0
      %1759 = vmatprep.subr.mxu0 0.0
      %1760 = vmatpush1.msra.mxu0 0.0
      %1761 = vmatprep.subr.mxu0 0.0
      %1762 = vmatpush1.msra.mxu0 0.0
      %1763 = vmatprep.subr.mxu0 0.0
      %1764 = vmatpush1.msra.mxu0 0.0
      %1765 = vmatprep.subr.mxu0 0.0
      %1766 = vmatpush1.msra.mxu0 0.0
      %1767 = vmatprep.subr.mxu0 0.0
      %1768 = vmatpush1.msra.mxu0 0.0
      %1769 = vmatprep.subr.mxu0 0.0
      %1770 = vmatpush1.msra.mxu0 0.0
      %1771 = vmatprep.subr.mxu0 0.0
      %1772 = vmatpush1.msra.mxu0 0.0
      %1773 = vmatprep.subr.mxu0 0.0
      %1774 = vmatpush1.msra.mxu0 0.0
      %1775 = vmatprep.subr.mxu0 0.0
      %1776 = vmatpush1.msra.mxu0 0.0
      %1777 = vmatprep.subr.mxu0 0.0
      %1778 = vmatpush1.msra.mxu0 0.0
      %1779 = vmatprep.subr.mxu0 0.0
      %1780 = vmatpush1.msra.mxu0 0.0
      %1781 = vmatprep.subr.mxu0 0.0
      %1782 = vmatpush1.msra.mxu0 0.0
      %1783 = vmatprep.subr.mxu0 0.0
      %1784 = vmatpush1.msra.mxu0 0.0
      %1785 = vmatprep.subr.mxu0 0.0
      %1786 = vmatpush1.msra.mxu0 0.0
      %1787 = vmatprep.subr.mxu0 0.0
      %1788 = vmatpush1.msra.mxu0 0.0
      %1789 = vmatprep.subr.mxu0 0.0
      %1790 = vmatpush1.msra.mxu0 0.0
      %1791 = vmatprep.subr.mxu0 0.0
      %1792 = vmatpush1.msra.mxu0 0.0
      %1793 = vmatprep.subr.mxu0 0.0
      %1794 = vmatpush1.msra.mxu0 0.0
      %1795 = vmatprep.subr.mxu0 0.0
      %1796 = vmatpush1.msra.mxu0 0.0
      %1797 = vmatprep.mubr.f32.mxu0 0.0
      %1798 = vmatmul.mubr.f32.gmra.mrb[0].mxu0 %v1731
      %v1799 = vpop.f32.mrb[0].mxu0
      %v1800 = vadd.f32 %v1726, %v1799
      %v1801 = vpop.f32.mrb[0].mxu0
      %v1802 = vadd.f32 %v1728, %v1801
      %1803 = vdwg.mxu0
      %v1804 = vld [vmem:[%s1305] sm:$0x1]
      %v1805 = vld [vmem:[%s33] sm:$0xff]
      %v1806 = vld [vmem:[%s33 + $0x8] sm:$0xff]
      %vm1807 = vcmask 64512
      %v1809 = vsel %vm1807, %v1804, 0
      %1811 = vmatprep.subr.mxu0 %v1806
      %1812 = vmatpush1.msra.mxu0 %v1805
      %1813 = vmatprep.subr.mxu0 0.0
      %1814 = vmatpush1.msra.mxu0 0.0
      %1815 = vmatprep.subr.mxu0 0.0
      %1816 = vmatpush1.msra.mxu0 0.0
      %1817 = vmatprep.subr.mxu0 0.0
      %1818 = vmatpush1.msra.mxu0 0.0
      %1819 = vmatprep.subr.mxu0 0.0
      %1820 = vmatpush1.msra.mxu0 0.0
      %1821 = vmatprep.subr.mxu0 0.0
      %1822 = vmatpush1.msra.mxu0 0.0
      %1823 = vmatprep.subr.mxu0 0.0
      %1824 = vmatpush1.msra.mxu0 0.0
      %1825 = vmatprep.subr.mxu0 0.0
      %1826 = vmatpush1.msra.mxu0 0.0
      %1827 = vmatprep.subr.mxu0 0.0
      %1828 = vmatpush1.msra.mxu0 0.0
      %1829 = vmatprep.subr.mxu0 0.0
      %1830 = vmatpush1.msra.mxu0 0.0
      %1831 = vmatprep.subr.mxu0 0.0
      %1832 = vmatpush1.msra.mxu0 0.0
      %1833 = vmatprep.subr.mxu0 0.0
      %1834 = vmatpush1.msra.mxu0 0.0
      %1835 = vmatprep.subr.mxu0 0.0
      %1836 = vmatpush1.msra.mxu0 0.0
      %1837 = vmatprep.subr.mxu0 0.0
      %1838 = vmatpush1.msra.mxu0 0.0
      %1839 = vmatprep.subr.mxu0 0.0
      %1840 = vmatpush1.msra.mxu0 0.0
      %1841 = vmatprep.subr.mxu0 0.0
      %1842 = vmatpush1.msra.mxu0 0.0
      %1843 = vmatprep.subr.mxu0 0.0
      %1844 = vmatpush1.msra.mxu0 0.0
      %1845 = vmatprep.subr.mxu0 0.0
      %1846 = vmatpush1.msra.mxu0 0.0
      %1847 = vmatprep.subr.mxu0 0.0
      %1848 = vmatpush1.msra.mxu0 0.0
      %1849 = vmatprep.subr.mxu0 0.0
      %1850 = vmatpush1.msra.mxu0 0.0
      %1851 = vmatprep.subr.mxu0 0.0
      %1852 = vmatpush1.msra.mxu0 0.0
      %1853 = vmatprep.subr.mxu0 0.0
      %1854 = vmatpush1.msra.mxu0 0.0
      %1855 = vmatprep.subr.mxu0 0.0
      %1856 = vmatpush1.msra.mxu0 0.0
      %1857 = vmatprep.subr.mxu0 0.0
      %1858 = vmatpush1.msra.mxu0 0.0
      %1859 = vmatprep.subr.mxu0 0.0
      %1860 = vmatpush1.msra.mxu0 0.0
      %1861 = vmatprep.subr.mxu0 0.0
      %1862 = vmatpush1.msra.mxu0 0.0
      %1863 = vmatprep.subr.mxu0 0.0
      %1864 = vmatpush1.msra.mxu0 0.0
      %1865 = vmatprep.subr.mxu0 0.0
      %1866 = vmatpush1.msra.mxu0 0.0
      %1867 = vmatprep.subr.mxu0 0.0
      %1868 = vmatpush1.msra.mxu0 0.0
      %1869 = vmatprep.subr.mxu0 0.0
      %1870 = vmatpush1.msra.mxu0 0.0
      %1871 = vmatprep.subr.mxu0 0.0
      %1872 = vmatpush1.msra.mxu0 0.0
      %1873 = vmatprep.subr.mxu0 0.0
      %1874 = vmatpush1.msra.mxu0 0.0
      %1875 = vmatprep.mubr.f32.mxu0 0.0
      %1876 = vmatmul.mubr.f32.gmra.mrb[0].mxu0 %v1809
      %v1877 = vpop.f32.mrb[0].mxu0
      %v1878 = vadd.f32 0.0, %v1877
      %v1879 = vpop.f32.mrb[0].mxu0
      %v1880 = vadd.f32 0.0, %v1879
      %1881 = vdwg.mxu0
      %v1882 = vadd.f32 %v1800, %v1878
      %v1883 = vadd.f32 %v1802, %v1880
      %v1884 = vld [vmem:[%s35] sm:$0x3]
      %v1886 = vlaneseq
      %v1887 = vshrl.u32 %v1886, 7
      %v1888 = vsub.s32 0, %v1887
      %v1889 = vrot.slane %v1884, %v1888
      %v1890 = vlaneseq
      %v1891 = vshrl.u32 %v1890, 7
      %v1892 = vsub.s32 1, %v1891
      %v1893 = vrot.slane %v1884, %v1892
      %v1896 = vadd.f32 %v1882, %v1889
      %v1897 = vadd.f32 %v1883, %v1893
      %v1898 = vld [vmem:[%s1296] sm:$0xff]
      %v1899 = vld [vmem:[%s1296 + $0x8] sm:$0xff]
      %v1900 = vld [vmem:[%s1296 + $0x10] sm:$0xff]
      %v1901 = vld [vmem:[%s1296 + $0x18] sm:$0xff]
      %v1902 = vld [vmem:[%s1296 + $0x20] sm:$0xff]
      %v1903 = vld [vmem:[%s1296 + $0x28] sm:$0xff]
      %v1904 = vld [vmem:[%s1296 + $0x30] sm:$0xff]
      %v1905 = vld [vmem:[%s1296 + $0x38] sm:$0xff]
      %vm1906 = vcmask 1024
      %1907 = vst.msk [vmem:[#allocation2] sm:$0x3] %vm1906, 0.0
      %1908 = vst.msk [vmem:[#allocation2 + $0x42] sm:$0x3] %vm1906, 0.0
      %vm1909 = vcmask 7168
      %1910 = vst.msk [vmem:[#allocation2 + $0x2] sm:$0xff] %vm1909, %v1898
      %1911 = vst.msk [vmem:[#allocation2 + $0xa] sm:$0xff] %vm1909, %v1899
      %1912 = vst.msk [vmem:[#allocation2 + $0x12] sm:$0xff] %vm1909, %v1900
      %1913 = vst.msk [vmem:[#allocation2 + $0x1a] sm:$0xff] %vm1909, %v1901
      %1914 = vst.msk [vmem:[#allocation2 + $0x22] sm:$0xff] %vm1909, %v1902
      %1915 = vst.msk [vmem:[#allocation2 + $0x2a] sm:$0xff] %vm1909, %v1903
      %1916 = vst.msk [vmem:[#allocation2 + $0x32] sm:$0xff] %vm1909, %v1904
      %1917 = vst.msk [vmem:[#allocation2 + $0x3a] sm:$0xff] %vm1909, %v1905
      %v1918 = vld [vmem:[%s11] sm:$0x1]
      %v1920 = vlaneseq
      %v1921 = vshrl.u32 %v1920, 7
      %v1922 = vsub.s32 0, %v1921
      %v1923 = vrot.slane %v1918, %v1922
      %v1925 = vadd.f32 %v1923, 0.0
      %v1926 = vld [vmem:[#allocation2] sm:$0xff]
      %v1927 = vld [vmem:[#allocation2 + $0x8] sm:$0xff]
      %v1928 = vld [vmem:[#allocation2 + $0x10] sm:$0xff]
      %v1929 = vld [vmem:[#allocation2 + $0x18] sm:$0xff]
      %v1930 = vld [vmem:[#allocation2 + $0x20] sm:$0xff]
      %v1931 = vld [vmem:[#allocation2 + $0x28] sm:$0xff]
      %v1932 = vld [vmem:[#allocation2 + $0x30] sm:$0xff]
      %v1933 = vld [vmem:[#allocation2 + $0x38] sm:$0xff]
      %v1934 = vld [vmem:[%s9] sm:$0x1]
      %1936 = vset.pattern.permute.xlu0 0
      %1937 = vperm.xlu0 %1936, %v1926
      %v1938 = vpop.permute.xlu0 %1937
      %1941 = vset.pattern.permute.xlu0 0
      %1942 = vperm.xlu0 %1941, %v1927
      %v1943 = vpop.permute.xlu0 %1942
      %1946 = vset.pattern.permute.xlu0 0
      %1947 = vperm.xlu0 %1946, %v1928
      %v1948 = vpop.permute.xlu0 %1947
      %1951 = vset.pattern.permute.xlu0 0
      %1952 = vperm.xlu0 %1951, %v1929
      %v1953 = vpop.permute.xlu0 %1952
      %1956 = vset.pattern.permute.xlu0 0
      %1957 = vperm.xlu0 %1956, %v1930
      %v1958 = vpop.permute.xlu0 %1957
      %1961 = vset.pattern.permute.xlu0 0
      %1962 = vperm.xlu0 %1961, %v1931
      %v1963 = vpop.permute.xlu0 %1962
      %1966 = vset.pattern.permute.xlu0 0
      %1967 = vperm.xlu0 %1966, %v1932
      %v1968 = vpop.permute.xlu0 %1967
      %1971 = vset.pattern.permute.xlu0 0
      %1972 = vperm.xlu0 %1971, %v1933
      %v1973 = vpop.permute.xlu0 %1972
      %v1975 = vlaneseq
      %v1976 = vshrl.u32 %v1975, 7
      %v1977 = vsub.s32 0, %v1976
      %v1978 = vrot.slane %v1934, %v1977
      %v1979 = vmul.f32 %v1938, %v1978
      %v1980 = vmul.f32 %v1943, %v1978
      %v1981 = vmul.f32 %v1948, %v1978
      %v1982 = vmul.f32 %v1953, %v1978
      %v1983 = vmul.f32 %v1958, %v1978
      %v1984 = vmul.f32 %v1963, %v1978
      %v1985 = vmul.f32 %v1968, %v1978
      %v1986 = vmul.f32 %v1973, %v1978
      %v1987 = vadd.f32 %v1925, %v1979
      %v1988 = vadd.f32 %v1925, %v1980
      %v1989 = vadd.f32 %v1925, %v1981
      %v1990 = vadd.f32 %v1925, %v1982
      %v1991 = vadd.f32 %v1925, %v1983
      %v1992 = vadd.f32 %v1925, %v1984
      %v1993 = vadd.f32 %v1925, %v1985
      %v1994 = vadd.f32 %v1925, %v1986
      %v1995 = vld [vmem:[#allocation2 + $0x1] sm:$0xff]
      %v1996 = vld [vmem:[#allocation2 + $0x9] sm:$0xff]
      %v1997 = vld [vmem:[#allocation2 + $0x11] sm:$0xff]
      %v1998 = vld [vmem:[#allocation2 + $0x19] sm:$0xff]
      %v1999 = vld [vmem:[#allocation2 + $0x21] sm:$0xff]
      %v2000 = vld [vmem:[#allocation2 + $0x29] sm:$0xff]
      %v2001 = vld [vmem:[#allocation2 + $0x31] sm:$0xff]
      %v2002 = vld [vmem:[#allocation2 + $0x39] sm:$0xff]
      %v2003 = vld [vmem:[%s9 + $0x1] sm:$0x1]
      %2005 = vset.pattern.permute.xlu0 0
      %2006 = vperm.xlu0 %2005, %v1995
      %v2007 = vpop.permute.xlu0 %2006
      %2010 = vset.pattern.permute.xlu0 0
      %2011 = vperm.xlu0 %2010, %v1996
      %v2012 = vpop.permute.xlu0 %2011
      %2015 = vset.pattern.permute.xlu0 0
      %2016 = vperm.xlu0 %2015, %v1997
      %v2017 = vpop.permute.xlu0 %2016
      %2020 = vset.pattern.permute.xlu0 0
      %2021 = vperm.xlu0 %2020, %v1998
      %v2022 = vpop.permute.xlu0 %2021
      %2025 = vset.pattern.permute.xlu0 0
      %2026 = vperm.xlu0 %2025, %v1999
      %v2027 = vpop.permute.xlu0 %2026
      %2030 = vset.pattern.permute.xlu0 0
      %2031 = vperm.xlu0 %2030, %v2000
      %v2032 = vpop.permute.xlu0 %2031
      %2035 = vset.pattern.permute.xlu0 0
      %2036 = vperm.xlu0 %2035, %v2001
      %v2037 = vpop.permute.xlu0 %2036
      %2040 = vset.pattern.permute.xlu0 0
      %2041 = vperm.xlu0 %2040, %v2002
      %v2042 = vpop.permute.xlu0 %2041
      %v2044 = vlaneseq
      %v2045 = vshrl.u32 %v2044, 7
      %v2046 = vsub.s32 0, %v2045
      %v2047 = vrot.slane %v2003, %v2046
      %v2048 = vmul.f32 %v2007, %v2047
      %v2049 = vmul.f32 %v2012, %v2047
      %v2050 = vmul.f32 %v2017, %v2047
      %v2051 = vmul.f32 %v2022, %v2047
      %v2052 = vmul.f32 %v2027, %v2047
      %v2053 = vmul.f32 %v2032, %v2047
      %v2054 = vmul.f32 %v2037, %v2047
      %v2055 = vmul.f32 %v2042, %v2047
      %v2056 = vadd.f32 %v1987, %v2048
      %v2057 = vadd.f32 %v1988, %v2049
      %v2058 = vadd.f32 %v1989, %v2050
      %v2059 = vadd.f32 %v1990, %v2051
      %v2060 = vadd.f32 %v1991, %v2052
      %v2061 = vadd.f32 %v1992, %v2053
      %v2062 = vadd.f32 %v1993, %v2054
      %v2063 = vadd.f32 %v1994, %v2055
      %v2064 = vld [vmem:[#allocation2 + $0x2] sm:$0xff]
      %v2065 = vld [vmem:[#allocation2 + $0xa] sm:$0xff]
      %v2066 = vld [vmem:[#allocation2 + $0x12] sm:$0xff]
      %v2067 = vld [vmem:[#allocation2 + $0x1a] sm:$0xff]
      %v2068 = vld [vmem:[#allocation2 + $0x22] sm:$0xff]
      %v2069 = vld [vmem:[#allocation2 + $0x2a] sm:$0xff]
      %v2070 = vld [vmem:[#allocation2 + $0x32] sm:$0xff]
      %v2071 = vld [vmem:[#allocation2 + $0x3a] sm:$0xff]
      %v2072 = vld [vmem:[%s9 + $0x2] sm:$0x1]
      %2074 = vset.pattern.permute.xlu0 0
      %2075 = vperm.xlu0 %2074, %v2064
      %v2076 = vpop.permute.xlu0 %2075
      %2079 = vset.pattern.permute.xlu0 0
      %2080 = vperm.xlu0 %2079, %v2065
      %v2081 = vpop.permute.xlu0 %2080
      %2084 = vset.pattern.permute.xlu0 0
      %2085 = vperm.xlu0 %2084, %v2066
      %v2086 = vpop.permute.xlu0 %2085
      %2089 = vset.pattern.permute.xlu0 0
      %2090 = vperm.xlu0 %2089, %v2067
      %v2091 = vpop.permute.xlu0 %2090
      %2094 = vset.pattern.permute.xlu0 0
      %2095 = vperm.xlu0 %2094, %v2068
      %v2096 = vpop.permute.xlu0 %2095
      %2099 = vset.pattern.permute.xlu0 0
      %2100 = vperm.xlu0 %2099, %v2069
      %v2101 = vpop.permute.xlu0 %2100
      %2104 = vset.pattern.permute.xlu0 0
      %2105 = vperm.xlu0 %2104, %v2070
      %v2106 = vpop.permute.xlu0 %2105
      %2109 = vset.pattern.permute.xlu0 0
      %2110 = vperm.xlu0 %2109, %v2071
      %v2111 = vpop.permute.xlu0 %2110
      %v2113 = vlaneseq
      %v2114 = vshrl.u32 %v2113, 7
      %v2115 = vsub.s32 0, %v2114
      %v2116 = vrot.slane %v2072, %v2115
      %v2117 = vmul.f32 %v2076, %v2116
      %v2118 = vmul.f32 %v2081, %v2116
      %v2119 = vmul.f32 %v2086, %v2116
      %v2120 = vmul.f32 %v2091, %v2116
      %v2121 = vmul.f32 %v2096, %v2116
      %v2122 = vmul.f32 %v2101, %v2116
      %v2123 = vmul.f32 %v2106, %v2116
      %v2124 = vmul.f32 %v2111, %v2116
      %v2125 = vadd.f32 %v2056, %v2117
      %v2126 = vadd.f32 %v2057, %v2118
      %v2127 = vadd.f32 %v2058, %v2119
      %v2128 = vadd.f32 %v2059, %v2120
      %v2129 = vadd.f32 %v2060, %v2121
      %v2130 = vadd.f32 %v2061, %v2122
      %v2131 = vadd.f32 %v2062, %v2123
      %v2132 = vadd.f32 %v2063, %v2124
      %v2133 = vld [vmem:[#allocation2 + $0x3] sm:$0xff]
      %v2134 = vld [vmem:[#allocation2 + $0xb] sm:$0xff]
      %v2135 = vld [vmem:[#allocation2 + $0x13] sm:$0xff]
      %v2136 = vld [vmem:[#allocation2 + $0x1b] sm:$0xff]
      %v2137 = vld [vmem:[#allocation2 + $0x23] sm:$0xff]
      %v2138 = vld [vmem:[#allocation2 + $0x2b] sm:$0xff]
      %v2139 = vld [vmem:[#allocation2 + $0x33] sm:$0xff]
      %v2140 = vld [vmem:[#allocation2 + $0x3b] sm:$0xff]
      %v2141 = vld [vmem:[%s9 + $0x3] sm:$0x1]
      %2143 = vset.pattern.permute.xlu0 0
      %2144 = vperm.xlu0 %2143, %v2133
      %v2145 = vpop.permute.xlu0 %2144
      %2148 = vset.pattern.permute.xlu0 0
      %2149 = vperm.xlu0 %2148, %v2134
      %v2150 = vpop.permute.xlu0 %2149
      %2153 = vset.pattern.permute.xlu0 0
      %2154 = vperm.xlu0 %2153, %v2135
      %v2155 = vpop.permute.xlu0 %2154
      %2158 = vset.pattern.permute.xlu0 0
      %2159 = vperm.xlu0 %2158, %v2136
      %v2160 = vpop.permute.xlu0 %2159
      %2163 = vset.pattern.permute.xlu0 0
      %2164 = vperm.xlu0 %2163, %v2137
      %v2165 = vpop.permute.xlu0 %2164
      %2168 = vset.pattern.permute.xlu0 0
      %2169 = vperm.xlu0 %2168, %v2138
      %v2170 = vpop.permute.xlu0 %2169
      %2173 = vset.pattern.permute.xlu0 0
      %2174 = vperm.xlu0 %2173, %v2139
      %v2175 = vpop.permute.xlu0 %2174
      %2178 = vset.pattern.permute.xlu0 0
      %2179 = vperm.xlu0 %2178, %v2140
      %v2180 = vpop.permute.xlu0 %2179
      %v2182 = vlaneseq
      %v2183 = vshrl.u32 %v2182, 7
      %v2184 = vsub.s32 0, %v2183
      %v2185 = vrot.slane %v2141, %v2184
      %v2186 = vmul.f32 %v2145, %v2185
      %v2187 = vmul.f32 %v2150, %v2185
      %v2188 = vmul.f32 %v2155, %v2185
      %v2189 = vmul.f32 %v2160, %v2185
      %v2190 = vmul.f32 %v2165, %v2185
      %v2191 = vmul.f32 %v2170, %v2185
      %v2192 = vmul.f32 %v2175, %v2185
      %v2193 = vmul.f32 %v2180, %v2185
      %v2194 = vadd.f32 %v2125, %v2186
      %v2195 = vadd.f32 %v2126, %v2187
      %v2196 = vadd.f32 %v2127, %v2188
      %v2197 = vadd.f32 %v2128, %v2189
      %v2198 = vadd.f32 %v2129, %v2190
      %v2199 = vadd.f32 %v2130, %v2191
      %v2200 = vadd.f32 %v2131, %v2192
      %v2201 = vadd.f32 %v2132, %v2193
      %v2202 = vld [vmem:[#allocation2 + $0x4] sm:$0xff]
      %v2203 = vld [vmem:[#allocation2 + $0xc] sm:$0xff]
      %v2204 = vld [vmem:[#allocation2 + $0x14] sm:$0xff]
      %v2205 = vld [vmem:[#allocation2 + $0x1c] sm:$0xff]
      %v2206 = vld [vmem:[#allocation2 + $0x24] sm:$0xff]
      %v2207 = vld [vmem:[#allocation2 + $0x2c] sm:$0xff]
      %v2208 = vld [vmem:[#allocation2 + $0x34] sm:$0xff]
      %v2209 = vld [vmem:[#allocation2 + $0x3c] sm:$0xff]
      %v2210 = vld [vmem:[%s9 + $0x4] sm:$0x1]
      %2212 = vset.pattern.permute.xlu0 0
      %2213 = vperm.xlu0 %2212, %v2202
      %v2214 = vpop.permute.xlu0 %2213
      %2217 = vset.pattern.permute.xlu0 0
      %2218 = vperm.xlu0 %2217, %v2203
      %v2219 = vpop.permute.xlu0 %2218
      %2222 = vset.pattern.permute.xlu0 0
      %2223 = vperm.xlu0 %2222, %v2204
      %v2224 = vpop.permute.xlu0 %2223
      %2227 = vset.pattern.permute.xlu0 0
      %2228 = vperm.xlu0 %2227, %v2205
      %v2229 = vpop.permute.xlu0 %2228
      %2232 = vset.pattern.permute.xlu0 0
      %2233 = vperm.xlu0 %2232, %v2206
      %v2234 = vpop.permute.xlu0 %2233
      %2237 = vset.pattern.permute.xlu0 0
      %2238 = vperm.xlu0 %2237, %v2207
      %v2239 = vpop.permute.xlu0 %2238
      %2242 = vset.pattern.permute.xlu0 0
      %2243 = vperm.xlu0 %2242, %v2208
      %v2244 = vpop.permute.xlu0 %2243
      %2247 = vset.pattern.permute.xlu0 0
      %2248 = vperm.xlu0 %2247, %v2209
      %v2249 = vpop.permute.xlu0 %2248
      %v2251 = vlaneseq
      %v2252 = vshrl.u32 %v2251, 7
      %v2253 = vsub.s32 0, %v2252
      %v2254 = vrot.slane %v2210, %v2253
      %v2255 = vmul.f32 %v2214, %v2254
      %v2256 = vmul.f32 %v2219, %v2254
      %v2257 = vmul.f32 %v2224, %v2254
      %v2258 = vmul.f32 %v2229, %v2254
      %v2259 = vmul.f32 %v2234, %v2254
      %v2260 = vmul.f32 %v2239, %v2254
      %v2261 = vmul.f32 %v2244, %v2254
      %v2262 = vmul.f32 %v2249, %v2254
      %v2263 = vadd.f32 %v2194, %v2255
      %v2264 = vadd.f32 %v2195, %v2256
      %v2265 = vadd.f32 %v2196, %v2257
      %v2266 = vadd.f32 %v2197, %v2258
      %v2267 = vadd.f32 %v2198, %v2259
      %v2268 = vadd.f32 %v2199, %v2260
      %v2269 = vadd.f32 %v2200, %v2261
      %v2270 = vadd.f32 %v2201, %v2262
      %v2271 = vlaneseq
      %v2272 = vshrl.u32 %v2271, 7
      %v2273 = vadd.s32 %v2272, 8
      %v2274 = vadd.s32 %v2272, 16
      %v2275 = vadd.s32 %v2272, 24
      %v2276 = vlaneseq
      %v2277 = vand.u32 %v2276, 127
      %v2278 = vmul.u32 %v2272, 2
      %v2279 = vmul.u32 %v2273, 2
      %v2280 = vmul.u32 %v2274, 2
      %v2281 = vmul.u32 %v2275, 2
      %v2282 = vsub.s32 %v2277, %v2278
      %v2283 = vsub.s32 %v2277, %v2279
      %v2284 = vsub.s32 %v2277, %v2280
      %v2285 = vsub.s32 %v2277, %v2281
      %vm2286 = vcmp.ge.s32.totalorder %v2282, 0
      %vm2287 = vcmp.ge.s32.totalorder %v2283, 0
      %vm2288 = vcmp.ge.s32.totalorder %v2284, 0
      %vm2289 = vcmp.ge.s32.totalorder %v2285, 0
      %vm2290 = vcmp.lt.s32.totalorder %v2282, 2
      %vm2291 = vcmp.lt.s32.totalorder %v2283, 2
      %vm2292 = vcmp.lt.s32.totalorder %v2284, 2
      %vm2293 = vcmp.lt.s32.totalorder %v2285, 2
      %vm2294 = vmand %vm2286, %vm2290
      %vm2295 = vmand %vm2287, %vm2291
      %vm2296 = vmand %vm2288, %vm2292
      %vm2297 = vmand %vm2289, %vm2293
      %v2298 = vsel %vm2294, 1, 0
      %v2299 = vsel %vm2295, 1, 0
      %v2300 = vsel %vm2296, 1, 0
      %v2301 = vsel %vm2297, 1, 0
      %v2302 = vcvt.s32.f32 %v2298
      %v2303 = vcvt.s32.f32 %v2299
      %v2304 = vcvt.s32.f32 %v2300
      %v2305 = vcvt.s32.f32 %v2301
      %v2306 = vmul.f32 %v2302, 0.5
      %v2307 = vmul.f32 %v2303, 0.5
      %v2308 = vmul.f32 %v2304, 0.5
      %v2309 = vmul.f32 %v2305, 0.5
      %v2311 = vsel %vm1570, %v2306, 0
      %v2314 = vsel %vm1570, %v2307, 0
      %v2317 = vsel %vm1570, %v2308, 0
      %v2320 = vsel %vm1570, %v2309, 0
      %2322 = vmatprep.subr.mxu0 0.0
      %2323 = vmatpush1.msra.mxu0 %v2263
      %2324 = vmatprep.subr.mxu0 0.0
      %2325 = vmatpush1.msra.mxu0 %v2264
      %2326 = vmatprep.subr.mxu0 0.0
      %2327 = vmatpush1.msra.mxu0 %v2265
      %2328 = vmatprep.subr.mxu0 0.0
      %2329 = vmatpush1.msra.mxu0 %v2266
      %2330 = vmatprep.subr.mxu0 0.0
      %2331 = vmatpush1.msra.mxu0 %v2267
      %2332 = vmatprep.subr.mxu0 0.0
      %2333 = vmatpush1.msra.mxu0 %v2268
      %2334 = vmatprep.subr.mxu0 0.0
      %2335 = vmatpush1.msra.mxu0 %v2269
      %2336 = vmatprep.subr.mxu0 0.0
      %2337 = vmatpush1.msra.mxu0 %v2270
      %2338 = vmatprep.subr.mxu0 0.0
      %2339 = vmatpush1.msra.mxu0 0.0
      %2340 = vmatprep.subr.mxu0 0.0
      %2341 = vmatpush1.msra.mxu0 0.0
      %2342 = vmatprep.subr.mxu0 0.0
      %2343 = vmatpush1.msra.mxu0 0.0
      %2344 = vmatprep.subr.mxu0 0.0
      %2345 = vmatpush1.msra.mxu0 0.0
      %2346 = vmatprep.subr.mxu0 0.0
      %2347 = vmatpush1.msra.mxu0 0.0
      %2348 = vmatprep.subr.mxu0 0.0
      %2349 = vmatpush1.msra.mxu0 0.0
      %2350 = vmatprep.subr.mxu0 0.0
      %2351 = vmatpush1.msra.mxu0 0.0
      %2352 = vmatprep.subr.mxu0 0.0
      %2353 = vmatpush1.msra.mxu0 0.0
      %2354 = vmatprep.subr.mxu0 0.0
      %2355 = vmatpush1.msra.mxu0 0.0
      %2356 = vmatprep.subr.mxu0 0.0
      %2357 = vmatpush1.msra.mxu0 0.0
      %2358 = vmatprep.subr.mxu0 0.0
      %2359 = vmatpush1.msra.mxu0 0.0
      %2360 = vmatprep.subr.mxu0 0.0
      %2361 = vmatpush1.msra.mxu0 0.0
      %2362 = vmatprep.subr.mxu0 0.0
      %2363 = vmatpush1.msra.mxu0 0.0
      %2364 = vmatprep.subr.mxu0 0.0
      %2365 = vmatpush1.msra.mxu0 0.0
      %2366 = vmatprep.subr.mxu0 0.0
      %2367 = vmatpush1.msra.mxu0 0.0
      %2368 = vmatprep.subr.mxu0 0.0
      %2369 = vmatpush1.msra.mxu0 0.0
      %2370 = vmatprep.subr.mxu0 0.0
      %2371 = vmatpush1.msra.mxu0 0.0
      %2372 = vmatprep.subr.mxu0 0.0
      %2373 = vmatpush1.msra.mxu0 0.0
      %2374 = vmatprep.subr.mxu0 0.0
      %2375 = vmatpush1.msra.mxu0 0.0
      %2376 = vmatprep.subr.mxu0 0.0
      %2377 = vmatpush1.msra.mxu0 0.0
      %2378 = vmatprep.subr.mxu0 0.0
      %2379 = vmatpush1.msra.mxu0 0.0
      %2380 = vmatprep.subr.mxu0 0.0
      %2381 = vmatpush1.msra.mxu0 0.0
      %2382 = vmatprep.subr.mxu0 0.0
      %2383 = vmatpush1.msra.mxu0 0.0
      %2384 = vmatprep.subr.mxu0 0.0
      %2385 = vmatpush1.msra.mxu0 0.0
      %2386 = vmatprep.mubr.f32.mxu0 0.0
      %2387 = vmatmul.mubr.f32.gmra.mrb[0].mxu0 %v2311
      %v2388 = vpop.f32.mrb[0].mxu0
      %v2389 = vadd.f32 0.0, %v2388
      %v2390 = vpop.f32.mrb[0].mxu0
      %2391 = vmatprep.mubr.f32.mxu0 0.0
      %2392 = vmatmul.mubr.f32.gmra.mrb[0].mxu0 %v2314
      %v2393 = vpop.f32.mrb[0].mxu0
      %v2394 = vadd.f32 0.0, %v2393
      %v2395 = vpop.f32.mrb[0].mxu0
      %2396 = vmatprep.mubr.f32.mxu0 0.0
      %2397 = vmatmul.mubr.f32.gmra.mrb[0].mxu0 %v2317
      %v2398 = vpop.f32.mrb[0].mxu0
      %v2399 = vadd.f32 0.0, %v2398
      %v2400 = vpop.f32.mrb[0].mxu0
      %2401 = vmatprep.mubr.f32.mxu0 0.0
      %2402 = vmatmul.mubr.f32.gmra.mrb[0].mxu0 %v2320
      %v2403 = vpop.f32.mrb[0].mxu0
      %v2404 = vadd.f32 0.0, %v2403
      %v2405 = vpop.f32.mrb[0].mxu0
      %2406 = vdwg.mxu0
      %v2407 = vld [vmem:[%s47] sm:$0x1]
      %v2409 = vlaneseq
      %v2410 = vshrl.u32 %v2409, 7
      %v2411 = vsub.s32 0, %v2410
      %v2412 = vrot.slane %v2407, %v2411
      %v2414 = vadd.f32 %v2412, 0.0
      %v2415 = vld [vmem:[%s45] sm:$0xff]
      %v2416 = vld [vmem:[%s45 + $0x8] sm:$0xff]
      %v2418 = vsel %vm1480, %v2389, 0
      %v2421 = vsel %vm1480, %v2394, 0
      %v2424 = vsel %vm1480, %v2399, 0
      %v2427 = vsel %vm1480, %v2404, 0
      %2429 = vmatprep.subr.mxu0 0.0
      %2430 = vmatpush1.msra.mxu0 %v2415
      %2431 = vmatprep.subr.mxu0 0.0
      %2432 = vmatpush1.msra.mxu0 %v2416
      %2433 = vmatprep.subr.mxu0 0.0
      %2434 = vmatpush1.msra.mxu0 0.0
      %2435 = vmatprep.subr.mxu0 0.0
      %2436 = vmatpush1.msra.mxu0 0.0
      %2437 = vmatprep.subr.mxu0 0.0
      %2438 = vmatpush1.msra.mxu0 0.0
      %2439 = vmatprep.subr.mxu0 0.0
      %2440 = vmatpush1.msra.mxu0 0.0
      %2441 = vmatprep.subr.mxu0 0.0
      %2442 = vmatpush1.msra.mxu0 0.0
      %2443 = vmatprep.subr.mxu0 0.0
      %2444 = vmatpush1.msra.mxu0 0.0
      %2445 = vmatprep.subr.mxu0 0.0
      %2446 = vmatpush1.msra.mxu0 0.0
      %2447 = vmatprep.subr.mxu0 0.0
      %2448 = vmatpush1.msra.mxu0 0.0
      %2449 = vmatprep.subr.mxu0 0.0
      %2450 = vmatpush1.msra.mxu0 0.0
      %2451 = vmatprep.subr.mxu0 0.0
      %2452 = vmatpush1.msra.mxu0 0.0
      %2453 = vmatprep.subr.mxu0 0.0
      %2454 = vmatpush1.msra.mxu0 0.0
      %2455 = vmatprep.subr.mxu0 0.0
      %2456 = vmatpush1.msra.mxu0 0.0
      %2457 = vmatprep.subr.mxu0 0.0
      %2458 = vmatpush1.msra.mxu0 0.0
      %2459 = vmatprep.subr.mxu0 0.0
      %2460 = vmatpush1.msra.mxu0 0.0
      %2461 = vmatprep.subr.mxu0 0.0
      %2462 = vmatpush1.msra.mxu0 0.0
      %2463 = vmatprep.subr.mxu0 0.0
      %2464 = vmatpush1.msra.mxu0 0.0
      %2465 = vmatprep.subr.mxu0 0.0
      %2466 = vmatpush1.msra.mxu0 0.0
      %2467 = vmatprep.subr.mxu0 0.0
      %2468 = vmatpush1.msra.mxu0 0.0
      %2469 = vmatprep.subr.mxu0 0.0
      %2470 = vmatpush1.msra.mxu0 0.0
      %2471 = vmatprep.subr.mxu0 0.0
      %2472 = vmatpush1.msra.mxu0 0.0
      %2473 = vmatprep.subr.mxu0 0.0
      %2474 = vmatpush1.msra.mxu0 0.0
      %2475 = vmatprep.subr.mxu0 0.0
      %2476 = vmatpush1.msra.mxu0 0.0
      %2477 = vmatprep.subr.mxu0 0.0
      %2478 = vmatpush1.msra.mxu0 0.0
      %2479 = vmatprep.subr.mxu0 0.0
      %2480 = vmatpush1.msra.mxu0 0.0
      %2481 = vmatprep.subr.mxu0 0.0
      %2482 = vmatpush1.msra.mxu0 0.0
      %2483 = vmatprep.subr.mxu0 0.0
      %2484 = vmatpush1.msra.mxu0 0.0
      %2485 = vmatprep.subr.mxu0 0.0
      %2486 = vmatpush1.msra.mxu0 0.0
      %2487 = vmatprep.subr.mxu0 0.0
      %2488 = vmatpush1.msra.mxu0 0.0
      %2489 = vmatprep.subr.mxu0 0.0
      %2490 = vmatpush1.msra.mxu0 0.0
      %2491 = vmatprep.subr.mxu0 0.0
      %2492 = vmatpush1.msra.mxu0 0.0
      %2493 = vmatprep.mubr.f32.mxu0 0.0
      %2494 = vmatmul.mubr.f32.gmra.mrb[0].mxu0 %v2418
      %v2495 = vpop.f32.mrb[0].mxu0
      %v2496 = vadd.f32 0.0, %v2495
      %v2497 = vpop.f32.mrb[0].mxu0
      %2498 = vmatprep.mubr.f32.mxu0 0.0
      %2499 = vmatmul.mubr.f32.gmra.mrb[0].mxu0 %v2421
      %v2500 = vpop.f32.mrb[0].mxu0
      %v2501 = vadd.f32 0.0, %v2500
      %v2502 = vpop.f32.mrb[0].mxu0
      %2503 = vmatprep.mubr.f32.mxu0 0.0
      %2504 = vmatmul.mubr.f32.gmra.mrb[0].mxu0 %v2424
      %v2505 = vpop.f32.mrb[0].mxu0
      %v2506 = vadd.f32 0.0, %v2505
      %v2507 = vpop.f32.mrb[0].mxu0
      %2508 = vmatprep.mubr.f32.mxu0 0.0
      %2509 = vmatmul.mubr.f32.gmra.mrb[0].mxu0 %v2427
      %v2510 = vpop.f32.mrb[0].mxu0
      %v2511 = vadd.f32 0.0, %v2510
      %v2512 = vpop.f32.mrb[0].mxu0
      %2513 = vdwg.mxu0
      %v2514 = vadd.f32 %v2414, %v2496
      %v2515 = vadd.f32 %v2414, %v2501
      %v2516 = vadd.f32 %v2414, %v2506
      %v2517 = vadd.f32 %v2414, %v2511
      %vm2518 = vcmask 122880
      %2519 = vst.msk [vmem:[#allocation2] sm:$0x1] %vm2518, 0.0
      %2520 = vst.msk [vmem:[#allocation2 + $0x21] sm:$0x1] %vm2518, 0.0
      %2521 = vst.msk [vmem:[#allocation2 + $0x1] sm:$0xff] %vm1480, %v2389
      %2522 = vst.msk [vmem:[#allocation2 + $0x9] sm:$0xff] %vm1480, %v2394
      %2523 = vst.msk [vmem:[#allocation2 + $0x11] sm:$0xff] %vm1480, %v2399
      %2524 = vst.msk [vmem:[#allocation2 + $0x19] sm:$0xff] %vm1480, %v2404
      %v2525 = vld [vmem:[#allocation2] sm:$0xff]
      %v2526 = vld [vmem:[#allocation2 + $0x8] sm:$0xff]
      %v2527 = vld [vmem:[#allocation2 + $0x10] sm:$0xff]
      %v2528 = vld [vmem:[#allocation2 + $0x18] sm:$0xff]
      %2529 = vst.msk [vmem:[#allocation3] sm:$0xff] %vm1480, %v2525
      %2530 = vst.msk [vmem:[#allocation3 + $0x10] sm:$0xff] %vm1480, %v2526
      %2531 = vst.msk [vmem:[#allocation3 + $0x20] sm:$0xff] %vm1480, %v2527
      %2532 = vst.msk [vmem:[#allocation3 + $0x30] sm:$0xff] %vm1480, %v2528
      %v2533 = vld [vmem:[#allocation2 + $0x1] sm:$0xff]
      %v2534 = vld [vmem:[#allocation2 + $0x9] sm:$0xff]
      %v2535 = vld [vmem:[#allocation2 + $0x11] sm:$0xff]
      %v2536 = vld [vmem:[#allocation2 + $0x19] sm:$0xff]
      %2541 = vrot.lane.b32.xlu0 %v2533, 16
      %v2542 = vpop.permute.xlu0 %2541
      %2543 = vrot.lane.b32.xlu0 %v2534, 16
      %v2544 = vpop.permute.xlu0 %2543
      %2545 = vrot.lane.b32.xlu0 %v2535, 16
      %v2546 = vpop.permute.xlu0 %2545
      %2547 = vrot.lane.b32.xlu0 %v2536, 16
      %v2548 = vpop.permute.xlu0 %2547
      %vm2553 = vcmask 261248
      %2554 = vst.msk [vmem:[#allocation3] sm:$0xff] %vm2553, %v2542
      %2555 = vst.msk [vmem:[#allocation3 + $0x10] sm:$0xff] %vm2553, %v2544
      %2556 = vst.msk [vmem:[#allocation3 + $0x20] sm:$0xff] %vm2553, %v2546
      %2557 = vst.msk [vmem:[#allocation3 + $0x30] sm:$0xff] %vm2553, %v2548
      %v2558 = vld [vmem:[#allocation2 + $0x2] sm:$0xff]
      %v2559 = vld [vmem:[#allocation2 + $0xa] sm:$0xff]
      %v2560 = vld [vmem:[#allocation2 + $0x12] sm:$0xff]
      %v2561 = vld [vmem:[#allocation2 + $0x1a] sm:$0xff]
      %2566 = vrot.lane.b32.xlu0 %v2558, 32
      %v2567 = vpop.permute.xlu0 %2566
      %2568 = vrot.lane.b32.xlu0 %v2559, 32
      %v2569 = vpop.permute.xlu0 %2568
      %2570 = vrot.lane.b32.xlu0 %v2560, 32
      %v2571 = vpop.permute.xlu0 %2570
      %2572 = vrot.lane.b32.xlu0 %v2561, 32
      %v2573 = vpop.permute.xlu0 %2572
      %vm2578 = vcmask 392448
      %2579 = vst.msk [vmem:[#allocation3] sm:$0xff] %vm2578, %v2567
      %2580 = vst.msk [vmem:[#allocation3 + $0x10] sm:$0xff] %vm2578, %v2569
      %2581 = vst.msk [vmem:[#allocation3 + $0x20] sm:$0xff] %vm2578, %v2571
      %2582 = vst.msk [vmem:[#allocation3 + $0x30] sm:$0xff] %vm2578, %v2573
      %v2583 = vld [vmem:[#allocation3] sm:$0xff]
      %v2584 = vld [vmem:[#allocation3 + $0x10] sm:$0xff]
      %v2585 = vld [vmem:[#allocation3 + $0x20] sm:$0xff]
      %v2586 = vld [vmem:[#allocation3 + $0x30] sm:$0xff]
      %v2587 = vld [vmem:[%s37] sm:$0xff]
      %v2588 = vld [vmem:[%s37 + $0x8] sm:$0xff]
      %v2589 = vld [vmem:[%s37 + $0x10] sm:$0xff]
      %v2590 = vld [vmem:[%s37 + $0x18] sm:$0xff]
      %v2591 = vld [vmem:[%s37 + $0x20] sm:$0xff]
      %v2592 = vld [vmem:[%s37 + $0x28] sm:$0xff]
      %v2593 = vld [vmem:[%s39] sm:$0x1]
      %v2595 = vlaneseq
      %v2596 = vshrl.u32 %v2595, 7
      %v2597 = vsub.s32 0, %v2596
      %v2598 = vrot.slane %v2593, %v2597
      %vm2600 = vcmask 392192
      %v2602 = vsel %vm2600, %v2583, 0
      %v2605 = vsel %vm2600, %v2584, 0
      %v2608 = vsel %vm2600, %v2585, 0
      %v2611 = vsel %vm2600, %v2586, 0
      %2613 = vmatprep.subr.mxu0 0.0
      %2614 = vmatpush1.msra.mxu0 %v2587
      %2615 = vmatprep.subr.mxu0 0.0
      %2616 = vmatpush1.msra.mxu0 %v2588
      %2617 = vmatprep.subr.mxu0 0.0
      %2618 = vmatpush1.msra.mxu0 %v2589
      %2619 = vmatprep.subr.mxu0 0.0
      %2620 = vmatpush1.msra.mxu0 %v2590
      %2621 = vmatprep.subr.mxu0 0.0
      %2622 = vmatpush1.msra.mxu0 %v2591
      %2623 = vmatprep.subr.mxu0 0.0
      %2624 = vmatpush1.msra.mxu0 %v2592
      %2625 = vmatprep.subr.mxu0 0.0
      %2626 = vmatpush1.msra.mxu0 0.0
      %2627 = vmatprep.subr.mxu0 0.0
      %2628 = vmatpush1.msra.mxu0 0.0
      %2629 = vmatprep.subr.mxu0 0.0
      %2630 = vmatpush1.msra.mxu0 0.0
      %2631 = vmatprep.subr.mxu0 0.0
      %2632 = vmatpush1.msra.mxu0 0.0
      %2633 = vmatprep.subr.mxu0 0.0
      %2634 = vmatpush1.msra.mxu0 0.0
      %2635 = vmatprep.subr.mxu0 0.0
      %2636 = vmatpush1.msra.mxu0 0.0
      %2637 = vmatprep.subr.mxu0 0.0
      %2638 = vmatpush1.msra.mxu0 0.0
      %2639 = vmatprep.subr.mxu0 0.0
      %2640 = vmatpush1.msra.mxu0 0.0
      %2641 = vmatprep.subr.mxu0 0.0
      %2642 = vmatpush1.msra.mxu0 0.0
      %2643 = vmatprep.subr.mxu0 0.0
      %2644 = vmatpush1.msra.mxu0 0.0
      %2645 = vmatprep.subr.mxu0 0.0
      %2646 = vmatpush1.msra.mxu0 0.0
      %2647 = vmatprep.subr.mxu0 0.0
      %2648 = vmatpush1.msra.mxu0 0.0
      %2649 = vmatprep.subr.mxu0 0.0
      %2650 = vmatpush1.msra.mxu0 0.0
      %2651 = vmatprep.subr.mxu0 0.0
      %2652 = vmatpush1.msra.mxu0 0.0
      %2653 = vmatprep.subr.mxu0 0.0
      %2654 = vmatpush1.msra.mxu0 0.0
      %2655 = vmatprep.subr.mxu0 0.0
      %2656 = vmatpush1.msra.mxu0 0.0
      %2657 = vmatprep.subr.mxu0 0.0
      %2658 = vmatpush1.msra.mxu0 0.0
      %2659 = vmatprep.subr.mxu0 0.0
      %2660 = vmatpush1.msra.mxu0 0.0
      %2661 = vmatprep.subr.mxu0 0.0
      %2662 = vmatpush1.msra.mxu0 0.0
      %2663 = vmatprep.subr.mxu0 0.0
      %2664 = vmatpush1.msra.mxu0 0.0
      %2665 = vmatprep.subr.mxu0 0.0
      %2666 = vmatpush1.msra.mxu0 0.0
      %2667 = vmatprep.subr.mxu0 0.0
      %2668 = vmatpush1.msra.mxu0 0.0
      %2669 = vmatprep.subr.mxu0 0.0
      %2670 = vmatpush1.msra.mxu0 0.0
      %2671 = vmatprep.subr.mxu0 0.0
      %2672 = vmatpush1.msra.mxu0 0.0
      %2673 = vmatprep.subr.mxu0 0.0
      %2674 = vmatpush1.msra.mxu0 0.0
      %2675 = vmatprep.subr.mxu0 0.0
      %2676 = vmatpush1.msra.mxu0 0.0
      %2677 = vmatprep.mubr.f32.mxu0 0.0
      %2678 = vmatmul.mubr.f32.gmra.mrb[0].mxu0 %v2602
      %v2679 = vpop.f32.mrb[0].mxu0
      %v2680 = vadd.f32 %v2598, %v2679
      %v2681 = vpop.f32.mrb[0].mxu0
      %2682 = vmatprep.mubr.f32.mxu0 0.0
      %2683 = vmatmul.mubr.f32.gmra.mrb[0].mxu0 %v2605
      %v2684 = vpop.f32.mrb[0].mxu0
      %v2685 = vadd.f32 %v2598, %v2684
      %v2686 = vpop.f32.mrb[0].mxu0
      %2687 = vmatprep.mubr.f32.mxu0 0.0
      %2688 = vmatmul.mubr.f32.gmra.mrb[0].mxu0 %v2608
      %v2689 = vpop.f32.mrb[0].mxu0
      %v2690 = vadd.f32 %v2598, %v2689
      %v2691 = vpop.f32.mrb[0].mxu0
      %2692 = vmatprep.mubr.f32.mxu0 0.0
      %2693 = vmatmul.mubr.f32.gmra.mrb[0].mxu0 %v2611
      %v2694 = vpop.f32.mrb[0].mxu0
      %v2695 = vadd.f32 %v2598, %v2694
      %v2696 = vpop.f32.mrb[0].mxu0
      %2697 = vdwg.mxu0
      %v2698 = vadd.f32 %v1896, 1.0
      %v2699 = vlaneseq
      %v2700 = vshrl.u32 %v2699, 7
      %v2701 = vsub.s32 0, %v2700
      %v2702 = vrot.slane %v2698, %v2701
      %v2703 = vmul.f32 %v2680, %v2702
      %v2704 = vmul.f32 %v2685, %v2702
      %v2705 = vmul.f32 %v2690, %v2702
      %v2706 = vmul.f32 %v2695, %v2702
      %v2707 = vlaneseq
      %v2708 = vshrl.u32 %v2707, 7
      %v2709 = vsub.s32 0, %v2708
      %v2710 = vrot.slane %v1896, %v2709
      %2712 = vrot.lane.b32.xlu0 %v2710, 96
      %v2713 = vpop.permute.xlu0 %2712
      %v2715 = vadd.f32 %v2703, %v2713
      %v2716 = vadd.f32 %v2704, %v2713
      %v2717 = vadd.f32 %v2705, %v2713
      %v2718 = vadd.f32 %v2706, %v2713
      %v2719 = vxor.u32 %v2715, 2147483648
      %v2720 = vxor.u32 %v2716, 2147483648
      %v2721 = vxor.u32 %v2717, 2147483648
      %v2722 = vxor.u32 %v2718, 2147483648
      %v2723 = vmul.f32 %v2719, 1.442695
      %v2724 = vpow.pop %v2723
      %v2725 = vmul.f32 %v2720, 1.442695
      %v2726 = vpow.pop %v2725
      %v2727 = vmul.f32 %v2721, 1.442695
      %v2728 = vpow.pop %v2727
      %v2729 = vmul.f32 %v2722, 1.442695
      %v2730 = vpow.pop %v2729
      %v2731 = vadd.f32 %v2724, 1.0
      %v2732 = vadd.f32 %v2726, 1.0
      %v2733 = vadd.f32 %v2728, 1.0
      %v2734 = vadd.f32 %v2730, 1.0
      %v2735 = vrcp.pop %v2731
      %v2736 = vmul.f32 1.0, %v2735
      %v2737 = vrcp.pop %v2732
      %v2738 = vmul.f32 1.0, %v2737
      %v2739 = vrcp.pop %v2733
      %v2740 = vmul.f32 1.0, %v2739
      %v2741 = vrcp.pop %v2734
      %v2742 = vmul.f32 1.0, %v2741
      %v2743 = vmul.f32 %v2715, %v2736
      %v2744 = vmul.f32 %v2716, %v2738
      %v2745 = vmul.f32 %v2717, %v2740
      %v2746 = vmul.f32 %v2718, %v2742
      %vm2747 = vcmask 253952
      %2748 = vst.msk [vmem:[#allocation2] sm:$0x1] %vm2747, 0.0
      %2749 = vst.msk [vmem:[#allocation2 + $0x21] sm:$0x1] %vm2747, 0.0
      %2750 = vst.msk [vmem:[#allocation2 + $0x1] sm:$0xff] %vm1317, %v2743
      %2751 = vst.msk [vmem:[#allocation2 + $0x9] sm:$0xff] %vm1317, %v2744
      %2752 = vst.msk [vmem:[#allocation2 + $0x11] sm:$0xff] %vm1317, %v2745
      %2753 = vst.msk [vmem:[#allocation2 + $0x19] sm:$0xff] %vm1317, %v2746
      %v2754 = vld [vmem:[#allocation2] sm:$0xff]
      %v2755 = vld [vmem:[#allocation2 + $0x8] sm:$0xff]
      %v2756 = vld [vmem:[#allocation2 + $0x10] sm:$0xff]
      %v2757 = vld [vmem:[#allocation2 + $0x18] sm:$0xff]
      %2758 = vst.msk [vmem:[#allocation3] sm:$0xff] %vm1317, %v2754
      %2759 = vst.msk [vmem:[#allocation3 + $0x10] sm:$0xff] %vm1317, %v2755
      %2760 = vst.msk [vmem:[#allocation3 + $0x20] sm:$0xff] %vm1317, %v2756
      %2761 = vst.msk [vmem:[#allocation3 + $0x30] sm:$0xff] %vm1317, %v2757
      %v2762 = vld [vmem:[#allocation2 + $0x1] sm:$0xff]
      %v2763 = vld [vmem:[#allocation2 + $0x9] sm:$0xff]
      %v2764 = vld [vmem:[#allocation2 + $0x11] sm:$0xff]
      %v2765 = vld [vmem:[#allocation2 + $0x19] sm:$0xff]
      %2770 = vrot.lane.b32.xlu0 %v2762, 32
      %v2771 = vpop.permute.xlu0 %2770
      %2772 = vrot.lane.b32.xlu0 %v2763, 32
      %v2773 = vpop.permute.xlu0 %2772
      %2774 = vrot.lane.b32.xlu0 %v2764, 32
      %v2775 = vpop.permute.xlu0 %2774
      %2776 = vrot.lane.b32.xlu0 %v2765, 32
      %v2777 = vpop.permute.xlu0 %2776
      %vm2782 = vcmask 523520
      %2783 = vst.msk [vmem:[#allocation3] sm:$0xff] %vm2782, %v2771
      %2784 = vst.msk [vmem:[#allocation3 + $0x10] sm:$0xff] %vm2782, %v2773
      %2785 = vst.msk [vmem:[#allocation3 + $0x20] sm:$0xff] %vm2782, %v2775
      %2786 = vst.msk [vmem:[#allocation3 + $0x30] sm:$0xff] %vm2782, %v2777
      %v2787 = vld [vmem:[#allocation2 + $0x2] sm:$0xff]
      %v2788 = vld [vmem:[#allocation2 + $0xa] sm:$0xff]
      %v2789 = vld [vmem:[#allocation2 + $0x12] sm:$0xff]
      %v2790 = vld [vmem:[#allocation2 + $0x1a] sm:$0xff]
      %2795 = vrot.lane.b32.xlu0 %v2787, 64
      %v2796 = vpop.permute.xlu0 %2795
      %2797 = vrot.lane.b32.xlu0 %v2788, 64
      %v2798 = vpop.permute.xlu0 %2797
      %2799 = vrot.lane.b32.xlu0 %v2789, 64
      %v2800 = vpop.permute.xlu0 %2799
      %2801 = vrot.lane.b32.xlu0 %v2790, 64
      %v2802 = vpop.permute.xlu0 %2801
      %vm2807 = vcmask 785920
      %2808 = vst.msk [vmem:[#allocation3] sm:$0xff] %vm2807, %v2796
      %2809 = vst.msk [vmem:[#allocation3 + $0x10] sm:$0xff] %vm2807, %v2798
      %2810 = vst.msk [vmem:[#allocation3 + $0x20] sm:$0xff] %vm2807, %v2800
      %2811 = vst.msk [vmem:[#allocation3 + $0x30] sm:$0xff] %vm2807, %v2802
      %v2812 = vld [vmem:[#allocation3] sm:$0xff]
      %v2813 = vld [vmem:[#allocation3 + $0x10] sm:$0xff]
      %v2814 = vld [vmem:[#allocation3 + $0x20] sm:$0xff]
      %v2815 = vld [vmem:[#allocation3 + $0x30] sm:$0xff]
      %v2816 = vld [vmem:[%s41] sm:$0xff]
      %v2817 = vld [vmem:[%s41 + $0x8] sm:$0xff]
      %v2818 = vld [vmem:[%s41 + $0x10] sm:$0xff]
      %v2819 = vld [vmem:[%s41 + $0x18] sm:$0xff]
      %v2820 = vld [vmem:[%s41 + $0x20] sm:$0xff]
      %v2821 = vld [vmem:[%s41 + $0x28] sm:$0xff]
      %v2822 = vld [vmem:[%s41 + $0x30] sm:$0xff]
      %v2823 = vld [vmem:[%s41 + $0x38] sm:$0xff]
      %v2824 = vld [vmem:[%s41 + $0x40] sm:$0xff]
      %v2825 = vld [vmem:[%s41 + $0x48] sm:$0xff]
      %v2826 = vld [vmem:[%s41 + $0x50] sm:$0xff]
      %v2827 = vld [vmem:[%s41 + $0x58] sm:$0xff]
      %v2828 = vld [vmem:[%s43] sm:$0x1]
      %v2830 = vlaneseq
      %v2831 = vshrl.u32 %v2830, 7
      %v2832 = vsub.s32 0, %v2831
      %v2833 = vrot.slane %v2828, %v2832
      %vm2835 = vcmask 785408
      %v2837 = vsel %vm2835, %v2812, 0
      %v2840 = vsel %vm2835, %v2813, 0
      %v2843 = vsel %vm2835, %v2814, 0
      %v2846 = vsel %vm2835, %v2815, 0
      %2848 = vmatprep.subr.mxu0 0.0
      %2849 = vmatpush1.msra.mxu0 %v2816
      %2850 = vmatprep.subr.mxu0 0.0
      %2851 = vmatpush1.msra.mxu0 %v2817
      %2852 = vmatprep.subr.mxu0 0.0
      %2853 = vmatpush1.msra.mxu0 %v2818
      %2854 = vmatprep.subr.mxu0 0.0
      %2855 = vmatpush1.msra.mxu0 %v2819
      %2856 = vmatprep.subr.mxu0 0.0
      %2857 = vmatpush1.msra.mxu0 %v2820
      %2858 = vmatprep.subr.mxu0 0.0
      %2859 = vmatpush1.msra.mxu0 %v2821
      %2860 = vmatprep.subr.mxu0 0.0
      %2861 = vmatpush1.msra.mxu0 %v2822
      %2862 = vmatprep.subr.mxu0 0.0
      %2863 = vmatpush1.msra.mxu0 %v2823
      %2864 = vmatprep.subr.mxu0 0.0
      %2865 = vmatpush1.msra.mxu0 %v2824
      %2866 = vmatprep.subr.mxu0 0.0
      %2867 = vmatpush1.msra.mxu0 %v2825
      %2868 = vmatprep.subr.mxu0 0.0
      %2869 = vmatpush1.msra.mxu0 %v2826
      %2870 = vmatprep.subr.mxu0 0.0
      %2871 = vmatpush1.msra.mxu0 %v2827
      %2872 = vmatprep.subr.mxu0 0.0
      %2873 = vmatpush1.msra.mxu0 0.0
      %2874 = vmatprep.subr.mxu0 0.0
      %2875 = vmatpush1.msra.mxu0 0.0
      %2876 = vmatprep.subr.mxu0 0.0
      %2877 = vmatpush1.msra.mxu0 0.0
      %2878 = vmatprep.subr.mxu0 0.0
      %2879 = vmatpush1.msra.mxu0 0.0
      %2880 = vmatprep.subr.mxu0 0.0
      %2881 = vmatpush1.msra.mxu0 0.0
      %2882 = vmatprep.subr.mxu0 0.0
      %2883 = vmatpush1.msra.mxu0 0.0
      %2884 = vmatprep.subr.mxu0 0.0
      %2885 = vmatpush1.msra.mxu0 0.0
      %2886 = vmatprep.subr.mxu0 0.0
      %2887 = vmatpush1.msra.mxu0 0.0
      %2888 = vmatprep.subr.mxu0 0.0
      %2889 = vmatpush1.msra.mxu0 0.0
      %2890 = vmatprep.subr.mxu0 0.0
      %2891 = vmatpush1.msra.mxu0 0.0
      %2892 = vmatprep.subr.mxu0 0.0
      %2893 = vmatpush1.msra.mxu0 0.0
      %2894 = vmatprep.subr.mxu0 0.0
      %2895 = vmatpush1.msra.mxu0 0.0
      %2896 = vmatprep.subr.mxu0 0.0
      %2897 = vmatpush1.msra.mxu0 0.0
      %2898 = vmatprep.subr.mxu0 0.0
      %2899 = vmatpush1.msra.mxu0 0.0
      %2900 = vmatprep.subr.mxu0 0.0
      %2901 = vmatpush1.msra.mxu0 0.0
      %2902 = vmatprep.subr.mxu0 0.0
      %2903 = vmatpush1.msra.mxu0 0.0
      %2904 = vmatprep.subr.mxu0 0.0
      %2905 = vmatpush1.msra.mxu0 0.0
      %2906 = vmatprep.subr.mxu0 0.0
      %2907 = vmatpush1.msra.mxu0 0.0
      %2908 = vmatprep.subr.mxu0 0.0
      %2909 = vmatpush1.msra.mxu0 0.0
      %2910 = vmatprep.subr.mxu0 0.0
      %2911 = vmatpush1.msra.mxu0 0.0
      %2912 = vmatprep.mubr.f32.mxu0 0.0
      %2913 = vmatmul.mubr.f32.gmra.mrb[0].mxu0 %v2837
      %v2914 = vpop.f32.mrb[0].mxu0
      %v2915 = vadd.f32 %v2833, %v2914
      %v2916 = vpop.f32.mrb[0].mxu0
      %2917 = vmatprep.mubr.f32.mxu0 0.0
      %2918 = vmatmul.mubr.f32.gmra.mrb[0].mxu0 %v2840
      %v2919 = vpop.f32.mrb[0].mxu0
      %v2920 = vadd.f32 %v2833, %v2919
      %v2921 = vpop.f32.mrb[0].mxu0
      %2922 = vmatprep.mubr.f32.mxu0 0.0
      %2923 = vmatmul.mubr.f32.gmra.mrb[0].mxu0 %v2843
      %v2924 = vpop.f32.mrb[0].mxu0
      %v2925 = vadd.f32 %v2833, %v2924
      %v2926 = vpop.f32.mrb[0].mxu0
      %2927 = vmatprep.mubr.f32.mxu0 0.0
      %2928 = vmatmul.mubr.f32.gmra.mrb[0].mxu0 %v2846
      %v2929 = vpop.f32.mrb[0].mxu0
      %v2930 = vadd.f32 %v2833, %v2929
      %v2931 = vpop.f32.mrb[0].mxu0
      %2932 = vdwg.mxu0
      %v2933 = vadd.f32 %v2915, %v2514
      %v2934 = vadd.f32 %v2920, %v2515
      %v2935 = vadd.f32 %v2925, %v2516
      %v2936 = vadd.f32 %v2930, %v2517
      %v2937 = vsel %vm1317, %v2306, 0
      %v2939 = vsel %vm1317, %v2307, 0
      %2941 = vmatprep.subr.mxu0 0.0
      %2942 = vmatpush1.msra.mxu0 %v2933
      %2943 = vmatprep.subr.mxu0 0.0
      %2944 = vmatpush1.msra.mxu0 %v2934
      %2945 = vmatprep.subr.mxu0 0.0
      %2946 = vmatpush1.msra.mxu0 %v2935
      %2947 = vmatprep.subr.mxu0 0.0
      %2948 = vmatpush1.msra.mxu0 %v2936
      %2949 = vmatprep.subr.mxu0 0.0
      %2950 = vmatpush1.msra.mxu0 0.0
      %2951 = vmatprep.subr.mxu0 0.0
      %2952 = vmatpush1.msra.mxu0 0.0
      %2953 = vmatprep.subr.mxu0 0.0
      %2954 = vmatpush1.msra.mxu0 0.0
      %2955 = vmatprep.subr.mxu0 0.0
      %2956 = vmatpush1.msra.mxu0 0.0
      %2957 = vmatprep.subr.mxu0 0.0
      %2958 = vmatpush1.msra.mxu0 0.0
      %2959 = vmatprep.subr.mxu0 0.0
      %2960 = vmatpush1.msra.mxu0 0.0
      %2961 = vmatprep.subr.mxu0 0.0
      %2962 = vmatpush1.msra.mxu0 0.0
      %2963 = vmatprep.subr.mxu0 0.0
      %2964 = vmatpush1.msra.mxu0 0.0
      %2965 = vmatprep.subr.mxu0 0.0
      %2966 = vmatpush1.msra.mxu0 0.0
      %2967 = vmatprep.subr.mxu0 0.0
      %2968 = vmatpush1.msra.mxu0 0.0
      %2969 = vmatprep.subr.mxu0 0.0
      %2970 = vmatpush1.msra.mxu0 0.0
      %2971 = vmatprep.subr.mxu0 0.0
      %2972 = vmatpush1.msra.mxu0 0.0
      %2973 = vmatprep.subr.mxu0 0.0
      %2974 = vmatpush1.msra.mxu0 0.0
      %2975 = vmatprep.subr.mxu0 0.0
      %2976 = vmatpush1.msra.mxu0 0.0
      %2977 = vmatprep.subr.mxu0 0.0
      %2978 = vmatpush1.msra.mxu0 0.0
      %2979 = vmatprep.subr.mxu0 0.0
      %2980 = vmatpush1.msra.mxu0 0.0
      %2981 = vmatprep.subr.mxu0 0.0
      %2982 = vmatpush1.msra.mxu0 0.0
      %2983 = vmatprep.subr.mxu0 0.0
      %2984 = vmatpush1.msra.mxu0 0.0
      %2985 = vmatprep.subr.mxu0 0.0
      %2986 = vmatpush1.msra.mxu0 0.0
      %2987 = vmatprep.subr.mxu0 0.0
      %2988 = vmatpush1.msra.mxu0 0.0
      %2989 = vmatprep.subr.mxu0 0.0
      %2990 = vmatpush1.msra.mxu0 0.0
      %2991 = vmatprep.subr.mxu0 0.0
      %2992 = vmatpush1.msra.mxu0 0.0
      %2993 = vmatprep.subr.mxu0 0.0
      %2994 = vmatpush1.msra.mxu0 0.0
      %2995 = vmatprep.subr.mxu0 0.0
      %2996 = vmatpush1.msra.mxu0 0.0
      %2997 = vmatprep.subr.mxu0 0.0
      %2998 = vmatpush1.msra.mxu0 0.0
      %2999 = vmatprep.subr.mxu0 0.0
      %3000 = vmatpush1.msra.mxu0 0.0
      %3001 = vmatprep.subr.mxu0 0.0
      %3002 = vmatpush1.msra.mxu0 0.0
      %3003 = vmatprep.subr.mxu0 0.0
      %3004 = vmatpush1.msra.mxu0 0.0
      %3005 = vmatprep.mubr.f32.mxu0 0.0
      %3006 = vmatmul.mubr.f32.gmra.mrb[0].mxu0 %v2937
      %v3007 = vpop.f32.mrb[0].mxu0
      %v3008 = vadd.f32 0.0, %v3007
      %v3009 = vpop.f32.mrb[0].mxu0
      %3010 = vmatprep.mubr.f32.mxu0 0.0
      %3011 = vmatmul.mubr.f32.gmra.mrb[0].mxu0 %v2939
      %v3012 = vpop.f32.mrb[0].mxu0
      %v3013 = vadd.f32 0.0, %v3012
      %v3014 = vpop.f32.mrb[0].mxu0
      %3015 = vdwg.mxu0
      %3016 = vst.msk [vmem:[#allocation2] sm:$0x1] %vm2747, 0.0
      %3017 = vst.msk [vmem:[#allocation2 + $0x11] sm:$0x1] %vm2747, 0.0
      %3018 = vst.msk [vmem:[#allocation2 + $0x1] sm:$0xff] %vm1317, %v3008
      %3019 = vst.msk [vmem:[#allocation2 + $0x9] sm:$0xff] %vm1317, %v3013
      %v3020 = vld [vmem:[#allocation2] sm:$0xff]
      %v3021 = vld [vmem:[#allocation2 + $0x8] sm:$0xff]
      %3022 = vst.msk [vmem:[#allocation3] sm:$0xff] %vm1317, %v3020
      %3023 = vst.msk [vmem:[#allocation3 + $0x10] sm:$0xff] %vm1317, %v3021
      %v3024 = vld [vmem:[#allocation2 + $0x1] sm:$0xff]
      %v3025 = vld [vmem:[#allocation2 + $0x9] sm:$0xff]
      %3028 = vrot.lane.b32.xlu0 %v3024, 32
      %v3029 = vpop.permute.xlu0 %3028
      %3030 = vrot.lane.b32.xlu0 %v3025, 32
      %v3031 = vpop.permute.xlu0 %3030
      %3034 = vst.msk [vmem:[#allocation3] sm:$0xff] %vm2782, %v3029
      %3035 = vst.msk [vmem:[#allocation3 + $0x10] sm:$0xff] %vm2782, %v3031
      %v3036 = vld [vmem:[#allocation2 + $0x2] sm:$0xff]
      %v3037 = vld [vmem:[#allocation2 + $0xa] sm:$0xff]
      %3040 = vrot.lane.b32.xlu0 %v3036, 64
      %v3041 = vpop.permute.xlu0 %3040
      %3042 = vrot.lane.b32.xlu0 %v3037, 64
      %v3043 = vpop.permute.xlu0 %3042
      %3046 = vst.msk [vmem:[#allocation3] sm:$0xff] %vm2807, %v3041
      %3047 = vst.msk [vmem:[#allocation3 + $0x10] sm:$0xff] %vm2807, %v3043
      %v3048 = vld [vmem:[#allocation3] sm:$0xff]
      %v3049 = vld [vmem:[#allocation3 + $0x10] sm:$0xff]
      %v3050 = vld [vmem:[%s49] sm:$0xff]
      %v3051 = vld [vmem:[%s49 + $0x8] sm:$0xff]
      %v3052 = vld [vmem:[%s49 + $0x10] sm:$0xff]
      %v3053 = vld [vmem:[%s49 + $0x18] sm:$0xff]
      %v3054 = vld [vmem:[%s49 + $0x20] sm:$0xff]
      %v3055 = vld [vmem:[%s49 + $0x28] sm:$0xff]
      %v3056 = vld [vmem:[%s49 + $0x30] sm:$0xff]
      %v3057 = vld [vmem:[%s49 + $0x38] sm:$0xff]
      %v3058 = vld [vmem:[%s49 + $0x40] sm:$0xff]
      %v3059 = vld [vmem:[%s49 + $0x48] sm:$0xff]
      %v3060 = vld [vmem:[%s49 + $0x50] sm:$0xff]
      %v3061 = vld [vmem:[%s49 + $0x58] sm:$0xff]
      %v3062 = vld [vmem:[%s51] sm:$0x1]
      %v3064 = vlaneseq
      %v3065 = vshrl.u32 %v3064, 7
      %v3066 = vsub.s32 0, %v3065
      %v3067 = vrot.slane %v3062, %v3066
      %v3070 = vsel %vm2835, %v3048, 0
      %v3073 = vsel %vm2835, %v3049, 0
      %3075 = vmatprep.subr.mxu0 0.0
      %3076 = vmatpush1.msra.mxu0 %v3050
      %3077 = vmatprep.subr.mxu0 0.0
      %3078 = vmatpush1.msra.mxu0 %v3051
      %3079 = vmatprep.subr.mxu0 0.0
      %3080 = vmatpush1.msra.mxu0 %v3052
      %3081 = vmatprep.subr.mxu0 0.0
      %3082 = vmatpush1.msra.mxu0 %v3053
      %3083 = vmatprep.subr.mxu0 0.0
      %3084 = vmatpush1.msra.mxu0 %v3054
      %3085 = vmatprep.subr.mxu0 0.0
      %3086 = vmatpush1.msra.mxu0 %v3055
      %3087 = vmatprep.subr.mxu0 0.0
      %3088 = vmatpush1.msra.mxu0 %v3056
      %3089 = vmatprep.subr.mxu0 0.0
      %3090 = vmatpush1.msra.mxu0 %v3057
      %3091 = vmatprep.subr.mxu0 0.0
      %3092 = vmatpush1.msra.mxu0 %v3058
      %3093 = vmatprep.subr.mxu0 0.0
      %3094 = vmatpush1.msra.mxu0 %v3059
      %3095 = vmatprep.subr.mxu0 0.0
      %3096 = vmatpush1.msra.mxu0 %v3060
      %3097 = vmatprep.subr.mxu0 0.0
      %3098 = vmatpush1.msra.mxu0 %v3061
      %3099 = vmatprep.subr.mxu0 0.0
      %3100 = vmatpush1.msra.mxu0 0.0
      %3101 = vmatprep.subr.mxu0 0.0
      %3102 = vmatpush1.msra.mxu0 0.0
      %3103 = vmatprep.subr.mxu0 0.0
      %3104 = vmatpush1.msra.mxu0 0.0
      %3105 = vmatprep.subr.mxu0 0.0
      %3106 = vmatpush1.msra.mxu0 0.0
      %3107 = vmatprep.subr.mxu0 0.0
      %3108 = vmatpush1.msra.mxu0 0.0
      %3109 = vmatprep.subr.mxu0 0.0
      %3110 = vmatpush1.msra.mxu0 0.0
      %3111 = vmatprep.subr.mxu0 0.0
      %3112 = vmatpush1.msra.mxu0 0.0
      %3113 = vmatprep.subr.mxu0 0.0
      %3114 = vmatpush1.msra.mxu0 0.0
      %3115 = vmatprep.subr.mxu0 0.0
      %3116 = vmatpush1.msra.mxu0 0.0
      %3117 = vmatprep.subr.mxu0 0.0
      %3118 = vmatpush1.msra.mxu0 0.0
      %3119 = vmatprep.subr.mxu0 0.0
      %3120 = vmatpush1.msra.mxu0 0.0
      %3121 = vmatprep.subr.mxu0 0.0
      %3122 = vmatpush1.msra.mxu0 0.0
      %3123 = vmatprep.subr.mxu0 0.0
      %3124 = vmatpush1.msra.mxu0 0.0
      %3125 = vmatprep.subr.mxu0 0.0
      %3126 = vmatpush1.msra.mxu0 0.0
      %3127 = vmatprep.subr.mxu0 0.0
      %3128 = vmatpush1.msra.mxu0 0.0
      %3129 = vmatprep.subr.mxu0 0.0
      %3130 = vmatpush1.msra.mxu0 0.0
      %3131 = vmatprep.subr.mxu0 0.0
      %3132 = vmatpush1.msra.mxu0 0.0
      %3133 = vmatprep.subr.mxu0 0.0
      %3134 = vmatpush1.msra.mxu0 0.0
      %3135 = vmatprep.subr.mxu0 0.0
      %3136 = vmatpush1.msra.mxu0 0.0
      %3137 = vmatprep.subr.mxu0 0.0
      %3138 = vmatpush1.msra.mxu0 0.0
      %3139 = vmatprep.mubr.f32.mxu0 0.0
      %3140 = vmatmul.mubr.f32.gmra.mrb[0].mxu0 %v3070
      %v3141 = vpop.f32.mrb[0].mxu0
      %v3142 = vadd.f32 %v3067, %v3141
      %v3143 = vpop.f32.mrb[0].mxu0
      %3144 = vmatprep.mubr.f32.mxu0 0.0
      %3145 = vmatmul.mubr.f32.gmra.mrb[0].mxu0 %v3073
      %v3146 = vpop.f32.mrb[0].mxu0
      %v3147 = vadd.f32 %v3067, %v3146
      %v3148 = vpop.f32.mrb[0].mxu0
      %3149 = vdwg.mxu0
      %3151 = vrot.lane.b32.xlu0 %v2702, 64
      %v3152 = vpop.permute.xlu0 %3151
      %v3154 = vmul.f32 %v3142, %v3152
      %v3155 = vmul.f32 %v3147, %v3152
      %3156 = vrot.lane.b32.xlu0 %v2710, 32
      %v3157 = vpop.permute.xlu0 %3156
      %v3159 = vadd.f32 %v3154, %v3157
      %v3160 = vadd.f32 %v3155, %v3157
      %v3161 = vxor.u32 %v3159, 2147483648
      %v3162 = vxor.u32 %v3160, 2147483648
      %v3163 = vmul.f32 %v3161, 1.442695
      %v3164 = vpow.pop %v3163
      %v3165 = vmul.f32 %v3162, 1.442695
      %v3166 = vpow.pop %v3165
      %v3167 = vadd.f32 %v3164, 1.0
      %v3168 = vadd.f32 %v3166, 1.0
      %v3169 = vrcp.pop %v3167
      %v3170 = vmul.f32 1.0, %v3169
      %v3171 = vrcp.pop %v3168
      %v3172 = vmul.f32 1.0, %v3171
      %v3173 = vmul.f32 %v3159, %v3170
      %v3174 = vmul.f32 %v3160, %v3172
      %3175 = vst.msk [vmem:[#allocation2] sm:$0x1] %vm2747, 0.0
      %3176 = vst.msk [vmem:[#allocation2 + $0x11] sm:$0x1] %vm2747, 0.0
      %3177 = vst.msk [vmem:[#allocation2 + $0x1] sm:$0xff] %vm1317, %v3173
      %3178 = vst.msk [vmem:[#allocation2 + $0x9] sm:$0xff] %vm1317, %v3174
      %v3179 = vld [vmem:[#allocation2] sm:$0xff]
      %v3180 = vld [vmem:[#allocation2 + $0x8] sm:$0xff]
      %3181 = vst.msk [vmem:[#allocation3] sm:$0xff] %vm1317, %v3179
      %3182 = vst.msk [vmem:[#allocation3 + $0x10] sm:$0xff] %vm1317, %v3180
      %v3183 = vld [vmem:[#allocation2 + $0x1] sm:$0xff]
      %v3184 = vld [vmem:[#allocation2 + $0x9] sm:$0xff]
      %3187 = vrot.lane.b32.xlu0 %v3183, 32
      %v3188 = vpop.permute.xlu0 %3187
      %3189 = vrot.lane.b32.xlu0 %v3184, 32
      %v3190 = vpop.permute.xlu0 %3189
      %3193 = vst.msk [vmem:[#allocation3] sm:$0xff] %vm2782, %v3188
      %3194 = vst.msk [vmem:[#allocation3 + $0x10] sm:$0xff] %vm2782, %v3190
      %v3195 = vld [vmem:[#allocation2 + $0x2] sm:$0xff]
      %v3196 = vld [vmem:[#allocation2 + $0xa] sm:$0xff]
      %3199 = vrot.lane.b32.xlu0 %v3195, 64
      %v3200 = vpop.permute.xlu0 %3199
      %3201 = vrot.lane.b32.xlu0 %v3196, 64
      %v3202 = vpop.permute.xlu0 %3201
      %3205 = vst.msk [vmem:[#allocation3] sm:$0xff] %vm2807, %v3200
      %3206 = vst.msk [vmem:[#allocation3 + $0x10] sm:$0xff] %vm2807, %v3202
      %v3207 = vld [vmem:[#allocation3] sm:$0xff]
      %v3208 = vld [vmem:[#allocation3 + $0x10] sm:$0xff]
      %v3209 = vld [vmem:[%s53] sm:$0xff]
      %v3210 = vld [vmem:[%s53 + $0x8] sm:$0xff]
      %v3211 = vld [vmem:[%s53 + $0x10] sm:$0xff]
      %v3212 = vld [vmem:[%s53 + $0x18] sm:$0xff]
      %v3213 = vld [vmem:[%s53 + $0x20] sm:$0xff]
      %v3214 = vld [vmem:[%s53 + $0x28] sm:$0xff]
      %v3215 = vld [vmem:[%s53 + $0x30] sm:$0xff]
      %v3216 = vld [vmem:[%s53 + $0x38] sm:$0xff]
      %v3217 = vld [vmem:[%s53 + $0x40] sm:$0xff]
      %v3218 = vld [vmem:[%s53 + $0x48] sm:$0xff]
      %v3219 = vld [vmem:[%s53 + $0x50] sm:$0xff]
      %v3220 = vld [vmem:[%s53 + $0x58] sm:$0xff]
      %v3221 = vld [vmem:[%s55] sm:$0x1]
      %v3223 = vlaneseq
      %v3224 = vshrl.u32 %v3223, 7
      %v3225 = vsub.s32 0, %v3224
      %v3226 = vrot.slane %v3221, %v3225
      %v3229 = vsel %vm2835, %v3207, 0
      %v3232 = vsel %vm2835, %v3208, 0
      %3234 = vmatprep.subr.mxu0 0.0
      %3235 = vmatpush1.msra.mxu0 %v3209
      %3236 = vmatprep.subr.mxu0 0.0
      %3237 = vmatpush1.msra.mxu0 %v3210
      %3238 = vmatprep.subr.mxu0 0.0
      %3239 = vmatpush1.msra.mxu0 %v3211
      %3240 = vmatprep.subr.mxu0 0.0
      %3241 = vmatpush1.msra.mxu0 %v3212
      %3242 = vmatprep.subr.mxu0 0.0
      %3243 = vmatpush1.msra.mxu0 %v3213
      %3244 = vmatprep.subr.mxu0 0.0
      %3245 = vmatpush1.msra.mxu0 %v3214
      %3246 = vmatprep.subr.mxu0 0.0
      %3247 = vmatpush1.msra.mxu0 %v3215
      %3248 = vmatprep.subr.mxu0 0.0
      %3249 = vmatpush1.msra.mxu0 %v3216
      %3250 = vmatprep.subr.mxu0 0.0
      %3251 = vmatpush1.msra.mxu0 %v3217
      %3252 = vmatprep.subr.mxu0 0.0
      %3253 = vmatpush1.msra.mxu0 %v3218
      %3254 = vmatprep.subr.mxu0 0.0
      %3255 = vmatpush1.msra.mxu0 %v3219
      %3256 = vmatprep.subr.mxu0 0.0
      %3257 = vmatpush1.msra.mxu0 %v3220
      %3258 = vmatprep.subr.mxu0 0.0
      %3259 = vmatpush1.msra.mxu0 0.0
      %3260 = vmatprep.subr.mxu0 0.0
      %3261 = vmatpush1.msra.mxu0 0.0
      %3262 = vmatprep.subr.mxu0 0.0
      %3263 = vmatpush1.msra.mxu0 0.0
      %3264 = vmatprep.subr.mxu0 0.0
      %3265 = vmatpush1.msra.mxu0 0.0
      %3266 = vmatprep.subr.mxu0 0.0
      %3267 = vmatpush1.msra.mxu0 0.0
      %3268 = vmatprep.subr.mxu0 0.0
      %3269 = vmatpush1.msra.mxu0 0.0
      %3270 = vmatprep.subr.mxu0 0.0
      %3271 = vmatpush1.msra.mxu0 0.0
      %3272 = vmatprep.subr.mxu0 0.0
      %3273 = vmatpush1.msra.mxu0 0.0
      %3274 = vmatprep.subr.mxu0 0.0
      %3275 = vmatpush1.msra.mxu0 0.0
      %3276 = vmatprep.subr.mxu0 0.0
      %3277 = vmatpush1.msra.mxu0 0.0
      %3278 = vmatprep.subr.mxu0 0.0
      %3279 = vmatpush1.msra.mxu0 0.0
      %3280 = vmatprep.subr.mxu0 0.0
      %3281 = vmatpush1.msra.mxu0 0.0
      %3282 = vmatprep.subr.mxu0 0.0
      %3283 = vmatpush1.msra.mxu0 0.0
      %3284 = vmatprep.subr.mxu0 0.0
      %3285 = vmatpush1.msra.mxu0 0.0
      %3286 = vmatprep.subr.mxu0 0.0
      %3287 = vmatpush1.msra.mxu0 0.0
      %3288 = vmatprep.subr.mxu0 0.0
      %3289 = vmatpush1.msra.mxu0 0.0
      %3290 = vmatprep.subr.mxu0 0.0
      %3291 = vmatpush1.msra.mxu0 0.0
      %3292 = vmatprep.subr.mxu0 0.0
      %3293 = vmatpush1.msra.mxu0 0.0
      %3294 = vmatprep.subr.mxu0 0.0
      %3295 = vmatpush1.msra.mxu0 0.0
      %3296 = vmatprep.subr.mxu0 0.0
      %3297 = vmatpush1.msra.mxu0 0.0
      %3298 = vmatprep.mubr.f32.mxu0 0.0
      %3299 = vmatmul.mubr.f32.gmra.mrb[0].mxu0 %v3229
      %v3300 = vpop.f32.mrb[0].mxu0
      %v3301 = vadd.f32 %v3226, %v3300
      %v3302 = vpop.f32.mrb[0].mxu0
      %3303 = vmatprep.mubr.f32.mxu0 0.0
      %3304 = vmatmul.mubr.f32.gmra.mrb[0].mxu0 %v3232
      %v3305 = vpop.f32.mrb[0].mxu0
      %v3306 = vadd.f32 %v3226, %v3305
      %v3307 = vpop.f32.mrb[0].mxu0
      %3308 = vdwg.mxu0
      %v3309 = vadd.f32 %v3301, %v3008
      %v3310 = vadd.f32 %v3306, %v3013
      %v3311 = vmul.u32 %v2277, 2
      %v3312 = vsub.s32 %v2272, %v3311
      %v3313 = vsub.s32 %v2273, %v3311
      %v3314 = vsub.s32 %v2274, %v3311
      %v3315 = vsub.s32 %v2275, %v3311
      %vm3316 = vcmp.ge.s32.totalorder %v3312, 0
      %vm3317 = vcmp.ge.s32.totalorder %v3313, 0
      %vm3318 = vcmp.ge.s32.totalorder %v3314, 0
      %vm3319 = vcmp.ge.s32.totalorder %v3315, 0
      %vm3320 = vcmp.lt.s32.totalorder %v3312, 2
      %vm3321 = vcmp.lt.s32.totalorder %v3313, 2
      %vm3322 = vcmp.lt.s32.totalorder %v3314, 2
      %vm3323 = vcmp.lt.s32.totalorder %v3315, 2
      %vm3324 = vmand %vm3316, %vm3320
      %vm3325 = vmand %vm3317, %vm3321
      %vm3326 = vmand %vm3318, %vm3322
      %vm3327 = vmand %vm3319, %vm3323
      %v3328 = vsel %vm3324, 1, 0
      %v3329 = vsel %vm3325, 1, 0
      %v3330 = vsel %vm3326, 1, 0
      %v3331 = vsel %vm3327, 1, 0
      %v3332 = vcvt.s32.f32 %v3328
      %v3333 = vcvt.s32.f32 %v3329
      %v3334 = vcvt.s32.f32 %v3330
      %v3335 = vcvt.s32.f32 %v3331
      %v3337 = vsel %vm1480, %v3332, 0
      %v3340 = vsel %vm1480, %v3333, 0
      %v3343 = vsel %vm1480, %v3334, 0
      %v3346 = vsel %vm1480, %v3335, 0
      %3348 = vmatprep.subr.mxu0 0.0
      %3349 = vmatpush1.msra.mxu0 %v3309
      %3350 = vmatprep.subr.mxu0 0.0
      %3351 = vmatpush1.msra.mxu0 %v3310
      %3352 = vmatprep.subr.mxu0 0.0
      %3353 = vmatpush1.msra.mxu0 0.0
      %3354 = vmatprep.subr.mxu0 0.0
      %3355 = vmatpush1.msra.mxu0 0.0
      %3356 = vmatprep.subr.mxu0 0.0
      %3357 = vmatpush1.msra.mxu0 0.0
      %3358 = vmatprep.subr.mxu0 0.0
      %3359 = vmatpush1.msra.mxu0 0.0
      %3360 = vmatprep.subr.mxu0 0.0
      %3361 = vmatpush1.msra.mxu0 0.0
      %3362 = vmatprep.subr.mxu0 0.0
      %3363 = vmatpush1.msra.mxu0 0.0
      %3364 = vmatprep.subr.mxu0 0.0
      %3365 = vmatpush1.msra.mxu0 0.0
      %3366 = vmatprep.subr.mxu0 0.0
      %3367 = vmatpush1.msra.mxu0 0.0
      %3368 = vmatprep.subr.mxu0 0.0
      %3369 = vmatpush1.msra.mxu0 0.0
      %3370 = vmatprep.subr.mxu0 0.0
      %3371 = vmatpush1.msra.mxu0 0.0
      %3372 = vmatprep.subr.mxu0 0.0
      %3373 = vmatpush1.msra.mxu0 0.0
      %3374 = vmatprep.subr.mxu0 0.0
      %3375 = vmatpush1.msra.mxu0 0.0
      %3376 = vmatprep.subr.mxu0 0.0
      %3377 = vmatpush1.msra.mxu0 0.0
      %3378 = vmatprep.subr.mxu0 0.0
      %3379 = vmatpush1.msra.mxu0 0.0
      %3380 = vmatprep.subr.mxu0 0.0
      %3381 = vmatpush1.msra.mxu0 0.0
      %3382 = vmatprep.subr.mxu0 0.0
      %3383 = vmatpush1.msra.mxu0 0.0
      %3384 = vmatprep.subr.mxu0 0.0
      %3385 = vmatpush1.msra.mxu0 0.0
      %3386 = vmatprep.subr.mxu0 0.0
      %3387 = vmatpush1.msra.mxu0 0.0
      %3388 = vmatprep.subr.mxu0 0.0
      %3389 = vmatpush1.msra.mxu0 0.0
      %3390 = vmatprep.subr.mxu0 0.0
      %3391 = vmatpush1.msra.mxu0 0.0
      %3392 = vmatprep.subr.mxu0 0.0
      %3393 = vmatpush1.msra.mxu0 0.0
      %3394 = vmatprep.subr.mxu0 0.0
      %3395 = vmatpush1.msra.mxu0 0.0
      %3396 = vmatprep.subr.mxu0 0.0
      %3397 = vmatpush1.msra.mxu0 0.0
      %3398 = vmatprep.subr.mxu0 0.0
      %3399 = vmatpush1.msra.mxu0 0.0
      %3400 = vmatprep.subr.mxu0 0.0
      %3401 = vmatpush1.msra.mxu0 0.0
      %3402 = vmatprep.subr.mxu0 0.0
      %3403 = vmatpush1.msra.mxu0 0.0
      %3404 = vmatprep.subr.mxu0 0.0
      %3405 = vmatpush1.msra.mxu0 0.0
      %3406 = vmatprep.subr.mxu0 0.0
      %3407 = vmatpush1.msra.mxu0 0.0
      %3408 = vmatprep.subr.mxu0 0.0
      %3409 = vmatpush1.msra.mxu0 0.0
      %3410 = vmatprep.subr.mxu0 0.0
      %3411 = vmatpush1.msra.mxu0 0.0
      %3412 = vmatprep.mubr.f32.mxu0 0.0
      %3413 = vmatmul.mubr.f32.gmra.mrb[0].mxu0 %v3337
      %v3414 = vpop.f32.mrb[0].mxu0
      %v3415 = vadd.f32 0.0, %v3414
      %v3416 = vpop.f32.mrb[0].mxu0
      %3417 = vmatprep.mubr.f32.mxu0 0.0
      %3418 = vmatmul.mubr.f32.gmra.mrb[0].mxu0 %v3340
      %v3419 = vpop.f32.mrb[0].mxu0
      %v3420 = vadd.f32 0.0, %v3419
      %v3421 = vpop.f32.mrb[0].mxu0
      %3422 = vmatprep.mubr.f32.mxu0 0.0
      %3423 = vmatmul.mubr.f32.gmra.mrb[0].mxu0 %v3343
      %v3424 = vpop.f32.mrb[0].mxu0
      %v3425 = vadd.f32 0.0, %v3424
      %v3426 = vpop.f32.mrb[0].mxu0
      %3427 = vmatprep.mubr.f32.mxu0 0.0
      %3428 = vmatmul.mubr.f32.gmra.mrb[0].mxu0 %v3346
      %v3429 = vpop.f32.mrb[0].mxu0
      %v3430 = vadd.f32 0.0, %v3429
      %v3431 = vpop.f32.mrb[0].mxu0
      %3432 = vdwg.mxu0
      %v3433 = vld [vmem:[%s67] sm:$0x1]
      %v3435 = vlaneseq
      %v3436 = vshrl.u32 %v3435, 7
      %v3437 = vsub.s32 0, %v3436
      %v3438 = vrot.slane %v3433, %v3437
      %v3440 = vadd.f32 %v3438, 0.0
      %v3441 = vld [vmem:[%s65] sm:$0xff]
      %v3442 = vld [vmem:[%s65 + $0x8] sm:$0xff]
      %v3443 = vld [vmem:[%s65 + $0x10] sm:$0xff]
      %v3444 = vld [vmem:[%s65 + $0x18] sm:$0xff]
      %v3446 = vsel %vm1317, %v3415, 0
      %v3449 = vsel %vm1317, %v3420, 0
      %v3452 = vsel %vm1317, %v3425, 0
      %v3455 = vsel %vm1317, %v3430, 0
      %3457 = vmatprep.subr.mxu0 0.0
      %3458 = vmatpush1.msra.mxu0 %v3441
      %3459 = vmatprep.subr.mxu0 0.0
      %3460 = vmatpush1.msra.mxu0 %v3442
      %3461 = vmatprep.subr.mxu0 0.0
      %3462 = vmatpush1.msra.mxu0 %v3443
      %3463 = vmatprep.subr.mxu0 0.0
      %3464 = vmatpush1.msra.mxu0 %v3444
      %3465 = vmatprep.subr.mxu0 0.0
      %3466 = vmatpush1.msra.mxu0 0.0
      %3467 = vmatprep.subr.mxu0 0.0
      %3468 = vmatpush1.msra.mxu0 0.0
      %3469 = vmatprep.subr.mxu0 0.0
      %3470 = vmatpush1.msra.mxu0 0.0
      %3471 = vmatprep.subr.mxu0 0.0
      %3472 = vmatpush1.msra.mxu0 0.0
      %3473 = vmatprep.subr.mxu0 0.0
      %3474 = vmatpush1.msra.mxu0 0.0
      %3475 = vmatprep.subr.mxu0 0.0
      %3476 = vmatpush1.msra.mxu0 0.0
      %3477 = vmatprep.subr.mxu0 0.0
      %3478 = vmatpush1.msra.mxu0 0.0
      %3479 = vmatprep.subr.mxu0 0.0
      %3480 = vmatpush1.msra.mxu0 0.0
      %3481 = vmatprep.subr.mxu0 0.0
      %3482 = vmatpush1.msra.mxu0 0.0
      %3483 = vmatprep.subr.mxu0 0.0
      %3484 = vmatpush1.msra.mxu0 0.0
      %3485 = vmatprep.subr.mxu0 0.0
      %3486 = vmatpush1.msra.mxu0 0.0
      %3487 = vmatprep.subr.mxu0 0.0
      %3488 = vmatpush1.msra.mxu0 0.0
      %3489 = vmatprep.subr.mxu0 0.0
      %3490 = vmatpush1.msra.mxu0 0.0
      %3491 = vmatprep.subr.mxu0 0.0
      %3492 = vmatpush1.msra.mxu0 0.0
      %3493 = vmatprep.subr.mxu0 0.0
      %3494 = vmatpush1.msra.mxu0 0.0
      %3495 = vmatprep.subr.mxu0 0.0
      %3496 = vmatpush1.msra.mxu0 0.0
      %3497 = vmatprep.subr.mxu0 0.0
      %3498 = vmatpush1.msra.mxu0 0.0
      %3499 = vmatprep.subr.mxu0 0.0
      %3500 = vmatpush1.msra.mxu0 0.0
      %3501 = vmatprep.subr.mxu0 0.0
      %3502 = vmatpush1.msra.mxu0 0.0
      %3503 = vmatprep.subr.mxu0 0.0
      %3504 = vmatpush1.msra.mxu0 0.0
      %3505 = vmatprep.subr.mxu0 0.0
      %3506 = vmatpush1.msra.mxu0 0.0
      %3507 = vmatprep.subr.mxu0 0.0
      %3508 = vmatpush1.msra.mxu0 0.0
      %3509 = vmatprep.subr.mxu0 0.0
      %3510 = vmatpush1.msra.mxu0 0.0
      %3511 = vmatprep.subr.mxu0 0.0
      %3512 = vmatpush1.msra.mxu0 0.0
      %3513 = vmatprep.subr.mxu0 0.0
      %3514 = vmatpush1.msra.mxu0 0.0
      %3515 = vmatprep.subr.mxu0 0.0
      %3516 = vmatpush1.msra.mxu0 0.0
      %3517 = vmatprep.subr.mxu0 0.0
      %3518 = vmatpush1.msra.mxu0 0.0
      %3519 = vmatprep.subr.mxu0 0.0
      %3520 = vmatpush1.msra.mxu0 0.0
      %3521 = vmatprep.mubr.f32.mxu0 0.0
      %3522 = vmatmul.mubr.f32.gmra.mrb[0].mxu0 %v3446
      %v3523 = vpop.f32.mrb[0].mxu0
      %v3524 = vadd.f32 0.0, %v3523
      %v3525 = vpop.f32.mrb[0].mxu0
      %3526 = vmatprep.mubr.f32.mxu0 0.0
      %3527 = vmatmul.mubr.f32.gmra.mrb[0].mxu0 %v3449
      %v3528 = vpop.f32.mrb[0].mxu0
      %v3529 = vadd.f32 0.0, %v3528
      %v3530 = vpop.f32.mrb[0].mxu0
      %3531 = vmatprep.mubr.f32.mxu0 0.0
      %3532 = vmatmul.mubr.f32.gmra.mrb[0].mxu0 %v3452
      %v3533 = vpop.f32.mrb[0].mxu0
      %v3534 = vadd.f32 0.0, %v3533
      %v3535 = vpop.f32.mrb[0].mxu0
      %3536 = vmatprep.mubr.f32.mxu0 0.0
      %3537 = vmatmul.mubr.f32.gmra.mrb[0].mxu0 %v3455
      %v3538 = vpop.f32.mrb[0].mxu0
      %v3539 = vadd.f32 0.0, %v3538
      %v3540 = vpop.f32.mrb[0].mxu0
      %3541 = vdwg.mxu0
      %v3542 = vadd.f32 %v3440, %v3524
      %v3543 = vadd.f32 %v3440, %v3529
      %v3544 = vadd.f32 %v3440, %v3534
      %v3545 = vadd.f32 %v3440, %v3539
      %v3546 = vld [vmem:[%s65 + $0x20] sm:$0xff]
      %v3547 = vld [vmem:[%s65 + $0x28] sm:$0xff]
      %v3548 = vld [vmem:[%s65 + $0x30] sm:$0xff]
      %v3549 = vld [vmem:[%s65 + $0x38] sm:$0xff]
      %3550 = vmatprep.subr.mxu0 0.0
      %3551 = vmatpush1.msra.mxu0 %v3546
      %3552 = vmatprep.subr.mxu0 0.0
      %3553 = vmatpush1.msra.mxu0 %v3547
      %3554 = vmatprep.subr.mxu0 0.0
      %3555 = vmatpush1.msra.mxu0 %v3548
      %3556 = vmatprep.subr.mxu0 0.0
      %3557 = vmatpush1.msra.mxu0 %v3549
      %3558 = vmatprep.subr.mxu0 0.0
      %3559 = vmatpush1.msra.mxu0 0.0
      %3560 = vmatprep.subr.mxu0 0.0
      %3561 = vmatpush1.msra.mxu0 0.0
      %3562 = vmatprep.subr.mxu0 0.0
      %3563 = vmatpush1.msra.mxu0 0.0
      %3564 = vmatprep.subr.mxu0 0.0
      %3565 = vmatpush1.msra.mxu0 0.0
      %3566 = vmatprep.subr.mxu0 0.0
      %3567 = vmatpush1.msra.mxu0 0.0
      %3568 = vmatprep.subr.mxu0 0.0
      %3569 = vmatpush1.msra.mxu0 0.0
      %3570 = vmatprep.subr.mxu0 0.0
      %3571 = vmatpush1.msra.mxu0 0.0
      %3572 = vmatprep.subr.mxu0 0.0
      %3573 = vmatpush1.msra.mxu0 0.0
      %3574 = vmatprep.subr.mxu0 0.0
      %3575 = vmatpush1.msra.mxu0 0.0
      %3576 = vmatprep.subr.mxu0 0.0
      %3577 = vmatpush1.msra.mxu0 0.0
      %3578 = vmatprep.subr.mxu0 0.0
      %3579 = vmatpush1.msra.mxu0 0.0
      %3580 = vmatprep.subr.mxu0 0.0
      %3581 = vmatpush1.msra.mxu0 0.0
      %3582 = vmatprep.subr.mxu0 0.0
      %3583 = vmatpush1.msra.mxu0 0.0
      %3584 = vmatprep.subr.mxu0 0.0
      %3585 = vmatpush1.msra.mxu0 0.0
      %3586 = vmatprep.subr.mxu0 0.0
      %3587 = vmatpush1.msra.mxu0 0.0
      %3588 = vmatprep.subr.mxu0 0.0
      %3589 = vmatpush1.msra.mxu0 0.0
      %3590 = vmatprep.subr.mxu0 0.0
      %3591 = vmatpush1.msra.mxu0 0.0
      %3592 = vmatprep.subr.mxu0 0.0
      %3593 = vmatpush1.msra.mxu0 0.0
      %3594 = vmatprep.subr.mxu0 0.0
      %3595 = vmatpush1.msra.mxu0 0.0
      %3596 = vmatprep.subr.mxu0 0.0
      %3597 = vmatpush1.msra.mxu0 0.0
      %3598 = vmatprep.subr.mxu0 0.0
      %3599 = vmatpush1.msra.mxu0 0.0
      %3600 = vmatprep.subr.mxu0 0.0
      %3601 = vmatpush1.msra.mxu0 0.0
      %3602 = vmatprep.subr.mxu0 0.0
      %3603 = vmatpush1.msra.mxu0 0.0
      %3604 = vmatprep.subr.mxu0 0.0
      %3605 = vmatpush1.msra.mxu0 0.0
      %3606 = vmatprep.subr.mxu0 0.0
      %3607 = vmatpush1.msra.mxu0 0.0
      %3608 = vmatprep.subr.mxu0 0.0
      %3609 = vmatpush1.msra.mxu0 0.0
      %3610 = vmatprep.subr.mxu0 0.0
      %3611 = vmatpush1.msra.mxu0 0.0
      %3612 = vmatprep.subr.mxu0 0.0
      %3613 = vmatpush1.msra.mxu0 0.0
      %3614 = vmatprep.mubr.f32.mxu0 0.0
      %3615 = vmatmul.mubr.f32.gmra.mrb[0].mxu0 %v3446
      %v3616 = vpop.f32.mrb[0].mxu0
      %v3617 = vadd.f32 0.0, %v3616
      %v3618 = vpop.f32.mrb[0].mxu0
      %3619 = vmatprep.mubr.f32.mxu0 0.0
      %3620 = vmatmul.mubr.f32.gmra.mrb[0].mxu0 %v3449
      %v3621 = vpop.f32.mrb[0].mxu0
      %v3622 = vadd.f32 0.0, %v3621
      %v3623 = vpop.f32.mrb[0].mxu0
      %3624 = vmatprep.mubr.f32.mxu0 0.0
      %3625 = vmatmul.mubr.f32.gmra.mrb[0].mxu0 %v3452
      %v3626 = vpop.f32.mrb[0].mxu0
      %v3627 = vadd.f32 0.0, %v3626
      %v3628 = vpop.f32.mrb[0].mxu0
      %3629 = vmatprep.mubr.f32.mxu0 0.0
      %3630 = vmatmul.mubr.f32.gmra.mrb[0].mxu0 %v3455
      %v3631 = vpop.f32.mrb[0].mxu0
      %v3632 = vadd.f32 0.0, %v3631
      %v3633 = vpop.f32.mrb[0].mxu0
      %3634 = vdwg.mxu0
      %v3635 = vadd.f32 %v3542, %v3617
      %v3636 = vadd.f32 %v3543, %v3622
      %v3637 = vadd.f32 %v3544, %v3627
      %v3638 = vadd.f32 %v3545, %v3632
      %vm3639 = vcmask 516096
      %3640 = vst.msk [vmem:[#allocation2] sm:$0x1] %vm3639, 0.0
      %3641 = vst.msk [vmem:[#allocation2 + $0x21] sm:$0x1] %vm3639, 0.0
      %3642 = vst.msk [vmem:[#allocation2 + $0x1] sm:$0xff] %vm1317, %v3415
      %3643 = vst.msk [vmem:[#allocation2 + $0x9] sm:$0xff] %vm1317, %v3420
      %3644 = vst.msk [vmem:[#allocation2 + $0x11] sm:$0xff] %vm1317, %v3425
      %3645 = vst.msk [vmem:[#allocation2 + $0x19] sm:$0xff] %vm1317, %v3430
      %3646 = vrot.lane.b32.xlu0 %v3415, 32
      %v3647 = vpop.permute.xlu0 %3646
      %3648 = vrot.lane.b32.xlu0 %v3420, 32
      %v3649 = vpop.permute.xlu0 %3648
      %3650 = vrot.lane.b32.xlu0 %v3425, 32
      %v3651 = vpop.permute.xlu0 %3650
      %3652 = vrot.lane.b32.xlu0 %v3430, 32
      %v3653 = vpop.permute.xlu0 %3652
      %3658 = vst.msk [vmem:[#allocation2 + $0x1] sm:$0xff] %vm2782, %v3647
      %3659 = vst.msk [vmem:[#allocation2 + $0x9] sm:$0xff] %vm2782, %v3649
      %3660 = vst.msk [vmem:[#allocation2 + $0x11] sm:$0xff] %vm2782, %v3651
      %3661 = vst.msk [vmem:[#allocation2 + $0x19] sm:$0xff] %vm2782, %v3653
      %v3662 = vld [vmem:[#allocation2] sm:$0xff]
      %v3663 = vld [vmem:[#allocation2 + $0x8] sm:$0xff]
      %v3664 = vld [vmem:[#allocation2 + $0x10] sm:$0xff]
      %v3665 = vld [vmem:[#allocation2 + $0x18] sm:$0xff]
      %3666 = vst.msk [vmem:[#allocation3] sm:$0xff] %vm1570, %v3662
      %3667 = vst.msk [vmem:[#allocation3 + $0x10] sm:$0xff] %vm1570, %v3663
      %3668 = vst.msk [vmem:[#allocation3 + $0x20] sm:$0xff] %vm1570, %v3664
      %3669 = vst.msk [vmem:[#allocation3 + $0x30] sm:$0xff] %vm1570, %v3665
      %v3670 = vld [vmem:[#allocation2 + $0x1] sm:$0xff]
      %v3671 = vld [vmem:[#allocation2 + $0x9] sm:$0xff]
      %v3672 = vld [vmem:[#allocation2 + $0x11] sm:$0xff]
      %v3673 = vld [vmem:[#allocation2 + $0x19] sm:$0xff]
      %3678 = vrot.lane.b32.xlu0 %v3670, 64
      %v3679 = vpop.permute.xlu0 %3678
      %3680 = vrot.lane.b32.xlu0 %v3671, 64
      %v3681 = vpop.permute.xlu0 %3680
      %3682 = vrot.lane.b32.xlu0 %v3672, 64
      %v3683 = vpop.permute.xlu0 %3682
      %3684 = vrot.lane.b32.xlu0 %v3673, 64
      %v3685 = vpop.permute.xlu0 %3684
      %vm3690 = vcmask 1048064
      %3691 = vst.msk [vmem:[#allocation3] sm:$0xff] %vm3690, %v3679
      %3692 = vst.msk [vmem:[#allocation3 + $0x10] sm:$0xff] %vm3690, %v3681
      %3693 = vst.msk [vmem:[#allocation3 + $0x20] sm:$0xff] %vm3690, %v3683
      %3694 = vst.msk [vmem:[#allocation3 + $0x30] sm:$0xff] %vm3690, %v3685
      %v3695 = vld [vmem:[#allocation2 + $0x2] sm:$0xff]
      %v3696 = vld [vmem:[#allocation2 + $0xa] sm:$0xff]
      %v3697 = vld [vmem:[#allocation2 + $0x12] sm:$0xff]
      %v3698 = vld [vmem:[#allocation2 + $0x1a] sm:$0xff]
      %3699 = vst.msk [vmem:[#allocation3 + $0x8] sm:$0xff] %vm1570, %v3695
      %3700 = vst.msk [vmem:[#allocation3 + $0x18] sm:$0xff] %vm1570, %v3696
      %3701 = vst.msk [vmem:[#allocation3 + $0x28] sm:$0xff] %vm1570, %v3697
      %3702 = vst.msk [vmem:[#allocation3 + $0x38] sm:$0xff] %vm1570, %v3698
      %v3703 = vld [vmem:[#allocation3] sm:$0xff]
      %v3704 = vld [vmem:[#allocation3 + $0x8] sm:$0xff]
      %v3705 = vld [vmem:[#allocation3 + $0x10] sm:$0xff]
      %v3706 = vld [vmem:[#allocation3 + $0x18] sm:$0xff]
      %v3707 = vld [vmem:[#allocation3 + $0x20] sm:$0xff]
      %v3708 = vld [vmem:[#allocation3 + $0x28] sm:$0xff]
      %v3709 = vld [vmem:[#allocation3 + $0x30] sm:$0xff]
      %v3710 = vld [vmem:[#allocation3 + $0x38] sm:$0xff]
      %v3711 = vld [vmem:[%s57] sm:$0xff]
      %v3712 = vld [vmem:[%s57 + $0x8] sm:$0xff]
      %v3713 = vld [vmem:[%s57 + $0x10] sm:$0xff]
      %v3714 = vld [vmem:[%s57 + $0x18] sm:$0xff]
      %v3715 = vld [vmem:[%s57 + $0x20] sm:$0xff]
      %v3716 = vld [vmem:[%s57 + $0x28] sm:$0xff]
      %v3717 = vld [vmem:[%s57 + $0x30] sm:$0xff]
      %v3718 = vld [vmem:[%s57 + $0x38] sm:$0xff]
      %v3719 = vld [vmem:[%s57 + $0x40] sm:$0xff]
      %v3720 = vld [vmem:[%s57 + $0x48] sm:$0xff]
      %v3721 = vld [vmem:[%s57 + $0x50] sm:$0xff]
      %v3722 = vld [vmem:[%s57 + $0x58] sm:$0xff]
      %v3723 = vld [vmem:[%s57 + $0x60] sm:$0xff]
      %v3724 = vld [vmem:[%s57 + $0x68] sm:$0xff]
      %v3725 = vld [vmem:[%s57 + $0x70] sm:$0xff]
      %v3726 = vld [vmem:[%s57 + $0x78] sm:$0xff]
      %v3727 = vld [vmem:[%s57 + $0x80] sm:$0xff]
      %v3728 = vld [vmem:[%s57 + $0x88] sm:$0xff]
      %v3729 = vld [vmem:[%s57 + $0x90] sm:$0xff]
      %v3730 = vld [vmem:[%s57 + $0x98] sm:$0xff]
      %v3731 = vld [vmem:[%s57 + $0xa0] sm:$0xff]
      %v3732 = vld [vmem:[%s57 + $0xa8] sm:$0xff]
      %v3733 = vld [vmem:[%s57 + $0xb0] sm:$0xff]
      %v3734 = vld [vmem:[%s57 + $0xb8] sm:$0xff]
      %v3735 = vld [vmem:[%s59] sm:$0x1]
      %v3737 = vlaneseq
      %v3738 = vshrl.u32 %v3737, 7
      %v3739 = vsub.s32 0, %v3738
      %v3740 = vrot.slane %v3735, %v3739
      %v3743 = vsel %vm1570, %v3704, 0
      %v3746 = vsel %vm1570, %v3706, 0
      %v3749 = vsel %vm1570, %v3708, 0
      %v3752 = vsel %vm1570, %v3710, 0
      %3754 = vmatprep.subr.mxu0 0.0
      %3755 = vmatpush1.msra.mxu0 %v3711
      %3756 = vmatprep.subr.mxu0 0.0
      %3757 = vmatpush1.msra.mxu0 %v3712
      %3758 = vmatprep.subr.mxu0 0.0
      %3759 = vmatpush1.msra.mxu0 %v3713
      %3760 = vmatprep.subr.mxu0 0.0
      %3761 = vmatpush1.msra.mxu0 %v3714
      %3762 = vmatprep.subr.mxu0 0.0
      %3763 = vmatpush1.msra.mxu0 %v3715
      %3764 = vmatprep.subr.mxu0 0.0
      %3765 = vmatpush1.msra.mxu0 %v3716
      %3766 = vmatprep.subr.mxu0 0.0
      %3767 = vmatpush1.msra.mxu0 %v3717
      %3768 = vmatprep.subr.mxu0 0.0
      %3769 = vmatpush1.msra.mxu0 %v3718
      %3770 = vmatprep.subr.mxu0 0.0
      %3771 = vmatpush1.msra.mxu0 %v3719
      %3772 = vmatprep.subr.mxu0 0.0
      %3773 = vmatpush1.msra.mxu0 %v3720
      %3774 = vmatprep.subr.mxu0 0.0
      %3775 = vmatpush1.msra.mxu0 %v3721
      %3776 = vmatprep.subr.mxu0 0.0
      %3777 = vmatpush1.msra.mxu0 %v3722
      %3778 = vmatprep.subr.mxu0 0.0
      %3779 = vmatpush1.msra.mxu0 %v3723
      %3780 = vmatprep.subr.mxu0 0.0
      %3781 = vmatpush1.msra.mxu0 %v3724
      %3782 = vmatprep.subr.mxu0 0.0
      %3783 = vmatpush1.msra.mxu0 %v3725
      %3784 = vmatprep.subr.mxu0 0.0
      %3785 = vmatpush1.msra.mxu0 %v3726
      %3786 = vmatprep.subr.mxu0 0.0
      %3787 = vmatpush1.msra.mxu0 %v3727
      %3788 = vmatprep.subr.mxu0 0.0
      %3789 = vmatpush1.msra.mxu0 %v3728
      %3790 = vmatprep.subr.mxu0 0.0
      %3791 = vmatpush1.msra.mxu0 %v3729
      %3792 = vmatprep.subr.mxu0 0.0
      %3793 = vmatpush1.msra.mxu0 %v3730
      %3794 = vmatprep.subr.mxu0 0.0
      %3795 = vmatpush1.msra.mxu0 %v3731
      %3796 = vmatprep.subr.mxu0 0.0
      %3797 = vmatpush1.msra.mxu0 %v3732
      %3798 = vmatprep.subr.mxu0 0.0
      %3799 = vmatpush1.msra.mxu0 %v3733
      %3800 = vmatprep.subr.mxu0 0.0
      %3801 = vmatpush1.msra.mxu0 %v3734
      %3802 = vmatprep.subr.mxu0 0.0
      %3803 = vmatpush1.msra.mxu0 0.0
      %3804 = vmatprep.subr.mxu0 0.0
      %3805 = vmatpush1.msra.mxu0 0.0
      %3806 = vmatprep.subr.mxu0 0.0
      %3807 = vmatpush1.msra.mxu0 0.0
      %3808 = vmatprep.subr.mxu0 0.0
      %3809 = vmatpush1.msra.mxu0 0.0
      %3810 = vmatprep.subr.mxu0 0.0
      %3811 = vmatpush1.msra.mxu0 0.0
      %3812 = vmatprep.subr.mxu0 0.0
      %3813 = vmatpush1.msra.mxu0 0.0
      %3814 = vmatprep.subr.mxu0 0.0
      %3815 = vmatpush1.msra.mxu0 0.0
      %3816 = vmatprep.subr.mxu0 0.0
      %3817 = vmatpush1.msra.mxu0 0.0
      %3818 = vmatprep.mubr.f32.mxu0 %v3743
      %3819 = vmatmul.mubr.f32.gmra.mrb[0].mxu0 %v3703
      %v3820 = vpop.f32.mrb[0].mxu0
      %v3821 = vadd.f32 %v3740, %v3820
      %v3822 = vpop.f32.mrb[0].mxu0
      %3823 = vmatprep.mubr.f32.mxu0 %v3746
      %3824 = vmatmul.mubr.f32.gmra.mrb[0].mxu0 %v3705
      %v3825 = vpop.f32.mrb[0].mxu0
      %v3826 = vadd.f32 %v3740, %v3825
      %v3827 = vpop.f32.mrb[0].mxu0
      %3828 = vmatprep.mubr.f32.mxu0 %v3749
      %3829 = vmatmul.mubr.f32.gmra.mrb[0].mxu0 %v3707
      %v3830 = vpop.f32.mrb[0].mxu0
      %v3831 = vadd.f32 %v3740, %v3830
      %v3832 = vpop.f32.mrb[0].mxu0
      %3833 = vmatprep.mubr.f32.mxu0 %v3752
      %3834 = vmatmul.mubr.f32.gmra.mrb[0].mxu0 %v3709
      %v3835 = vpop.f32.mrb[0].mxu0
      %v3836 = vadd.f32 %v3740, %v3835
      %v3837 = vpop.f32.mrb[0].mxu0
      %3838 = vdwg.mxu0
      %v3839 = vadd.f32 %v1897, 1.0
      %v3840 = vlaneseq
      %v3841 = vshrl.u32 %v3840, 7
      %v3842 = vsub.s32 0, %v3841
      %v3843 = vrot.slane %v3839, %v3842
      %v3844 = vmul.f32 %v3821, %v3843
      %v3845 = vmul.f32 %v3826, %v3843
      %v3846 = vmul.f32 %v3831, %v3843
      %v3847 = vmul.f32 %v3836, %v3843
      %v3848 = vlaneseq
      %v3849 = vshrl.u32 %v3848, 7
      %v3850 = vsub.s32 0, %v3849
      %v3851 = vrot.slane %v1897, %v3850
      %3853 = vrot.lane.b32.xlu0 %v3851, 96
      %v3854 = vpop.permute.xlu0 %3853
      %v3856 = vadd.f32 %v3844, %v3854
      %v3857 = vadd.f32 %v3845, %v3854
      %v3858 = vadd.f32 %v3846, %v3854
      %v3859 = vadd.f32 %v3847, %v3854
      %v3860 = vxor.u32 %v3856, 2147483648
      %v3861 = vxor.u32 %v3857, 2147483648
      %v3862 = vxor.u32 %v3858, 2147483648
      %v3863 = vxor.u32 %v3859, 2147483648
      %v3864 = vmul.f32 %v3860, 1.442695
      %v3865 = vpow.pop %v3864
      %v3866 = vmul.f32 %v3861, 1.442695
      %v3867 = vpow.pop %v3866
      %v3868 = vmul.f32 %v3862, 1.442695
      %v3869 = vpow.pop %v3868
      %v3870 = vmul.f32 %v3863, 1.442695
      %v3871 = vpow.pop %v3870
      %v3872 = vadd.f32 %v3865, 1.0
      %v3873 = vadd.f32 %v3867, 1.0
      %v3874 = vadd.f32 %v3869, 1.0
      %v3875 = vadd.f32 %v3871, 1.0
      %v3876 = vrcp.pop %v3872
      %v3877 = vmul.f32 1.0, %v3876
      %v3878 = vrcp.pop %v3873
      %v3879 = vmul.f32 1.0, %v3878
      %v3880 = vrcp.pop %v3874
      %v3881 = vmul.f32 1.0, %v3880
      %v3882 = vrcp.pop %v3875
      %v3883 = vmul.f32 1.0, %v3882
      %v3884 = vmul.f32 %v3856, %v3877
      %v3885 = vmul.f32 %v3857, %v3879
      %v3886 = vmul.f32 %v3858, %v3881
      %v3887 = vmul.f32 %v3859, %v3883
      %3888 = vst.msk [vmem:[#allocation2] sm:$0x1] %vm2747, 0.0
      %3889 = vst.msk [vmem:[#allocation2 + $0x21] sm:$0x1] %vm2747, 0.0
      %3890 = vst.msk [vmem:[#allocation2 + $0x1] sm:$0xff] %vm1317, %v3884
      %3891 = vst.msk [vmem:[#allocation2 + $0x9] sm:$0xff] %vm1317, %v3885
      %3892 = vst.msk [vmem:[#allocation2 + $0x11] sm:$0xff] %vm1317, %v3886
      %3893 = vst.msk [vmem:[#allocation2 + $0x19] sm:$0xff] %vm1317, %v3887
      %v3894 = vld [vmem:[#allocation2] sm:$0xff]
      %v3895 = vld [vmem:[#allocation2 + $0x8] sm:$0xff]
      %v3896 = vld [vmem:[#allocation2 + $0x10] sm:$0xff]
      %v3897 = vld [vmem:[#allocation2 + $0x18] sm:$0xff]
      %3898 = vst.msk [vmem:[#allocation3] sm:$0xff] %vm1317, %v3894
      %3899 = vst.msk [vmem:[#allocation3 + $0x10] sm:$0xff] %vm1317, %v3895
      %3900 = vst.msk [vmem:[#allocation3 + $0x20] sm:$0xff] %vm1317, %v3896
      %3901 = vst.msk [vmem:[#allocation3 + $0x30] sm:$0xff] %vm1317, %v3897
      %v3902 = vld [vmem:[#allocation2 + $0x1] sm:$0xff]
      %v3903 = vld [vmem:[#allocation2 + $0x9] sm:$0xff]
      %v3904 = vld [vmem:[#allocation2 + $0x11] sm:$0xff]
      %v3905 = vld [vmem:[#allocation2 + $0x19] sm:$0xff]
      %3910 = vrot.lane.b32.xlu0 %v3902, 32
      %v3911 = vpop.permute.xlu0 %3910
      %3912 = vrot.lane.b32.xlu0 %v3903, 32
      %v3913 = vpop.permute.xlu0 %3912
      %3914 = vrot.lane.b32.xlu0 %v3904, 32
      %v3915 = vpop.permute.xlu0 %3914
      %3916 = vrot.lane.b32.xlu0 %v3905, 32
      %v3917 = vpop.permute.xlu0 %3916
      %3922 = vst.msk [vmem:[#allocation3] sm:$0xff] %vm2782, %v3911
      %3923 = vst.msk [vmem:[#allocation3 + $0x10] sm:$0xff] %vm2782, %v3913
      %3924 = vst.msk [vmem:[#allocation3 + $0x20] sm:$0xff] %vm2782, %v3915
      %3925 = vst.msk [vmem:[#allocation3 + $0x30] sm:$0xff] %vm2782, %v3917
      %v3926 = vld [vmem:[#allocation2 + $0x2] sm:$0xff]
      %v3927 = vld [vmem:[#allocation2 + $0xa] sm:$0xff]
      %v3928 = vld [vmem:[#allocation2 + $0x12] sm:$0xff]
      %v3929 = vld [vmem:[#allocation2 + $0x1a] sm:$0xff]
      %3934 = vrot.lane.b32.xlu0 %v3926, 64
      %v3935 = vpop.permute.xlu0 %3934
      %3936 = vrot.lane.b32.xlu0 %v3927, 64
      %v3937 = vpop.permute.xlu0 %3936
      %3938 = vrot.lane.b32.xlu0 %v3928, 64
      %v3939 = vpop.permute.xlu0 %3938
      %3940 = vrot.lane.b32.xlu0 %v3929, 64
      %v3941 = vpop.permute.xlu0 %3940
      %3946 = vst.msk [vmem:[#allocation3] sm:$0xff] %vm2807, %v3935
      %3947 = vst.msk [vmem:[#allocation3 + $0x10] sm:$0xff] %vm2807, %v3937
      %3948 = vst.msk [vmem:[#allocation3 + $0x20] sm:$0xff] %vm2807, %v3939
      %3949 = vst.msk [vmem:[#allocation3 + $0x30] sm:$0xff] %vm2807, %v3941
      %v3950 = vld [vmem:[#allocation3] sm:$0xff]
      %v3951 = vld [vmem:[#allocation3 + $0x10] sm:$0xff]
      %v3952 = vld [vmem:[#allocation3 + $0x20] sm:$0xff]
      %v3953 = vld [vmem:[#allocation3 + $0x30] sm:$0xff]
      %v3954 = vld [vmem:[%s61] sm:$0xff]
      %v3955 = vld [vmem:[%s61 + $0x8] sm:$0xff]
      %v3956 = vld [vmem:[%s61 + $0x10] sm:$0xff]
      %v3957 = vld [vmem:[%s61 + $0x18] sm:$0xff]
      %v3958 = vld [vmem:[%s61 + $0x20] sm:$0xff]
      %v3959 = vld [vmem:[%s61 + $0x28] sm:$0xff]
      %v3960 = vld [vmem:[%s61 + $0x30] sm:$0xff]
      %v3961 = vld [vmem:[%s61 + $0x38] sm:$0xff]
      %v3962 = vld [vmem:[%s61 + $0x40] sm:$0xff]
      %v3963 = vld [vmem:[%s61 + $0x48] sm:$0xff]
      %v3964 = vld [vmem:[%s61 + $0x50] sm:$0xff]
      %v3965 = vld [vmem:[%s61 + $0x58] sm:$0xff]
      %v3966 = vld [vmem:[%s63] sm:$0x1]
      %v3968 = vlaneseq
      %v3969 = vshrl.u32 %v3968, 7
      %v3970 = vsub.s32 0, %v3969
      %v3971 = vrot.slane %v3966, %v3970
      %v3974 = vsel %vm2835, %v3950, 0
      %v3977 = vsel %vm2835, %v3951, 0
      %v3980 = vsel %vm2835, %v3952, 0
      %v3983 = vsel %vm2835, %v3953, 0
      %3985 = vmatprep.subr.mxu0 0.0
      %3986 = vmatpush1.msra.mxu0 %v3954
      %3987 = vmatprep.subr.mxu0 0.0
      %3988 = vmatpush1.msra.mxu0 %v3955
      %3989 = vmatprep.subr.mxu0 0.0
      %3990 = vmatpush1.msra.mxu0 %v3956
      %3991 = vmatprep.subr.mxu0 0.0
      %3992 = vmatpush1.msra.mxu0 %v3957
      %3993 = vmatprep.subr.mxu0 0.0
      %3994 = vmatpush1.msra.mxu0 %v3958
      %3995 = vmatprep.subr.mxu0 0.0
      %3996 = vmatpush1.msra.mxu0 %v3959
      %3997 = vmatprep.subr.mxu0 0.0
      %3998 = vmatpush1.msra.mxu0 %v3960
      %3999 = vmatprep.subr.mxu0 0.0
      %4000 = vmatpush1.msra.mxu0 %v3961
      %4001 = vmatprep.subr.mxu0 0.0
      %4002 = vmatpush1.msra.mxu0 %v3962
      %4003 = vmatprep.subr.mxu0 0.0
      %4004 = vmatpush1.msra.mxu0 %v3963
      %4005 = vmatprep.subr.mxu0 0.0
      %4006 = vmatpush1.msra.mxu0 %v3964
      %4007 = vmatprep.subr.mxu0 0.0
      %4008 = vmatpush1.msra.mxu0 %v3965
      %4009 = vmatprep.subr.mxu0 0.0
      %4010 = vmatpush1.msra.mxu0 0.0
      %4011 = vmatprep.subr.mxu0 0.0
      %4012 = vmatpush1.msra.mxu0 0.0
      %4013 = vmatprep.subr.mxu0 0.0
      %4014 = vmatpush1.msra.mxu0 0.0
      %4015 = vmatprep.subr.mxu0 0.0
      %4016 = vmatpush1.msra.mxu0 0.0
      %4017 = vmatprep.subr.mxu0 0.0
      %4018 = vmatpush1.msra.mxu0 0.0
      %4019 = vmatprep.subr.mxu0 0.0
      %4020 = vmatpush1.msra.mxu0 0.0
      %4021 = vmatprep.subr.mxu0 0.0
      %4022 = vmatpush1.msra.mxu0 0.0
      %4023 = vmatprep.subr.mxu0 0.0
      %4024 = vmatpush1.msra.mxu0 0.0
      %4025 = vmatprep.subr.mxu0 0.0
      %4026 = vmatpush1.msra.mxu0 0.0
      %4027 = vmatprep.subr.mxu0 0.0
      %4028 = vmatpush1.msra.mxu0 0.0
      %4029 = vmatprep.subr.mxu0 0.0
      %4030 = vmatpush1.msra.mxu0 0.0
      %4031 = vmatprep.subr.mxu0 0.0
      %4032 = vmatpush1.msra.mxu0 0.0
      %4033 = vmatprep.subr.mxu0 0.0
      %4034 = vmatpush1.msra.mxu0 0.0
      %4035 = vmatprep.subr.mxu0 0.0
      %4036 = vmatpush1.msra.mxu0 0.0
      %4037 = vmatprep.subr.mxu0 0.0
      %4038 = vmatpush1.msra.mxu0 0.0
      %4039 = vmatprep.subr.mxu0 0.0
      %4040 = vmatpush1.msra.mxu0 0.0
      %4041 = vmatprep.subr.mxu0 0.0
      %4042 = vmatpush1.msra.mxu0 0.0
      %4043 = vmatprep.subr.mxu0 0.0
      %4044 = vmatpush1.msra.mxu0 0.0
      %4045 = vmatprep.subr.mxu0 0.0
      %4046 = vmatpush1.msra.mxu0 0.0
      %4047 = vmatprep.subr.mxu0 0.0
      %4048 = vmatpush1.msra.mxu0 0.0
      %4049 = vmatprep.mubr.f32.mxu0 0.0
      %4050 = vmatmul.mubr.f32.gmra.mrb[0].mxu0 %v3974
      %v4051 = vpop.f32.mrb[0].mxu0
      %v4052 = vadd.f32 %v3971, %v4051
      %v4053 = vpop.f32.mrb[0].mxu0
      %4054 = vmatprep.mubr.f32.mxu0 0.0
      %4055 = vmatmul.mubr.f32.gmra.mrb[0].mxu0 %v3977
      %v4056 = vpop.f32.mrb[0].mxu0
      %v4057 = vadd.f32 %v3971, %v4056
      %v4058 = vpop.f32.mrb[0].mxu0
      %4059 = vmatprep.mubr.f32.mxu0 0.0
      %4060 = vmatmul.mubr.f32.gmra.mrb[0].mxu0 %v3980
      %v4061 = vpop.f32.mrb[0].mxu0
      %v4062 = vadd.f32 %v3971, %v4061
      %v4063 = vpop.f32.mrb[0].mxu0
      %4064 = vmatprep.mubr.f32.mxu0 0.0
      %4065 = vmatmul.mubr.f32.gmra.mrb[0].mxu0 %v3983
      %v4066 = vpop.f32.mrb[0].mxu0
      %v4067 = vadd.f32 %v3971, %v4066
      %v4068 = vpop.f32.mrb[0].mxu0
      %4069 = vdwg.mxu0
      %v4070 = vadd.f32 %v4052, %v3635
      %v4071 = vadd.f32 %v4057, %v3636
      %v4072 = vadd.f32 %v4062, %v3637
      %v4073 = vadd.f32 %v4067, %v3638
      %v4074 = vadd.s32 %v2272, 32
      %v4075 = vadd.s32 %v2272, 40
      %v4076 = vadd.s32 %v2272, 48
      %v4077 = vadd.s32 %v2272, 56
      %v4078 = vsub.s32 %v4074, %v3311
      %v4079 = vsub.s32 %v4075, %v3311
      %v4080 = vsub.s32 %v4076, %v3311
      %v4081 = vsub.s32 %v4077, %v3311
      %vm4082 = vcmp.ge.s32.totalorder %v4078, 0
      %vm4083 = vcmp.ge.s32.totalorder %v4079, 0
      %vm4084 = vcmp.ge.s32.totalorder %v4080, 0
      %vm4085 = vcmp.ge.s32.totalorder %v4081, 0
      %vm4086 = vcmp.lt.s32.totalorder %v4078, 2
      %vm4087 = vcmp.lt.s32.totalorder %v4079, 2
      %vm4088 = vcmp.lt.s32.totalorder %v4080, 2
      %vm4089 = vcmp.lt.s32.totalorder %v4081, 2
      %vm4090 = vmand %vm4082, %vm4086
      %vm4091 = vmand %vm4083, %vm4087
      %vm4092 = vmand %vm4084, %vm4088
      %vm4093 = vmand %vm4085, %vm4089
      %v4094 = vsel %vm4090, 1, 0
      %v4095 = vsel %vm4091, 1, 0
      %v4096 = vsel %vm4092, 1, 0
      %v4097 = vsel %vm4093, 1, 0
      %v4098 = vcvt.s32.f32 %v4094
      %v4099 = vcvt.s32.f32 %v4095
      %v4100 = vcvt.s32.f32 %v4096
      %v4101 = vcvt.s32.f32 %v4097
      %v4102 = vsel %vm1317, %v3332, 0
      %v4104 = vsel %vm1317, %v3333, 0
      %v4106 = vsel %vm1317, %v3334, 0
      %v4108 = vsel %vm1317, %v3335, 0
      %v4111 = vsel %vm1317, %v4098, 0
      %v4114 = vsel %vm1317, %v4099, 0
      %v4117 = vsel %vm1317, %v4100, 0
      %v4120 = vsel %vm1317, %v4101, 0
      %4122 = vmatprep.subr.mxu0 0.0
      %4123 = vmatpush1.msra.mxu0 %v4070
      %4124 = vmatprep.subr.mxu0 0.0
      %4125 = vmatpush1.msra.mxu0 %v4071
      %4126 = vmatprep.subr.mxu0 0.0
      %4127 = vmatpush1.msra.mxu0 %v4072
      %4128 = vmatprep.subr.mxu0 0.0
      %4129 = vmatpush1.msra.mxu0 %v4073
      %4130 = vmatprep.subr.mxu0 0.0
      %4131 = vmatpush1.msra.mxu0 0.0
      %4132 = vmatprep.subr.mxu0 0.0
      %4133 = vmatpush1.msra.mxu0 0.0
      %4134 = vmatprep.subr.mxu0 0.0
      %4135 = vmatpush1.msra.mxu0 0.0
      %4136 = vmatprep.subr.mxu0 0.0
      %4137 = vmatpush1.msra.mxu0 0.0
      %4138 = vmatprep.subr.mxu0 0.0
      %4139 = vmatpush1.msra.mxu0 0.0
      %4140 = vmatprep.subr.mxu0 0.0
      %4141 = vmatpush1.msra.mxu0 0.0
      %4142 = vmatprep.subr.mxu0 0.0
      %4143 = vmatpush1.msra.mxu0 0.0
      %4144 = vmatprep.subr.mxu0 0.0
      %4145 = vmatpush1.msra.mxu0 0.0
      %4146 = vmatprep.subr.mxu0 0.0
      %4147 = vmatpush1.msra.mxu0 0.0
      %4148 = vmatprep.subr.mxu0 0.0
      %4149 = vmatpush1.msra.mxu0 0.0
      %4150 = vmatprep.subr.mxu0 0.0
      %4151 = vmatpush1.msra.mxu0 0.0
      %4152 = vmatprep.subr.mxu0 0.0
      %4153 = vmatpush1.msra.mxu0 0.0
      %4154 = vmatprep.subr.mxu0 0.0
      %4155 = vmatpush1.msra.mxu0 0.0
      %4156 = vmatprep.subr.mxu0 0.0
      %4157 = vmatpush1.msra.mxu0 0.0
      %4158 = vmatprep.subr.mxu0 0.0
      %4159 = vmatpush1.msra.mxu0 0.0
      %4160 = vmatprep.subr.mxu0 0.0
      %4161 = vmatpush1.msra.mxu0 0.0
      %4162 = vmatprep.subr.mxu0 0.0
      %4163 = vmatpush1.msra.mxu0 0.0
      %4164 = vmatprep.subr.mxu0 0.0
      %4165 = vmatpush1.msra.mxu0 0.0
      %4166 = vmatprep.subr.mxu0 0.0
      %4167 = vmatpush1.msra.mxu0 0.0
      %4168 = vmatprep.subr.mxu0 0.0
      %4169 = vmatpush1.msra.mxu0 0.0
      %4170 = vmatprep.subr.mxu0 0.0
      %4171 = vmatpush1.msra.mxu0 0.0
      %4172 = vmatprep.subr.mxu0 0.0
      %4173 = vmatpush1.msra.mxu0 0.0
      %4174 = vmatprep.subr.mxu0 0.0
      %4175 = vmatpush1.msra.mxu0 0.0
      %4176 = vmatprep.subr.mxu0 0.0
      %4177 = vmatpush1.msra.mxu0 0.0
      %4178 = vmatprep.subr.mxu0 0.0
      %4179 = vmatpush1.msra.mxu0 0.0
      %4180 = vmatprep.subr.mxu0 0.0
      %4181 = vmatpush1.msra.mxu0 0.0
      %4182 = vmatprep.subr.mxu0 0.0
      %4183 = vmatpush1.msra.mxu0 0.0
      %4184 = vmatprep.subr.mxu0 0.0
      %4185 = vmatpush1.msra.mxu0 0.0
      %4186 = vmatprep.mubr.f32.mxu0 0.0
      %4187 = vmatmul.mubr.f32.gmra.mrb[0].mxu0 %v4102
      %v4188 = vpop.f32.mrb[0].mxu0
      %v4189 = vadd.f32 0.0, %v4188
      %v4190 = vpop.f32.mrb[0].mxu0
      %4191 = vmatprep.mubr.f32.mxu0 0.0
      %4192 = vmatmul.mubr.f32.gmra.mrb[0].mxu0 %v4104
      %v4193 = vpop.f32.mrb[0].mxu0
      %v4194 = vadd.f32 0.0, %v4193
      %v4195 = vpop.f32.mrb[0].mxu0
      %4196 = vmatprep.mubr.f32.mxu0 0.0
      %4197 = vmatmul.mubr.f32.gmra.mrb[0].mxu0 %v4106
      %v4198 = vpop.f32.mrb[0].mxu0
      %v4199 = vadd.f32 0.0, %v4198
      %v4200 = vpop.f32.mrb[0].mxu0
      %4201 = vmatprep.mubr.f32.mxu0 0.0
      %4202 = vmatmul.mubr.f32.gmra.mrb[0].mxu0 %v4108
      %v4203 = vpop.f32.mrb[0].mxu0
      %v4204 = vadd.f32 0.0, %v4203
      %v4205 = vpop.f32.mrb[0].mxu0
      %4206 = vmatprep.mubr.f32.mxu0 0.0
      %4207 = vmatmul.mubr.f32.gmra.mrb[0].mxu0 %v4111
      %v4208 = vpop.f32.mrb[0].mxu0
      %v4209 = vadd.f32 0.0, %v4208
      %v4210 = vpop.f32.mrb[0].mxu0
      %4211 = vmatprep.mubr.f32.mxu0 0.0
      %4212 = vmatmul.mubr.f32.gmra.mrb[0].mxu0 %v4114
      %v4213 = vpop.f32.mrb[0].mxu0
      %v4214 = vadd.f32 0.0, %v4213
      %v4215 = vpop.f32.mrb[0].mxu0
      %4216 = vmatprep.mubr.f32.mxu0 0.0
      %4217 = vmatmul.mubr.f32.gmra.mrb[0].mxu0 %v4117
      %v4218 = vpop.f32.mrb[0].mxu0
      %v4219 = vadd.f32 0.0, %v4218
      %v4220 = vpop.f32.mrb[0].mxu0
      %4221 = vmatprep.mubr.f32.mxu0 0.0
      %4222 = vmatmul.mubr.f32.gmra.mrb[0].mxu0 %v4120
      %v4223 = vpop.f32.mrb[0].mxu0
      %v4224 = vadd.f32 0.0, %v4223
      %v4225 = vpop.f32.mrb[0].mxu0
      %4226 = vdwg.mxu0
      %4227 = vmatprep.subr.mxu0 0.0
      %4228 = vmatpush1.msra.mxu0 %v2933
      %4229 = vmatprep.subr.mxu0 0.0
      %4230 = vmatpush1.msra.mxu0 %v2934
      %4231 = vmatprep.subr.mxu0 0.0
      %4232 = vmatpush1.msra.mxu0 %v2935
      %4233 = vmatprep.subr.mxu0 0.0
      %4234 = vmatpush1.msra.mxu0 %v2936
      %4235 = vmatprep.subr.mxu0 0.0
      %4236 = vmatpush1.msra.mxu0 0.0
      %4237 = vmatprep.subr.mxu0 0.0
      %4238 = vmatpush1.msra.mxu0 0.0
      %4239 = vmatprep.subr.mxu0 0.0
      %4240 = vmatpush1.msra.mxu0 0.0
      %4241 = vmatprep.subr.mxu0 0.0
      %4242 = vmatpush1.msra.mxu0 0.0
      %4243 = vmatprep.subr.mxu0 0.0
      %4244 = vmatpush1.msra.mxu0 0.0
      %4245 = vmatprep.subr.mxu0 0.0
      %4246 = vmatpush1.msra.mxu0 0.0
      %4247 = vmatprep.subr.mxu0 0.0
      %4248 = vmatpush1.msra.mxu0 0.0
      %4249 = vmatprep.subr.mxu0 0.0
      %4250 = vmatpush1.msra.mxu0 0.0
      %4251 = vmatprep.subr.mxu0 0.0
      %4252 = vmatpush1.msra.mxu0 0.0
      %4253 = vmatprep.subr.mxu0 0.0
      %4254 = vmatpush1.msra.mxu0 0.0
      %4255 = vmatprep.subr.mxu0 0.0
      %4256 = vmatpush1.msra.mxu0 0.0
      %4257 = vmatprep.subr.mxu0 0.0
      %4258 = vmatpush1.msra.mxu0 0.0
      %4259 = vmatprep.subr.mxu0 0.0
      %4260 = vmatpush1.msra.mxu0 0.0
      %4261 = vmatprep.subr.mxu0 0.0
      %4262 = vmatpush1.msra.mxu0 0.0
      %4263 = vmatprep.subr.mxu0 0.0
      %4264 = vmatpush1.msra.mxu0 0.0
      %4265 = vmatprep.subr.mxu0 0.0
      %4266 = vmatpush1.msra.mxu0 0.0
      %4267 = vmatprep.subr.mxu0 0.0
      %4268 = vmatpush1.msra.mxu0 0.0
      %4269 = vmatprep.subr.mxu0 0.0
      %4270 = vmatpush1.msra.mxu0 0.0
      %4271 = vmatprep.subr.mxu0 0.0
      %4272 = vmatpush1.msra.mxu0 0.0
      %4273 = vmatprep.subr.mxu0 0.0
      %4274 = vmatpush1.msra.mxu0 0.0
      %4275 = vmatprep.subr.mxu0 0.0
      %4276 = vmatpush1.msra.mxu0 0.0
      %4277 = vmatprep.subr.mxu0 0.0
      %4278 = vmatpush1.msra.mxu0 0.0
      %4279 = vmatprep.subr.mxu0 0.0
      %4280 = vmatpush1.msra.mxu0 0.0
      %4281 = vmatprep.subr.mxu0 0.0
      %4282 = vmatpush1.msra.mxu0 0.0
      %4283 = vmatprep.subr.mxu0 0.0
      %4284 = vmatpush1.msra.mxu0 0.0
      %4285 = vmatprep.subr.mxu0 0.0
      %4286 = vmatpush1.msra.mxu0 0.0
      %4287 = vmatprep.subr.mxu0 0.0
      %4288 = vmatpush1.msra.mxu0 0.0
      %4289 = vmatprep.subr.mxu0 0.0
      %4290 = vmatpush1.msra.mxu0 0.0
      %4291 = vmatprep.mubr.f32.mxu0 0.0
      %4292 = vmatmul.mubr.f32.gmra.mrb[0].mxu0 %v4102
      %v4293 = vpop.f32.mrb[0].mxu0
      %v4294 = vadd.f32 0.0, %v4293
      %v4295 = vpop.f32.mrb[0].mxu0
      %4296 = vmatprep.mubr.f32.mxu0 0.0
      %4297 = vmatmul.mubr.f32.gmra.mrb[0].mxu0 %v4104
      %v4298 = vpop.f32.mrb[0].mxu0
      %v4299 = vadd.f32 0.0, %v4298
      %v4300 = vpop.f32.mrb[0].mxu0
      %4301 = vmatprep.mubr.f32.mxu0 0.0
      %4302 = vmatmul.mubr.f32.gmra.mrb[0].mxu0 %v4106
      %v4303 = vpop.f32.mrb[0].mxu0
      %v4304 = vadd.f32 0.0, %v4303
      %v4305 = vpop.f32.mrb[0].mxu0
      %4306 = vmatprep.mubr.f32.mxu0 0.0
      %4307 = vmatmul.mubr.f32.gmra.mrb[0].mxu0 %v4108
      %v4308 = vpop.f32.mrb[0].mxu0
      %v4309 = vadd.f32 0.0, %v4308
      %v4310 = vpop.f32.mrb[0].mxu0
      %4311 = vmatprep.mubr.f32.mxu0 0.0
      %4312 = vmatmul.mubr.f32.gmra.mrb[0].mxu0 %v4111
      %v4313 = vpop.f32.mrb[0].mxu0
      %v4314 = vadd.f32 0.0, %v4313
      %v4315 = vpop.f32.mrb[0].mxu0
      %4316 = vmatprep.mubr.f32.mxu0 0.0
      %4317 = vmatmul.mubr.f32.gmra.mrb[0].mxu0 %v4114
      %v4318 = vpop.f32.mrb[0].mxu0
      %v4319 = vadd.f32 0.0, %v4318
      %v4320 = vpop.f32.mrb[0].mxu0
      %4321 = vmatprep.mubr.f32.mxu0 0.0
      %4322 = vmatmul.mubr.f32.gmra.mrb[0].mxu0 %v4117
      %v4323 = vpop.f32.mrb[0].mxu0
      %v4324 = vadd.f32 0.0, %v4323
      %v4325 = vpop.f32.mrb[0].mxu0
      %4326 = vmatprep.mubr.f32.mxu0 0.0
      %4327 = vmatmul.mubr.f32.gmra.mrb[0].mxu0 %v4120
      %v4328 = vpop.f32.mrb[0].mxu0
      %v4329 = vadd.f32 0.0, %v4328
      %v4330 = vpop.f32.mrb[0].mxu0
      %4331 = vdwg.mxu0
      %v4332 = vld [vmem:[%s79] sm:$0x1]
      %v4334 = vlaneseq
      %v4335 = vshrl.u32 %v4334, 7
      %v4336 = vsub.s32 0, %v4335
      %v4337 = vrot.slane %v4332, %v4336
      %v4339 = vadd.f32 %v4337, 0.0
      %v4340 = vld [vmem:[%s77] sm:$0xff]
      %v4341 = vld [vmem:[%s77 + $0x8] sm:$0xff]
      %v4342 = vld [vmem:[%s77 + $0x10] sm:$0xff]
      %v4343 = vld [vmem:[%s77 + $0x18] sm:$0xff]
      %v4345 = vsel %vm1317, %v4189, 0
      %v4348 = vsel %vm1317, %v4194, 0
      %v4351 = vsel %vm1317, %v4199, 0
      %v4354 = vsel %vm1317, %v4204, 0
      %v4357 = vsel %vm1317, %v4209, 0
      %v4360 = vsel %vm1317, %v4214, 0
      %v4363 = vsel %vm1317, %v4219, 0
      %v4366 = vsel %vm1317, %v4224, 0
      %4368 = vmatprep.subr.mxu0 0.0
      %4369 = vmatpush1.msra.mxu0 %v4340
      %4370 = vmatprep.subr.mxu0 0.0
      %4371 = vmatpush1.msra.mxu0 %v4341
      %4372 = vmatprep.subr.mxu0 0.0
      %4373 = vmatpush1.msra.mxu0 %v4342
      %4374 = vmatprep.subr.mxu0 0.0
      %4375 = vmatpush1.msra.mxu0 %v4343
      %4376 = vmatprep.subr.mxu0 0.0
      %4377 = vmatpush1.msra.mxu0 0.0
      %4378 = vmatprep.subr.mxu0 0.0
      %4379 = vmatpush1.msra.mxu0 0.0
      %4380 = vmatprep.subr.mxu0 0.0
      %4381 = vmatpush1.msra.mxu0 0.0
      %4382 = vmatprep.subr.mxu0 0.0
      %4383 = vmatpush1.msra.mxu0 0.0
      %4384 = vmatprep.subr.mxu0 0.0
      %4385 = vmatpush1.msra.mxu0 0.0
      %4386 = vmatprep.subr.mxu0 0.0
      %4387 = vmatpush1.msra.mxu0 0.0
      %4388 = vmatprep.subr.mxu0 0.0
      %4389 = vmatpush1.msra.mxu0 0.0
      %4390 = vmatprep.subr.mxu0 0.0
      %4391 = vmatpush1.msra.mxu0 0.0
      %4392 = vmatprep.subr.mxu0 0.0
      %4393 = vmatpush1.msra.mxu0 0.0
      %4394 = vmatprep.subr.mxu0 0.0
      %4395 = vmatpush1.msra.mxu0 0.0
      %4396 = vmatprep.subr.mxu0 0.0
      %4397 = vmatpush1.msra.mxu0 0.0
      %4398 = vmatprep.subr.mxu0 0.0
      %4399 = vmatpush1.msra.mxu0 0.0
      %4400 = vmatprep.subr.mxu0 0.0
      %4401 = vmatpush1.msra.mxu0 0.0
      %4402 = vmatprep.subr.mxu0 0.0
      %4403 = vmatpush1.msra.mxu0 0.0
      %4404 = vmatprep.subr.mxu0 0.0
      %4405 = vmatpush1.msra.mxu0 0.0
      %4406 = vmatprep.subr.mxu0 0.0
      %4407 = vmatpush1.msra.mxu0 0.0
      %4408 = vmatprep.subr.mxu0 0.0
      %4409 = vmatpush1.msra.mxu0 0.0
      %4410 = vmatprep.subr.mxu0 0.0
      %4411 = vmatpush1.msra.mxu0 0.0
      %4412 = vmatprep.subr.mxu0 0.0
      %4413 = vmatpush1.msra.mxu0 0.0
      %4414 = vmatprep.subr.mxu0 0.0
      %4415 = vmatpush1.msra.mxu0 0.0
      %4416 = vmatprep.subr.mxu0 0.0
      %4417 = vmatpush1.msra.mxu0 0.0
      %4418 = vmatprep.subr.mxu0 0.0
      %4419 = vmatpush1.msra.mxu0 0.0
      %4420 = vmatprep.subr.mxu0 0.0
      %4421 = vmatpush1.msra.mxu0 0.0
      %4422 = vmatprep.subr.mxu0 0.0
      %4423 = vmatpush1.msra.mxu0 0.0
      %4424 = vmatprep.subr.mxu0 0.0
      %4425 = vmatpush1.msra.mxu0 0.0
      %4426 = vmatprep.subr.mxu0 0.0
      %4427 = vmatpush1.msra.mxu0 0.0
      %4428 = vmatprep.subr.mxu0 0.0
      %4429 = vmatpush1.msra.mxu0 0.0
      %4430 = vmatprep.subr.mxu0 0.0
      %4431 = vmatpush1.msra.mxu0 0.0
      %4432 = vmatprep.mubr.f32.mxu0 0.0
      %4433 = vmatmul.mubr.f32.gmra.mrb[0].mxu0 %v4345
      %v4434 = vpop.f32.mrb[0].mxu0
      %v4435 = vadd.f32 0.0, %v4434
      %v4436 = vpop.f32.mrb[0].mxu0
      %4437 = vmatprep.mubr.f32.mxu0 0.0
      %4438 = vmatmul.mubr.f32.gmra.mrb[0].mxu0 %v4348
      %v4439 = vpop.f32.mrb[0].mxu0
      %v4440 = vadd.f32 0.0, %v4439
      %v4441 = vpop.f32.mrb[0].mxu0
      %4442 = vmatprep.mubr.f32.mxu0 0.0
      %4443 = vmatmul.mubr.f32.gmra.mrb[0].mxu0 %v4351
      %v4444 = vpop.f32.mrb[0].mxu0
      %v4445 = vadd.f32 0.0, %v4444
      %v4446 = vpop.f32.mrb[0].mxu0
      %4447 = vmatprep.mubr.f32.mxu0 0.0
      %4448 = vmatmul.mubr.f32.gmra.mrb[0].mxu0 %v4354
      %v4449 = vpop.f32.mrb[0].mxu0
      %v4450 = vadd.f32 0.0, %v4449
      %v4451 = vpop.f32.mrb[0].mxu0
      %4452 = vmatprep.mubr.f32.mxu0 0.0
      %4453 = vmatmul.mubr.f32.gmra.mrb[0].mxu0 %v4357
      %v4454 = vpop.f32.mrb[0].mxu0
      %v4455 = vadd.f32 0.0, %v4454
      %v4456 = vpop.f32.mrb[0].mxu0
      %4457 = vmatprep.mubr.f32.mxu0 0.0
      %4458 = vmatmul.mubr.f32.gmra.mrb[0].mxu0 %v4360
      %v4459 = vpop.f32.mrb[0].mxu0
      %v4460 = vadd.f32 0.0, %v4459
      %v4461 = vpop.f32.mrb[0].mxu0
      %4462 = vmatprep.mubr.f32.mxu0 0.0
      %4463 = vmatmul.mubr.f32.gmra.mrb[0].mxu0 %v4363
      %v4464 = vpop.f32.mrb[0].mxu0
      %v4465 = vadd.f32 0.0, %v4464
      %v4466 = vpop.f32.mrb[0].mxu0
      %4467 = vmatprep.mubr.f32.mxu0 0.0
      %4468 = vmatmul.mubr.f32.gmra.mrb[0].mxu0 %v4366
      %v4469 = vpop.f32.mrb[0].mxu0
      %v4470 = vadd.f32 0.0, %v4469
      %v4471 = vpop.f32.mrb[0].mxu0
      %4472 = vdwg.mxu0
      %v4473 = vadd.f32 %v4339, %v4435
      %v4474 = vadd.f32 %v4339, %v4440
      %v4475 = vadd.f32 %v4339, %v4445
      %v4476 = vadd.f32 %v4339, %v4450
      %v4477 = vadd.f32 %v4339, %v4455
      %v4478 = vadd.f32 %v4339, %v4460
      %v4479 = vadd.f32 %v4339, %v4465
      %v4480 = vadd.f32 %v4339, %v4470
      %v4481 = vld [vmem:[%s77 + $0x20] sm:$0xff]
      %v4482 = vld [vmem:[%s77 + $0x28] sm:$0xff]
      %v4483 = vld [vmem:[%s77 + $0x30] sm:$0xff]
      %v4484 = vld [vmem:[%s77 + $0x38] sm:$0xff]
      %v4486 = vsel %vm1317, %v4294, 0
      %v4489 = vsel %vm1317, %v4299, 0
      %v4492 = vsel %vm1317, %v4304, 0
      %v4495 = vsel %vm1317, %v4309, 0
      %v4498 = vsel %vm1317, %v4314, 0
      %v4501 = vsel %vm1317, %v4319, 0
      %v4504 = vsel %vm1317, %v4324, 0
      %v4507 = vsel %vm1317, %v4329, 0
      %4509 = vmatprep.subr.mxu0 0.0
      %4510 = vmatpush1.msra.mxu0 %v4481
      %4511 = vmatprep.subr.mxu0 0.0
      %4512 = vmatpush1.msra.mxu0 %v4482
      %4513 = vmatprep.subr.mxu0 0.0
      %4514 = vmatpush1.msra.mxu0 %v4483
      %4515 = vmatprep.subr.mxu0 0.0
      %4516 = vmatpush1.msra.mxu0 %v4484
      %4517 = vmatprep.subr.mxu0 0.0
      %4518 = vmatpush1.msra.mxu0 0.0
      %4519 = vmatprep.subr.mxu0 0.0
      %4520 = vmatpush1.msra.mxu0 0.0
      %4521 = vmatprep.subr.mxu0 0.0
      %4522 = vmatpush1.msra.mxu0 0.0
      %4523 = vmatprep.subr.mxu0 0.0
      %4524 = vmatpush1.msra.mxu0 0.0
      %4525 = vmatprep.subr.mxu0 0.0
      %4526 = vmatpush1.msra.mxu0 0.0
      %4527 = vmatprep.subr.mxu0 0.0
      %4528 = vmatpush1.msra.mxu0 0.0
      %4529 = vmatprep.subr.mxu0 0.0
      %4530 = vmatpush1.msra.mxu0 0.0
      %4531 = vmatprep.subr.mxu0 0.0
      %4532 = vmatpush1.msra.mxu0 0.0
      %4533 = vmatprep.subr.mxu0 0.0
      %4534 = vmatpush1.msra.mxu0 0.0
      %4535 = vmatprep.subr.mxu0 0.0
      %4536 = vmatpush1.msra.mxu0 0.0
      %4537 = vmatprep.subr.mxu0 0.0
      %4538 = vmatpush1.msra.mxu0 0.0
      %4539 = vmatprep.subr.mxu0 0.0
      %4540 = vmatpush1.msra.mxu0 0.0
      %4541 = vmatprep.subr.mxu0 0.0
      %4542 = vmatpush1.msra.mxu0 0.0
      %4543 = vmatprep.subr.mxu0 0.0
      %4544 = vmatpush1.msra.mxu0 0.0
      %4545 = vmatprep.subr.mxu0 0.0
      %4546 = vmatpush1.msra.mxu0 0.0
      %4547 = vmatprep.subr.mxu0 0.0
      %4548 = vmatpush1.msra.mxu0 0.0
      %4549 = vmatprep.subr.mxu0 0.0
      %4550 = vmatpush1.msra.mxu0 0.0
      %4551 = vmatprep.subr.mxu0 0.0
      %4552 = vmatpush1.msra.mxu0 0.0
      %4553 = vmatprep.subr.mxu0 0.0
      %4554 = vmatpush1.msra.mxu0 0.0
      %4555 = vmatprep.subr.mxu0 0.0
      %4556 = vmatpush1.msra.mxu0 0.0
      %4557 = vmatprep.subr.mxu0 0.0
      %4558 = vmatpush1.msra.mxu0 0.0
      %4559 = vmatprep.subr.mxu0 0.0
      %4560 = vmatpush1.msra.mxu0 0.0
      %4561 = vmatprep.subr.mxu0 0.0
      %4562 = vmatpush1.msra.mxu0 0.0
      %4563 = vmatprep.subr.mxu0 0.0
      %4564 = vmatpush1.msra.mxu0 0.0
      %4565 = vmatprep.subr.mxu0 0.0
      %4566 = vmatpush1.msra.mxu0 0.0
      %4567 = vmatprep.subr.mxu0 0.0
      %4568 = vmatpush1.msra.mxu0 0.0
      %4569 = vmatprep.subr.mxu0 0.0
      %4570 = vmatpush1.msra.mxu0 0.0
      %4571 = vmatprep.subr.mxu0 0.0
      %4572 = vmatpush1.msra.mxu0 0.0
      %4573 = vmatprep.mubr.f32.mxu0 0.0
      %4574 = vmatmul.mubr.f32.gmra.mrb[0].mxu0 %v4486
      %v4575 = vpop.f32.mrb[0].mxu0
      %v4576 = vadd.f32 0.0, %v4575
      %v4577 = vpop.f32.mrb[0].mxu0
      %4578 = vmatprep.mubr.f32.mxu0 0.0
      %4579 = vmatmul.mubr.f32.gmra.mrb[0].mxu0 %v4489
      %v4580 = vpop.f32.mrb[0].mxu0
      %v4581 = vadd.f32 0.0, %v4580
      %v4582 = vpop.f32.mrb[0].mxu0
      %4583 = vmatprep.mubr.f32.mxu0 0.0
      %4584 = vmatmul.mubr.f32.gmra.mrb[0].mxu0 %v4492
      %v4585 = vpop.f32.mrb[0].mxu0
      %v4586 = vadd.f32 0.0, %v4585
      %v4587 = vpop.f32.mrb[0].mxu0
      %4588 = vmatprep.mubr.f32.mxu0 0.0
      %4589 = vmatmul.mubr.f32.gmra.mrb[0].mxu0 %v4495
      %v4590 = vpop.f32.mrb[0].mxu0
      %v4591 = vadd.f32 0.0, %v4590
      %v4592 = vpop.f32.mrb[0].mxu0
      %4593 = vmatprep.mubr.f32.mxu0 0.0
      %4594 = vmatmul.mubr.f32.gmra.mrb[0].mxu0 %v4498
      %v4595 = vpop.f32.mrb[0].mxu0
      %v4596 = vadd.f32 0.0, %v4595
      %v4597 = vpop.f32.mrb[0].mxu0
      %4598 = vmatprep.mubr.f32.mxu0 0.0
      %4599 = vmatmul.mubr.f32.gmra.mrb[0].mxu0 %v4501
      %v4600 = vpop.f32.mrb[0].mxu0
      %v4601 = vadd.f32 0.0, %v4600
      %v4602 = vpop.f32.mrb[0].mxu0
      %4603 = vmatprep.mubr.f32.mxu0 0.0
      %4604 = vmatmul.mubr.f32.gmra.mrb[0].mxu0 %v4504
      %v4605 = vpop.f32.mrb[0].mxu0
      %v4606 = vadd.f32 0.0, %v4605
      %v4607 = vpop.f32.mrb[0].mxu0
      %4608 = vmatprep.mubr.f32.mxu0 0.0
      %4609 = vmatmul.mubr.f32.gmra.mrb[0].mxu0 %v4507
      %v4610 = vpop.f32.mrb[0].mxu0
      %v4611 = vadd.f32 0.0, %v4610
      %v4612 = vpop.f32.mrb[0].mxu0
      %4613 = vdwg.mxu0
      %v4614 = vadd.f32 %v4473, %v4576
      %v4615 = vadd.f32 %v4474, %v4581
      %v4616 = vadd.f32 %v4475, %v4586
      %v4617 = vadd.f32 %v4476, %v4591
      %v4618 = vadd.f32 %v4477, %v4596
      %v4619 = vadd.f32 %v4478, %v4601
      %v4620 = vadd.f32 %v4479, %v4606
      %v4621 = vadd.f32 %v4480, %v4611
      %4622 = vst.msk [vmem:[#allocation2] sm:$0x1] %vm3639, 0.0
      %4623 = vst.msk [vmem:[#allocation2 + $0x41] sm:$0x1] %vm3639, 0.0
      %4624 = vst.msk [vmem:[#allocation2 + $0x1] sm:$0xff] %vm1317, %v4189
      %4625 = vst.msk [vmem:[#allocation2 + $0x9] sm:$0xff] %vm1317, %v4194
      %4626 = vst.msk [vmem:[#allocation2 + $0x11] sm:$0xff] %vm1317, %v4199
      %4627 = vst.msk [vmem:[#allocation2 + $0x19] sm:$0xff] %vm1317, %v4204
      %4628 = vst.msk [vmem:[#allocation2 + $0x21] sm:$0xff] %vm1317, %v4209
      %4629 = vst.msk [vmem:[#allocation2 + $0x29] sm:$0xff] %vm1317, %v4214
      %4630 = vst.msk [vmem:[#allocation2 + $0x31] sm:$0xff] %vm1317, %v4219
      %4631 = vst.msk [vmem:[#allocation2 + $0x39] sm:$0xff] %vm1317, %v4224
      %4632 = vrot.lane.b32.xlu0 %v4294, 32
      %v4633 = vpop.permute.xlu0 %4632
      %4634 = vrot.lane.b32.xlu0 %v4299, 32
      %v4635 = vpop.permute.xlu0 %4634
      %4636 = vrot.lane.b32.xlu0 %v4304, 32
      %v4637 = vpop.permute.xlu0 %4636
      %4638 = vrot.lane.b32.xlu0 %v4309, 32
      %v4639 = vpop.permute.xlu0 %4638
      %4640 = vrot.lane.b32.xlu0 %v4314, 32
      %v4641 = vpop.permute.xlu0 %4640
      %4642 = vrot.lane.b32.xlu0 %v4319, 32
      %v4643 = vpop.permute.xlu0 %4642
      %4644 = vrot.lane.b32.xlu0 %v4324, 32
      %v4645 = vpop.permute.xlu0 %4644
      %4646 = vrot.lane.b32.xlu0 %v4329, 32
      %v4647 = vpop.permute.xlu0 %4646
      %4656 = vst.msk [vmem:[#allocation2 + $0x1] sm:$0xff] %vm2782, %v4633
      %4657 = vst.msk [vmem:[#allocation2 + $0x9] sm:$0xff] %vm2782, %v4635
      %4658 = vst.msk [vmem:[#allocation2 + $0x11] sm:$0xff] %vm2782, %v4637
      %4659 = vst.msk [vmem:[#allocation2 + $0x19] sm:$0xff] %vm2782, %v4639
      %4660 = vst.msk [vmem:[#allocation2 + $0x21] sm:$0xff] %vm2782, %v4641
      %4661 = vst.msk [vmem:[#allocation2 + $0x29] sm:$0xff] %vm2782, %v4643
      %4662 = vst.msk [vmem:[#allocation2 + $0x31] sm:$0xff] %vm2782, %v4645
      %4663 = vst.msk [vmem:[#allocation2 + $0x39] sm:$0xff] %vm2782, %v4647
      %v4664 = vld [vmem:[#allocation2] sm:$0xff]
      %v4665 = vld [vmem:[#allocation2 + $0x8] sm:$0xff]
      %v4666 = vld [vmem:[#allocation2 + $0x10] sm:$0xff]
      %v4667 = vld [vmem:[#allocation2 + $0x18] sm:$0xff]
      %v4668 = vld [vmem:[#allocation2 + $0x20] sm:$0xff]
      %v4669 = vld [vmem:[#allocation2 + $0x28] sm:$0xff]
      %v4670 = vld [vmem:[#allocation2 + $0x30] sm:$0xff]
      %v4671 = vld [vmem:[#allocation2 + $0x38] sm:$0xff]
      %4672 = vst.msk [vmem:[#allocation3] sm:$0xff] %vm1570, %v4664
      %4673 = vst.msk [vmem:[#allocation3 + $0x10] sm:$0xff] %vm1570, %v4665
      %4674 = vst.msk [vmem:[#allocation3 + $0x20] sm:$0xff] %vm1570, %v4666
      %4675 = vst.msk [vmem:[#allocation3 + $0x30] sm:$0xff] %vm1570, %v4667
      %4676 = vst.msk [vmem:[#allocation3 + $0x40] sm:$0xff] %vm1570, %v4668
      %4677 = vst.msk [vmem:[#allocation3 + $0x50] sm:$0xff] %vm1570, %v4669
      %4678 = vst.msk [vmem:[#allocation3 + $0x60] sm:$0xff] %vm1570, %v4670
      %4679 = vst.msk [vmem:[#allocation3 + $0x70] sm:$0xff] %vm1570, %v4671
      %v4680 = vld [vmem:[#allocation2 + $0x1] sm:$0xff]
      %v4681 = vld [vmem:[#allocation2 + $0x9] sm:$0xff]
      %v4682 = vld [vmem:[#allocation2 + $0x11] sm:$0xff]
      %v4683 = vld [vmem:[#allocation2 + $0x19] sm:$0xff]
      %v4684 = vld [vmem:[#allocation2 + $0x21] sm:$0xff]
      %v4685 = vld [vmem:[#allocation2 + $0x29] sm:$0xff]
      %v4686 = vld [vmem:[#allocation2 + $0x31] sm:$0xff]
      %v4687 = vld [vmem:[#allocation2 + $0x39] sm:$0xff]
      %4696 = vrot.lane.b32.xlu0 %v4680, 64
      %v4697 = vpop.permute.xlu0 %4696
      %4698 = vrot.lane.b32.xlu0 %v4681, 64
      %v4699 = vpop.permute.xlu0 %4698
      %4700 = vrot.lane.b32.xlu0 %v4682, 64
      %v4701 = vpop.permute.xlu0 %4700
      %4702 = vrot.lane.b32.xlu0 %v4683, 64
      %v4703 = vpop.permute.xlu0 %4702
      %4704 = vrot.lane.b32.xlu0 %v4684, 64
      %v4705 = vpop.permute.xlu0 %4704
      %4706 = vrot.lane.b32.xlu0 %v4685, 64
      %v4707 = vpop.permute.xlu0 %4706
      %4708 = vrot.lane.b32.xlu0 %v4686, 64
      %v4709 = vpop.permute.xlu0 %4708
      %4710 = vrot.lane.b32.xlu0 %v4687, 64
      %v4711 = vpop.permute.xlu0 %4710
      %4720 = vst.msk [vmem:[#allocation3] sm:$0xff] %vm3690, %v4697
      %4721 = vst.msk [vmem:[#allocation3 + $0x10] sm:$0xff] %vm3690, %v4699
      %4722 = vst.msk [vmem:[#allocation3 + $0x20] sm:$0xff] %vm3690, %v4701
      %4723 = vst.msk [vmem:[#allocation3 + $0x30] sm:$0xff] %vm3690, %v4703
      %4724 = vst.msk [vmem:[#allocation3 + $0x40] sm:$0xff] %vm3690, %v4705
      %4725 = vst.msk [vmem:[#allocation3 + $0x50] sm:$0xff] %vm3690, %v4707
      %4726 = vst.msk [vmem:[#allocation3 + $0x60] sm:$0xff] %vm3690, %v4709
      %4727 = vst.msk [vmem:[#allocation3 + $0x70] sm:$0xff] %vm3690, %v4711
      %v4728 = vld [vmem:[#allocation2 + $0x2] sm:$0xff]
      %v4729 = vld [vmem:[#allocation2 + $0xa] sm:$0xff]
      %v4730 = vld [vmem:[#allocation2 + $0x12] sm:$0xff]
      %v4731 = vld [vmem:[#allocation2 + $0x1a] sm:$0xff]
      %v4732 = vld [vmem:[#allocation2 + $0x22] sm:$0xff]
      %v4733 = vld [vmem:[#allocation2 + $0x2a] sm:$0xff]
      %v4734 = vld [vmem:[#allocation2 + $0x32] sm:$0xff]
      %v4735 = vld [vmem:[#allocation2 + $0x3a] sm:$0xff]
      %4736 = vst.msk [vmem:[#allocation3 + $0x8] sm:$0xff] %vm1570, %v4728
      %4737 = vst.msk [vmem:[#allocation3 + $0x18] sm:$0xff] %vm1570, %v4729
      %4738 = vst.msk [vmem:[#allocation3 + $0x28] sm:$0xff] %vm1570, %v4730
      %4739 = vst.msk [vmem:[#allocation3 + $0x38] sm:$0xff] %vm1570, %v4731
      %4740 = vst.msk [vmem:[#allocation3 + $0x48] sm:$0xff] %vm1570, %v4732
      %4741 = vst.msk [vmem:[#allocation3 + $0x58] sm:$0xff] %vm1570, %v4733
      %4742 = vst.msk [vmem:[#allocation3 + $0x68] sm:$0xff] %vm1570, %v4734
      %4743 = vst.msk [vmem:[#allocation3 + $0x78] sm:$0xff] %vm1570, %v4735
      %v4744 = vld [vmem:[#allocation3] sm:$0xff]
      %v4745 = vld [vmem:[#allocation3 + $0x8] sm:$0xff]
      %v4746 = vld [vmem:[#allocation3 + $0x10] sm:$0xff]
      %v4747 = vld [vmem:[#allocation3 + $0x18] sm:$0xff]
      %v4748 = vld [vmem:[#allocation3 + $0x20] sm:$0xff]
      %v4749 = vld [vmem:[#allocation3 + $0x28] sm:$0xff]
      %v4750 = vld [vmem:[#allocation3 + $0x30] sm:$0xff]
      %v4751 = vld [vmem:[#allocation3 + $0x38] sm:$0xff]
      %v4752 = vld [vmem:[#allocation3 + $0x40] sm:$0xff]
      %v4753 = vld [vmem:[#allocation3 + $0x48] sm:$0xff]
      %v4754 = vld [vmem:[#allocation3 + $0x50] sm:$0xff]
      %v4755 = vld [vmem:[#allocation3 + $0x58] sm:$0xff]
      %v4756 = vld [vmem:[#allocation3 + $0x60] sm:$0xff]
      %v4757 = vld [vmem:[#allocation3 + $0x68] sm:$0xff]
      %v4758 = vld [vmem:[#allocation3 + $0x70] sm:$0xff]
      %v4759 = vld [vmem:[#allocation3 + $0x78] sm:$0xff]
      %v4760 = vld [vmem:[%s69] sm:$0xff]
      %v4761 = vld [vmem:[%s69 + $0x8] sm:$0xff]
      %v4762 = vld [vmem:[%s69 + $0x10] sm:$0xff]
      %v4763 = vld [vmem:[%s69 + $0x18] sm:$0xff]
      %v4764 = vld [vmem:[%s69 + $0x20] sm:$0xff]
      %v4765 = vld [vmem:[%s69 + $0x28] sm:$0xff]
      %v4766 = vld [vmem:[%s69 + $0x30] sm:$0xff]
      %v4767 = vld [vmem:[%s69 + $0x38] sm:$0xff]
      %v4768 = vld [vmem:[%s69 + $0x40] sm:$0xff]
      %v4769 = vld [vmem:[%s69 + $0x48] sm:$0xff]
      %v4770 = vld [vmem:[%s69 + $0x50] sm:$0xff]
      %v4771 = vld [vmem:[%s69 + $0x58] sm:$0xff]
      %v4772 = vld [vmem:[%s69 + $0x60] sm:$0xff]
      %v4773 = vld [vmem:[%s69 + $0x68] sm:$0xff]
      %v4774 = vld [vmem:[%s69 + $0x70] sm:$0xff]
      %v4775 = vld [vmem:[%s69 + $0x78] sm:$0xff]
      %v4776 = vld [vmem:[%s69 + $0x80] sm:$0xff]
      %v4777 = vld [vmem:[%s69 + $0x88] sm:$0xff]
      %v4778 = vld [vmem:[%s69 + $0x90] sm:$0xff]
      %v4779 = vld [vmem:[%s69 + $0x98] sm:$0xff]
      %v4780 = vld [vmem:[%s69 + $0xa0] sm:$0xff]
      %v4781 = vld [vmem:[%s69 + $0xa8] sm:$0xff]
      %v4782 = vld [vmem:[%s69 + $0xb0] sm:$0xff]
      %v4783 = vld [vmem:[%s69 + $0xb8] sm:$0xff]
      %v4784 = vld [vmem:[%s71] sm:$0x1]
      %v4786 = vlaneseq
      %v4787 = vshrl.u32 %v4786, 7
      %v4788 = vsub.s32 0, %v4787
      %v4789 = vrot.slane %v4784, %v4788
      %v4792 = vsel %vm1570, %v4745, 0
      %v4795 = vsel %vm1570, %v4747, 0
      %v4798 = vsel %vm1570, %v4749, 0
      %v4801 = vsel %vm1570, %v4751, 0
      %v4804 = vsel %vm1570, %v4753, 0
      %v4807 = vsel %vm1570, %v4755, 0
      %v4810 = vsel %vm1570, %v4757, 0
      %v4813 = vsel %vm1570, %v4759, 0
      %4815 = vmatprep.subr.mxu0 0.0
      %4816 = vmatpush1.msra.mxu0 %v4760
      %4817 = vmatprep.subr.mxu0 0.0
      %4818 = vmatpush1.msra.mxu0 %v4761
      %4819 = vmatprep.subr.mxu0 0.0
      %4820 = vmatpush1.msra.mxu0 %v4762
      %4821 = vmatprep.subr.mxu0 0.0
      %4822 = vmatpush1.msra.mxu0 %v4763
      %4823 = vmatprep.subr.mxu0 0.0
      %4824 = vmatpush1.msra.mxu0 %v4764
      %4825 = vmatprep.subr.mxu0 0.0
      %4826 = vmatpush1.msra.mxu0 %v4765
      %4827 = vmatprep.subr.mxu0 0.0
      %4828 = vmatpush1.msra.mxu0 %v4766
      %4829 = vmatprep.subr.mxu0 0.0
      %4830 = vmatpush1.msra.mxu0 %v4767
      %4831 = vmatprep.subr.mxu0 0.0
      %4832 = vmatpush1.msra.mxu0 %v4768
      %4833 = vmatprep.subr.mxu0 0.0
      %4834 = vmatpush1.msra.mxu0 %v4769
      %4835 = vmatprep.subr.mxu0 0.0
      %4836 = vmatpush1.msra.mxu0 %v4770
      %4837 = vmatprep.subr.mxu0 0.0
      %4838 = vmatpush1.msra.mxu0 %v4771
      %4839 = vmatprep.subr.mxu0 0.0
      %4840 = vmatpush1.msra.mxu0 %v4772
      %4841 = vmatprep.subr.mxu0 0.0
      %4842 = vmatpush1.msra.mxu0 %v4773
      %4843 = vmatprep.subr.mxu0 0.0
      %4844 = vmatpush1.msra.mxu0 %v4774
      %4845 = vmatprep.subr.mxu0 0.0
      %4846 = vmatpush1.msra.mxu0 %v4775
      %4847 = vmatprep.subr.mxu0 0.0
      %4848 = vmatpush1.msra.mxu0 %v4776
      %4849 = vmatprep.subr.mxu0 0.0
      %4850 = vmatpush1.msra.mxu0 %v4777
      %4851 = vmatprep.subr.mxu0 0.0
      %4852 = vmatpush1.msra.mxu0 %v4778
      %4853 = vmatprep.subr.mxu0 0.0
      %4854 = vmatpush1.msra.mxu0 %v4779
      %4855 = vmatprep.subr.mxu0 0.0
      %4856 = vmatpush1.msra.mxu0 %v4780
      %4857 = vmatprep.subr.mxu0 0.0
      %4858 = vmatpush1.msra.mxu0 %v4781
      %4859 = vmatprep.subr.mxu0 0.0
      %4860 = vmatpush1.msra.mxu0 %v4782
      %4861 = vmatprep.subr.mxu0 0.0
      %4862 = vmatpush1.msra.mxu0 %v4783
      %4863 = vmatprep.subr.mxu0 0.0
      %4864 = vmatpush1.msra.mxu0 0.0
      %4865 = vmatprep.subr.mxu0 0.0
      %4866 = vmatpush1.msra.mxu0 0.0
      %4867 = vmatprep.subr.mxu0 0.0
      %4868 = vmatpush1.msra.mxu0 0.0
      %4869 = vmatprep.subr.mxu0 0.0
      %4870 = vmatpush1.msra.mxu0 0.0
      %4871 = vmatprep.subr.mxu0 0.0
      %4872 = vmatpush1.msra.mxu0 0.0
      %4873 = vmatprep.subr.mxu0 0.0
      %4874 = vmatpush1.msra.mxu0 0.0
      %4875 = vmatprep.subr.mxu0 0.0
      %4876 = vmatpush1.msra.mxu0 0.0
      %4877 = vmatprep.subr.mxu0 0.0
      %4878 = vmatpush1.msra.mxu0 0.0
      %4879 = vmatprep.mubr.f32.mxu0 %v4792
      %4880 = vmatmul.mubr.f32.gmra.mrb[0].mxu0 %v4744
      %v4881 = vpop.f32.mrb[0].mxu0
      %v4882 = vadd.f32 %v4789, %v4881
      %v4883 = vpop.f32.mrb[0].mxu0
      %4884 = vmatprep.mubr.f32.mxu0 %v4795
      %4885 = vmatmul.mubr.f32.gmra.mrb[0].mxu0 %v4746
      %v4886 = vpop.f32.mrb[0].mxu0
      %v4887 = vadd.f32 %v4789, %v4886
      %v4888 = vpop.f32.mrb[0].mxu0
      %4889 = vmatprep.mubr.f32.mxu0 %v4798
      %4890 = vmatmul.mubr.f32.gmra.mrb[0].mxu0 %v4748
      %v4891 = vpop.f32.mrb[0].mxu0
      %v4892 = vadd.f32 %v4789, %v4891
      %v4893 = vpop.f32.mrb[0].mxu0
      %4894 = vmatprep.mubr.f32.mxu0 %v4801
      %4895 = vmatmul.mubr.f32.gmra.mrb[0].mxu0 %v4750
      %v4896 = vpop.f32.mrb[0].mxu0
      %v4897 = vadd.f32 %v4789, %v4896
      %v4898 = vpop.f32.mrb[0].mxu0
      %4899 = vmatprep.mubr.f32.mxu0 %v4804
      %4900 = vmatmul.mubr.f32.gmra.mrb[0].mxu0 %v4752
      %v4901 = vpop.f32.mrb[0].mxu0
      %v4902 = vadd.f32 %v4789, %v4901
      %v4903 = vpop.f32.mrb[0].mxu0
      %4904 = vmatprep.mubr.f32.mxu0 %v4807
      %4905 = vmatmul.mubr.f32.gmra.mrb[0].mxu0 %v4754
      %v4906 = vpop.f32.mrb[0].mxu0
      %v4907 = vadd.f32 %v4789, %v4906
      %v4908 = vpop.f32.mrb[0].mxu0
      %4909 = vmatprep.mubr.f32.mxu0 %v4810
      %4910 = vmatmul.mubr.f32.gmra.mrb[0].mxu0 %v4756
      %v4911 = vpop.f32.mrb[0].mxu0
      %v4912 = vadd.f32 %v4789, %v4911
      %v4913 = vpop.f32.mrb[0].mxu0
      %4914 = vmatprep.mubr.f32.mxu0 %v4813
      %4915 = vmatmul.mubr.f32.gmra.mrb[0].mxu0 %v4758
      %v4916 = vpop.f32.mrb[0].mxu0
      %v4917 = vadd.f32 %v4789, %v4916
      %v4918 = vpop.f32.mrb[0].mxu0
      %4919 = vdwg.mxu0
      %4921 = vrot.lane.b32.xlu0 %v3843, 64
      %v4922 = vpop.permute.xlu0 %4921
      %v4924 = vmul.f32 %v4882, %v4922
      %v4925 = vmul.f32 %v4887, %v4922
      %v4926 = vmul.f32 %v4892, %v4922
      %v4927 = vmul.f32 %v4897, %v4922
      %v4928 = vmul.f32 %v4902, %v4922
      %v4929 = vmul.f32 %v4907, %v4922
      %v4930 = vmul.f32 %v4912, %v4922
      %v4931 = vmul.f32 %v4917, %v4922
      %4932 = vrot.lane.b32.xlu0 %v3851, 48
      %v4933 = vpop.permute.xlu0 %4932
      %v4935 = vadd.f32 %v4924, %v4933
      %v4936 = vadd.f32 %v4925, %v4933
      %v4937 = vadd.f32 %v4926, %v4933
      %v4938 = vadd.f32 %v4927, %v4933
      %v4939 = vadd.f32 %v4928, %v4933
      %v4940 = vadd.f32 %v4929, %v4933
      %v4941 = vadd.f32 %v4930, %v4933
      %v4942 = vadd.f32 %v4931, %v4933
      %v4943 = vxor.u32 %v4935, 2147483648
      %v4944 = vxor.u32 %v4936, 2147483648
      %v4945 = vxor.u32 %v4937, 2147483648
      %v4946 = vxor.u32 %v4938, 2147483648
      %v4947 = vxor.u32 %v4939, 2147483648
      %v4948 = vxor.u32 %v4940, 2147483648
      %v4949 = vxor.u32 %v4941, 2147483648
      %v4950 = vxor.u32 %v4942, 2147483648
      %v4951 = vmul.f32 %v4943, 1.442695
      %v4952 = vpow.pop %v4951
      %v4953 = vmul.f32 %v4944, 1.442695
      %v4954 = vpow.pop %v4953
      %v4955 = vmul.f32 %v4945, 1.442695
      %v4956 = vpow.pop %v4955
      %v4957 = vmul.f32 %v4946, 1.442695
      %v4958 = vpow.pop %v4957
      %v4959 = vmul.f32 %v4947, 1.442695
      %v4960 = vpow.pop %v4959
      %v4961 = vmul.f32 %v4948, 1.442695
      %v4962 = vpow.pop %v4961
      %v4963 = vmul.f32 %v4949, 1.442695
      %v4964 = vpow.pop %v4963
      %v4965 = vmul.f32 %v4950, 1.442695
      %v4966 = vpow.pop %v4965
      %v4967 = vadd.f32 %v4952, 1.0
      %v4968 = vadd.f32 %v4954, 1.0
      %v4969 = vadd.f32 %v4956, 1.0
      %v4970 = vadd.f32 %v4958, 1.0
      %v4971 = vadd.f32 %v4960, 1.0
      %v4972 = vadd.f32 %v4962, 1.0
      %v4973 = vadd.f32 %v4964, 1.0
      %v4974 = vadd.f32 %v4966, 1.0
      %v4975 = vrcp.pop %v4967
      %v4976 = vmul.f32 1.0, %v4975
      %v4977 = vrcp.pop %v4968
      %v4978 = vmul.f32 1.0, %v4977
      %v4979 = vrcp.pop %v4969
      %v4980 = vmul.f32 1.0, %v4979
      %v4981 = vrcp.pop %v4970
      %v4982 = vmul.f32 1.0, %v4981
      %v4983 = vrcp.pop %v4971
      %v4984 = vmul.f32 1.0, %v4983
      %v4985 = vrcp.pop %v4972
      %v4986 = vmul.f32 1.0, %v4985
      %v4987 = vrcp.pop %v4973
      %v4988 = vmul.f32 1.0, %v4987
      %v4989 = vrcp.pop %v4974
      %v4990 = vmul.f32 1.0, %v4989
      %v4991 = vmul.f32 %v4935, %v4976
      %v4992 = vmul.f32 %v4936, %v4978
      %v4993 = vmul.f32 %v4937, %v4980
      %v4994 = vmul.f32 %v4938, %v4982
      %v4995 = vmul.f32 %v4939, %v4984
      %v4996 = vmul.f32 %v4940, %v4986
      %v4997 = vmul.f32 %v4941, %v4988
      %v4998 = vmul.f32 %v4942, %v4990
      %4999 = vst.msk [vmem:[#allocation2] sm:$0x1] %vm2518, 0.0
      %5000 = vst.msk [vmem:[#allocation2 + $0x41] sm:$0x1] %vm2518, 0.0
      %5001 = vst.msk [vmem:[#allocation2 + $0x1] sm:$0xff] %vm1480, %v4991
      %5002 = vst.msk [vmem:[#allocation2 + $0x9] sm:$0xff] %vm1480, %v4992
      %5003 = vst.msk [vmem:[#allocation2 + $0x11] sm:$0xff] %vm1480, %v4993
      %5004 = vst.msk [vmem:[#allocation2 + $0x19] sm:$0xff] %vm1480, %v4994
      %5005 = vst.msk [vmem:[#allocation2 + $0x21] sm:$0xff] %vm1480, %v4995
      %5006 = vst.msk [vmem:[#allocation2 + $0x29] sm:$0xff] %vm1480, %v4996
      %5007 = vst.msk [vmem:[#allocation2 + $0x31] sm:$0xff] %vm1480, %v4997
      %5008 = vst.msk [vmem:[#allocation2 + $0x39] sm:$0xff] %vm1480, %v4998
      %v5009 = vld [vmem:[#allocation2] sm:$0xff]
      %v5010 = vld [vmem:[#allocation2 + $0x8] sm:$0xff]
      %v5011 = vld [vmem:[#allocation2 + $0x10] sm:$0xff]
      %v5012 = vld [vmem:[#allocation2 + $0x18] sm:$0xff]
      %v5013 = vld [vmem:[#allocation2 + $0x20] sm:$0xff]
      %v5014 = vld [vmem:[#allocation2 + $0x28] sm:$0xff]
      %v5015 = vld [vmem:[#allocation2 + $0x30] sm:$0xff]
      %v5016 = vld [vmem:[#allocation2 + $0x38] sm:$0xff]
      %5017 = vst.msk [vmem:[#allocation3] sm:$0xff] %vm1480, %v5009
      %5018 = vst.msk [vmem:[#allocation3 + $0x10] sm:$0xff] %vm1480, %v5010
      %5019 = vst.msk [vmem:[#allocation3 + $0x20] sm:$0xff] %vm1480, %v5011
      %5020 = vst.msk [vmem:[#allocation3 + $0x30] sm:$0xff] %vm1480, %v5012
      %5021 = vst.msk [vmem:[#allocation3 + $0x40] sm:$0xff] %vm1480, %v5013
      %5022 = vst.msk [vmem:[#allocation3 + $0x50] sm:$0xff] %vm1480, %v5014
      %5023 = vst.msk [vmem:[#allocation3 + $0x60] sm:$0xff] %vm1480, %v5015
      %5024 = vst.msk [vmem:[#allocation3 + $0x70] sm:$0xff] %vm1480, %v5016
      %v5025 = vld [vmem:[#allocation2 + $0x1] sm:$0xff]
      %v5026 = vld [vmem:[#allocation2 + $0x9] sm:$0xff]
      %v5027 = vld [vmem:[#allocation2 + $0x11] sm:$0xff]
      %v5028 = vld [vmem:[#allocation2 + $0x19] sm:$0xff]
      %v5029 = vld [vmem:[#allocation2 + $0x21] sm:$0xff]
      %v5030 = vld [vmem:[#allocation2 + $0x29] sm:$0xff]
      %v5031 = vld [vmem:[#allocation2 + $0x31] sm:$0xff]
      %v5032 = vld [vmem:[#allocation2 + $0x39] sm:$0xff]
      %5041 = vrot.lane.b32.xlu0 %v5025, 16
      %v5042 = vpop.permute.xlu0 %5041
      %5043 = vrot.lane.b32.xlu0 %v5026, 16
      %v5044 = vpop.permute.xlu0 %5043
      %5045 = vrot.lane.b32.xlu0 %v5027, 16
      %v5046 = vpop.permute.xlu0 %5045
      %5047 = vrot.lane.b32.xlu0 %v5028, 16
      %v5048 = vpop.permute.xlu0 %5047
      %5049 = vrot.lane.b32.xlu0 %v5029, 16
      %v5050 = vpop.permute.xlu0 %5049
      %5051 = vrot.lane.b32.xlu0 %v5030, 16
      %v5052 = vpop.permute.xlu0 %5051
      %5053 = vrot.lane.b32.xlu0 %v5031, 16
      %v5054 = vpop.permute.xlu0 %5053
      %5055 = vrot.lane.b32.xlu0 %v5032, 16
      %v5056 = vpop.permute.xlu0 %5055
      %5065 = vst.msk [vmem:[#allocation3] sm:$0xff] %vm2553, %v5042
      %5066 = vst.msk [vmem:[#allocation3 + $0x10] sm:$0xff] %vm2553, %v5044
      %5067 = vst.msk [vmem:[#allocation3 + $0x20] sm:$0xff] %vm2553, %v5046
      %5068 = vst.msk [vmem:[#allocation3 + $0x30] sm:$0xff] %vm2553, %v5048
      %5069 = vst.msk [vmem:[#allocation3 + $0x40] sm:$0xff] %vm2553, %v5050
      %5070 = vst.msk [vmem:[#allocation3 + $0x50] sm:$0xff] %vm2553, %v5052
      %5071 = vst.msk [vmem:[#allocation3 + $0x60] sm:$0xff] %vm2553, %v5054
      %5072 = vst.msk [vmem:[#allocation3 + $0x70] sm:$0xff] %vm2553, %v5056
      %v5073 = vld [vmem:[#allocation2 + $0x2] sm:$0xff]
      %v5074 = vld [vmem:[#allocation2 + $0xa] sm:$0xff]
      %v5075 = vld [vmem:[#allocation2 + $0x12] sm:$0xff]
      %v5076 = vld [vmem:[#allocation2 + $0x1a] sm:$0xff]
      %v5077 = vld [vmem:[#allocation2 + $0x22] sm:$0xff]
      %v5078 = vld [vmem:[#allocation2 + $0x2a] sm:$0xff]
      %v5079 = vld [vmem:[#allocation2 + $0x32] sm:$0xff]
      %v5080 = vld [vmem:[#allocation2 + $0x3a] sm:$0xff]
      %5089 = vrot.lane.b32.xlu0 %v5073, 32
      %v5090 = vpop.permute.xlu0 %5089
      %5091 = vrot.lane.b32.xlu0 %v5074, 32
      %v5092 = vpop.permute.xlu0 %5091
      %5093 = vrot.lane.b32.xlu0 %v5075, 32
      %v5094 = vpop.permute.xlu0 %5093
      %5095 = vrot.lane.b32.xlu0 %v5076, 32
      %v5096 = vpop.permute.xlu0 %5095
      %5097 = vrot.lane.b32.xlu0 %v5077, 32
      %v5098 = vpop.permute.xlu0 %5097
      %5099 = vrot.lane.b32.xlu0 %v5078, 32
      %v5100 = vpop.permute.xlu0 %5099
      %5101 = vrot.lane.b32.xlu0 %v5079, 32
      %v5102 = vpop.permute.xlu0 %5101
      %5103 = vrot.lane.b32.xlu0 %v5080, 32
      %v5104 = vpop.permute.xlu0 %5103
      %5113 = vst.msk [vmem:[#allocation3] sm:$0xff] %vm2578, %v5090
      %5114 = vst.msk [vmem:[#allocation3 + $0x10] sm:$0xff] %vm2578, %v5092
      %5115 = vst.msk [vmem:[#allocation3 + $0x20] sm:$0xff] %vm2578, %v5094
      %5116 = vst.msk [vmem:[#allocation3 + $0x30] sm:$0xff] %vm2578, %v5096
      %5117 = vst.msk [vmem:[#allocation3 + $0x40] sm:$0xff] %vm2578, %v5098
      %5118 = vst.msk [vmem:[#allocation3 + $0x50] sm:$0xff] %vm2578, %v5100
      %5119 = vst.msk [vmem:[#allocation3 + $0x60] sm:$0xff] %vm2578, %v5102
      %5120 = vst.msk [vmem:[#allocation3 + $0x70] sm:$0xff] %vm2578, %v5104
      %v5121 = vld [vmem:[#allocation3] sm:$0xff]
      %v5122 = vld [vmem:[#allocation3 + $0x10] sm:$0xff]
      %v5123 = vld [vmem:[#allocation3 + $0x20] sm:$0xff]
      %v5124 = vld [vmem:[#allocation3 + $0x30] sm:$0xff]
      %v5125 = vld [vmem:[#allocation3 + $0x40] sm:$0xff]
      %v5126 = vld [vmem:[#allocation3 + $0x50] sm:$0xff]
      %v5127 = vld [vmem:[#allocation3 + $0x60] sm:$0xff]
      %v5128 = vld [vmem:[#allocation3 + $0x70] sm:$0xff]
      %v5129 = vld [vmem:[%s73] sm:$0xff]
      %v5130 = vld [vmem:[%s73 + $0x8] sm:$0xff]
      %v5131 = vld [vmem:[%s73 + $0x10] sm:$0xff]
      %v5132 = vld [vmem:[%s73 + $0x18] sm:$0xff]
      %v5133 = vld [vmem:[%s73 + $0x20] sm:$0xff]
      %v5134 = vld [vmem:[%s73 + $0x28] sm:$0xff]
      %v5135 = vld [vmem:[%s75] sm:$0x1]
      %v5137 = vlaneseq
      %v5138 = vshrl.u32 %v5137, 7
      %v5139 = vsub.s32 0, %v5138
      %v5140 = vrot.slane %v5135, %v5139
      %v5143 = vsel %vm2600, %v5121, 0
      %v5146 = vsel %vm2600, %v5122, 0
      %v5149 = vsel %vm2600, %v5123, 0
      %v5152 = vsel %vm2600, %v5124, 0
      %v5155 = vsel %vm2600, %v5125, 0
      %v5158 = vsel %vm2600, %v5126, 0
      %v5161 = vsel %vm2600, %v5127, 0
      %v5164 = vsel %vm2600, %v5128, 0
      %5166 = vmatprep.subr.mxu0 0.0
      %5167 = vmatpush1.msra.mxu0 %v5129
      %5168 = vmatprep.subr.mxu0 0.0
      %5169 = vmatpush1.msra.mxu0 %v5130
      %5170 = vmatprep.subr.mxu0 0.0
      %5171 = vmatpush1.msra.mxu0 %v5131
      %5172 = vmatprep.subr.mxu0 0.0
      %5173 = vmatpush1.msra.mxu0 %v5132
      %5174 = vmatprep.subr.mxu0 0.0
      %5175 = vmatpush1.msra.mxu0 %v5133
      %5176 = vmatprep.subr.mxu0 0.0
      %5177 = vmatpush1.msra.mxu0 %v5134
      %5178 = vmatprep.subr.mxu0 0.0
      %5179 = vmatpush1.msra.mxu0 0.0
      %5180 = vmatprep.subr.mxu0 0.0
      %5181 = vmatpush1.msra.mxu0 0.0
      %5182 = vmatprep.subr.mxu0 0.0
      %5183 = vmatpush1.msra.mxu0 0.0
      %5184 = vmatprep.subr.mxu0 0.0
      %5185 = vmatpush1.msra.mxu0 0.0
      %5186 = vmatprep.subr.mxu0 0.0
      %5187 = vmatpush1.msra.mxu0 0.0
      %5188 = vmatprep.subr.mxu0 0.0
      %5189 = vmatpush1.msra.mxu0 0.0
      %5190 = vmatprep.subr.mxu0 0.0
      %5191 = vmatpush1.msra.mxu0 0.0
      %5192 = vmatprep.subr.mxu0 0.0
      %5193 = vmatpush1.msra.mxu0 0.0
      %5194 = vmatprep.subr.mxu0 0.0
      %5195 = vmatpush1.msra.mxu0 0.0
      %5196 = vmatprep.subr.mxu0 0.0
      %5197 = vmatpush1.msra.mxu0 0.0
      %5198 = vmatprep.subr.mxu0 0.0
      %5199 = vmatpush1.msra.mxu0 0.0
      %5200 = vmatprep.subr.mxu0 0.0
      %5201 = vmatpush1.msra.mxu0 0.0
      %5202 = vmatprep.subr.mxu0 0.0
      %5203 = vmatpush1.msra.mxu0 0.0
      %5204 = vmatprep.subr.mxu0 0.0
      %5205 = vmatpush1.msra.mxu0 0.0
      %5206 = vmatprep.subr.mxu0 0.0
      %5207 = vmatpush1.msra.mxu0 0.0
      %5208 = vmatprep.subr.mxu0 0.0
      %5209 = vmatpush1.msra.mxu0 0.0
      %5210 = vmatprep.subr.mxu0 0.0
      %5211 = vmatpush1.msra.mxu0 0.0
      %5212 = vmatprep.subr.mxu0 0.0
      %5213 = vmatpush1.msra.mxu0 0.0
      %5214 = vmatprep.subr.mxu0 0.0
      %5215 = vmatpush1.msra.mxu0 0.0
      %5216 = vmatprep.subr.mxu0 0.0
      %5217 = vmatpush1.msra.mxu0 0.0
      %5218 = vmatprep.subr.mxu0 0.0
      %5219 = vmatpush1.msra.mxu0 0.0
      %5220 = vmatprep.subr.mxu0 0.0
      %5221 = vmatpush1.msra.mxu0 0.0
      %5222 = vmatprep.subr.mxu0 0.0
      %5223 = vmatpush1.msra.mxu0 0.0
      %5224 = vmatprep.subr.mxu0 0.0
      %5225 = vmatpush1.msra.mxu0 0.0
      %5226 = vmatprep.subr.mxu0 0.0
      %5227 = vmatpush1.msra.mxu0 0.0
      %5228 = vmatprep.subr.mxu0 0.0
      %5229 = vmatpush1.msra.mxu0 0.0
      %5230 = vmatprep.mubr.f32.mxu0 0.0
      %5231 = vmatmul.mubr.f32.gmra.mrb[0].mxu0 %v5143
      %v5232 = vpop.f32.mrb[0].mxu0
      %v5233 = vadd.f32 %v5140, %v5232
      %v5234 = vpop.f32.mrb[0].mxu0
      %5235 = vmatprep.mubr.f32.mxu0 0.0
      %5236 = vmatmul.mubr.f32.gmra.mrb[0].mxu0 %v5146
      %v5237 = vpop.f32.mrb[0].mxu0
      %v5238 = vadd.f32 %v5140, %v5237
      %v5239 = vpop.f32.mrb[0].mxu0
      %5240 = vmatprep.mubr.f32.mxu0 0.0
      %5241 = vmatmul.mubr.f32.gmra.mrb[0].mxu0 %v5149
      %v5242 = vpop.f32.mrb[0].mxu0
      %v5243 = vadd.f32 %v5140, %v5242
      %v5244 = vpop.f32.mrb[0].mxu0
      %5245 = vmatprep.mubr.f32.mxu0 0.0
      %5246 = vmatmul.mubr.f32.gmra.mrb[0].mxu0 %v5152
      %v5247 = vpop.f32.mrb[0].mxu0
      %v5248 = vadd.f32 %v5140, %v5247
      %v5249 = vpop.f32.mrb[0].mxu0
      %5250 = vmatprep.mubr.f32.mxu0 0.0
      %5251 = vmatmul.mubr.f32.gmra.mrb[0].mxu0 %v5155
      %v5252 = vpop.f32.mrb[0].mxu0
      %v5253 = vadd.f32 %v5140, %v5252
      %v5254 = vpop.f32.mrb[0].mxu0
      %5255 = vmatprep.mubr.f32.mxu0 0.0
      %5256 = vmatmul.mubr.f32.gmra.mrb[0].mxu0 %v5158
      %v5257 = vpop.f32.mrb[0].mxu0
      %v5258 = vadd.f32 %v5140, %v5257
      %v5259 = vpop.f32.mrb[0].mxu0
      %5260 = vmatprep.mubr.f32.mxu0 0.0
      %5261 = vmatmul.mubr.f32.gmra.mrb[0].mxu0 %v5161
      %v5262 = vpop.f32.mrb[0].mxu0
      %v5263 = vadd.f32 %v5140, %v5262
      %v5264 = vpop.f32.mrb[0].mxu0
      %5265 = vmatprep.mubr.f32.mxu0 0.0
      %5266 = vmatmul.mubr.f32.gmra.mrb[0].mxu0 %v5164
      %v5267 = vpop.f32.mrb[0].mxu0
      %v5268 = vadd.f32 %v5140, %v5267
      %v5269 = vpop.f32.mrb[0].mxu0
      %5270 = vdwg.mxu0
      %v5271 = vadd.f32 %v5233, %v4614
      %v5272 = vadd.f32 %v5238, %v4615
      %v5273 = vadd.f32 %v5243, %v4616
      %v5274 = vadd.f32 %v5248, %v4617
      %v5275 = vadd.f32 %v5253, %v4618
      %v5276 = vadd.f32 %v5258, %v4619
      %v5277 = vadd.f32 %v5263, %v4620
      %v5278 = vadd.f32 %v5268, %v4621
      %5279 = vst.msk [vmem:[#allocation2] sm:$0x1] %vm2518, 0.0
      %5280 = vst.msk [vmem:[#allocation2 + $0x41] sm:$0x1] %vm2518, 0.0
      %5281 = vst.msk [vmem:[#allocation2 + $0x1] sm:$0xff] %vm1480, %v5271
      %5282 = vst.msk [vmem:[#allocation2 + $0x9] sm:$0xff] %vm1480, %v5272
      %5283 = vst.msk [vmem:[#allocation2 + $0x11] sm:$0xff] %vm1480, %v5273
      %5284 = vst.msk [vmem:[#allocation2 + $0x19] sm:$0xff] %vm1480, %v5274
      %5285 = vst.msk [vmem:[#allocation2 + $0x21] sm:$0xff] %vm1480, %v5275
      %5286 = vst.msk [vmem:[#allocation2 + $0x29] sm:$0xff] %vm1480, %v5276
      %5287 = vst.msk [vmem:[#allocation2 + $0x31] sm:$0xff] %vm1480, %v5277
      %5288 = vst.msk [vmem:[#allocation2 + $0x39] sm:$0xff] %vm1480, %v5278
      %v5289 = vld [vmem:[#allocation2] sm:$0xff]
      %v5290 = vld [vmem:[#allocation2 + $0x8] sm:$0xff]
      %v5291 = vld [vmem:[#allocation2 + $0x10] sm:$0xff]
      %v5292 = vld [vmem:[#allocation2 + $0x18] sm:$0xff]
      %v5293 = vld [vmem:[#allocation2 + $0x20] sm:$0xff]
      %v5294 = vld [vmem:[#allocation2 + $0x28] sm:$0xff]
      %v5295 = vld [vmem:[#allocation2 + $0x30] sm:$0xff]
      %v5296 = vld [vmem:[#allocation2 + $0x38] sm:$0xff]
      %5297 = vst.msk [vmem:[#allocation3] sm:$0xff] %vm1480, %v5289
      %5298 = vst.msk [vmem:[#allocation3 + $0x10] sm:$0xff] %vm1480, %v5290
      %5299 = vst.msk [vmem:[#allocation3 + $0x20] sm:$0xff] %vm1480, %v5291
      %5300 = vst.msk [vmem:[#allocation3 + $0x30] sm:$0xff] %vm1480, %v5292
      %5301 = vst.msk [vmem:[#allocation3 + $0x40] sm:$0xff] %vm1480, %v5293
      %5302 = vst.msk [vmem:[#allocation3 + $0x50] sm:$0xff] %vm1480, %v5294
      %5303 = vst.msk [vmem:[#allocation3 + $0x60] sm:$0xff] %vm1480, %v5295
      %5304 = vst.msk [vmem:[#allocation3 + $0x70] sm:$0xff] %vm1480, %v5296
      %v5305 = vld [vmem:[#allocation2 + $0x1] sm:$0xff]
      %v5306 = vld [vmem:[#allocation2 + $0x9] sm:$0xff]
      %v5307 = vld [vmem:[#allocation2 + $0x11] sm:$0xff]
      %v5308 = vld [vmem:[#allocation2 + $0x19] sm:$0xff]
      %v5309 = vld [vmem:[#allocation2 + $0x21] sm:$0xff]
      %v5310 = vld [vmem:[#allocation2 + $0x29] sm:$0xff]
      %v5311 = vld [vmem:[#allocation2 + $0x31] sm:$0xff]
      %v5312 = vld [vmem:[#allocation2 + $0x39] sm:$0xff]
      %5321 = vrot.lane.b32.xlu0 %v5305, 16
      %v5322 = vpop.permute.xlu0 %5321
      %5323 = vrot.lane.b32.xlu0 %v5306, 16
      %v5324 = vpop.permute.xlu0 %5323
      %5325 = vrot.lane.b32.xlu0 %v5307, 16
      %v5326 = vpop.permute.xlu0 %5325
      %5327 = vrot.lane.b32.xlu0 %v5308, 16
      %v5328 = vpop.permute.xlu0 %5327
      %5329 = vrot.lane.b32.xlu0 %v5309, 16
      %v5330 = vpop.permute.xlu0 %5329
      %5331 = vrot.lane.b32.xlu0 %v5310, 16
      %v5332 = vpop.permute.xlu0 %5331
      %5333 = vrot.lane.b32.xlu0 %v5311, 16
      %v5334 = vpop.permute.xlu0 %5333
      %5335 = vrot.lane.b32.xlu0 %v5312, 16
      %v5336 = vpop.permute.xlu0 %5335
      %5345 = vst.msk [vmem:[#allocation3] sm:$0xff] %vm2553, %v5322
      %5346 = vst.msk [vmem:[#allocation3 + $0x10] sm:$0xff] %vm2553, %v5324
      %5347 = vst.msk [vmem:[#allocation3 + $0x20] sm:$0xff] %vm2553, %v5326
      %5348 = vst.msk [vmem:[#allocation3 + $0x30] sm:$0xff] %vm2553, %v5328
      %5349 = vst.msk [vmem:[#allocation3 + $0x40] sm:$0xff] %vm2553, %v5330
      %5350 = vst.msk [vmem:[#allocation3 + $0x50] sm:$0xff] %vm2553, %v5332
      %5351 = vst.msk [vmem:[#allocation3 + $0x60] sm:$0xff] %vm2553, %v5334
      %5352 = vst.msk [vmem:[#allocation3 + $0x70] sm:$0xff] %vm2553, %v5336
      %v5353 = vld [vmem:[#allocation2 + $0x2] sm:$0xff]
      %v5354 = vld [vmem:[#allocation2 + $0xa] sm:$0xff]
      %v5355 = vld [vmem:[#allocation2 + $0x12] sm:$0xff]
      %v5356 = vld [vmem:[#allocation2 + $0x1a] sm:$0xff]
      %v5357 = vld [vmem:[#allocation2 + $0x22] sm:$0xff]
      %v5358 = vld [vmem:[#allocation2 + $0x2a] sm:$0xff]
      %v5359 = vld [vmem:[#allocation2 + $0x32] sm:$0xff]
      %v5360 = vld [vmem:[#allocation2 + $0x3a] sm:$0xff]
      %5369 = vrot.lane.b32.xlu0 %v5353, 32
      %v5370 = vpop.permute.xlu0 %5369
      %5371 = vrot.lane.b32.xlu0 %v5354, 32
      %v5372 = vpop.permute.xlu0 %5371
      %5373 = vrot.lane.b32.xlu0 %v5355, 32
      %v5374 = vpop.permute.xlu0 %5373
      %5375 = vrot.lane.b32.xlu0 %v5356, 32
      %v5376 = vpop.permute.xlu0 %5375
      %5377 = vrot.lane.b32.xlu0 %v5357, 32
      %v5378 = vpop.permute.xlu0 %5377
      %5379 = vrot.lane.b32.xlu0 %v5358, 32
      %v5380 = vpop.permute.xlu0 %5379
      %5381 = vrot.lane.b32.xlu0 %v5359, 32
      %v5382 = vpop.permute.xlu0 %5381
      %5383 = vrot.lane.b32.xlu0 %v5360, 32
      %v5384 = vpop.permute.xlu0 %5383
      %5393 = vst.msk [vmem:[#allocation3] sm:$0xff] %vm2578, %v5370
      %5394 = vst.msk [vmem:[#allocation3 + $0x10] sm:$0xff] %vm2578, %v5372
      %5395 = vst.msk [vmem:[#allocation3 + $0x20] sm:$0xff] %vm2578, %v5374
      %5396 = vst.msk [vmem:[#allocation3 + $0x30] sm:$0xff] %vm2578, %v5376
      %5397 = vst.msk [vmem:[#allocation3 + $0x40] sm:$0xff] %vm2578, %v5378
      %5398 = vst.msk [vmem:[#allocation3 + $0x50] sm:$0xff] %vm2578, %v5380
      %5399 = vst.msk [vmem:[#allocation3 + $0x60] sm:$0xff] %vm2578, %v5382
      %5400 = vst.msk [vmem:[#allocation3 + $0x70] sm:$0xff] %vm2578, %v5384
      %v5401 = vld [vmem:[#allocation3] sm:$0xff]
      %v5402 = vld [vmem:[#allocation3 + $0x10] sm:$0xff]
      %v5403 = vld [vmem:[#allocation3 + $0x20] sm:$0xff]
      %v5404 = vld [vmem:[#allocation3 + $0x30] sm:$0xff]
      %v5405 = vld [vmem:[#allocation3 + $0x40] sm:$0xff]
      %v5406 = vld [vmem:[#allocation3 + $0x50] sm:$0xff]
      %v5407 = vld [vmem:[#allocation3 + $0x60] sm:$0xff]
      %v5408 = vld [vmem:[#allocation3 + $0x70] sm:$0xff]
      %v5409 = vld [vmem:[%s81] sm:$0xff]
      %v5410 = vld [vmem:[%s81 + $0x8] sm:$0xff]
      %v5411 = vld [vmem:[%s81 + $0x10] sm:$0xff]
      %v5412 = vld [vmem:[%s81 + $0x18] sm:$0xff]
      %v5413 = vld [vmem:[%s81 + $0x20] sm:$0xff]
      %v5414 = vld [vmem:[%s81 + $0x28] sm:$0xff]
      %v5415 = vld [vmem:[#allocation4] sm:$0x1]
      %v5417 = vlaneseq
      %v5418 = vshrl.u32 %v5417, 7
      %v5419 = vsub.s32 0, %v5418
      %v5420 = vrot.slane %v5415, %v5419
      %v5423 = vsel %vm2600, %v5401, 0
      %v5426 = vsel %vm2600, %v5402, 0
      %v5429 = vsel %vm2600, %v5403, 0
      %v5432 = vsel %vm2600, %v5404, 0
      %v5435 = vsel %vm2600, %v5405, 0
      %v5438 = vsel %vm2600, %v5406, 0
      %v5441 = vsel %vm2600, %v5407, 0
      %v5444 = vsel %vm2600, %v5408, 0
      %5446 = vmatprep.subr.mxu0 0.0
      %5447 = vmatpush1.msra.mxu0 %v5409
      %5448 = vmatprep.subr.mxu0 0.0
      %5449 = vmatpush1.msra.mxu0 %v5410
      %5450 = vmatprep.subr.mxu0 0.0
      %5451 = vmatpush1.msra.mxu0 %v5411
      %5452 = vmatprep.subr.mxu0 0.0
      %5453 = vmatpush1.msra.mxu0 %v5412
      %5454 = vmatprep.subr.mxu0 0.0
      %5455 = vmatpush1.msra.mxu0 %v5413
      %5456 = vmatprep.subr.mxu0 0.0
      %5457 = vmatpush1.msra.mxu0 %v5414
      %5458 = vmatprep.subr.mxu0 0.0
      %5459 = vmatpush1.msra.mxu0 0.0
      %5460 = vmatprep.subr.mxu0 0.0
      %5461 = vmatpush1.msra.mxu0 0.0
      %5462 = vmatprep.subr.mxu0 0.0
      %5463 = vmatpush1.msra.mxu0 0.0
      %5464 = vmatprep.subr.mxu0 0.0
      %5465 = vmatpush1.msra.mxu0 0.0
      %5466 = vmatprep.subr.mxu0 0.0
      %5467 = vmatpush1.msra.mxu0 0.0
      %5468 = vmatprep.subr.mxu0 0.0
      %5469 = vmatpush1.msra.mxu0 0.0
      %5470 = vmatprep.subr.mxu0 0.0
      %5471 = vmatpush1.msra.mxu0 0.0
      %5472 = vmatprep.subr.mxu0 0.0
      %5473 = vmatpush1.msra.mxu0 0.0
      %5474 = vmatprep.subr.mxu0 0.0
      %5475 = vmatpush1.msra.mxu0 0.0
      %5476 = vmatprep.subr.mxu0 0.0
      %5477 = vmatpush1.msra.mxu0 0.0
      %5478 = vmatprep.subr.mxu0 0.0
      %5479 = vmatpush1.msra.mxu0 0.0
      %5480 = vmatprep.subr.mxu0 0.0
      %5481 = vmatpush1.msra.mxu0 0.0
      %5482 = vmatprep.subr.mxu0 0.0
      %5483 = vmatpush1.msra.mxu0 0.0
      %5484 = vmatprep.subr.mxu0 0.0
      %5485 = vmatpush1.msra.mxu0 0.0
      %5486 = vmatprep.subr.mxu0 0.0
      %5487 = vmatpush1.msra.mxu0 0.0
      %5488 = vmatprep.subr.mxu0 0.0
      %5489 = vmatpush1.msra.mxu0 0.0
      %5490 = vmatprep.subr.mxu0 0.0
      %5491 = vmatpush1.msra.mxu0 0.0
      %5492 = vmatprep.subr.mxu0 0.0
      %5493 = vmatpush1.msra.mxu0 0.0
      %5494 = vmatprep.subr.mxu0 0.0
      %5495 = vmatpush1.msra.mxu0 0.0
      %5496 = vmatprep.subr.mxu0 0.0
      %5497 = vmatpush1.msra.mxu0 0.0
      %5498 = vmatprep.subr.mxu0 0.0
      %5499 = vmatpush1.msra.mxu0 0.0
      %5500 = vmatprep.subr.mxu0 0.0
      %5501 = vmatpush1.msra.mxu0 0.0
      %5502 = vmatprep.subr.mxu0 0.0
      %5503 = vmatpush1.msra.mxu0 0.0
      %5504 = vmatprep.subr.mxu0 0.0
      %5505 = vmatpush1.msra.mxu0 0.0
      %5506 = vmatprep.subr.mxu0 0.0
      %5507 = vmatpush1.msra.mxu0 0.0
      %5508 = vmatprep.subr.mxu0 0.0
      %5509 = vmatpush1.msra.mxu0 0.0
      %5510 = vmatprep.mubr.f32.mxu0 0.0
      %5511 = vmatmul.mubr.f32.gmra.mrb[0].mxu0 %v5423
      %v5512 = vpop.f32.mrb[0].mxu0
      %v5513 = vadd.f32 %v5420, %v5512
      %v5514 = vpop.f32.mrb[0].mxu0
      %5515 = vmatprep.mubr.f32.mxu0 0.0
      %5516 = vmatmul.mubr.f32.gmra.mrb[0].mxu0 %v5426
      %v5517 = vpop.f32.mrb[0].mxu0
      %v5518 = vadd.f32 %v5420, %v5517
      %v5519 = vpop.f32.mrb[0].mxu0
      %5520 = vmatprep.mubr.f32.mxu0 0.0
      %5521 = vmatmul.mubr.f32.gmra.mrb[0].mxu0 %v5429
      %v5522 = vpop.f32.mrb[0].mxu0
      %v5523 = vadd.f32 %v5420, %v5522
      %v5524 = vpop.f32.mrb[0].mxu0
      %5525 = vmatprep.mubr.f32.mxu0 0.0
      %5526 = vmatmul.mubr.f32.gmra.mrb[0].mxu0 %v5432
      %v5527 = vpop.f32.mrb[0].mxu0
      %v5528 = vadd.f32 %v5420, %v5527
      %v5529 = vpop.f32.mrb[0].mxu0
      %5530 = vmatprep.mubr.f32.mxu0 0.0
      %5531 = vmatmul.mubr.f32.gmra.mrb[0].mxu0 %v5435
      %v5532 = vpop.f32.mrb[0].mxu0
      %v5533 = vadd.f32 %v5420, %v5532
      %v5534 = vpop.f32.mrb[0].mxu0
      %5535 = vmatprep.mubr.f32.mxu0 0.0
      %5536 = vmatmul.mubr.f32.gmra.mrb[0].mxu0 %v5438
      %v5537 = vpop.f32.mrb[0].mxu0
      %v5538 = vadd.f32 %v5420, %v5537
      %v5539 = vpop.f32.mrb[0].mxu0
      %5540 = vmatprep.mubr.f32.mxu0 0.0
      %5541 = vmatmul.mubr.f32.gmra.mrb[0].mxu0 %v5441
      %v5542 = vpop.f32.mrb[0].mxu0
      %v5543 = vadd.f32 %v5420, %v5542
      %v5544 = vpop.f32.mrb[0].mxu0
      %5545 = vmatprep.mubr.f32.mxu0 0.0
      %5546 = vmatmul.mubr.f32.gmra.mrb[0].mxu0 %v5444
      %v5547 = vpop.f32.mrb[0].mxu0
      %v5548 = vadd.f32 %v5420, %v5547
      %v5549 = vpop.f32.mrb[0].mxu0
      %5550 = vdwg.mxu0
      %5551 = vst.msk [vmem:[%s1310] sm:$0xff] %vm1909, %v5513
      %5552 = vst.msk [vmem:[%s1310 + $0x8] sm:$0xff] %vm1909, %v5518
      %5553 = vst.msk [vmem:[%s1310 + $0x10] sm:$0xff] %vm1909, %v5523
      %5554 = vst.msk [vmem:[%s1310 + $0x18] sm:$0xff] %vm1909, %v5528
      %5555 = vst.msk [vmem:[%s1310 + $0x20] sm:$0xff] %vm1909, %v5533
      %5556 = vst.msk [vmem:[%s1310 + $0x28] sm:$0xff] %vm1909, %v5538
      %5557 = vst.msk [vmem:[%s1310 + $0x30] sm:$0xff] %vm1909, %v5543
      %5558 = vst.msk [vmem:[%s1310 + $0x38] sm:$0xff] %vm1909, %v5548
      %p5559 = scmp.lt.s32.totalorder %s98, 1
      %s5560 = scalar_select %p5559, %s98, 1
      %s5561 = smul.addr %s5560, 8
      %s5562 = smul.addr %s5561, 8
      %s5563 = scalar_lea.vmem %s85, %s5562
      // Predicated region
      $region189: #{unet_forward.1} parent=187 // pred_check
        %p5564 = pneg %p1018
      $region190: #{unet_forward.1} parent=187 // pred_check_branch
        %5566 = sbr.rel (%p5564) target = $region192
      $region191: #{unet_forward.1} parent=187 // pred_region
        _
      $region192: #{unet_forward.1} parent=187 // pred_fallthru
        _
    $region188: #{unet_forward.1} parent=5 // pred_fallthru
      _
    %p5567 = scmp.le.s32.totalorder 2, %s93
    // Predicated region
    $region193: #{unet_forward.1} parent=5 // pred_check
      %p5568 = pneg %p5567
    $region194: #{unet_forward.1} parent=5 // pred_check_branch
      %5570 = sbr.rel (%p5568) target = $region196
    $region195: #{unet_forward.1} parent=5 // pred_region
      %s5571 = ssub.s32 %s93, 2
      // Predicated region
      $region197: #{unet_forward.1} parent=195 // pred_check
        %p5572 = pneg %p1024
      $region198: #{unet_forward.1} parent=195 // pred_check_branch
        %5574 = sbr.rel (%p5572) target = $region200
      $region199: #{unet_forward.1} parent=195 // pred_region
        %p5575 = scmp.lt.s32.totalorder %s99, 1
        %s5576 = scalar_select %p5575, %s99, 1
        %s5577 = smul.addr %s5576, 8
        %s5578 = smul.addr %s5577, 8
        %s5579 = scalar_lea.vmem %s85, %s5578
      $region200: #{unet_forward.1} parent=195 // pred_fallthru
        _
    $region196: #{unet_forward.1} parent=5 // pred_fallthru
      _
  $region6: #{unet_forward.1} parent=0 // loop_footer
    %s97 = sadd.s32 1, %s93
  $region7: #{unet_forward.1} parent=0 // loop_footer_branch
    %92 = sbr.rel target = $region3
  $region8: #{unet_forward.1} parent=0 // loop_exit
    _

</llo_original>
